<compile_context>
chip_gen: v6e
topology: v6e:2x2x1
jax: 0.10.0
libtpu: 0.0.40
codegen_flags: <defaults>
</compile_context>

<pallas_src>
import functools
import math

import jax
import jax.numpy as jnp
from jax.experimental import pallas as pl
from jax.experimental.pallas import tpu as pltpu

_OUT_LANES = 256   # lane-dense packed head output: [0:6]=orientation, [6:132]=joints
_LN_EPS = 1e-5     # PyTorch nn.LayerNorm default


# -----------------------------------------------------------------------------
# Fused Pallas kernel: whole AvatarPoser forward for one block of TB sequences
# -----------------------------------------------------------------------------
def _fused_forward_kernel(
        x_ref, emb_w, emb_b,
        in_w, in_b, out_w, out_b,
        ff_w1, ff_b1, ff_w2, ff_b2,
        ln1_g, ln1_b, ln2_g, ln2_b,
        head_w1, head_b1, head_w2, head_b2,
        out_ref, *, nhead, eps):
    TB, S, Dp = x_ref.shape
    E = emb_w.shape[1]
    L = in_w.shape[0]
    H = nhead
    Dh = E // H
    M = TB * S
    scale = 1.0 / math.sqrt(Dh)

    def mm(a, w, b):
        # bf16 x bf16 on the MXU with f32 accumulation; bias added in f32.
        return jnp.dot(a.astype(w.dtype), w,
                       preferred_element_type=jnp.float32) + b

    def layernorm(t, g, b):
        mu = jnp.mean(t, axis=-1, keepdims=True)
        tc = t - mu
        var = jnp.mean(tc * tc, axis=-1, keepdims=True)
        return tc * jax.lax.rsqrt(var + eps) * g + b

    # linear_embedding on the whole (TB*S, Dp) slab.
    h = mm(x_ref[...].reshape(M, Dp), emb_w[...], emb_b[...])            # (M, E) f32

    for li in range(L):
        # ---- multi-head self attention (batched over TB per head) ----------
        qkv = mm(h, in_w[li], in_b[li])                                  # (M, 3E)
        q = (qkv[:, :E] * scale).reshape(TB, S, E)    # fold 1/sqrt(Dh) into q
        k = qkv[:, E:2 * E].reshape(TB, S, E)
        v = qkv[:, 2 * E:].reshape(TB, S, E)

        ctxs = []
        for hd in range(H):        # small static loop; attention is noise vs FF
            sl = slice(hd * Dh, (hd + 1) * Dh)
            qh, kh, vh = q[:, :, sl], k[:, :, sl], v[:, :, sl]           # (TB, S, Dh)
            s = jnp.einsum('bqd,bkd->bqk', qh, kh,
                           preferred_element_type=jnp.float32)           # (TB, S, S)
            s = s - jnp.max(s, axis=-1, keepdims=True)
            p = jnp.exp(s)
            p = p / jnp.sum(p, axis=-1, keepdims=True)                   # exact softmax
            ctxs.append(jnp.einsum('bqk,bkd->bqd', p, vh,
                                   preferred_element_type=jnp.float32))  # (TB, S, Dh)
        ctx = jnp.concatenate(ctxs, axis=-1).reshape(M, E)               # (M, E)
        attn = mm(ctx, out_w[li], out_b[li])                             # (M, E)
        h = layernorm(h + attn, ln1_g[li], ln1_b[li])

        # ---- feed forward: the (M, F) hidden never leaves VMEM -------------
        ff = jnp.maximum(mm(h, ff_w1[li], ff_b1[li]), 0.0)               # (M, F)
        ff = mm(ff, ff_w2[li], ff_b2[li])                                # (M, E)
        h = layernorm(h + ff, ln2_g[li], ln2_b[li])

    # last time step of every batch element in this block: (TB, E)
    x_last = h.reshape(TB, S, E)[:, S - 1:S, :].reshape(TB, E)

    # fused stabilizer + joint_rotation_decoder heads for all TB rows at once.
    hidden = jnp.maximum(mm(x_last, head_w1[...], head_b1[...]), 0.0)    # (TB, 512)
    out_row = mm(hidden, head_w2[...], head_b2[...])                     # (TB, 256)
    out_ref[...] = out_row.reshape(TB, 1, _OUT_LANES)


# -----------------------------------------------------------------------------
# Parameter packing: bf16 weights, per-layer stacking, fused head packing
# -----------------------------------------------------------------------------
def _pack_params(params, d_in, d_pad):
    f32, bf16 = jnp.float32, jnp.bfloat16
    layers = params["layers"]

    def row(v):
        return jnp.asarray(v, f32).reshape(1, -1)

    def stack_w(name):                      # (L, fan_in, fan_out) bf16
        return jnp.stack([lp[name] for lp in layers]).astype(bf16)

    def stack_b(name):                      # (L, 1, dim) f32
        return jnp.stack([row(lp[name]) for lp in layers])

    emb_w = jnp.pad(params["emb_w"], ((0, d_pad - d_in), (0, 0))).astype(bf16)
    emb_b = row(params["emb_b"])

    in_w, in_b = stack_w("in_proj_w"), stack_b("in_proj_b")
    out_w, out_b = stack_w("out_proj_w"), stack_b("out_proj_b")
    ff_w1, ff_b1 = stack_w("ff_w1"), stack_b("ff_b1")
    ff_w2, ff_b2 = stack_w("ff_w2"), stack_b("ff_b2")
    ln1_g, ln1_b = stack_b("ln1_g"), stack_b("ln1_b")
    ln2_g, ln2_b = stack_b("ln2_g"), stack_b("ln2_b")

    # Pack stabilizer + joint_rotation_decoder into one lane-dense head:
    #   hidden = relu(x @ [stab_w1 | jrd_w1] + [stab_b1 | jrd_b1])   (TB, 512)
    #   out    = hidden @ W2 + b2  with block-structured W2 so that
    #   out[:, 0:6] == stabilizer(x), out[:, 6:132] == joint_rotation_decoder(x)
    head_w1 = jnp.concatenate([params["stab_w1"], params["jrd_w1"]], axis=1)
    head_b1 = jnp.concatenate([params["stab_b1"], params["jrd_b1"]])
    h1 = params["stab_w1"].shape[1]          # 256
    n_go = params["stab_w2"].shape[1]        # 6
    n_jr = params["jrd_w2"].shape[1]         # 126
    head_w2 = jnp.zeros((head_w1.shape[1], _OUT_LANES), f32)
    head_w2 = head_w2.at[:h1, :n_go].set(params["stab_w2"])
    head_w2 = head_w2.at[h1:, n_go:n_go + n_jr].set(params["jrd_w2"])
    head_b2 = jnp.zeros((_OUT_LANES,), f32)
    head_b2 = head_b2.at[:n_go].set(params["stab_b2"])
    head_b2 = head_b2.at[n_go:n_go + n_jr].set(params["jrd_b2"])

    weights = [emb_w, emb_b,
               in_w, in_b, out_w, out_b,
               ff_w1, ff_b1, ff_w2, ff_b2,
               ln1_g, ln1_b, ln2_g, ln2_b,
               head_w1.astype(bf16), row(head_b1),
               head_w2.astype(bf16), row(head_b2)]
    return weights, n_go, n_jr


# -----------------------------------------------------------------------------
# Forward wrapper
# -----------------------------------------------------------------------------
def avatar_poser_forward(params, input_tensor, *, nhead, batch_block=None):
    """AvatarPoser.forward(input_tensor, do_fk=False).

    input_tensor: (batch, seq, input_dim)
    returns: (global_orientation (B, 6), joint_rotation (B, 126))
    """
    B, S, D_in = input_tensor.shape
    num_layer = len(params["layers"])
    E = params["emb_w"].shape[1]
    F = params["layers"][0]["ff_w1"].shape[1]

    # Batch tile: target TB*S ~ 128 MXU rows per grid step (raise on v6e).
    if batch_block is None:
        batch_block = max(1, 128 // max(S, 1))
    tb = min(batch_block, B)
    b_pad = ((B + tb - 1) // tb) * tb
    d_pad = ((D_in + 127) // 128) * 128       # lane-align the embedding K dim

    x = jnp.pad(input_tensor.astype(jnp.float32),
                ((0, b_pad - B), (0, 0), (0, d_pad - D_in)))

    weights, n_go, n_jr = _pack_params(params, D_in, d_pad)

    def _const_spec(arr):                     # index-invariant full-array block
        zeros = (0,) * arr.ndim
        return pl.BlockSpec(arr.shape, lambda b, _z=zeros: _z)

    in_specs = [pl.BlockSpec((tb, S, d_pad), lambda b: (b, 0, 0))]
    in_specs += [_const_spec(w) for w in weights]

    weight_bytes = sum(int(w.size) * w.dtype.itemsize for w in weights)
    flops = (2 * b_pad * S * (d_pad * E
             + num_layer * (3 * E * E + E * E + 2 * E * F + 2 * S * E))
             + 2 * b_pad * (E * 512 + 512 * _OUT_LANES))
    cost = pl.CostEstimate(
        flops=int(flops),
        transcendentals=int(b_pad * num_layer * nhead * S * S),
        bytes_accessed=int(weight_bytes + x.size * 4 + b_pad * _OUT_LANES * 4))

    out = pl.pallas_call(
        functools.partial(_fused_forward_kernel, nhead=nhead, eps=_LN_EPS),
        out_shape=jax.ShapeDtypeStruct((b_pad, 1, _OUT_LANES), jnp.float32),
        grid=(b_pad // tb,),
        in_specs=in_specs,
        out_specs=pl.BlockSpec((tb, 1, _OUT_LANES), lambda b: (b, 0, 0)),
        compiler_params=pltpu.CompilerParams(
            dimension_semantics=("parallel",),
            # bf16 weight slabs + the (TB*S, F) f32 FF hidden stay well below
            # this; leaves headroom on v7x's 64 MiB VMEM.
            vmem_limit_bytes=32 * 1024 * 1024),
        cost_estimate=cost,
    )(x, *weights)

    out = out[:B, 0, :]
    global_orientation = out[:, :n_go]
    joint_rotation = out[:, n_go:n_go + n_jr]
    # TODO(synk): do_fk=True branch (SMPL body_model forward kinematics + IK)
    # requires external body-model assets and is not representable here.
    return global_orientation, joint_rotation


# -----------------------------------------------------------------------------
# Parameter initialization (deterministic, synthetic, mirrors the PyTorch module)
# -----------------------------------------------------------------------------
def _dense(key, fan_in, fan_out):
    kw, kb = jax.random.split(key)
    limit = 1.0 / math.sqrt(fan_in)
    w = jax.random.uniform(kw, (fan_in, fan_out), jnp.float32, -limit, limit)
    b = jax.random.uniform(kb, (fan_out,), jnp.float32, -limit, limit)
    return w, b


def init_avatar_poser_params(key, input_dim, embed_dim, num_layer, ff_dim):
    keys = jax.random.split(key, 5 + num_layer)
    params = {}
    params["emb_w"], params["emb_b"] = _dense(keys[0], input_dim, embed_dim)

    layers = []
    for li in range(num_layer):
        k = jax.random.split(keys[1 + li], 4)
        lp = {}
        lp["in_proj_w"], lp["in_proj_b"] = _dense(k[0], embed_dim, 3 * embed_dim)
        lp["out_proj_w"], lp["out_proj_b"] = _dense(k[1], embed_dim, embed_dim)
        lp["ff_w1"], lp["ff_b1"] = _dense(k[2], embed_dim, ff_dim)
        lp["ff_w2"], lp["ff_b2"] = _dense(k[3], ff_dim, embed_dim)
        lp["ln1_g"] = jnp.ones((embed_dim,), jnp.float32)
        lp["ln1_b"] = jnp.zeros((embed_dim,), jnp.float32)
        lp["ln2_g"] = jnp.ones((embed_dim,), jnp.float32)
        lp["ln2_b"] = jnp.zeros((embed_dim,), jnp.float32)
        layers.append(lp)
    params["layers"] = layers

    params["stab_w1"], params["stab_b1"] = _dense(keys[1 + num_layer], embed_dim, 256)
    params["stab_w2"], params["stab_b2"] = _dense(keys[2 + num_layer], 256, 6)
    params["jrd_w1"], params["jrd_b1"] = _dense(keys[3 + num_layer], embed_dim, 256)
    params["jrd_w2"], params["jrd_b2"] = _dense(keys[4 + num_layer], 256, 126)
    return params


# -----------------------------------------------------------------------------
# Main
# -----------------------------------------------------------------------------
if __name__ == "__main__":
    batch = 2
    seq = 8
    input_dim = 36
    embed_dim = 32
    nhead = 4
    num_layer = 2
    ff_dim = 2048   # PyTorch nn.TransformerEncoderLayer default dim_feedforward

    key = jax.random.PRNGKey(0)
    k_params, k_input = jax.random.split(key)

    params = init_avatar_poser_params(k_params, input_dim, embed_dim, num_layer, ff_dim)
    input_tensor = jax.random.normal(k_input, (batch, seq, input_dim), jnp.float32)

    fwd = jax.jit(functools.partial(avatar_poser_forward, nhead=nhead))
    global_orientation, joint_rotation = fwd(params, input_tensor)
    jax.block_until_ready((global_orientation, joint_rotation))

    assert global_orientation.shape == (batch, 6)
    assert joint_rotation.shape == (batch, 126)
    assert bool(jnp.all(jnp.isfinite(global_orientation)))
    assert bool(jnp.all(jnp.isfinite(joint_rotation)))
    print("KERNEL_OK")
</pallas_src>

<mosaic_0001>
module attributes {stable_mosaic.version = 11 : i64} {
  func.func @_fused_forward_kernel(%arg0: i32, %arg1: memref<2x8x128xf32, #tpu.memory_space<vmem>>, %arg2: memref<128x32xbf16, #tpu.memory_space<vmem>>, %arg3: memref<1x32xf32, #tpu.memory_space<vmem>>, %arg4: memref<2x32x96xbf16, #tpu.memory_space<vmem>>, %arg5: memref<2x1x96xf32, #tpu.memory_space<vmem>>, %arg6: memref<2x32x32xbf16, #tpu.memory_space<vmem>>, %arg7: memref<2x1x32xf32, #tpu.memory_space<vmem>>, %arg8: memref<2x32x2048xbf16, #tpu.memory_space<vmem>>, %arg9: memref<2x1x2048xf32, #tpu.memory_space<vmem>>, %arg10: memref<2x2048x32xbf16, #tpu.memory_space<vmem>>, %arg11: memref<2x1x32xf32, #tpu.memory_space<vmem>>, %arg12: memref<2x1x32xf32, #tpu.memory_space<vmem>>, %arg13: memref<2x1x32xf32, #tpu.memory_space<vmem>>, %arg14: memref<2x1x32xf32, #tpu.memory_space<vmem>>, %arg15: memref<2x1x32xf32, #tpu.memory_space<vmem>>, %arg16: memref<32x512xbf16, #tpu.memory_space<vmem>>, %arg17: memref<1x512xf32, #tpu.memory_space<vmem>>, %arg18: memref<512x256xbf16, #tpu.memory_space<vmem>>, %arg19: memref<1x256xf32, #tpu.memory_space<vmem>>, %arg20: memref<2x1x256xf32, #tpu.memory_space<vmem>>) attributes {dimension_semantics = [#tpu.dimension_semantics<parallel>], iteration_bounds = array<i64: 1>, scalar_prefetch = 0 : i64, scratch_operands = 0 : i64, tpu.core_type = #tpu.core_type<tc>, window_params = [{transform_indices = @transform_0, window_bounds = array<i64: 2, 8, 128>}, {pipeline_mode = #tpu.pipeline_mode<synchronous>, transform_indices = @transform_1, window_bounds = array<i64: 128, 32>}, {pipeline_mode = #tpu.pipeline_mode<synchronous>, transform_indices = @transform_2, window_bounds = array<i64: 1, 32>}, {pipeline_mode = #tpu.pipeline_mode<synchronous>, transform_indices = @transform_3, window_bounds = array<i64: 2, 32, 96>}, {pipeline_mode = #tpu.pipeline_mode<synchronous>, transform_indices = @transform_4, window_bounds = array<i64: 2, 1, 96>}, {pipeline_mode = #tpu.pipeline_mode<synchronous>, transform_indices = @transform_5, window_bounds = array<i64: 2, 32, 32>}, {pipeline_mode = #tpu.pipeline_mode<synchronous>, transform_indices = @transform_6, window_bounds = array<i64: 2, 1, 32>}, {pipeline_mode = #tpu.pipeline_mode<synchronous>, transform_indices = @transform_7, window_bounds = array<i64: 2, 32, 2048>}, {pipeline_mode = #tpu.pipeline_mode<synchronous>, transform_indices = @transform_8, window_bounds = array<i64: 2, 1, 2048>}, {pipeline_mode = #tpu.pipeline_mode<synchronous>, transform_indices = @transform_9, window_bounds = array<i64: 2, 2048, 32>}, {pipeline_mode = #tpu.pipeline_mode<synchronous>, transform_indices = @transform_10, window_bounds = array<i64: 2, 1, 32>}, {pipeline_mode = #tpu.pipeline_mode<synchronous>, transform_indices = @transform_11, window_bounds = array<i64: 2, 1, 32>}, {pipeline_mode = #tpu.pipeline_mode<synchronous>, transform_indices = @transform_12, window_bounds = array<i64: 2, 1, 32>}, {pipeline_mode = #tpu.pipeline_mode<synchronous>, transform_indices = @transform_13, window_bounds = array<i64: 2, 1, 32>}, {pipeline_mode = #tpu.pipeline_mode<synchronous>, transform_indices = @transform_14, window_bounds = array<i64: 2, 1, 32>}, {pipeline_mode = #tpu.pipeline_mode<synchronous>, transform_indices = @transform_15, window_bounds = array<i64: 32, 512>}, {pipeline_mode = #tpu.pipeline_mode<synchronous>, transform_indices = @transform_16, window_bounds = array<i64: 1, 512>}, {pipeline_mode = #tpu.pipeline_mode<synchronous>, transform_indices = @transform_17, window_bounds = array<i64: 512, 256>}, {pipeline_mode = #tpu.pipeline_mode<synchronous>, transform_indices = @transform_18, window_bounds = array<i64: 1, 256>}, {transform_indices = @transform_19, window_bounds = array<i64: 2, 1, 256>}]} {
    %c0 = arith.constant 0 : index
    %c0_0 = arith.constant 0 : index
    %c0_1 = arith.constant 0 : index
    %0 = vector.load %arg1[%c0, %c0_0, %c0_1] : memref<2x8x128xf32, #tpu.memory_space<vmem>>, vector<2x8x128xf32>
    %1 = vector.shape_cast %0 : vector<2x8x128xf32> to vector<16x128xf32>
    %c0_2 = arith.constant 0 : index
    %c0_3 = arith.constant 0 : index
    %2 = vector.load %arg2[%c0_2, %c0_3] : memref<128x32xbf16, #tpu.memory_space<vmem>>, vector<128x32xbf16>
    %c0_4 = arith.constant 0 : index
    %c0_5 = arith.constant 0 : index
    %3 = vector.load %arg3[%c0_4, %c0_5] : memref<1x32xf32, #tpu.memory_space<vmem>>, vector<1x32xf32>
    %4 = arith.truncf %1 : vector<16x128xf32> to vector<16x128xbf16>
    %cst = arith.constant dense<0.000000e+00> : vector<16x32xf32>
    %5 = tpu.matmul %4, %2, %cst {dimension_numbers = #tpu.dot_dimension_numbers<[1], [0], [0], [1], [0, 0, 1, 1], [], []>} : vector<16x128xbf16>, vector<128x32xbf16>, vector<16x32xf32> -> vector<16x32xf32>
    %6 = vector.broadcast %3 : vector<1x32xf32> to vector<16x32xf32>
    %7 = arith.addf %5, %6 : vector<16x32xf32>
    %c0_6 = arith.constant 0 : index
    %c0_7 = arith.constant 0 : index
    %c0_8 = arith.constant 0 : index
    %8 = vector.load %arg4[%c0_6, %c0_7, %c0_8] : memref<2x32x96xbf16, #tpu.memory_space<vmem>>, vector<1x32x96xbf16>
    %9 = vector.shape_cast %8 : vector<1x32x96xbf16> to vector<32x96xbf16>
    %c0_9 = arith.constant 0 : index
    %c0_10 = arith.constant 0 : index
    %c0_11 = arith.constant 0 : index
    %10 = vector.load %arg5[%c0_9, %c0_10, %c0_11] : memref<2x1x96xf32, #tpu.memory_space<vmem>>, vector<1x1x96xf32>
    %11 = vector.shape_cast %10 : vector<1x1x96xf32> to vector<1x96xf32>
    %12 = arith.truncf %7 : vector<16x32xf32> to vector<16x32xbf16>
    %cst_12 = arith.constant dense<0.000000e+00> : vector<16x96xf32>
    %13 = tpu.matmul %12, %9, %cst_12 {dimension_numbers = #tpu.dot_dimension_numbers<[1], [0], [0], [1], [0, 0, 1, 1], [], []>} : vector<16x32xbf16>, vector<32x96xbf16>, vector<16x96xf32> -> vector<16x96xf32>
    %14 = vector.broadcast %11 : vector<1x96xf32> to vector<16x96xf32>
    %15 = arith.addf %13, %14 : vector<16x96xf32>
    %16 = vector.extract_strided_slice %15 {offsets = [0, 0], sizes = [16, 32], strides = [1, 1]} : vector<16x96xf32> to vector<16x32xf32>
    %cst_13 = arith.constant 0.353553385 : f32
    %17 = vector.broadcast %cst_13 : f32 to vector<16x32xf32>
    %18 = arith.mulf %16, %17 : vector<16x32xf32>
    %19 = vector.shape_cast %18 : vector<16x32xf32> to vector<2x8x32xf32>
    %20 = vector.extract_strided_slice %15 {offsets = [0, 32], sizes = [16, 32], strides = [1, 1]} : vector<16x96xf32> to vector<16x32xf32>
    %21 = vector.shape_cast %20 : vector<16x32xf32> to vector<2x8x32xf32>
    %22 = vector.extract_strided_slice %15 {offsets = [0, 64], sizes = [16, 32], strides = [1, 1]} : vector<16x96xf32> to vector<16x32xf32>
    %23 = vector.shape_cast %22 : vector<16x32xf32> to vector<2x8x32xf32>
    %24 = vector.extract_strided_slice %19 {offsets = [0, 0, 0], sizes = [2, 8, 8], strides = [1, 1, 1]} : vector<2x8x32xf32> to vector<2x8x8xf32>
    %25 = vector.extract_strided_slice %21 {offsets = [0, 0, 0], sizes = [2, 8, 8], strides = [1, 1, 1]} : vector<2x8x32xf32> to vector<2x8x8xf32>
    %26 = vector.extract_strided_slice %23 {offsets = [0, 0, 0], sizes = [2, 8, 8], strides = [1, 1, 1]} : vector<2x8x32xf32> to vector<2x8x8xf32>
    "tpu.trace_start"() <{level = 10 : i32, message = "bqd,bkd->bqk"}> : () -> ()
    %cst_14 = arith.constant dense<0.000000e+00> : vector<2x8x8xf32>
    %27 = tpu.matmul %24, %25, %cst_14 {dimension_numbers = #tpu.dot_dimension_numbers<[2], [2], [1], [1], [0, 0, 0, 1, 1, 1], [0], [0]>} : vector<2x8x8xf32>, vector<2x8x8xf32>, vector<2x8x8xf32> -> vector<2x8x8xf32>
    "tpu.trace_stop"() : () -> ()
    %cst_15 = arith.constant dense<0xFF800000> : vector<2x8xf32>
    %28 = vector.multi_reduction <maximumf>, %27, %cst_15 [2] : vector<2x8x8xf32> to vector<2x8xf32>
    %29 = vector.shape_cast %28 : vector<2x8xf32> to vector<2x8x1xf32>
    %30 = vector.broadcast %29 : vector<2x8x1xf32> to vector<2x8x8xf32>
    %31 = arith.subf %27, %30 : vector<2x8x8xf32>
    %32 = math.exp %31 : vector<2x8x8xf32>
    %cst_16 = arith.constant dense<0.000000e+00> : vector<2x8xf32>
    %33 = vector.multi_reduction <add>, %32, %cst_16 [2] : vector<2x8x8xf32> to vector<2x8xf32>
    %34 = vector.shape_cast %33 : vector<2x8xf32> to vector<2x8x1xf32>
    %35 = vector.broadcast %34 : vector<2x8x1xf32> to vector<2x8x8xf32>
    %36 = arith.divf %32, %35 : vector<2x8x8xf32>
    "tpu.trace_start"() <{level = 10 : i32, message = "bqk,bkd->bqd"}> : () -> ()
    %cst_17 = arith.constant dense<0.000000e+00> : vector<2x8x8xf32>
    %37 = tpu.matmul %36, %26, %cst_17 {dimension_numbers = #tpu.dot_dimension_numbers<[2], [1], [1], [2], [0, 0, 0, 1, 1, 2], [0], [0]>} : vector<2x8x8xf32>, vector<2x8x8xf32>, vector<2x8x8xf32> -> vector<2x8x8xf32>
    "tpu.trace_stop"() : () -> ()
    %38 = vector.extract_strided_slice %19 {offsets = [0, 0, 8], sizes = [2, 8, 8], strides = [1, 1, 1]} : vector<2x8x32xf32> to vector<2x8x8xf32>
    %39 = vector.extract_strided_slice %21 {offsets = [0, 0, 8], sizes = [2, 8, 8], strides = [1, 1, 1]} : vector<2x8x32xf32> to vector<2x8x8xf32>
    %40 = vector.extract_strided_slice %23 {offsets = [0, 0, 8], sizes = [2, 8, 8], strides = [1, 1, 1]} : vector<2x8x32xf32> to vector<2x8x8xf32>
    "tpu.trace_start"() <{level = 10 : i32, message = "bqd,bkd->bqk"}> : () -> ()
    %cst_18 = arith.constant dense<0.000000e+00> : vector<2x8x8xf32>
    %41 = tpu.matmul %38, %39, %cst_18 {dimension_numbers = #tpu.dot_dimension_numbers<[2], [2], [1], [1], [0, 0, 0, 1, 1, 1], [0], [0]>} : vector<2x8x8xf32>, vector<2x8x8xf32>, vector<2x8x8xf32> -> vector<2x8x8xf32>
    "tpu.trace_stop"() : () -> ()
    %cst_19 = arith.constant dense<0xFF800000> : vector<2x8xf32>
    %42 = vector.multi_reduction <maximumf>, %41, %cst_19 [2] : vector<2x8x8xf32> to vector<2x8xf32>
    %43 = vector.shape_cast %42 : vector<2x8xf32> to vector<2x8x1xf32>
    %44 = vector.broadcast %43 : vector<2x8x1xf32> to vector<2x8x8xf32>
    %45 = arith.subf %41, %44 : vector<2x8x8xf32>
    %46 = math.exp %45 : vector<2x8x8xf32>
    %cst_20 = arith.constant dense<0.000000e+00> : vector<2x8xf32>
    %47 = vector.multi_reduction <add>, %46, %cst_20 [2] : vector<2x8x8xf32> to vector<2x8xf32>
    %48 = vector.shape_cast %47 : vector<2x8xf32> to vector<2x8x1xf32>
    %49 = vector.broadcast %48 : vector<2x8x1xf32> to vector<2x8x8xf32>
    %50 = arith.divf %46, %49 : vector<2x8x8xf32>
    "tpu.trace_start"() <{level = 10 : i32, message = "bqk,bkd->bqd"}> : () -> ()
    %cst_21 = arith.constant dense<0.000000e+00> : vector<2x8x8xf32>
    %51 = tpu.matmul %50, %40, %cst_21 {dimension_numbers = #tpu.dot_dimension_numbers<[2], [1], [1], [2], [0, 0, 0, 1, 1, 2], [0], [0]>} : vector<2x8x8xf32>, vector<2x8x8xf32>, vector<2x8x8xf32> -> vector<2x8x8xf32>
    "tpu.trace_stop"() : () -> ()
    %52 = vector.extract_strided_slice %19 {offsets = [0, 0, 16], sizes = [2, 8, 8], strides = [1, 1, 1]} : vector<2x8x32xf32> to vector<2x8x8xf32>
    %53 = vector.extract_strided_slice %21 {offsets = [0, 0, 16], sizes = [2, 8, 8], strides = [1, 1, 1]} : vector<2x8x32xf32> to vector<2x8x8xf32>
    %54 = vector.extract_strided_slice %23 {offsets = [0, 0, 16], sizes = [2, 8, 8], strides = [1, 1, 1]} : vector<2x8x32xf32> to vector<2x8x8xf32>
    "tpu.trace_start"() <{level = 10 : i32, message = "bqd,bkd->bqk"}> : () -> ()
    %cst_22 = arith.constant dense<0.000000e+00> : vector<2x8x8xf32>
    %55 = tpu.matmul %52, %53, %cst_22 {dimension_numbers = #tpu.dot_dimension_numbers<[2], [2], [1], [1], [0, 0, 0, 1, 1, 1], [0], [0]>} : vector<2x8x8xf32>, vector<2x8x8xf32>, vector<2x8x8xf32> -> vector<2x8x8xf32>
    "tpu.trace_stop"() : () -> ()
    %cst_23 = arith.constant dense<0xFF800000> : vector<2x8xf32>
    %56 = vector.multi_reduction <maximumf>, %55, %cst_23 [2] : vector<2x8x8xf32> to vector<2x8xf32>
    %57 = vector.shape_cast %56 : vector<2x8xf32> to vector<2x8x1xf32>
    %58 = vector.broadcast %57 : vector<2x8x1xf32> to vector<2x8x8xf32>
    %59 = arith.subf %55, %58 : vector<2x8x8xf32>
    %60 = math.exp %59 : vector<2x8x8xf32>
    %cst_24 = arith.constant dense<0.000000e+00> : vector<2x8xf32>
    %61 = vector.multi_reduction <add>, %60, %cst_24 [2] : vector<2x8x8xf32> to vector<2x8xf32>
    %62 = vector.shape_cast %61 : vector<2x8xf32> to vector<2x8x1xf32>
    %63 = vector.broadcast %62 : vector<2x8x1xf32> to vector<2x8x8xf32>
    %64 = arith.divf %60, %63 : vector<2x8x8xf32>
    "tpu.trace_start"() <{level = 10 : i32, message = "bqk,bkd->bqd"}> : () -> ()
    %cst_25 = arith.constant dense<0.000000e+00> : vector<2x8x8xf32>
    %65 = tpu.matmul %64, %54, %cst_25 {dimension_numbers = #tpu.dot_dimension_numbers<[2], [1], [1], [2], [0, 0, 0, 1, 1, 2], [0], [0]>} : vector<2x8x8xf32>, vector<2x8x8xf32>, vector<2x8x8xf32> -> vector<2x8x8xf32>
    "tpu.trace_stop"() : () -> ()
    %66 = vector.extract_strided_slice %19 {offsets = [0, 0, 24], sizes = [2, 8, 8], strides = [1, 1, 1]} : vector<2x8x32xf32> to vector<2x8x8xf32>
    %67 = vector.extract_strided_slice %21 {offsets = [0, 0, 24], sizes = [2, 8, 8], strides = [1, 1, 1]} : vector<2x8x32xf32> to vector<2x8x8xf32>
    %68 = vector.extract_strided_slice %23 {offsets = [0, 0, 24], sizes = [2, 8, 8], strides = [1, 1, 1]} : vector<2x8x32xf32> to vector<2x8x8xf32>
    "tpu.trace_start"() <{level = 10 : i32, message = "bqd,bkd->bqk"}> : () -> ()
    %cst_26 = arith.constant dense<0.000000e+00> : vector<2x8x8xf32>
    %69 = tpu.matmul %66, %67, %cst_26 {dimension_numbers = #tpu.dot_dimension_numbers<[2], [2], [1], [1], [0, 0, 0, 1, 1, 1], [0], [0]>} : vector<2x8x8xf32>, vector<2x8x8xf32>, vector<2x8x8xf32> -> vector<2x8x8xf32>
    "tpu.trace_stop"() : () -> ()
    %cst_27 = arith.constant dense<0xFF800000> : vector<2x8xf32>
    %70 = vector.multi_reduction <maximumf>, %69, %cst_27 [2] : vector<2x8x8xf32> to vector<2x8xf32>
    %71 = vector.shape_cast %70 : vector<2x8xf32> to vector<2x8x1xf32>
    %72 = vector.broadcast %71 : vector<2x8x1xf32> to vector<2x8x8xf32>
    %73 = arith.subf %69, %72 : vector<2x8x8xf32>
    %74 = math.exp %73 : vector<2x8x8xf32>
    %cst_28 = arith.constant dense<0.000000e+00> : vector<2x8xf32>
    %75 = vector.multi_reduction <add>, %74, %cst_28 [2] : vector<2x8x8xf32> to vector<2x8xf32>
    %76 = vector.shape_cast %75 : vector<2x8xf32> to vector<2x8x1xf32>
    %77 = vector.broadcast %76 : vector<2x8x1xf32> to vector<2x8x8xf32>
    %78 = arith.divf %74, %77 : vector<2x8x8xf32>
    "tpu.trace_start"() <{level = 10 : i32, message = "bqk,bkd->bqd"}> : () -> ()
    %cst_29 = arith.constant dense<0.000000e+00> : vector<2x8x8xf32>
    %79 = tpu.matmul %78, %68, %cst_29 {dimension_numbers = #tpu.dot_dimension_numbers<[2], [1], [1], [2], [0, 0, 0, 1, 1, 2], [0], [0]>} : vector<2x8x8xf32>, vector<2x8x8xf32>, vector<2x8x8xf32> -> vector<2x8x8xf32>
    "tpu.trace_stop"() : () -> ()
    %80 = tpu.concatenate %37, %51, %65, %79 in 2 : vector<2x8x8xf32>, vector<2x8x8xf32>, vector<2x8x8xf32>, vector<2x8x8xf32> -> vector<2x8x32xf32>
    %81 = vector.shape_cast %80 : vector<2x8x32xf32> to vector<16x32xf32>
    %c0_30 = arith.constant 0 : index
    %c0_31 = arith.constant 0 : index
    %c0_32 = arith.constant 0 : index
    %82 = vector.load %arg6[%c0_30, %c0_31, %c0_32] : memref<2x32x32xbf16, #tpu.memory_space<vmem>>, vector<1x32x32xbf16>
    %83 = vector.shape_cast %82 : vector<1x32x32xbf16> to vector<32x32xbf16>
    %c0_33 = arith.constant 0 : index
    %c0_34 = arith.constant 0 : index
    %c0_35 = arith.constant 0 : index
    %84 = vector.load %arg7[%c0_33, %c0_34, %c0_35] : memref<2x1x32xf32, #tpu.memory_space<vmem>>, vector<1x1x32xf32>
    %85 = vector.shape_cast %84 : vector<1x1x32xf32> to vector<1x32xf32>
    %86 = arith.truncf %81 : vector<16x32xf32> to vector<16x32xbf16>
    %cst_36 = arith.constant dense<0.000000e+00> : vector<16x32xf32>
    %87 = tpu.matmul %86, %83, %cst_36 {dimension_numbers = #tpu.dot_dimension_numbers<[1], [0], [0], [1], [0, 0, 1, 1], [], []>} : vector<16x32xbf16>, vector<32x32xbf16>, vector<16x32xf32> -> vector<16x32xf32>
    %88 = vector.broadcast %85 : vector<1x32xf32> to vector<16x32xf32>
    %89 = arith.addf %87, %88 : vector<16x32xf32>
    %90 = arith.addf %7, %89 : vector<16x32xf32>
    %c0_37 = arith.constant 0 : index
    %c0_38 = arith.constant 0 : index
    %c0_39 = arith.constant 0 : index
    %91 = vector.load %arg12[%c0_37, %c0_38, %c0_39] : memref<2x1x32xf32, #tpu.memory_space<vmem>>, vector<1x1x32xf32>
    %92 = vector.shape_cast %91 : vector<1x1x32xf32> to vector<1x32xf32>
    %c0_40 = arith.constant 0 : index
    %c0_41 = arith.constant 0 : index
    %c0_42 = arith.constant 0 : index
    %93 = vector.load %arg13[%c0_40, %c0_41, %c0_42] : memref<2x1x32xf32, #tpu.memory_space<vmem>>, vector<1x1x32xf32>
    %94 = vector.shape_cast %93 : vector<1x1x32xf32> to vector<1x32xf32>
    %cst_43 = arith.constant dense<0.000000e+00> : vector<16xf32>
    %95 = vector.multi_reduction <add>, %90, %cst_43 [1] : vector<16x32xf32> to vector<16xf32>
    %96 = vector.shape_cast %95 : vector<16xf32> to vector<16x1xf32>
    %cst_44 = arith.constant 3.200000e+01 : f32
    %97 = vector.broadcast %cst_44 : f32 to vector<16x1xf32>
    %98 = arith.divf %96, %97 : vector<16x1xf32>
    %99 = vector.broadcast %98 : vector<16x1xf32> to vector<16x32xf32>
    %100 = arith.subf %90, %99 : vector<16x32xf32>
    %101 = arith.mulf %100, %100 : vector<16x32xf32>
    %cst_45 = arith.constant dense<0.000000e+00> : vector<16xf32>
    %102 = vector.multi_reduction <add>, %101, %cst_45 [1] : vector<16x32xf32> to vector<16xf32>
    %103 = vector.shape_cast %102 : vector<16xf32> to vector<16x1xf32>
    %cst_46 = arith.constant 3.200000e+01 : f32
    %104 = vector.broadcast %cst_46 : f32 to vector<16x1xf32>
    %105 = arith.divf %103, %104 : vector<16x1xf32>
    %cst_47 = arith.constant 9.99999974E-6 : f32
    %106 = vector.broadcast %cst_47 : f32 to vector<16x1xf32>
    %107 = arith.addf %105, %106 : vector<16x1xf32>
    %108 = math.rsqrt %107 : vector<16x1xf32>
    %109 = vector.broadcast %108 : vector<16x1xf32> to vector<16x32xf32>
    %110 = arith.mulf %100, %109 : vector<16x32xf32>
    %111 = vector.broadcast %92 : vector<1x32xf32> to vector<16x32xf32>
    %112 = arith.mulf %110, %111 : vector<16x32xf32>
    %113 = vector.broadcast %94 : vector<1x32xf32> to vector<16x32xf32>
    %114 = arith.addf %112, %113 : vector<16x32xf32>
    %c0_48 = arith.constant 0 : index
    %c0_49 = arith.constant 0 : index
    %c0_50 = arith.constant 0 : index
    %115 = vector.load %arg8[%c0_48, %c0_49, %c0_50] : memref<2x32x2048xbf16, #tpu.memory_space<vmem>>, vector<1x32x2048xbf16>
    %116 = vector.shape_cast %115 : vector<1x32x2048xbf16> to vector<32x2048xbf16>
    %c0_51 = arith.constant 0 : index
    %c0_52 = arith.constant 0 : index
    %c0_53 = arith.constant 0 : index
    %117 = vector.load %arg9[%c0_51, %c0_52, %c0_53] : memref<2x1x2048xf32, #tpu.memory_space<vmem>>, vector<1x1x2048xf32>
    %118 = vector.shape_cast %117 : vector<1x1x2048xf32> to vector<1x2048xf32>
    %119 = arith.truncf %114 : vector<16x32xf32> to vector<16x32xbf16>
    %cst_54 = arith.constant dense<0.000000e+00> : vector<16x2048xf32>
    %120 = tpu.matmul %119, %116, %cst_54 {dimension_numbers = #tpu.dot_dimension_numbers<[1], [0], [0], [1], [0, 0, 1, 1], [], []>} : vector<16x32xbf16>, vector<32x2048xbf16>, vector<16x2048xf32> -> vector<16x2048xf32>
    %121 = vector.broadcast %118 : vector<1x2048xf32> to vector<16x2048xf32>
    %122 = arith.addf %120, %121 : vector<16x2048xf32>
    %cst_55 = arith.constant 0.000000e+00 : f32
    %123 = vector.broadcast %cst_55 : f32 to vector<16x2048xf32>
    %124 = arith.maximumf %122, %123 : vector<16x2048xf32>
    %c0_56 = arith.constant 0 : index
    %c0_57 = arith.constant 0 : index
    %c0_58 = arith.constant 0 : index
    %125 = vector.load %arg10[%c0_56, %c0_57, %c0_58] : memref<2x2048x32xbf16, #tpu.memory_space<vmem>>, vector<1x2048x32xbf16>
    %126 = vector.shape_cast %125 : vector<1x2048x32xbf16> to vector<2048x32xbf16>
    %c0_59 = arith.constant 0 : index
    %c0_60 = arith.constant 0 : index
    %c0_61 = arith.constant 0 : index
    %127 = vector.load %arg11[%c0_59, %c0_60, %c0_61] : memref<2x1x32xf32, #tpu.memory_space<vmem>>, vector<1x1x32xf32>
    %128 = vector.shape_cast %127 : vector<1x1x32xf32> to vector<1x32xf32>
    %129 = arith.truncf %124 : vector<16x2048xf32> to vector<16x2048xbf16>
    %cst_62 = arith.constant dense<0.000000e+00> : vector<16x32xf32>
    %130 = tpu.matmul %129, %126, %cst_62 {dimension_numbers = #tpu.dot_dimension_numbers<[1], [0], [0], [1], [0, 0, 1, 1], [], []>} : vector<16x2048xbf16>, vector<2048x32xbf16>, vector<16x32xf32> -> vector<16x32xf32>
    %131 = vector.broadcast %128 : vector<1x32xf32> to vector<16x32xf32>
    %132 = arith.addf %130, %131 : vector<16x32xf32>
    %133 = arith.addf %114, %132 : vector<16x32xf32>
    %c0_63 = arith.constant 0 : index
    %c0_64 = arith.constant 0 : index
    %c0_65 = arith.constant 0 : index
    %134 = vector.load %arg14[%c0_63, %c0_64, %c0_65] : memref<2x1x32xf32, #tpu.memory_space<vmem>>, vector<1x1x32xf32>
    %135 = vector.shape_cast %134 : vector<1x1x32xf32> to vector<1x32xf32>
    %c0_66 = arith.constant 0 : index
    %c0_67 = arith.constant 0 : index
    %c0_68 = arith.constant 0 : index
    %136 = vector.load %arg15[%c0_66, %c0_67, %c0_68] : memref<2x1x32xf32, #tpu.memory_space<vmem>>, vector<1x1x32xf32>
    %137 = vector.shape_cast %136 : vector<1x1x32xf32> to vector<1x32xf32>
    %cst_69 = arith.constant dense<0.000000e+00> : vector<16xf32>
    %138 = vector.multi_reduction <add>, %133, %cst_69 [1] : vector<16x32xf32> to vector<16xf32>
    %139 = vector.shape_cast %138 : vector<16xf32> to vector<16x1xf32>
    %cst_70 = arith.constant 3.200000e+01 : f32
    %140 = vector.broadcast %cst_70 : f32 to vector<16x1xf32>
    %141 = arith.divf %139, %140 : vector<16x1xf32>
    %142 = vector.broadcast %141 : vector<16x1xf32> to vector<16x32xf32>
    %143 = arith.subf %133, %142 : vector<16x32xf32>
    %144 = arith.mulf %143, %143 : vector<16x32xf32>
    %cst_71 = arith.constant dense<0.000000e+00> : vector<16xf32>
    %145 = vector.multi_reduction <add>, %144, %cst_71 [1] : vector<16x32xf32> to vector<16xf32>
    %146 = vector.shape_cast %145 : vector<16xf32> to vector<16x1xf32>
    %cst_72 = arith.constant 3.200000e+01 : f32
    %147 = vector.broadcast %cst_72 : f32 to vector<16x1xf32>
    %148 = arith.divf %146, %147 : vector<16x1xf32>
    %cst_73 = arith.constant 9.99999974E-6 : f32
    %149 = vector.broadcast %cst_73 : f32 to vector<16x1xf32>
    %150 = arith.addf %148, %149 : vector<16x1xf32>
    %151 = math.rsqrt %150 : vector<16x1xf32>
    %152 = vector.broadcast %151 : vector<16x1xf32> to vector<16x32xf32>
    %153 = arith.mulf %143, %152 : vector<16x32xf32>
    %154 = vector.broadcast %135 : vector<1x32xf32> to vector<16x32xf32>
    %155 = arith.mulf %153, %154 : vector<16x32xf32>
    %156 = vector.broadcast %137 : vector<1x32xf32> to vector<16x32xf32>
    %157 = arith.addf %155, %156 : vector<16x32xf32>
    %c1 = arith.constant 1 : index
    %c0_74 = arith.constant 0 : index
    %c0_75 = arith.constant 0 : index
    %158 = vector.load %arg4[%c1, %c0_74, %c0_75] : memref<2x32x96xbf16, #tpu.memory_space<vmem>>, vector<1x32x96xbf16>
    %159 = vector.shape_cast %158 : vector<1x32x96xbf16> to vector<32x96xbf16>
    %c1_76 = arith.constant 1 : index
    %c0_77 = arith.constant 0 : index
    %c0_78 = arith.constant 0 : index
    %160 = vector.load %arg5[%c1_76, %c0_77, %c0_78] : memref<2x1x96xf32, #tpu.memory_space<vmem>>, vector<1x1x96xf32>
    %161 = vector.shape_cast %160 : vector<1x1x96xf32> to vector<1x96xf32>
    %162 = arith.truncf %157 : vector<16x32xf32> to vector<16x32xbf16>
    %cst_79 = arith.constant dense<0.000000e+00> : vector<16x96xf32>
    %163 = tpu.matmul %162, %159, %cst_79 {dimension_numbers = #tpu.dot_dimension_numbers<[1], [0], [0], [1], [0, 0, 1, 1], [], []>} : vector<16x32xbf16>, vector<32x96xbf16>, vector<16x96xf32> -> vector<16x96xf32>
    %164 = vector.broadcast %161 : vector<1x96xf32> to vector<16x96xf32>
    %165 = arith.addf %163, %164 : vector<16x96xf32>
    %166 = vector.extract_strided_slice %165 {offsets = [0, 0], sizes = [16, 32], strides = [1, 1]} : vector<16x96xf32> to vector<16x32xf32>
    %cst_80 = arith.constant 0.353553385 : f32
    %167 = vector.broadcast %cst_80 : f32 to vector<16x32xf32>
    %168 = arith.mulf %166, %167 : vector<16x32xf32>
    %169 = vector.shape_cast %168 : vector<16x32xf32> to vector<2x8x32xf32>
    %170 = vector.extract_strided_slice %165 {offsets = [0, 32], sizes = [16, 32], strides = [1, 1]} : vector<16x96xf32> to vector<16x32xf32>
    %171 = vector.shape_cast %170 : vector<16x32xf32> to vector<2x8x32xf32>
    %172 = vector.extract_strided_slice %165 {offsets = [0, 64], sizes = [16, 32], strides = [1, 1]} : vector<16x96xf32> to vector<16x32xf32>
    %173 = vector.shape_cast %172 : vector<16x32xf32> to vector<2x8x32xf32>
    %174 = vector.extract_strided_slice %169 {offsets = [0, 0, 0], sizes = [2, 8, 8], strides = [1, 1, 1]} : vector<2x8x32xf32> to vector<2x8x8xf32>
    %175 = vector.extract_strided_slice %171 {offsets = [0, 0, 0], sizes = [2, 8, 8], strides = [1, 1, 1]} : vector<2x8x32xf32> to vector<2x8x8xf32>
    %176 = vector.extract_strided_slice %173 {offsets = [0, 0, 0], sizes = [2, 8, 8], strides = [1, 1, 1]} : vector<2x8x32xf32> to vector<2x8x8xf32>
    "tpu.trace_start"() <{level = 10 : i32, message = "bqd,bkd->bqk"}> : () -> ()
    %cst_81 = arith.constant dense<0.000000e+00> : vector<2x8x8xf32>
    %177 = tpu.matmul %174, %175, %cst_81 {dimension_numbers = #tpu.dot_dimension_numbers<[2], [2], [1], [1], [0, 0, 0, 1, 1, 1], [0], [0]>} : vector<2x8x8xf32>, vector<2x8x8xf32>, vector<2x8x8xf32> -> vector<2x8x8xf32>
    "tpu.trace_stop"() : () -> ()
    %cst_82 = arith.constant dense<0xFF800000> : vector<2x8xf32>
    %178 = vector.multi_reduction <maximumf>, %177, %cst_82 [2] : vector<2x8x8xf32> to vector<2x8xf32>
    %179 = vector.shape_cast %178 : vector<2x8xf32> to vector<2x8x1xf32>
    %180 = vector.broadcast %179 : vector<2x8x1xf32> to vector<2x8x8xf32>
    %181 = arith.subf %177, %180 : vector<2x8x8xf32>
    %182 = math.exp %181 : vector<2x8x8xf32>
    %cst_83 = arith.constant dense<0.000000e+00> : vector<2x8xf32>
    %183 = vector.multi_reduction <add>, %182, %cst_83 [2] : vector<2x8x8xf32> to vector<2x8xf32>
    %184 = vector.shape_cast %183 : vector<2x8xf32> to vector<2x8x1xf32>
    %185 = vector.broadcast %184 : vector<2x8x1xf32> to vector<2x8x8xf32>
    %186 = arith.divf %182, %185 : vector<2x8x8xf32>
    "tpu.trace_start"() <{level = 10 : i32, message = "bqk,bkd->bqd"}> : () -> ()
    %cst_84 = arith.constant dense<0.000000e+00> : vector<2x8x8xf32>
    %187 = tpu.matmul %186, %176, %cst_84 {dimension_numbers = #tpu.dot_dimension_numbers<[2], [1], [1], [2], [0, 0, 0, 1, 1, 2], [0], [0]>} : vector<2x8x8xf32>, vector<2x8x8xf32>, vector<2x8x8xf32> -> vector<2x8x8xf32>
    "tpu.trace_stop"() : () -> ()
    %188 = vector.extract_strided_slice %169 {offsets = [0, 0, 8], sizes = [2, 8, 8], strides = [1, 1, 1]} : vector<2x8x32xf32> to vector<2x8x8xf32>
    %189 = vector.extract_strided_slice %171 {offsets = [0, 0, 8], sizes = [2, 8, 8], strides = [1, 1, 1]} : vector<2x8x32xf32> to vector<2x8x8xf32>
    %190 = vector.extract_strided_slice %173 {offsets = [0, 0, 8], sizes = [2, 8, 8], strides = [1, 1, 1]} : vector<2x8x32xf32> to vector<2x8x8xf32>
    "tpu.trace_start"() <{level = 10 : i32, message = "bqd,bkd->bqk"}> : () -> ()
    %cst_85 = arith.constant dense<0.000000e+00> : vector<2x8x8xf32>
    %191 = tpu.matmul %188, %189, %cst_85 {dimension_numbers = #tpu.dot_dimension_numbers<[2], [2], [1], [1], [0, 0, 0, 1, 1, 1], [0], [0]>} : vector<2x8x8xf32>, vector<2x8x8xf32>, vector<2x8x8xf32> -> vector<2x8x8xf32>
    "tpu.trace_stop"() : () -> ()
    %cst_86 = arith.constant dense<0xFF800000> : vector<2x8xf32>
    %192 = vector.multi_reduction <maximumf>, %191, %cst_86 [2] : vector<2x8x8xf32> to vector<2x8xf32>
    %193 = vector.shape_cast %192 : vector<2x8xf32> to vector<2x8x1xf32>
    %194 = vector.broadcast %193 : vector<2x8x1xf32> to vector<2x8x8xf32>
    %195 = arith.subf %191, %194 : vector<2x8x8xf32>
    %196 = math.exp %195 : vector<2x8x8xf32>
    %cst_87 = arith.constant dense<0.000000e+00> : vector<2x8xf32>
    %197 = vector.multi_reduction <add>, %196, %cst_87 [2] : vector<2x8x8xf32> to vector<2x8xf32>
    %198 = vector.shape_cast %197 : vector<2x8xf32> to vector<2x8x1xf32>
    %199 = vector.broadcast %198 : vector<2x8x1xf32> to vector<2x8x8xf32>
    %200 = arith.divf %196, %199 : vector<2x8x8xf32>
    "tpu.trace_start"() <{level = 10 : i32, message = "bqk,bkd->bqd"}> : () -> ()
    %cst_88 = arith.constant dense<0.000000e+00> : vector<2x8x8xf32>
    %201 = tpu.matmul %200, %190, %cst_88 {dimension_numbers = #tpu.dot_dimension_numbers<[2], [1], [1], [2], [0, 0, 0, 1, 1, 2], [0], [0]>} : vector<2x8x8xf32>, vector<2x8x8xf32>, vector<2x8x8xf32> -> vector<2x8x8xf32>
    "tpu.trace_stop"() : () -> ()
    %202 = vector.extract_strided_slice %169 {offsets = [0, 0, 16], sizes = [2, 8, 8], strides = [1, 1, 1]} : vector<2x8x32xf32> to vector<2x8x8xf32>
    %203 = vector.extract_strided_slice %171 {offsets = [0, 0, 16], sizes = [2, 8, 8], strides = [1, 1, 1]} : vector<2x8x32xf32> to vector<2x8x8xf32>
    %204 = vector.extract_strided_slice %173 {offsets = [0, 0, 16], sizes = [2, 8, 8], strides = [1, 1, 1]} : vector<2x8x32xf32> to vector<2x8x8xf32>
    "tpu.trace_start"() <{level = 10 : i32, message = "bqd,bkd->bqk"}> : () -> ()
    %cst_89 = arith.constant dense<0.000000e+00> : vector<2x8x8xf32>
    %205 = tpu.matmul %202, %203, %cst_89 {dimension_numbers = #tpu.dot_dimension_numbers<[2], [2], [1], [1], [0, 0, 0, 1, 1, 1], [0], [0]>} : vector<2x8x8xf32>, vector<2x8x8xf32>, vector<2x8x8xf32> -> vector<2x8x8xf32>
    "tpu.trace_stop"() : () -> ()
    %cst_90 = arith.constant dense<0xFF800000> : vector<2x8xf32>
    %206 = vector.multi_reduction <maximumf>, %205, %cst_90 [2] : vector<2x8x8xf32> to vector<2x8xf32>
    %207 = vector.shape_cast %206 : vector<2x8xf32> to vector<2x8x1xf32>
    %208 = vector.broadcast %207 : vector<2x8x1xf32> to vector<2x8x8xf32>
    %209 = arith.subf %205, %208 : vector<2x8x8xf32>
    %210 = math.exp %209 : vector<2x8x8xf32>
    %cst_91 = arith.constant dense<0.000000e+00> : vector<2x8xf32>
    %211 = vector.multi_reduction <add>, %210, %cst_91 [2] : vector<2x8x8xf32> to vector<2x8xf32>
    %212 = vector.shape_cast %211 : vector<2x8xf32> to vector<2x8x1xf32>
    %213 = vector.broadcast %212 : vector<2x8x1xf32> to vector<2x8x8xf32>
    %214 = arith.divf %210, %213 : vector<2x8x8xf32>
    "tpu.trace_start"() <{level = 10 : i32, message = "bqk,bkd->bqd"}> : () -> ()
    %cst_92 = arith.constant dense<0.000000e+00> : vector<2x8x8xf32>
    %215 = tpu.matmul %214, %204, %cst_92 {dimension_numbers = #tpu.dot_dimension_numbers<[2], [1], [1], [2], [0, 0, 0, 1, 1, 2], [0], [0]>} : vector<2x8x8xf32>, vector<2x8x8xf32>, vector<2x8x8xf32> -> vector<2x8x8xf32>
    "tpu.trace_stop"() : () -> ()
    %216 = vector.extract_strided_slice %169 {offsets = [0, 0, 24], sizes = [2, 8, 8], strides = [1, 1, 1]} : vector<2x8x32xf32> to vector<2x8x8xf32>
    %217 = vector.extract_strided_slice %171 {offsets = [0, 0, 24], sizes = [2, 8, 8], strides = [1, 1, 1]} : vector<2x8x32xf32> to vector<2x8x8xf32>
    %218 = vector.extract_strided_slice %173 {offsets = [0, 0, 24], sizes = [2, 8, 8], strides = [1, 1, 1]} : vector<2x8x32xf32> to vector<2x8x8xf32>
    "tpu.trace_start"() <{level = 10 : i32, message = "bqd,bkd->bqk"}> : () -> ()
    %cst_93 = arith.constant dense<0.000000e+00> : vector<2x8x8xf32>
    %219 = tpu.matmul %216, %217, %cst_93 {dimension_numbers = #tpu.dot_dimension_numbers<[2], [2], [1], [1], [0, 0, 0, 1, 1, 1], [0], [0]>} : vector<2x8x8xf32>, vector<2x8x8xf32>, vector<2x8x8xf32> -> vector<2x8x8xf32>
    "tpu.trace_stop"() : () -> ()
    %cst_94 = arith.constant dense<0xFF800000> : vector<2x8xf32>
    %220 = vector.multi_reduction <maximumf>, %219, %cst_94 [2] : vector<2x8x8xf32> to vector<2x8xf32>
    %221 = vector.shape_cast %220 : vector<2x8xf32> to vector<2x8x1xf32>
    %222 = vector.broadcast %221 : vector<2x8x1xf32> to vector<2x8x8xf32>
    %223 = arith.subf %219, %222 : vector<2x8x8xf32>
    %224 = math.exp %223 : vector<2x8x8xf32>
    %cst_95 = arith.constant dense<0.000000e+00> : vector<2x8xf32>
    %225 = vector.multi_reduction <add>, %224, %cst_95 [2] : vector<2x8x8xf32> to vector<2x8xf32>
    %226 = vector.shape_cast %225 : vector<2x8xf32> to vector<2x8x1xf32>
    %227 = vector.broadcast %226 : vector<2x8x1xf32> to vector<2x8x8xf32>
    %228 = arith.divf %224, %227 : vector<2x8x8xf32>
    "tpu.trace_start"() <{level = 10 : i32, message = "bqk,bkd->bqd"}> : () -> ()
    %cst_96 = arith.constant dense<0.000000e+00> : vector<2x8x8xf32>
    %229 = tpu.matmul %228, %218, %cst_96 {dimension_numbers = #tpu.dot_dimension_numbers<[2], [1], [1], [2], [0, 0, 0, 1, 1, 2], [0], [0]>} : vector<2x8x8xf32>, vector<2x8x8xf32>, vector<2x8x8xf32> -> vector<2x8x8xf32>
    "tpu.trace_stop"() : () -> ()
    %230 = tpu.concatenate %187, %201, %215, %229 in 2 : vector<2x8x8xf32>, vector<2x8x8xf32>, vector<2x8x8xf32>, vector<2x8x8xf32> -> vector<2x8x32xf32>
    %231 = vector.shape_cast %230 : vector<2x8x32xf32> to vector<16x32xf32>
    %c1_97 = arith.constant 1 : index
    %c0_98 = arith.constant 0 : index
    %c0_99 = arith.constant 0 : index
    %232 = vector.load %arg6[%c1_97, %c0_98, %c0_99] : memref<2x32x32xbf16, #tpu.memory_space<vmem>>, vector<1x32x32xbf16>
    %233 = vector.shape_cast %232 : vector<1x32x32xbf16> to vector<32x32xbf16>
    %c1_100 = arith.constant 1 : index
    %c0_101 = arith.constant 0 : index
    %c0_102 = arith.constant 0 : index
    %234 = vector.load %arg7[%c1_100, %c0_101, %c0_102] : memref<2x1x32xf32, #tpu.memory_space<vmem>>, vector<1x1x32xf32>
    %235 = vector.shape_cast %234 : vector<1x1x32xf32> to vector<1x32xf32>
    %236 = arith.truncf %231 : vector<16x32xf32> to vector<16x32xbf16>
    %cst_103 = arith.constant dense<0.000000e+00> : vector<16x32xf32>
    %237 = tpu.matmul %236, %233, %cst_103 {dimension_numbers = #tpu.dot_dimension_numbers<[1], [0], [0], [1], [0, 0, 1, 1], [], []>} : vector<16x32xbf16>, vector<32x32xbf16>, vector<16x32xf32> -> vector<16x32xf32>
    %238 = vector.broadcast %235 : vector<1x32xf32> to vector<16x32xf32>
    %239 = arith.addf %237, %238 : vector<16x32xf32>
    %240 = arith.addf %157, %239 : vector<16x32xf32>
    %c1_104 = arith.constant 1 : index
    %c0_105 = arith.constant 0 : index
    %c0_106 = arith.constant 0 : index
    %241 = vector.load %arg12[%c1_104, %c0_105, %c0_106] : memref<2x1x32xf32, #tpu.memory_space<vmem>>, vector<1x1x32xf32>
    %242 = vector.shape_cast %241 : vector<1x1x32xf32> to vector<1x32xf32>
    %c1_107 = arith.constant 1 : index
    %c0_108 = arith.constant 0 : index
    %c0_109 = arith.constant 0 : index
    %243 = vector.load %arg13[%c1_107, %c0_108, %c0_109] : memref<2x1x32xf32, #tpu.memory_space<vmem>>, vector<1x1x32xf32>
    %244 = vector.shape_cast %243 : vector<1x1x32xf32> to vector<1x32xf32>
    %cst_110 = arith.constant dense<0.000000e+00> : vector<16xf32>
    %245 = vector.multi_reduction <add>, %240, %cst_110 [1] : vector<16x32xf32> to vector<16xf32>
    %246 = vector.shape_cast %245 : vector<16xf32> to vector<16x1xf32>
    %cst_111 = arith.constant 3.200000e+01 : f32
    %247 = vector.broadcast %cst_111 : f32 to vector<16x1xf32>
    %248 = arith.divf %246, %247 : vector<16x1xf32>
    %249 = vector.broadcast %248 : vector<16x1xf32> to vector<16x32xf32>
    %250 = arith.subf %240, %249 : vector<16x32xf32>
    %251 = arith.mulf %250, %250 : vector<16x32xf32>
    %cst_112 = arith.constant dense<0.000000e+00> : vector<16xf32>
    %252 = vector.multi_reduction <add>, %251, %cst_112 [1] : vector<16x32xf32> to vector<16xf32>
    %253 = vector.shape_cast %252 : vector<16xf32> to vector<16x1xf32>
    %cst_113 = arith.constant 3.200000e+01 : f32
    %254 = vector.broadcast %cst_113 : f32 to vector<16x1xf32>
    %255 = arith.divf %253, %254 : vector<16x1xf32>
    %cst_114 = arith.constant 9.99999974E-6 : f32
    %256 = vector.broadcast %cst_114 : f32 to vector<16x1xf32>
    %257 = arith.addf %255, %256 : vector<16x1xf32>
    %258 = math.rsqrt %257 : vector<16x1xf32>
    %259 = vector.broadcast %258 : vector<16x1xf32> to vector<16x32xf32>
    %260 = arith.mulf %250, %259 : vector<16x32xf32>
    %261 = vector.broadcast %242 : vector<1x32xf32> to vector<16x32xf32>
    %262 = arith.mulf %260, %261 : vector<16x32xf32>
    %263 = vector.broadcast %244 : vector<1x32xf32> to vector<16x32xf32>
    %264 = arith.addf %262, %263 : vector<16x32xf32>
    %c1_115 = arith.constant 1 : index
    %c0_116 = arith.constant 0 : index
    %c0_117 = arith.constant 0 : index
    %265 = vector.load %arg8[%c1_115, %c0_116, %c0_117] : memref<2x32x2048xbf16, #tpu.memory_space<vmem>>, vector<1x32x2048xbf16>
    %266 = vector.shape_cast %265 : vector<1x32x2048xbf16> to vector<32x2048xbf16>
    %c1_118 = arith.constant 1 : index
    %c0_119 = arith.constant 0 : index
    %c0_120 = arith.constant 0 : index
    %267 = vector.load %arg9[%c1_118, %c0_119, %c0_120] : memref<2x1x2048xf32, #tpu.memory_space<vmem>>, vector<1x1x2048xf32>
    %268 = vector.shape_cast %267 : vector<1x1x2048xf32> to vector<1x2048xf32>
    %269 = arith.truncf %264 : vector<16x32xf32> to vector<16x32xbf16>
    %cst_121 = arith.constant dense<0.000000e+00> : vector<16x2048xf32>
    %270 = tpu.matmul %269, %266, %cst_121 {dimension_numbers = #tpu.dot_dimension_numbers<[1], [0], [0], [1], [0, 0, 1, 1], [], []>} : vector<16x32xbf16>, vector<32x2048xbf16>, vector<16x2048xf32> -> vector<16x2048xf32>
    %271 = vector.broadcast %268 : vector<1x2048xf32> to vector<16x2048xf32>
    %272 = arith.addf %270, %271 : vector<16x2048xf32>
    %cst_122 = arith.constant 0.000000e+00 : f32
    %273 = vector.broadcast %cst_122 : f32 to vector<16x2048xf32>
    %274 = arith.maximumf %272, %273 : vector<16x2048xf32>
    %c1_123 = arith.constant 1 : index
    %c0_124 = arith.constant 0 : index
    %c0_125 = arith.constant 0 : index
    %275 = vector.load %arg10[%c1_123, %c0_124, %c0_125] : memref<2x2048x32xbf16, #tpu.memory_space<vmem>>, vector<1x2048x32xbf16>
    %276 = vector.shape_cast %275 : vector<1x2048x32xbf16> to vector<2048x32xbf16>
    %c1_126 = arith.constant 1 : index
    %c0_127 = arith.constant 0 : index
    %c0_128 = arith.constant 0 : index
    %277 = vector.load %arg11[%c1_126, %c0_127, %c0_128] : memref<2x1x32xf32, #tpu.memory_space<vmem>>, vector<1x1x32xf32>
    %278 = vector.shape_cast %277 : vector<1x1x32xf32> to vector<1x32xf32>
    %279 = arith.truncf %274 : vector<16x2048xf32> to vector<16x2048xbf16>
    %cst_129 = arith.constant dense<0.000000e+00> : vector<16x32xf32>
    %280 = tpu.matmul %279, %276, %cst_129 {dimension_numbers = #tpu.dot_dimension_numbers<[1], [0], [0], [1], [0, 0, 1, 1], [], []>} : vector<16x2048xbf16>, vector<2048x32xbf16>, vector<16x32xf32> -> vector<16x32xf32>
    %281 = vector.broadcast %278 : vector<1x32xf32> to vector<16x32xf32>
    %282 = arith.addf %280, %281 : vector<16x32xf32>
    %283 = arith.addf %264, %282 : vector<16x32xf32>
    %c1_130 = arith.constant 1 : index
    %c0_131 = arith.constant 0 : index
    %c0_132 = arith.constant 0 : index
    %284 = vector.load %arg14[%c1_130, %c0_131, %c0_132] : memref<2x1x32xf32, #tpu.memory_space<vmem>>, vector<1x1x32xf32>
    %285 = vector.shape_cast %284 : vector<1x1x32xf32> to vector<1x32xf32>
    %c1_133 = arith.constant 1 : index
    %c0_134 = arith.constant 0 : index
    %c0_135 = arith.constant 0 : index
    %286 = vector.load %arg15[%c1_133, %c0_134, %c0_135] : memref<2x1x32xf32, #tpu.memory_space<vmem>>, vector<1x1x32xf32>
    %287 = vector.shape_cast %286 : vector<1x1x32xf32> to vector<1x32xf32>
    %cst_136 = arith.constant dense<0.000000e+00> : vector<16xf32>
    %288 = vector.multi_reduction <add>, %283, %cst_136 [1] : vector<16x32xf32> to vector<16xf32>
    %289 = vector.shape_cast %288 : vector<16xf32> to vector<16x1xf32>
    %cst_137 = arith.constant 3.200000e+01 : f32
    %290 = vector.broadcast %cst_137 : f32 to vector<16x1xf32>
    %291 = arith.divf %289, %290 : vector<16x1xf32>
    %292 = vector.broadcast %291 : vector<16x1xf32> to vector<16x32xf32>
    %293 = arith.subf %283, %292 : vector<16x32xf32>
    %294 = arith.mulf %293, %293 : vector<16x32xf32>
    %cst_138 = arith.constant dense<0.000000e+00> : vector<16xf32>
    %295 = vector.multi_reduction <add>, %294, %cst_138 [1] : vector<16x32xf32> to vector<16xf32>
    %296 = vector.shape_cast %295 : vector<16xf32> to vector<16x1xf32>
    %cst_139 = arith.constant 3.200000e+01 : f32
    %297 = vector.broadcast %cst_139 : f32 to vector<16x1xf32>
    %298 = arith.divf %296, %297 : vector<16x1xf32>
    %cst_140 = arith.constant 9.99999974E-6 : f32
    %299 = vector.broadcast %cst_140 : f32 to vector<16x1xf32>
    %300 = arith.addf %298, %299 : vector<16x1xf32>
    %301 = math.rsqrt %300 : vector<16x1xf32>
    %302 = vector.broadcast %301 : vector<16x1xf32> to vector<16x32xf32>
    %303 = arith.mulf %293, %302 : vector<16x32xf32>
    %304 = vector.broadcast %285 : vector<1x32xf32> to vector<16x32xf32>
    %305 = arith.mulf %303, %304 : vector<16x32xf32>
    %306 = vector.broadcast %287 : vector<1x32xf32> to vector<16x32xf32>
    %307 = arith.addf %305, %306 : vector<16x32xf32>
    %308 = vector.shape_cast %307 : vector<16x32xf32> to vector<2x8x32xf32>
    %309 = vector.extract_strided_slice %308 {offsets = [0, 7, 0], sizes = [2, 1, 32], strides = [1, 1, 1]} : vector<2x8x32xf32> to vector<2x1x32xf32>
    %310 = vector.shape_cast %309 : vector<2x1x32xf32> to vector<2x32xf32>
    %c0_141 = arith.constant 0 : index
    %c0_142 = arith.constant 0 : index
    %311 = vector.load %arg16[%c0_141, %c0_142] : memref<32x512xbf16, #tpu.memory_space<vmem>>, vector<32x512xbf16>
    %c0_143 = arith.constant 0 : index
    %c0_144 = arith.constant 0 : index
    %312 = vector.load %arg17[%c0_143, %c0_144] : memref<1x512xf32, #tpu.memory_space<vmem>>, vector<1x512xf32>
    %313 = arith.truncf %310 : vector<2x32xf32> to vector<2x32xbf16>
    %cst_145 = arith.constant dense<0.000000e+00> : vector<2x512xf32>
    %314 = tpu.matmul %313, %311, %cst_145 {dimension_numbers = #tpu.dot_dimension_numbers<[1], [0], [0], [1], [0, 0, 1, 1], [], []>} : vector<2x32xbf16>, vector<32x512xbf16>, vector<2x512xf32> -> vector<2x512xf32>
    %315 = vector.broadcast %312 : vector<1x512xf32> to vector<2x512xf32>
    %316 = arith.addf %314, %315 : vector<2x512xf32>
    %cst_146 = arith.constant 0.000000e+00 : f32
    %317 = vector.broadcast %cst_146 : f32 to vector<2x512xf32>
    %318 = arith.maximumf %316, %317 : vector<2x512xf32>
    %c0_147 = arith.constant 0 : index
    %c0_148 = arith.constant 0 : index
    %319 = vector.load %arg18[%c0_147, %c0_148] : memref<512x256xbf16, #tpu.memory_space<vmem>>, vector<512x256xbf16>
    %c0_149 = arith.constant 0 : index
    %c0_150 = arith.constant 0 : index
    %320 = vector.load %arg19[%c0_149, %c0_150] : memref<1x256xf32, #tpu.memory_space<vmem>>, vector<1x256xf32>
    %321 = arith.truncf %318 : vector<2x512xf32> to vector<2x512xbf16>
    %cst_151 = arith.constant dense<0.000000e+00> : vector<2x256xf32>
    %322 = tpu.matmul %321, %319, %cst_151 {dimension_numbers = #tpu.dot_dimension_numbers<[1], [0], [0], [1], [0, 0, 1, 1], [], []>} : vector<2x512xbf16>, vector<512x256xbf16>, vector<2x256xf32> -> vector<2x256xf32>
    %323 = vector.broadcast %320 : vector<1x256xf32> to vector<2x256xf32>
    %324 = arith.addf %322, %323 : vector<2x256xf32>
    %325 = vector.shape_cast %324 : vector<2x256xf32> to vector<2x1x256xf32>
    %c0_152 = arith.constant 0 : index
    %c0_153 = arith.constant 0 : index
    %c0_154 = arith.constant 0 : index
    %326 = vector.load %arg20[%c0_152, %c0_153, %c0_154] : memref<2x1x256xf32, #tpu.memory_space<vmem>>, vector<2x1x256xf32>
    tpu.vector_store %arg20[%c0_152, %c0_153, %c0_154], %325 {strides = array<i32>} : memref<2x1x256xf32, #tpu.memory_space<vmem>>, vector<2x1x256xf32>,
    return
  }
  func.func @transform_0(%arg0: i32) -> (i32, i32, i32) {
    %c0_i32 = arith.constant 0 : i32
    %c0_i32_0 = arith.constant 0 : i32
    %c0_i32_1 = arith.constant 0 : i32
    return %arg0, %c0_i32, %c0_i32_0 : i32, i32, i32
  }
  func.func @transform_1(%arg0: i32) -> (i32, i32) {
    %c0_i32 = arith.constant 0 : i32
    %c0_i32_0 = arith.constant 0 : i32
    %c0_i32_1 = arith.constant 0 : i32
    return %c0_i32, %c0_i32_0 : i32, i32
  }
  func.func @transform_2(%arg0: i32) -> (i32, i32) {
    %c0_i32 = arith.constant 0 : i32
    %c0_i32_0 = arith.constant 0 : i32
    %c0_i32_1 = arith.constant 0 : i32
    return %c0_i32, %c0_i32_0 : i32, i32
  }
  func.func @transform_3(%arg0: i32) -> (i32, i32, i32) {
    %c0_i32 = arith.constant 0 : i32
    %c0_i32_0 = arith.constant 0 : i32
    %c0_i32_1 = arith.constant 0 : i32
    %c0_i32_2 = arith.constant 0 : i32
    return %c0_i32, %c0_i32_0, %c0_i32_1 : i32, i32, i32
  }
  func.func @transform_4(%arg0: i32) -> (i32, i32, i32) {
    %c0_i32 = arith.constant 0 : i32
    %c0_i32_0 = arith.constant 0 : i32
    %c0_i32_1 = arith.constant 0 : i32
    %c0_i32_2 = arith.constant 0 : i32
    return %c0_i32, %c0_i32_0, %c0_i32_1 : i32, i32, i32
  }
  func.func @transform_5(%arg0: i32) -> (i32, i32, i32) {
    %c0_i32 = arith.constant 0 : i32
    %c0_i32_0 = arith.constant 0 : i32
    %c0_i32_1 = arith.constant 0 : i32
    %c0_i32_2 = arith.constant 0 : i32
    return %c0_i32, %c0_i32_0, %c0_i32_1 : i32, i32, i32
  }
  func.func @transform_6(%arg0: i32) -> (i32, i32, i32) {
    %c0_i32 = arith.constant 0 : i32
    %c0_i32_0 = arith.constant 0 : i32
    %c0_i32_1 = arith.constant 0 : i32
    %c0_i32_2 = arith.constant 0 : i32
    return %c0_i32, %c0_i32_0, %c0_i32_1 : i32, i32, i32
  }
  func.func @transform_7(%arg0: i32) -> (i32, i32, i32) {
    %c0_i32 = arith.constant 0 : i32
    %c0_i32_0 = arith.constant 0 : i32
    %c0_i32_1 = arith.constant 0 : i32
    %c0_i32_2 = arith.constant 0 : i32
    return %c0_i32, %c0_i32_0, %c0_i32_1 : i32, i32, i32
  }
  func.func @transform_8(%arg0: i32) -> (i32, i32, i32) {
    %c0_i32 = arith.constant 0 : i32
    %c0_i32_0 = arith.constant 0 : i32
    %c0_i32_1 = arith.constant 0 : i32
    %c0_i32_2 = arith.constant 0 : i32
    return %c0_i32, %c0_i32_0, %c0_i32_1 : i32, i32, i32
  }
  func.func @transform_9(%arg0: i32) -> (i32, i32, i32) {
    %c0_i32 = arith.constant 0 : i32
    %c0_i32_0 = arith.constant 0 : i32
    %c0_i32_1 = arith.constant 0 : i32
    %c0_i32_2 = arith.constant 0 : i32
    return %c0_i32, %c0_i32_0, %c0_i32_1 : i32, i32, i32
  }
  func.func @transform_10(%arg0: i32) -> (i32, i32, i32) {
    %c0_i32 = arith.constant 0 : i32
    %c0_i32_0 = arith.constant 0 : i32
    %c0_i32_1 = arith.constant 0 : i32
    %c0_i32_2 = arith.constant 0 : i32
    return %c0_i32, %c0_i32_0, %c0_i32_1 : i32, i32, i32
  }
  func.func @transform_11(%arg0: i32) -> (i32, i32, i32) {
    %c0_i32 = arith.constant 0 : i32
    %c0_i32_0 = arith.constant 0 : i32
    %c0_i32_1 = arith.constant 0 : i32
    %c0_i32_2 = arith.constant 0 : i32
    return %c0_i32, %c0_i32_0, %c0_i32_1 : i32, i32, i32
  }
  func.func @transform_12(%arg0: i32) -> (i32, i32, i32) {
    %c0_i32 = arith.constant 0 : i32
    %c0_i32_0 = arith.constant 0 : i32
    %c0_i32_1 = arith.constant 0 : i32
    %c0_i32_2 = arith.constant 0 : i32
    return %c0_i32, %c0_i32_0, %c0_i32_1 : i32, i32, i32
  }
  func.func @transform_13(%arg0: i32) -> (i32, i32, i32) {
    %c0_i32 = arith.constant 0 : i32
    %c0_i32_0 = arith.constant 0 : i32
    %c0_i32_1 = arith.constant 0 : i32
    %c0_i32_2 = arith.constant 0 : i32
    return %c0_i32, %c0_i32_0, %c0_i32_1 : i32, i32, i32
  }
  func.func @transform_14(%arg0: i32) -> (i32, i32, i32) {
    %c0_i32 = arith.constant 0 : i32
    %c0_i32_0 = arith.constant 0 : i32
    %c0_i32_1 = arith.constant 0 : i32
    %c0_i32_2 = arith.constant 0 : i32
    return %c0_i32, %c0_i32_0, %c0_i32_1 : i32, i32, i32
  }
  func.func @transform_15(%arg0: i32) -> (i32, i32) {
    %c0_i32 = arith.constant 0 : i32
    %c0_i32_0 = arith.constant 0 : i32
    %c0_i32_1 = arith.constant 0 : i32
    return %c0_i32, %c0_i32_0 : i32, i32
  }
  func.func @transform_16(%arg0: i32) -> (i32, i32) {
    %c0_i32 = arith.constant 0 : i32
    %c0_i32_0 = arith.constant 0 : i32
    %c0_i32_1 = arith.constant 0 : i32
    return %c0_i32, %c0_i32_0 : i32, i32
  }
  func.func @transform_17(%arg0: i32) -> (i32, i32) {
    %c0_i32 = arith.constant 0 : i32
    %c0_i32_0 = arith.constant 0 : i32
    %c0_i32_1 = arith.constant 0 : i32
    return %c0_i32, %c0_i32_0 : i32, i32
  }
  func.func @transform_18(%arg0: i32) -> (i32, i32) {
    %c0_i32 = arith.constant 0 : i32
    %c0_i32_0 = arith.constant 0 : i32
    %c0_i32_1 = arith.constant 0 : i32
    return %c0_i32, %c0_i32_0 : i32, i32
  }
  func.func @transform_19(%arg0: i32) -> (i32, i32, i32) {
    %c0_i32 = arith.constant 0 : i32
    %c0_i32_0 = arith.constant 0 : i32
    %c0_i32_1 = arith.constant 0 : i32
    return %arg0, %c0_i32, %c0_i32_0 : i32, i32, i32
  }
}

</mosaic_0001>

<llo_original>
// kernel: avatar_poser_forward.1
$region0: #{avatar_poser_forward.1}
  #allocation0 [shape = 'u32[]', space=smem, size = 0x4, offset = 0x4, fixed_abs, tag = 'smem constant byte address 0x4 - core index']
  #allocation1 [shape = 'u32[144,128]{1,0:T(1,128)}', space=vmem, size = 0x12000, scoped, tag = 'internal scratch']
  %s0 = inlined_call_operand.vmem [shape: f32[2,8,128], index: 0, kind: input, shape index: {}]
  %s1 = inlined_call_operand.vmem [shape: bf16[128,32], index: 1, kind: input, shape index: {}]
  %s2 = inlined_call_operand.vmem [shape: f32[1,32], index: 2, kind: input, shape index: {}]
  %s3 = inlined_call_operand.vmem [shape: bf16[2,32,96], index: 3, kind: input, shape index: {}]
  %s4 = inlined_call_operand.vmem [shape: f32[2,1,96], index: 4, kind: input, shape index: {}]
  %s5 = inlined_call_operand.vmem [shape: bf16[2,32,32], index: 5, kind: input, shape index: {}]
  %s6 = inlined_call_operand.vmem [shape: f32[2,1,32], index: 6, kind: input, shape index: {}]
  %s7 = inlined_call_operand.vmem [shape: bf16[2,32,2048], index: 7, kind: input, shape index: {}]
  %s8 = inlined_call_operand.vmem [shape: f32[2,1,2048], index: 8, kind: input, shape index: {}]
  %s9 = inlined_call_operand.vmem [shape: bf16[2,2048,32], index: 9, kind: input, shape index: {}]
  %s10 = inlined_call_operand.vmem [shape: f32[2,1,32], index: 10, kind: input, shape index: {}]
  %s11 = inlined_call_operand.vmem [shape: f32[2,1,32], index: 11, kind: input, shape index: {}]
  %s12 = inlined_call_operand.vmem [shape: f32[2,1,32], index: 12, kind: input, shape index: {}]
  %s13 = inlined_call_operand.vmem [shape: f32[2,1,32], index: 13, kind: input, shape index: {}]
  %s14 = inlined_call_operand.vmem [shape: f32[2,1,32], index: 14, kind: input, shape index: {}]
  %s15 = inlined_call_operand.vmem [shape: bf16[32,512], index: 15, kind: input, shape index: {}]
  %s16 = inlined_call_operand.vmem [shape: f32[1,512], index: 16, kind: input, shape index: {}]
  %s17 = inlined_call_operand.vmem [shape: bf16[512,256], index: 17, kind: input, shape index: {}]
  %s18 = inlined_call_operand.vmem [shape: f32[1,256], index: 18, kind: input, shape index: {}]
  %s19 = inlined_call_operand.vmem [shape: f32[2,1,256], index: 19, kind: output, shape index: {}]
  %s20 = sld [smem:[#allocation0]]
  $region86: #{avatar_poser_forward.1} parent=0
    _
  %s22 = ssub.s32 1, %s20
  %s23 = scalar_select 0, %s22, %s20
  // Predicated region
  $region2: #{avatar_poser_forward.1} parent=0 // pred_check
    _
  $region3: #{avatar_poser_forward.1} parent=0 // pred_check_branch
    %25 = sbr.rel (0) target = $region5
  $region4: #{avatar_poser_forward.1} parent=0 // pred_region
    _
  $region5: #{avatar_poser_forward.1} parent=0 // pred_fallthru
    _
  // Predicated region
  $region6: #{avatar_poser_forward.1} parent=0 // pred_check
    _
  $region7: #{avatar_poser_forward.1} parent=0 // pred_check_branch
    %27 = sbr.rel (0) target = $region9
  $region8: #{avatar_poser_forward.1} parent=0 // pred_region
    _
  $region9: #{avatar_poser_forward.1} parent=0 // pred_fallthru
    _
  // Predicated region
  $region10: #{avatar_poser_forward.1} parent=0 // pred_check
    _
  $region11: #{avatar_poser_forward.1} parent=0 // pred_check_branch
    %29 = sbr.rel (0) target = $region13
  $region12: #{avatar_poser_forward.1} parent=0 // pred_region
    _
  $region13: #{avatar_poser_forward.1} parent=0 // pred_fallthru
    _
  // Predicated region
  $region14: #{avatar_poser_forward.1} parent=0 // pred_check
    _
  $region15: #{avatar_poser_forward.1} parent=0 // pred_check_branch
    %31 = sbr.rel (0) target = $region17
  $region16: #{avatar_poser_forward.1} parent=0 // pred_region
    _
  $region17: #{avatar_poser_forward.1} parent=0 // pred_fallthru
    _
  // Predicated region
  $region18: #{avatar_poser_forward.1} parent=0 // pred_check
    _
  $region19: #{avatar_poser_forward.1} parent=0 // pred_check_branch
    %33 = sbr.rel (0) target = $region21
  $region20: #{avatar_poser_forward.1} parent=0 // pred_region
    _
  $region21: #{avatar_poser_forward.1} parent=0 // pred_fallthru
    _
  // Predicated region
  $region22: #{avatar_poser_forward.1} parent=0 // pred_check
    _
  $region23: #{avatar_poser_forward.1} parent=0 // pred_check_branch
    %35 = sbr.rel (0) target = $region25
  $region24: #{avatar_poser_forward.1} parent=0 // pred_region
    _
  $region25: #{avatar_poser_forward.1} parent=0 // pred_fallthru
    _
  // Predicated region
  $region26: #{avatar_poser_forward.1} parent=0 // pred_check
    _
  $region27: #{avatar_poser_forward.1} parent=0 // pred_check_branch
    %37 = sbr.rel (0) target = $region29
  $region28: #{avatar_poser_forward.1} parent=0 // pred_region
    _
  $region29: #{avatar_poser_forward.1} parent=0 // pred_fallthru
    _
  // Predicated region
  $region30: #{avatar_poser_forward.1} parent=0 // pred_check
    _
  $region31: #{avatar_poser_forward.1} parent=0 // pred_check_branch
    %39 = sbr.rel (0) target = $region33
  $region32: #{avatar_poser_forward.1} parent=0 // pred_region
    _
  $region33: #{avatar_poser_forward.1} parent=0 // pred_fallthru
    _
  // Predicated region
  $region34: #{avatar_poser_forward.1} parent=0 // pred_check
    _
  $region35: #{avatar_poser_forward.1} parent=0 // pred_check_branch
    %41 = sbr.rel (0) target = $region37
  $region36: #{avatar_poser_forward.1} parent=0 // pred_region
    _
  $region37: #{avatar_poser_forward.1} parent=0 // pred_fallthru
    _
  // Predicated region
  $region38: #{avatar_poser_forward.1} parent=0 // pred_check
    _
  $region39: #{avatar_poser_forward.1} parent=0 // pred_check_branch
    %43 = sbr.rel (0) target = $region41
  $region40: #{avatar_poser_forward.1} parent=0 // pred_region
    _
  $region41: #{avatar_poser_forward.1} parent=0 // pred_fallthru
    _
  // Predicated region
  $region42: #{avatar_poser_forward.1} parent=0 // pred_check
    _
  $region43: #{avatar_poser_forward.1} parent=0 // pred_check_branch
    %45 = sbr.rel (0) target = $region45
  $region44: #{avatar_poser_forward.1} parent=0 // pred_region
    _
  $region45: #{avatar_poser_forward.1} parent=0 // pred_fallthru
    _
  // Predicated region
  $region46: #{avatar_poser_forward.1} parent=0 // pred_check
    _
  $region47: #{avatar_poser_forward.1} parent=0 // pred_check_branch
    %47 = sbr.rel (0) target = $region49
  $region48: #{avatar_poser_forward.1} parent=0 // pred_region
    _
  $region49: #{avatar_poser_forward.1} parent=0 // pred_fallthru
    _
  // Predicated region
  $region50: #{avatar_poser_forward.1} parent=0 // pred_check
    _
  $region51: #{avatar_poser_forward.1} parent=0 // pred_check_branch
    %49 = sbr.rel (0) target = $region53
  $region52: #{avatar_poser_forward.1} parent=0 // pred_region
    _
  $region53: #{avatar_poser_forward.1} parent=0 // pred_fallthru
    _
  // Predicated region
  $region54: #{avatar_poser_forward.1} parent=0 // pred_check
    _
  $region55: #{avatar_poser_forward.1} parent=0 // pred_check_branch
    %51 = sbr.rel (0) target = $region57
  $region56: #{avatar_poser_forward.1} parent=0 // pred_region
    _
  $region57: #{avatar_poser_forward.1} parent=0 // pred_fallthru
    _
  // Predicated region
  $region58: #{avatar_poser_forward.1} parent=0 // pred_check
    _
  $region59: #{avatar_poser_forward.1} parent=0 // pred_check_branch
    %53 = sbr.rel (0) target = $region61
  $region60: #{avatar_poser_forward.1} parent=0 // pred_region
    _
  $region61: #{avatar_poser_forward.1} parent=0 // pred_fallthru
    _
  // Predicated region
  $region62: #{avatar_poser_forward.1} parent=0 // pred_check
    _
  $region63: #{avatar_poser_forward.1} parent=0 // pred_check_branch
    %55 = sbr.rel (0) target = $region65
  $region64: #{avatar_poser_forward.1} parent=0 // pred_region
    _
  $region65: #{avatar_poser_forward.1} parent=0 // pred_fallthru
    _
  // Predicated region
  $region66: #{avatar_poser_forward.1} parent=0 // pred_check
    _
  $region67: #{avatar_poser_forward.1} parent=0 // pred_check_branch
    %57 = sbr.rel (0) target = $region69
  $region68: #{avatar_poser_forward.1} parent=0 // pred_region
    _
  $region69: #{avatar_poser_forward.1} parent=0 // pred_fallthru
    _
  // Predicated region
  $region70: #{avatar_poser_forward.1} parent=0 // pred_check
    _
  $region71: #{avatar_poser_forward.1} parent=0 // pred_check_branch
    %59 = sbr.rel (0) target = $region73
  $region72: #{avatar_poser_forward.1} parent=0 // pred_region
    _
  $region73: #{avatar_poser_forward.1} parent=0 // pred_fallthru
    _
  // Predicated region
  $region74: #{avatar_poser_forward.1} parent=0 // pred_check
    _
  $region75: #{avatar_poser_forward.1} parent=0 // pred_check_branch
    %61 = sbr.rel (0) target = $region77
  $region76: #{avatar_poser_forward.1} parent=0 // pred_region
    _
  $region77: #{avatar_poser_forward.1} parent=0 // pred_fallthru
    _
  %v63 = vld [vmem:[%s0] sm:$0xff]
  %v64 = vld [vmem:[%s0 + $0x8] sm:$0xff]
  %v65 = vld [vmem:[%s1] sm:$0xf]
  %v66 = vld [vmem:[%s1 + $0x4] sm:$0xf]
  %v67 = vld [vmem:[%s1 + $0x8] sm:$0xf]
  %v68 = vld [vmem:[%s1 + $0xc] sm:$0xf]
  %v69 = vld [vmem:[%s1 + $0x10] sm:$0xf]
  %v70 = vld [vmem:[%s1 + $0x14] sm:$0xf]
  %v71 = vld [vmem:[%s1 + $0x18] sm:$0xf]
  %v72 = vld [vmem:[%s1 + $0x1c] sm:$0xf]
  %v73 = vld [vmem:[%s1 + $0x20] sm:$0xf]
  %v74 = vld [vmem:[%s1 + $0x24] sm:$0xf]
  %v75 = vld [vmem:[%s1 + $0x28] sm:$0xf]
  %v76 = vld [vmem:[%s1 + $0x2c] sm:$0xf]
  %v77 = vld [vmem:[%s1 + $0x30] sm:$0xf]
  %v78 = vld [vmem:[%s1 + $0x34] sm:$0xf]
  %v79 = vld [vmem:[%s1 + $0x38] sm:$0xf]
  %v80 = vld [vmem:[%s1 + $0x3c] sm:$0xf]
  %v81 = vld [vmem:[%s2] sm:$0x1]
  %v82 = vpack.c.bf16 %v64, %v63
  %v84 = vlaneseq
  %v85 = vshrl.u32 %v84, 7
  %v86 = vsub.s32 0, %v85
  %v87 = vrot.slane %v81, %v86
  %v105 = vunpack.c.l.b16 %v65
  %v106 = vunpack.c.l.b16 %v66
  %v107 = vunpack.c.l.b16 %v67
  %v108 = vunpack.c.l.b16 %v68
  %v109 = vunpack.c.l.b16 %v69
  %v110 = vunpack.c.l.b16 %v70
  %v111 = vunpack.c.l.b16 %v71
  %v112 = vunpack.c.l.b16 %v72
  %v113 = vunpack.c.l.b16 %v73
  %v114 = vunpack.c.l.b16 %v74
  %v115 = vunpack.c.l.b16 %v75
  %v116 = vunpack.c.l.b16 %v76
  %v117 = vunpack.c.l.b16 %v77
  %v118 = vunpack.c.l.b16 %v78
  %v119 = vunpack.c.l.b16 %v79
  %v120 = vunpack.c.l.b16 %v80
  %v121 = vpack.c.b16 %v106, %v105
  %v122 = vpack.c.b16 %v108, %v107
  %v123 = vpack.c.b16 %v110, %v109
  %v124 = vpack.c.b16 %v112, %v111
  %v125 = vpack.c.b16 %v114, %v113
  %v126 = vpack.c.b16 %v116, %v115
  %v127 = vpack.c.b16 %v118, %v117
  %v128 = vpack.c.b16 %v120, %v119
  %137 = vmatprep.subr.bf16.mxu0 0
  %138 = vmatpush1.bf16.msra.mxu0 %v128
  %139 = vmatprep.subr.bf16.mxu0 0
  %140 = vmatpush1.bf16.msra.mxu0 %v127
  %141 = vmatprep.subr.bf16.mxu0 0
  %142 = vmatpush1.bf16.msra.mxu0 %v126
  %143 = vmatprep.subr.bf16.mxu0 0
  %144 = vmatpush1.bf16.msra.mxu0 %v125
  %145 = vmatprep.subr.bf16.mxu0 0
  %146 = vmatpush1.bf16.msra.mxu0 %v124
  %147 = vmatprep.subr.bf16.mxu0 0
  %148 = vmatpush1.bf16.msra.mxu0 %v123
  %149 = vmatprep.subr.bf16.mxu0 0
  %150 = vmatpush1.bf16.msra.mxu0 %v122
  %151 = vmatprep.subr.bf16.mxu0 0
  %152 = vmatpush1.bf16.msra.mxu0 %v121
  %153 = vmatprep.subr.bf16.mxu0 0
  %154 = vmatpush2.bf16.msra.mxu0 0
  %155 = vmatprep.subr.bf16.mxu0 0
  %156 = vmatpush2.bf16.msra.mxu0 0
  %157 = vmatprep.subr.bf16.mxu0 0
  %158 = vmatpush2.bf16.msra.mxu0 0
  %159 = vmatprep.subr.bf16.mxu0 0
  %160 = vmatpush2.bf16.msra.mxu0 0
  %161 = vmatprep.subr.bf16.mxu0 0
  %162 = vmatpush2.bf16.msra.mxu0 0
  %163 = vmatprep.subr.bf16.mxu0 0
  %164 = vmatpush2.bf16.msra.mxu0 0
  %165 = vmatprep.subr.bf16.mxu0 0
  %166 = vmatpush2.bf16.msra.mxu0 0
  %167 = vmatprep.subr.bf16.mxu0 0
  %168 = vmatpush2.bf16.msra.mxu0 0
  %169 = vmatprep.mubr.bf16.mxu0 0
  %170 = vmatmul.mubr.bf16.gmra.mxu0 %v82
  %v171 = vpop.f32.mrf.mxu0
  %v172 = vadd.f32 %v87, %v171
  %v173 = vpop.f32.mrf.mxu0
  %v174 = vpop.f32.mrf.mxu0
  %v175 = vadd.f32 %v87, %v174
  %v176 = vpop.f32.mrf.mxu0
  %177 = vdwg.mxu0
  %v178 = vld [vmem:[%s3] sm:$0xf]
  %v179 = vld [vmem:[%s3 + $0x4] sm:$0xf]
  %v180 = vld [vmem:[%s3 + $0x8] sm:$0xf]
  %v181 = vld [vmem:[%s3 + $0xc] sm:$0xf]
  %v182 = vld [vmem:[%s4] sm:$0x1]
  %v183 = vpack.c.bf16 %v175, %v172
  %v185 = vlaneseq
  %v186 = vshrl.u32 %v185, 7
  %v187 = vsub.s32 0, %v186
  %v188 = vrot.slane %v182, %v187
  %v194 = vunpack.c.l.b16 %v178
  %v195 = vunpack.c.l.b16 %v179
  %v196 = vunpack.c.l.b16 %v180
  %v197 = vunpack.c.l.b16 %v181
  %v198 = vpack.c.b16 %v195, %v194
  %v199 = vpack.c.b16 %v197, %v196
  %vm202 = vcmask 261120
  %v204 = vsel %vm202, %v183, 0
  %206 = vmatprep.subr.bf16.mxu0 0
  %207 = vmatpush1.bf16.msra.mxu0 0
  %208 = vmatprep.subr.bf16.mxu0 0
  %209 = vmatpush1.bf16.msra.mxu0 0
  %210 = vmatprep.subr.bf16.mxu0 0
  %211 = vmatpush1.bf16.msra.mxu0 0
  %212 = vmatprep.subr.bf16.mxu0 0
  %213 = vmatpush1.bf16.msra.mxu0 0
  %214 = vmatprep.subr.bf16.mxu0 0
  %215 = vmatpush1.bf16.msra.mxu0 0
  %216 = vmatprep.subr.bf16.mxu0 0
  %217 = vmatpush1.bf16.msra.mxu0 0
  %218 = vmatprep.subr.bf16.mxu0 0
  %219 = vmatpush1.bf16.msra.mxu0 %v199
  %220 = vmatprep.subr.bf16.mxu0 0
  %221 = vmatpush1.bf16.msra.mxu0 %v198
  %222 = vmatprep.subr.bf16.mxu0 0
  %223 = vmatpush2.bf16.msra.mxu0 0
  %224 = vmatprep.subr.bf16.mxu0 0
  %225 = vmatpush2.bf16.msra.mxu0 0
  %226 = vmatprep.subr.bf16.mxu0 0
  %227 = vmatpush2.bf16.msra.mxu0 0
  %228 = vmatprep.subr.bf16.mxu0 0
  %229 = vmatpush2.bf16.msra.mxu0 0
  %230 = vmatprep.subr.bf16.mxu0 0
  %231 = vmatpush2.bf16.msra.mxu0 0
  %232 = vmatprep.subr.bf16.mxu0 0
  %233 = vmatpush2.bf16.msra.mxu0 0
  %234 = vmatprep.subr.bf16.mxu0 0
  %235 = vmatpush2.bf16.msra.mxu0 0
  %236 = vmatprep.subr.bf16.mxu0 0
  %237 = vmatpush2.bf16.msra.mxu0 0
  %238 = vmatprep.mubr.bf16.mxu0 0
  %239 = vmatmul.mubr.bf16.gmra.mxu0 %v204
  %v240 = vpop.f32.mrf.mxu0
  %v241 = vadd.f32 %v188, %v240
  %v242 = vpop.f32.mrf.mxu0
  %v243 = vpop.f32.mrf.mxu0
  %v244 = vadd.f32 %v188, %v243
  %v245 = vpop.f32.mrf.mxu0
  %246 = vdwg.mxu0
  %v247 = vmul.f32 %v241, 0.35355338
  %v248 = vmul.f32 %v244, 0.35355338
  %250 = vrot.lane.b32.xlu0 %v241, 96
  %v251 = vpop.permute.xlu0 %250
  %vm252 = vcmask 64512
  %v254 = vsel %vm252, %v247, 0
  %v256 = vsel %vm252, %v251, 0
  %258 = vmatprep.subr.mxu0 0.0
  %259 = vmatpush1.xpose.msra.mxu0 0.0
  %260 = vmatprep.subr.mxu0 0.0
  %261 = vmatpush1.xpose.msra.mxu0 0.0
  %262 = vmatprep.subr.mxu0 0.0
  %263 = vmatpush1.xpose.msra.mxu0 0.0
  %264 = vmatprep.subr.mxu0 0.0
  %265 = vmatpush1.xpose.msra.mxu0 0.0
  %266 = vmatprep.subr.mxu0 0.0
  %267 = vmatpush1.xpose.msra.mxu0 0.0
  %268 = vmatprep.subr.mxu0 0.0
  %269 = vmatpush1.xpose.msra.mxu0 0.0
  %270 = vmatprep.subr.mxu0 0.0
  %271 = vmatpush1.xpose.msra.mxu0 0.0
  %272 = vmatprep.subr.mxu0 0.0
  %273 = vmatpush1.xpose.msra.mxu0 0.0
  %274 = vmatprep.subr.mxu0 0.0
  %275 = vmatpush1.xpose.msra.mxu0 0.0
  %276 = vmatprep.subr.mxu0 0.0
  %277 = vmatpush1.xpose.msra.mxu0 0.0
  %278 = vmatprep.subr.mxu0 0.0
  %279 = vmatpush1.xpose.msra.mxu0 0.0
  %280 = vmatprep.subr.mxu0 0.0
  %281 = vmatpush1.xpose.msra.mxu0 0.0
  %282 = vmatprep.subr.mxu0 0.0
  %283 = vmatpush1.xpose.msra.mxu0 0.0
  %284 = vmatprep.subr.mxu0 0.0
  %285 = vmatpush1.xpose.msra.mxu0 0.0
  %286 = vmatprep.subr.mxu0 0.0
  %287 = vmatpush1.xpose.msra.mxu0 0.0
  %288 = vmatprep.subr.mxu0 0.0
  %289 = vmatpush1.xpose.msra.mxu0 %v256
  %290 = vmatprep.subr.mxu0 0.0
  %291 = vmatpush2.xpose.msra.mxu0 0.0
  %292 = vmatprep.subr.mxu0 0.0
  %293 = vmatpush2.xpose.msra.mxu0 0.0
  %294 = vmatprep.subr.mxu0 0.0
  %295 = vmatpush2.xpose.msra.mxu0 0.0
  %296 = vmatprep.subr.mxu0 0.0
  %297 = vmatpush2.xpose.msra.mxu0 0.0
  %298 = vmatprep.subr.mxu0 0.0
  %299 = vmatpush2.xpose.msra.mxu0 0.0
  %300 = vmatprep.subr.mxu0 0.0
  %301 = vmatpush2.xpose.msra.mxu0 0.0
  %302 = vmatprep.subr.mxu0 0.0
  %303 = vmatpush2.xpose.msra.mxu0 0.0
  %304 = vmatprep.subr.mxu0 0.0
  %305 = vmatpush2.xpose.msra.mxu0 0.0
  %306 = vmatprep.subr.mxu0 0.0
  %307 = vmatpush2.xpose.msra.mxu0 0.0
  %308 = vmatprep.subr.mxu0 0.0
  %309 = vmatpush2.xpose.msra.mxu0 0.0
  %310 = vmatprep.subr.mxu0 0.0
  %311 = vmatpush2.xpose.msra.mxu0 0.0
  %312 = vmatprep.subr.mxu0 0.0
  %313 = vmatpush2.xpose.msra.mxu0 0.0
  %314 = vmatprep.subr.mxu0 0.0
  %315 = vmatpush2.xpose.msra.mxu0 0.0
  %316 = vmatprep.subr.mxu0 0.0
  %317 = vmatpush2.xpose.msra.mxu0 0.0
  %318 = vmatprep.subr.mxu0 0.0
  %319 = vmatpush2.xpose.msra.mxu0 0.0
  %320 = vmatprep.subr.mxu0 0.0
  %321 = vmatpush2.xpose.msra.mxu0 0.0
  %322 = vmatprep.mubr.f32.mxu0 0.0
  %323 = vmatmul.mubr.f32.gmra.mxu0 %v254
  %v324 = vpop.f32.mrf.mxu0
  %v325 = vadd.f32 0.0, %v324
  %v326 = vpop.f32.mrf.mxu0
  %327 = vdwg.mxu0
  %329 = vrot.lane.b32.xlu0 %v244, 96
  %v330 = vpop.permute.xlu0 %329
  %v332 = vsel %vm252, %v248, 0
  %v334 = vsel %vm252, %v330, 0
  %336 = vmatprep.subr.mxu0 0.0
  %337 = vmatpush1.xpose.msra.mxu0 0.0
  %338 = vmatprep.subr.mxu0 0.0
  %339 = vmatpush1.xpose.msra.mxu0 0.0
  %340 = vmatprep.subr.mxu0 0.0
  %341 = vmatpush1.xpose.msra.mxu0 0.0
  %342 = vmatprep.subr.mxu0 0.0
  %343 = vmatpush1.xpose.msra.mxu0 0.0
  %344 = vmatprep.subr.mxu0 0.0
  %345 = vmatpush1.xpose.msra.mxu0 0.0
  %346 = vmatprep.subr.mxu0 0.0
  %347 = vmatpush1.xpose.msra.mxu0 0.0
  %348 = vmatprep.subr.mxu0 0.0
  %349 = vmatpush1.xpose.msra.mxu0 0.0
  %350 = vmatprep.subr.mxu0 0.0
  %351 = vmatpush1.xpose.msra.mxu0 0.0
  %352 = vmatprep.subr.mxu0 0.0
  %353 = vmatpush1.xpose.msra.mxu0 0.0
  %354 = vmatprep.subr.mxu0 0.0
  %355 = vmatpush1.xpose.msra.mxu0 0.0
  %356 = vmatprep.subr.mxu0 0.0
  %357 = vmatpush1.xpose.msra.mxu0 0.0
  %358 = vmatprep.subr.mxu0 0.0
  %359 = vmatpush1.xpose.msra.mxu0 0.0
  %360 = vmatprep.subr.mxu0 0.0
  %361 = vmatpush1.xpose.msra.mxu0 0.0
  %362 = vmatprep.subr.mxu0 0.0
  %363 = vmatpush1.xpose.msra.mxu0 0.0
  %364 = vmatprep.subr.mxu0 0.0
  %365 = vmatpush1.xpose.msra.mxu0 0.0
  %366 = vmatprep.subr.mxu0 0.0
  %367 = vmatpush1.xpose.msra.mxu0 %v334
  %368 = vmatprep.subr.mxu0 0.0
  %369 = vmatpush2.xpose.msra.mxu0 0.0
  %370 = vmatprep.subr.mxu0 0.0
  %371 = vmatpush2.xpose.msra.mxu0 0.0
  %372 = vmatprep.subr.mxu0 0.0
  %373 = vmatpush2.xpose.msra.mxu0 0.0
  %374 = vmatprep.subr.mxu0 0.0
  %375 = vmatpush2.xpose.msra.mxu0 0.0
  %376 = vmatprep.subr.mxu0 0.0
  %377 = vmatpush2.xpose.msra.mxu0 0.0
  %378 = vmatprep.subr.mxu0 0.0
  %379 = vmatpush2.xpose.msra.mxu0 0.0
  %380 = vmatprep.subr.mxu0 0.0
  %381 = vmatpush2.xpose.msra.mxu0 0.0
  %382 = vmatprep.subr.mxu0 0.0
  %383 = vmatpush2.xpose.msra.mxu0 0.0
  %384 = vmatprep.subr.mxu0 0.0
  %385 = vmatpush2.xpose.msra.mxu0 0.0
  %386 = vmatprep.subr.mxu0 0.0
  %387 = vmatpush2.xpose.msra.mxu0 0.0
  %388 = vmatprep.subr.mxu0 0.0
  %389 = vmatpush2.xpose.msra.mxu0 0.0
  %390 = vmatprep.subr.mxu0 0.0
  %391 = vmatpush2.xpose.msra.mxu0 0.0
  %392 = vmatprep.subr.mxu0 0.0
  %393 = vmatpush2.xpose.msra.mxu0 0.0
  %394 = vmatprep.subr.mxu0 0.0
  %395 = vmatpush2.xpose.msra.mxu0 0.0
  %396 = vmatprep.subr.mxu0 0.0
  %397 = vmatpush2.xpose.msra.mxu0 0.0
  %398 = vmatprep.subr.mxu0 0.0
  %399 = vmatpush2.xpose.msra.mxu0 0.0
  %400 = vmatprep.mubr.f32.mxu0 0.0
  %401 = vmatmul.mubr.f32.gmra.mxu0 %v332
  %v402 = vpop.f32.mrf.mxu0
  %v403 = vadd.f32 0.0, %v402
  %v404 = vpop.f32.mrf.mxu0
  %405 = vdwg.mxu0
  %v406 = vsel %vm252, %v325, -inf
  %407 = vmax.xlane.f32.xlu0 %v406
  %v408 = vpop.xlane.xlu0 %407
  %v409 = vsel %vm252, %v403, -inf
  %410 = vmax.xlane.f32.xlu0 %v409
  %v411 = vpop.xlane.xlu0 %410
  %v412 = vsub.f32 %v325, %v408
  %v413 = vsub.f32 %v403, %v411
  %v414 = vmul.f32 %v412, 1.442695
  %v415 = vpow.pop %v414
  %v416 = vmul.f32 %v413, 1.442695
  %v417 = vpow.pop %v416
  %v418 = vsel %vm252, %v415, 0.0
  %419 = vadd.xlane.f32.xlu0 %v418
  %v420 = vpop.xlane.xlu0 %419
  %v421 = vsel %vm252, %v417, 0.0
  %422 = vadd.xlane.f32.xlu0 %v421
  %v423 = vpop.xlane.xlu0 %422
  %v424 = vrcp.pop %v420
  %v425 = vmul.f32 %v415, %v424
  %v426 = vrcp.pop %v423
  %v427 = vmul.f32 %v417, %v426
  %428 = vrot.lane.b32.xlu0 %v241, 64
  %v429 = vpop.permute.xlu0 %428
  %v432 = vsel %vm252, %v425, 0
  %434 = vmatprep.subr.mxu0 0.0
  %435 = vmatpush1.msra.mxu0 0.0
  %436 = vmatprep.subr.mxu0 0.0
  %437 = vmatpush1.msra.mxu0 0.0
  %438 = vmatprep.subr.mxu0 0.0
  %439 = vmatpush1.msra.mxu0 0.0
  %440 = vmatprep.subr.mxu0 0.0
  %441 = vmatpush1.msra.mxu0 0.0
  %442 = vmatprep.subr.mxu0 0.0
  %443 = vmatpush1.msra.mxu0 0.0
  %444 = vmatprep.subr.mxu0 0.0
  %445 = vmatpush1.msra.mxu0 0.0
  %446 = vmatprep.subr.mxu0 0.0
  %447 = vmatpush1.msra.mxu0 0.0
  %448 = vmatprep.subr.mxu0 0.0
  %449 = vmatpush1.msra.mxu0 0.0
  %450 = vmatprep.subr.mxu0 0.0
  %451 = vmatpush1.msra.mxu0 0.0
  %452 = vmatprep.subr.mxu0 0.0
  %453 = vmatpush1.msra.mxu0 0.0
  %454 = vmatprep.subr.mxu0 0.0
  %455 = vmatpush1.msra.mxu0 0.0
  %456 = vmatprep.subr.mxu0 0.0
  %457 = vmatpush1.msra.mxu0 0.0
  %458 = vmatprep.subr.mxu0 0.0
  %459 = vmatpush1.msra.mxu0 0.0
  %460 = vmatprep.subr.mxu0 0.0
  %461 = vmatpush1.msra.mxu0 0.0
  %462 = vmatprep.subr.mxu0 0.0
  %463 = vmatpush1.msra.mxu0 0.0
  %464 = vmatprep.subr.mxu0 0.0
  %465 = vmatpush1.msra.mxu0 %v429
  %466 = vmatprep.subr.mxu0 0.0
  %467 = vmatpush2.msra.mxu0 0.0
  %468 = vmatprep.subr.mxu0 0.0
  %469 = vmatpush2.msra.mxu0 0.0
  %470 = vmatprep.subr.mxu0 0.0
  %471 = vmatpush2.msra.mxu0 0.0
  %472 = vmatprep.subr.mxu0 0.0
  %473 = vmatpush2.msra.mxu0 0.0
  %474 = vmatprep.subr.mxu0 0.0
  %475 = vmatpush2.msra.mxu0 0.0
  %476 = vmatprep.subr.mxu0 0.0
  %477 = vmatpush2.msra.mxu0 0.0
  %478 = vmatprep.subr.mxu0 0.0
  %479 = vmatpush2.msra.mxu0 0.0
  %480 = vmatprep.subr.mxu0 0.0
  %481 = vmatpush2.msra.mxu0 0.0
  %482 = vmatprep.subr.mxu0 0.0
  %483 = vmatpush2.msra.mxu0 0.0
  %484 = vmatprep.subr.mxu0 0.0
  %485 = vmatpush2.msra.mxu0 0.0
  %486 = vmatprep.subr.mxu0 0.0
  %487 = vmatpush2.msra.mxu0 0.0
  %488 = vmatprep.subr.mxu0 0.0
  %489 = vmatpush2.msra.mxu0 0.0
  %490 = vmatprep.subr.mxu0 0.0
  %491 = vmatpush2.msra.mxu0 0.0
  %492 = vmatprep.subr.mxu0 0.0
  %493 = vmatpush2.msra.mxu0 0.0
  %494 = vmatprep.subr.mxu0 0.0
  %495 = vmatpush2.msra.mxu0 0.0
  %496 = vmatprep.subr.mxu0 0.0
  %497 = vmatpush2.msra.mxu0 0.0
  %498 = vmatprep.mubr.f32.mxu0 0.0
  %499 = vmatmul.mubr.f32.gmra.mxu0 %v432
  %v500 = vpop.f32.mrf.mxu0
  %v501 = vadd.f32 0.0, %v500
  %v502 = vpop.f32.mrf.mxu0
  %503 = vdwg.mxu0
  %504 = vrot.lane.b32.xlu0 %v244, 64
  %v505 = vpop.permute.xlu0 %504
  %v508 = vsel %vm252, %v427, 0
  %510 = vmatprep.subr.mxu0 0.0
  %511 = vmatpush1.msra.mxu0 0.0
  %512 = vmatprep.subr.mxu0 0.0
  %513 = vmatpush1.msra.mxu0 0.0
  %514 = vmatprep.subr.mxu0 0.0
  %515 = vmatpush1.msra.mxu0 0.0
  %516 = vmatprep.subr.mxu0 0.0
  %517 = vmatpush1.msra.mxu0 0.0
  %518 = vmatprep.subr.mxu0 0.0
  %519 = vmatpush1.msra.mxu0 0.0
  %520 = vmatprep.subr.mxu0 0.0
  %521 = vmatpush1.msra.mxu0 0.0
  %522 = vmatprep.subr.mxu0 0.0
  %523 = vmatpush1.msra.mxu0 0.0
  %524 = vmatprep.subr.mxu0 0.0
  %525 = vmatpush1.msra.mxu0 0.0
  %526 = vmatprep.subr.mxu0 0.0
  %527 = vmatpush1.msra.mxu0 0.0
  %528 = vmatprep.subr.mxu0 0.0
  %529 = vmatpush1.msra.mxu0 0.0
  %530 = vmatprep.subr.mxu0 0.0
  %531 = vmatpush1.msra.mxu0 0.0
  %532 = vmatprep.subr.mxu0 0.0
  %533 = vmatpush1.msra.mxu0 0.0
  %534 = vmatprep.subr.mxu0 0.0
  %535 = vmatpush1.msra.mxu0 0.0
  %536 = vmatprep.subr.mxu0 0.0
  %537 = vmatpush1.msra.mxu0 0.0
  %538 = vmatprep.subr.mxu0 0.0
  %539 = vmatpush1.msra.mxu0 0.0
  %540 = vmatprep.subr.mxu0 0.0
  %541 = vmatpush1.msra.mxu0 %v505
  %542 = vmatprep.subr.mxu0 0.0
  %543 = vmatpush2.msra.mxu0 0.0
  %544 = vmatprep.subr.mxu0 0.0
  %545 = vmatpush2.msra.mxu0 0.0
  %546 = vmatprep.subr.mxu0 0.0
  %547 = vmatpush2.msra.mxu0 0.0
  %548 = vmatprep.subr.mxu0 0.0
  %549 = vmatpush2.msra.mxu0 0.0
  %550 = vmatprep.subr.mxu0 0.0
  %551 = vmatpush2.msra.mxu0 0.0
  %552 = vmatprep.subr.mxu0 0.0
  %553 = vmatpush2.msra.mxu0 0.0
  %554 = vmatprep.subr.mxu0 0.0
  %555 = vmatpush2.msra.mxu0 0.0
  %556 = vmatprep.subr.mxu0 0.0
  %557 = vmatpush2.msra.mxu0 0.0
  %558 = vmatprep.subr.mxu0 0.0
  %559 = vmatpush2.msra.mxu0 0.0
  %560 = vmatprep.subr.mxu0 0.0
  %561 = vmatpush2.msra.mxu0 0.0
  %562 = vmatprep.subr.mxu0 0.0
  %563 = vmatpush2.msra.mxu0 0.0
  %564 = vmatprep.subr.mxu0 0.0
  %565 = vmatpush2.msra.mxu0 0.0
  %566 = vmatprep.subr.mxu0 0.0
  %567 = vmatpush2.msra.mxu0 0.0
  %568 = vmatprep.subr.mxu0 0.0
  %569 = vmatpush2.msra.mxu0 0.0
  %570 = vmatprep.subr.mxu0 0.0
  %571 = vmatpush2.msra.mxu0 0.0
  %572 = vmatprep.subr.mxu0 0.0
  %573 = vmatpush2.msra.mxu0 0.0
  %574 = vmatprep.mubr.f32.mxu0 0.0
  %575 = vmatmul.mubr.f32.gmra.mxu0 %v508
  %v576 = vpop.f32.mrf.mxu0
  %v577 = vadd.f32 0.0, %v576
  %v578 = vpop.f32.mrf.mxu0
  %579 = vdwg.mxu0
  %580 = vrot.lane.b32.xlu0 %v247, 120
  %v581 = vpop.permute.xlu0 %580
  %582 = vrot.lane.b32.xlu0 %v241, 88
  %v583 = vpop.permute.xlu0 %582
  %v584 = vsel %vm252, %v581, 0
  %v586 = vsel %vm252, %v583, 0
  %588 = vmatprep.subr.mxu0 0.0
  %589 = vmatpush1.xpose.msra.mxu0 0.0
  %590 = vmatprep.subr.mxu0 0.0
  %591 = vmatpush1.xpose.msra.mxu0 0.0
  %592 = vmatprep.subr.mxu0 0.0
  %593 = vmatpush1.xpose.msra.mxu0 0.0
  %594 = vmatprep.subr.mxu0 0.0
  %595 = vmatpush1.xpose.msra.mxu0 0.0
  %596 = vmatprep.subr.mxu0 0.0
  %597 = vmatpush1.xpose.msra.mxu0 0.0
  %598 = vmatprep.subr.mxu0 0.0
  %599 = vmatpush1.xpose.msra.mxu0 0.0
  %600 = vmatprep.subr.mxu0 0.0
  %601 = vmatpush1.xpose.msra.mxu0 0.0
  %602 = vmatprep.subr.mxu0 0.0
  %603 = vmatpush1.xpose.msra.mxu0 0.0
  %604 = vmatprep.subr.mxu0 0.0
  %605 = vmatpush1.xpose.msra.mxu0 0.0
  %606 = vmatprep.subr.mxu0 0.0
  %607 = vmatpush1.xpose.msra.mxu0 0.0
  %608 = vmatprep.subr.mxu0 0.0
  %609 = vmatpush1.xpose.msra.mxu0 0.0
  %610 = vmatprep.subr.mxu0 0.0
  %611 = vmatpush1.xpose.msra.mxu0 0.0
  %612 = vmatprep.subr.mxu0 0.0
  %613 = vmatpush1.xpose.msra.mxu0 0.0
  %614 = vmatprep.subr.mxu0 0.0
  %615 = vmatpush1.xpose.msra.mxu0 0.0
  %616 = vmatprep.subr.mxu0 0.0
  %617 = vmatpush1.xpose.msra.mxu0 0.0
  %618 = vmatprep.subr.mxu0 0.0
  %619 = vmatpush1.xpose.msra.mxu0 %v586
  %620 = vmatprep.subr.mxu0 0.0
  %621 = vmatpush2.xpose.msra.mxu0 0.0
  %622 = vmatprep.subr.mxu0 0.0
  %623 = vmatpush2.xpose.msra.mxu0 0.0
  %624 = vmatprep.subr.mxu0 0.0
  %625 = vmatpush2.xpose.msra.mxu0 0.0
  %626 = vmatprep.subr.mxu0 0.0
  %627 = vmatpush2.xpose.msra.mxu0 0.0
  %628 = vmatprep.subr.mxu0 0.0
  %629 = vmatpush2.xpose.msra.mxu0 0.0
  %630 = vmatprep.subr.mxu0 0.0
  %631 = vmatpush2.xpose.msra.mxu0 0.0
  %632 = vmatprep.subr.mxu0 0.0
  %633 = vmatpush2.xpose.msra.mxu0 0.0
  %634 = vmatprep.subr.mxu0 0.0
  %635 = vmatpush2.xpose.msra.mxu0 0.0
  %636 = vmatprep.subr.mxu0 0.0
  %637 = vmatpush2.xpose.msra.mxu0 0.0
  %638 = vmatprep.subr.mxu0 0.0
  %639 = vmatpush2.xpose.msra.mxu0 0.0
  %640 = vmatprep.subr.mxu0 0.0
  %641 = vmatpush2.xpose.msra.mxu0 0.0
  %642 = vmatprep.subr.mxu0 0.0
  %643 = vmatpush2.xpose.msra.mxu0 0.0
  %644 = vmatprep.subr.mxu0 0.0
  %645 = vmatpush2.xpose.msra.mxu0 0.0
  %646 = vmatprep.subr.mxu0 0.0
  %647 = vmatpush2.xpose.msra.mxu0 0.0
  %648 = vmatprep.subr.mxu0 0.0
  %649 = vmatpush2.xpose.msra.mxu0 0.0
  %650 = vmatprep.subr.mxu0 0.0
  %651 = vmatpush2.xpose.msra.mxu0 0.0
  %652 = vmatprep.mubr.f32.mxu0 0.0
  %653 = vmatmul.mubr.f32.gmra.mxu0 %v584
  %v654 = vpop.f32.mrf.mxu0
  %v655 = vadd.f32 0.0, %v654
  %v656 = vpop.f32.mrf.mxu0
  %657 = vdwg.mxu0
  %658 = vrot.lane.b32.xlu0 %v248, 120
  %v659 = vpop.permute.xlu0 %658
  %660 = vrot.lane.b32.xlu0 %v244, 88
  %v661 = vpop.permute.xlu0 %660
  %v662 = vsel %vm252, %v659, 0
  %v664 = vsel %vm252, %v661, 0
  %666 = vmatprep.subr.mxu0 0.0
  %667 = vmatpush1.xpose.msra.mxu0 0.0
  %668 = vmatprep.subr.mxu0 0.0
  %669 = vmatpush1.xpose.msra.mxu0 0.0
  %670 = vmatprep.subr.mxu0 0.0
  %671 = vmatpush1.xpose.msra.mxu0 0.0
  %672 = vmatprep.subr.mxu0 0.0
  %673 = vmatpush1.xpose.msra.mxu0 0.0
  %674 = vmatprep.subr.mxu0 0.0
  %675 = vmatpush1.xpose.msra.mxu0 0.0
  %676 = vmatprep.subr.mxu0 0.0
  %677 = vmatpush1.xpose.msra.mxu0 0.0
  %678 = vmatprep.subr.mxu0 0.0
  %679 = vmatpush1.xpose.msra.mxu0 0.0
  %680 = vmatprep.subr.mxu0 0.0
  %681 = vmatpush1.xpose.msra.mxu0 0.0
  %682 = vmatprep.subr.mxu0 0.0
  %683 = vmatpush1.xpose.msra.mxu0 0.0
  %684 = vmatprep.subr.mxu0 0.0
  %685 = vmatpush1.xpose.msra.mxu0 0.0
  %686 = vmatprep.subr.mxu0 0.0
  %687 = vmatpush1.xpose.msra.mxu0 0.0
  %688 = vmatprep.subr.mxu0 0.0
  %689 = vmatpush1.xpose.msra.mxu0 0.0
  %690 = vmatprep.subr.mxu0 0.0
  %691 = vmatpush1.xpose.msra.mxu0 0.0
  %692 = vmatprep.subr.mxu0 0.0
  %693 = vmatpush1.xpose.msra.mxu0 0.0
  %694 = vmatprep.subr.mxu0 0.0
  %695 = vmatpush1.xpose.msra.mxu0 0.0
  %696 = vmatprep.subr.mxu0 0.0
  %697 = vmatpush1.xpose.msra.mxu0 %v664
  %698 = vmatprep.subr.mxu0 0.0
  %699 = vmatpush2.xpose.msra.mxu0 0.0
  %700 = vmatprep.subr.mxu0 0.0
  %701 = vmatpush2.xpose.msra.mxu0 0.0
  %702 = vmatprep.subr.mxu0 0.0
  %703 = vmatpush2.xpose.msra.mxu0 0.0
  %704 = vmatprep.subr.mxu0 0.0
  %705 = vmatpush2.xpose.msra.mxu0 0.0
  %706 = vmatprep.subr.mxu0 0.0
  %707 = vmatpush2.xpose.msra.mxu0 0.0
  %708 = vmatprep.subr.mxu0 0.0
  %709 = vmatpush2.xpose.msra.mxu0 0.0
  %710 = vmatprep.subr.mxu0 0.0
  %711 = vmatpush2.xpose.msra.mxu0 0.0
  %712 = vmatprep.subr.mxu0 0.0
  %713 = vmatpush2.xpose.msra.mxu0 0.0
  %714 = vmatprep.subr.mxu0 0.0
  %715 = vmatpush2.xpose.msra.mxu0 0.0
  %716 = vmatprep.subr.mxu0 0.0
  %717 = vmatpush2.xpose.msra.mxu0 0.0
  %718 = vmatprep.subr.mxu0 0.0
  %719 = vmatpush2.xpose.msra.mxu0 0.0
  %720 = vmatprep.subr.mxu0 0.0
  %721 = vmatpush2.xpose.msra.mxu0 0.0
  %722 = vmatprep.subr.mxu0 0.0
  %723 = vmatpush2.xpose.msra.mxu0 0.0
  %724 = vmatprep.subr.mxu0 0.0
  %725 = vmatpush2.xpose.msra.mxu0 0.0
  %726 = vmatprep.subr.mxu0 0.0
  %727 = vmatpush2.xpose.msra.mxu0 0.0
  %728 = vmatprep.subr.mxu0 0.0
  %729 = vmatpush2.xpose.msra.mxu0 0.0
  %730 = vmatprep.mubr.f32.mxu0 0.0
  %731 = vmatmul.mubr.f32.gmra.mxu0 %v662
  %v732 = vpop.f32.mrf.mxu0
  %v733 = vadd.f32 0.0, %v732
  %v734 = vpop.f32.mrf.mxu0
  %735 = vdwg.mxu0
  %v736 = vsel %vm252, %v655, -inf
  %737 = vmax.xlane.f32.xlu0 %v736
  %v738 = vpop.xlane.xlu0 %737
  %v739 = vsel %vm252, %v733, -inf
  %740 = vmax.xlane.f32.xlu0 %v739
  %v741 = vpop.xlane.xlu0 %740
  %v742 = vsub.f32 %v655, %v738
  %v743 = vsub.f32 %v733, %v741
  %v744 = vmul.f32 %v742, 1.442695
  %v745 = vpow.pop %v744
  %v746 = vmul.f32 %v743, 1.442695
  %v747 = vpow.pop %v746
  %v748 = vsel %vm252, %v745, 0.0
  %749 = vadd.xlane.f32.xlu0 %v748
  %v750 = vpop.xlane.xlu0 %749
  %v751 = vsel %vm252, %v747, 0.0
  %752 = vadd.xlane.f32.xlu0 %v751
  %v753 = vpop.xlane.xlu0 %752
  %v754 = vrcp.pop %v750
  %v755 = vmul.f32 %v745, %v754
  %v756 = vrcp.pop %v753
  %v757 = vmul.f32 %v747, %v756
  %758 = vrot.lane.b32.xlu0 %v241, 56
  %v759 = vpop.permute.xlu0 %758
  %v762 = vsel %vm252, %v755, 0
  %764 = vmatprep.subr.mxu0 0.0
  %765 = vmatpush1.msra.mxu0 0.0
  %766 = vmatprep.subr.mxu0 0.0
  %767 = vmatpush1.msra.mxu0 0.0
  %768 = vmatprep.subr.mxu0 0.0
  %769 = vmatpush1.msra.mxu0 0.0
  %770 = vmatprep.subr.mxu0 0.0
  %771 = vmatpush1.msra.mxu0 0.0
  %772 = vmatprep.subr.mxu0 0.0
  %773 = vmatpush1.msra.mxu0 0.0
  %774 = vmatprep.subr.mxu0 0.0
  %775 = vmatpush1.msra.mxu0 0.0
  %776 = vmatprep.subr.mxu0 0.0
  %777 = vmatpush1.msra.mxu0 0.0
  %778 = vmatprep.subr.mxu0 0.0
  %779 = vmatpush1.msra.mxu0 0.0
  %780 = vmatprep.subr.mxu0 0.0
  %781 = vmatpush1.msra.mxu0 0.0
  %782 = vmatprep.subr.mxu0 0.0
  %783 = vmatpush1.msra.mxu0 0.0
  %784 = vmatprep.subr.mxu0 0.0
  %785 = vmatpush1.msra.mxu0 0.0
  %786 = vmatprep.subr.mxu0 0.0
  %787 = vmatpush1.msra.mxu0 0.0
  %788 = vmatprep.subr.mxu0 0.0
  %789 = vmatpush1.msra.mxu0 0.0
  %790 = vmatprep.subr.mxu0 0.0
  %791 = vmatpush1.msra.mxu0 0.0
  %792 = vmatprep.subr.mxu0 0.0
  %793 = vmatpush1.msra.mxu0 0.0
  %794 = vmatprep.subr.mxu0 0.0
  %795 = vmatpush1.msra.mxu0 %v759
  %796 = vmatprep.subr.mxu0 0.0
  %797 = vmatpush2.msra.mxu0 0.0
  %798 = vmatprep.subr.mxu0 0.0
  %799 = vmatpush2.msra.mxu0 0.0
  %800 = vmatprep.subr.mxu0 0.0
  %801 = vmatpush2.msra.mxu0 0.0
  %802 = vmatprep.subr.mxu0 0.0
  %803 = vmatpush2.msra.mxu0 0.0
  %804 = vmatprep.subr.mxu0 0.0
  %805 = vmatpush2.msra.mxu0 0.0
  %806 = vmatprep.subr.mxu0 0.0
  %807 = vmatpush2.msra.mxu0 0.0
  %808 = vmatprep.subr.mxu0 0.0
  %809 = vmatpush2.msra.mxu0 0.0
  %810 = vmatprep.subr.mxu0 0.0
  %811 = vmatpush2.msra.mxu0 0.0
  %812 = vmatprep.subr.mxu0 0.0
  %813 = vmatpush2.msra.mxu0 0.0
  %814 = vmatprep.subr.mxu0 0.0
  %815 = vmatpush2.msra.mxu0 0.0
  %816 = vmatprep.subr.mxu0 0.0
  %817 = vmatpush2.msra.mxu0 0.0
  %818 = vmatprep.subr.mxu0 0.0
  %819 = vmatpush2.msra.mxu0 0.0
  %820 = vmatprep.subr.mxu0 0.0
  %821 = vmatpush2.msra.mxu0 0.0
  %822 = vmatprep.subr.mxu0 0.0
  %823 = vmatpush2.msra.mxu0 0.0
  %824 = vmatprep.subr.mxu0 0.0
  %825 = vmatpush2.msra.mxu0 0.0
  %826 = vmatprep.subr.mxu0 0.0
  %827 = vmatpush2.msra.mxu0 0.0
  %828 = vmatprep.mubr.f32.mxu0 0.0
  %829 = vmatmul.mubr.f32.gmra.mxu0 %v762
  %v830 = vpop.f32.mrf.mxu0
  %v831 = vadd.f32 0.0, %v830
  %v832 = vpop.f32.mrf.mxu0
  %833 = vdwg.mxu0
  %834 = vrot.lane.b32.xlu0 %v244, 56
  %v835 = vpop.permute.xlu0 %834
  %v838 = vsel %vm252, %v757, 0
  %840 = vmatprep.subr.mxu0 0.0
  %841 = vmatpush1.msra.mxu0 0.0
  %842 = vmatprep.subr.mxu0 0.0
  %843 = vmatpush1.msra.mxu0 0.0
  %844 = vmatprep.subr.mxu0 0.0
  %845 = vmatpush1.msra.mxu0 0.0
  %846 = vmatprep.subr.mxu0 0.0
  %847 = vmatpush1.msra.mxu0 0.0
  %848 = vmatprep.subr.mxu0 0.0
  %849 = vmatpush1.msra.mxu0 0.0
  %850 = vmatprep.subr.mxu0 0.0
  %851 = vmatpush1.msra.mxu0 0.0
  %852 = vmatprep.subr.mxu0 0.0
  %853 = vmatpush1.msra.mxu0 0.0
  %854 = vmatprep.subr.mxu0 0.0
  %855 = vmatpush1.msra.mxu0 0.0
  %856 = vmatprep.subr.mxu0 0.0
  %857 = vmatpush1.msra.mxu0 0.0
  %858 = vmatprep.subr.mxu0 0.0
  %859 = vmatpush1.msra.mxu0 0.0
  %860 = vmatprep.subr.mxu0 0.0
  %861 = vmatpush1.msra.mxu0 0.0
  %862 = vmatprep.subr.mxu0 0.0
  %863 = vmatpush1.msra.mxu0 0.0
  %864 = vmatprep.subr.mxu0 0.0
  %865 = vmatpush1.msra.mxu0 0.0
  %866 = vmatprep.subr.mxu0 0.0
  %867 = vmatpush1.msra.mxu0 0.0
  %868 = vmatprep.subr.mxu0 0.0
  %869 = vmatpush1.msra.mxu0 0.0
  %870 = vmatprep.subr.mxu0 0.0
  %871 = vmatpush1.msra.mxu0 %v835
  %872 = vmatprep.subr.mxu0 0.0
  %873 = vmatpush2.msra.mxu0 0.0
  %874 = vmatprep.subr.mxu0 0.0
  %875 = vmatpush2.msra.mxu0 0.0
  %876 = vmatprep.subr.mxu0 0.0
  %877 = vmatpush2.msra.mxu0 0.0
  %878 = vmatprep.subr.mxu0 0.0
  %879 = vmatpush2.msra.mxu0 0.0
  %880 = vmatprep.subr.mxu0 0.0
  %881 = vmatpush2.msra.mxu0 0.0
  %882 = vmatprep.subr.mxu0 0.0
  %883 = vmatpush2.msra.mxu0 0.0
  %884 = vmatprep.subr.mxu0 0.0
  %885 = vmatpush2.msra.mxu0 0.0
  %886 = vmatprep.subr.mxu0 0.0
  %887 = vmatpush2.msra.mxu0 0.0
  %888 = vmatprep.subr.mxu0 0.0
  %889 = vmatpush2.msra.mxu0 0.0
  %890 = vmatprep.subr.mxu0 0.0
  %891 = vmatpush2.msra.mxu0 0.0
  %892 = vmatprep.subr.mxu0 0.0
  %893 = vmatpush2.msra.mxu0 0.0
  %894 = vmatprep.subr.mxu0 0.0
  %895 = vmatpush2.msra.mxu0 0.0
  %896 = vmatprep.subr.mxu0 0.0
  %897 = vmatpush2.msra.mxu0 0.0
  %898 = vmatprep.subr.mxu0 0.0
  %899 = vmatpush2.msra.mxu0 0.0
  %900 = vmatprep.subr.mxu0 0.0
  %901 = vmatpush2.msra.mxu0 0.0
  %902 = vmatprep.subr.mxu0 0.0
  %903 = vmatpush2.msra.mxu0 0.0
  %904 = vmatprep.mubr.f32.mxu0 0.0
  %905 = vmatmul.mubr.f32.gmra.mxu0 %v838
  %v906 = vpop.f32.mrf.mxu0
  %v907 = vadd.f32 0.0, %v906
  %v908 = vpop.f32.mrf.mxu0
  %909 = vdwg.mxu0
  %910 = vrot.lane.b32.xlu0 %v247, 112
  %v911 = vpop.permute.xlu0 %910
  %912 = vrot.lane.b32.xlu0 %v241, 80
  %v913 = vpop.permute.xlu0 %912
  %v914 = vsel %vm252, %v911, 0
  %v916 = vsel %vm252, %v913, 0
  %918 = vmatprep.subr.mxu0 0.0
  %919 = vmatpush1.xpose.msra.mxu0 0.0
  %920 = vmatprep.subr.mxu0 0.0
  %921 = vmatpush1.xpose.msra.mxu0 0.0
  %922 = vmatprep.subr.mxu0 0.0
  %923 = vmatpush1.xpose.msra.mxu0 0.0
  %924 = vmatprep.subr.mxu0 0.0
  %925 = vmatpush1.xpose.msra.mxu0 0.0
  %926 = vmatprep.subr.mxu0 0.0
  %927 = vmatpush1.xpose.msra.mxu0 0.0
  %928 = vmatprep.subr.mxu0 0.0
  %929 = vmatpush1.xpose.msra.mxu0 0.0
  %930 = vmatprep.subr.mxu0 0.0
  %931 = vmatpush1.xpose.msra.mxu0 0.0
  %932 = vmatprep.subr.mxu0 0.0
  %933 = vmatpush1.xpose.msra.mxu0 0.0
  %934 = vmatprep.subr.mxu0 0.0
  %935 = vmatpush1.xpose.msra.mxu0 0.0
  %936 = vmatprep.subr.mxu0 0.0
  %937 = vmatpush1.xpose.msra.mxu0 0.0
  %938 = vmatprep.subr.mxu0 0.0
  %939 = vmatpush1.xpose.msra.mxu0 0.0
  %940 = vmatprep.subr.mxu0 0.0
  %941 = vmatpush1.xpose.msra.mxu0 0.0
  %942 = vmatprep.subr.mxu0 0.0
  %943 = vmatpush1.xpose.msra.mxu0 0.0
  %944 = vmatprep.subr.mxu0 0.0
  %945 = vmatpush1.xpose.msra.mxu0 0.0
  %946 = vmatprep.subr.mxu0 0.0
  %947 = vmatpush1.xpose.msra.mxu0 0.0
  %948 = vmatprep.subr.mxu0 0.0
  %949 = vmatpush1.xpose.msra.mxu0 %v916
  %950 = vmatprep.subr.mxu0 0.0
  %951 = vmatpush2.xpose.msra.mxu0 0.0
  %952 = vmatprep.subr.mxu0 0.0
  %953 = vmatpush2.xpose.msra.mxu0 0.0
  %954 = vmatprep.subr.mxu0 0.0
  %955 = vmatpush2.xpose.msra.mxu0 0.0
  %956 = vmatprep.subr.mxu0 0.0
  %957 = vmatpush2.xpose.msra.mxu0 0.0
  %958 = vmatprep.subr.mxu0 0.0
  %959 = vmatpush2.xpose.msra.mxu0 0.0
  %960 = vmatprep.subr.mxu0 0.0
  %961 = vmatpush2.xpose.msra.mxu0 0.0
  %962 = vmatprep.subr.mxu0 0.0
  %963 = vmatpush2.xpose.msra.mxu0 0.0
  %964 = vmatprep.subr.mxu0 0.0
  %965 = vmatpush2.xpose.msra.mxu0 0.0
  %966 = vmatprep.subr.mxu0 0.0
  %967 = vmatpush2.xpose.msra.mxu0 0.0
  %968 = vmatprep.subr.mxu0 0.0
  %969 = vmatpush2.xpose.msra.mxu0 0.0
  %970 = vmatprep.subr.mxu0 0.0
  %971 = vmatpush2.xpose.msra.mxu0 0.0
  %972 = vmatprep.subr.mxu0 0.0
  %973 = vmatpush2.xpose.msra.mxu0 0.0
  %974 = vmatprep.subr.mxu0 0.0
  %975 = vmatpush2.xpose.msra.mxu0 0.0
  %976 = vmatprep.subr.mxu0 0.0
  %977 = vmatpush2.xpose.msra.mxu0 0.0
  %978 = vmatprep.subr.mxu0 0.0
  %979 = vmatpush2.xpose.msra.mxu0 0.0
  %980 = vmatprep.subr.mxu0 0.0
  %981 = vmatpush2.xpose.msra.mxu0 0.0
  %982 = vmatprep.mubr.f32.mxu0 0.0
  %983 = vmatmul.mubr.f32.gmra.mxu0 %v914
  %v984 = vpop.f32.mrf.mxu0
  %v985 = vadd.f32 0.0, %v984
  %v986 = vpop.f32.mrf.mxu0
  %987 = vdwg.mxu0
  %988 = vrot.lane.b32.xlu0 %v248, 112
  %v989 = vpop.permute.xlu0 %988
  %990 = vrot.lane.b32.xlu0 %v244, 80
  %v991 = vpop.permute.xlu0 %990
  %v992 = vsel %vm252, %v989, 0
  %v994 = vsel %vm252, %v991, 0
  %996 = vmatprep.subr.mxu0 0.0
  %997 = vmatpush1.xpose.msra.mxu0 0.0
  %998 = vmatprep.subr.mxu0 0.0
  %999 = vmatpush1.xpose.msra.mxu0 0.0
  %1000 = vmatprep.subr.mxu0 0.0
  %1001 = vmatpush1.xpose.msra.mxu0 0.0
  %1002 = vmatprep.subr.mxu0 0.0
  %1003 = vmatpush1.xpose.msra.mxu0 0.0
  %1004 = vmatprep.subr.mxu0 0.0
  %1005 = vmatpush1.xpose.msra.mxu0 0.0
  %1006 = vmatprep.subr.mxu0 0.0
  %1007 = vmatpush1.xpose.msra.mxu0 0.0
  %1008 = vmatprep.subr.mxu0 0.0
  %1009 = vmatpush1.xpose.msra.mxu0 0.0
  %1010 = vmatprep.subr.mxu0 0.0
  %1011 = vmatpush1.xpose.msra.mxu0 0.0
  %1012 = vmatprep.subr.mxu0 0.0
  %1013 = vmatpush1.xpose.msra.mxu0 0.0
  %1014 = vmatprep.subr.mxu0 0.0
  %1015 = vmatpush1.xpose.msra.mxu0 0.0
  %1016 = vmatprep.subr.mxu0 0.0
  %1017 = vmatpush1.xpose.msra.mxu0 0.0
  %1018 = vmatprep.subr.mxu0 0.0
  %1019 = vmatpush1.xpose.msra.mxu0 0.0
  %1020 = vmatprep.subr.mxu0 0.0
  %1021 = vmatpush1.xpose.msra.mxu0 0.0
  %1022 = vmatprep.subr.mxu0 0.0
  %1023 = vmatpush1.xpose.msra.mxu0 0.0
  %1024 = vmatprep.subr.mxu0 0.0
  %1025 = vmatpush1.xpose.msra.mxu0 0.0
  %1026 = vmatprep.subr.mxu0 0.0
  %1027 = vmatpush1.xpose.msra.mxu0 %v994
  %1028 = vmatprep.subr.mxu0 0.0
  %1029 = vmatpush2.xpose.msra.mxu0 0.0
  %1030 = vmatprep.subr.mxu0 0.0
  %1031 = vmatpush2.xpose.msra.mxu0 0.0
  %1032 = vmatprep.subr.mxu0 0.0
  %1033 = vmatpush2.xpose.msra.mxu0 0.0
  %1034 = vmatprep.subr.mxu0 0.0
  %1035 = vmatpush2.xpose.msra.mxu0 0.0
  %1036 = vmatprep.subr.mxu0 0.0
  %1037 = vmatpush2.xpose.msra.mxu0 0.0
  %1038 = vmatprep.subr.mxu0 0.0
  %1039 = vmatpush2.xpose.msra.mxu0 0.0
  %1040 = vmatprep.subr.mxu0 0.0
  %1041 = vmatpush2.xpose.msra.mxu0 0.0
  %1042 = vmatprep.subr.mxu0 0.0
  %1043 = vmatpush2.xpose.msra.mxu0 0.0
  %1044 = vmatprep.subr.mxu0 0.0
  %1045 = vmatpush2.xpose.msra.mxu0 0.0
  %1046 = vmatprep.subr.mxu0 0.0
  %1047 = vmatpush2.xpose.msra.mxu0 0.0
  %1048 = vmatprep.subr.mxu0 0.0
  %1049 = vmatpush2.xpose.msra.mxu0 0.0
  %1050 = vmatprep.subr.mxu0 0.0
  %1051 = vmatpush2.xpose.msra.mxu0 0.0
  %1052 = vmatprep.subr.mxu0 0.0
  %1053 = vmatpush2.xpose.msra.mxu0 0.0
  %1054 = vmatprep.subr.mxu0 0.0
  %1055 = vmatpush2.xpose.msra.mxu0 0.0
  %1056 = vmatprep.subr.mxu0 0.0
  %1057 = vmatpush2.xpose.msra.mxu0 0.0
  %1058 = vmatprep.subr.mxu0 0.0
  %1059 = vmatpush2.xpose.msra.mxu0 0.0
  %1060 = vmatprep.mubr.f32.mxu0 0.0
  %1061 = vmatmul.mubr.f32.gmra.mxu0 %v992
  %v1062 = vpop.f32.mrf.mxu0
  %v1063 = vadd.f32 0.0, %v1062
  %v1064 = vpop.f32.mrf.mxu0
  %1065 = vdwg.mxu0
  %v1066 = vsel %vm252, %v985, -inf
  %1067 = vmax.xlane.f32.xlu0 %v1066
  %v1068 = vpop.xlane.xlu0 %1067
  %v1069 = vsel %vm252, %v1063, -inf
  %1070 = vmax.xlane.f32.xlu0 %v1069
  %v1071 = vpop.xlane.xlu0 %1070
  %v1072 = vsub.f32 %v985, %v1068
  %v1073 = vsub.f32 %v1063, %v1071
  %v1074 = vmul.f32 %v1072, 1.442695
  %v1075 = vpow.pop %v1074
  %v1076 = vmul.f32 %v1073, 1.442695
  %v1077 = vpow.pop %v1076
  %v1078 = vsel %vm252, %v1075, 0.0
  %1079 = vadd.xlane.f32.xlu0 %v1078
  %v1080 = vpop.xlane.xlu0 %1079
  %v1081 = vsel %vm252, %v1077, 0.0
  %1082 = vadd.xlane.f32.xlu0 %v1081
  %v1083 = vpop.xlane.xlu0 %1082
  %v1084 = vrcp.pop %v1080
  %v1085 = vmul.f32 %v1075, %v1084
  %v1086 = vrcp.pop %v1083
  %v1087 = vmul.f32 %v1077, %v1086
  %1088 = vrot.lane.b32.xlu0 %v241, 48
  %v1089 = vpop.permute.xlu0 %1088
  %v1092 = vsel %vm252, %v1085, 0
  %1094 = vmatprep.subr.mxu0 0.0
  %1095 = vmatpush1.msra.mxu0 0.0
  %1096 = vmatprep.subr.mxu0 0.0
  %1097 = vmatpush1.msra.mxu0 0.0
  %1098 = vmatprep.subr.mxu0 0.0
  %1099 = vmatpush1.msra.mxu0 0.0
  %1100 = vmatprep.subr.mxu0 0.0
  %1101 = vmatpush1.msra.mxu0 0.0
  %1102 = vmatprep.subr.mxu0 0.0
  %1103 = vmatpush1.msra.mxu0 0.0
  %1104 = vmatprep.subr.mxu0 0.0
  %1105 = vmatpush1.msra.mxu0 0.0
  %1106 = vmatprep.subr.mxu0 0.0
  %1107 = vmatpush1.msra.mxu0 0.0
  %1108 = vmatprep.subr.mxu0 0.0
  %1109 = vmatpush1.msra.mxu0 0.0
  %1110 = vmatprep.subr.mxu0 0.0
  %1111 = vmatpush1.msra.mxu0 0.0
  %1112 = vmatprep.subr.mxu0 0.0
  %1113 = vmatpush1.msra.mxu0 0.0
  %1114 = vmatprep.subr.mxu0 0.0
  %1115 = vmatpush1.msra.mxu0 0.0
  %1116 = vmatprep.subr.mxu0 0.0
  %1117 = vmatpush1.msra.mxu0 0.0
  %1118 = vmatprep.subr.mxu0 0.0
  %1119 = vmatpush1.msra.mxu0 0.0
  %1120 = vmatprep.subr.mxu0 0.0
  %1121 = vmatpush1.msra.mxu0 0.0
  %1122 = vmatprep.subr.mxu0 0.0
  %1123 = vmatpush1.msra.mxu0 0.0
  %1124 = vmatprep.subr.mxu0 0.0
  %1125 = vmatpush1.msra.mxu0 %v1089
  %1126 = vmatprep.subr.mxu0 0.0
  %1127 = vmatpush2.msra.mxu0 0.0
  %1128 = vmatprep.subr.mxu0 0.0
  %1129 = vmatpush2.msra.mxu0 0.0
  %1130 = vmatprep.subr.mxu0 0.0
  %1131 = vmatpush2.msra.mxu0 0.0
  %1132 = vmatprep.subr.mxu0 0.0
  %1133 = vmatpush2.msra.mxu0 0.0
  %1134 = vmatprep.subr.mxu0 0.0
  %1135 = vmatpush2.msra.mxu0 0.0
  %1136 = vmatprep.subr.mxu0 0.0
  %1137 = vmatpush2.msra.mxu0 0.0
  %1138 = vmatprep.subr.mxu0 0.0
  %1139 = vmatpush2.msra.mxu0 0.0
  %1140 = vmatprep.subr.mxu0 0.0
  %1141 = vmatpush2.msra.mxu0 0.0
  %1142 = vmatprep.subr.mxu0 0.0
  %1143 = vmatpush2.msra.mxu0 0.0
  %1144 = vmatprep.subr.mxu0 0.0
  %1145 = vmatpush2.msra.mxu0 0.0
  %1146 = vmatprep.subr.mxu0 0.0
  %1147 = vmatpush2.msra.mxu0 0.0
  %1148 = vmatprep.subr.mxu0 0.0
  %1149 = vmatpush2.msra.mxu0 0.0
  %1150 = vmatprep.subr.mxu0 0.0
  %1151 = vmatpush2.msra.mxu0 0.0
  %1152 = vmatprep.subr.mxu0 0.0
  %1153 = vmatpush2.msra.mxu0 0.0
  %1154 = vmatprep.subr.mxu0 0.0
  %1155 = vmatpush2.msra.mxu0 0.0
  %1156 = vmatprep.subr.mxu0 0.0
  %1157 = vmatpush2.msra.mxu0 0.0
  %1158 = vmatprep.mubr.f32.mxu0 0.0
  %1159 = vmatmul.mubr.f32.gmra.mxu0 %v1092
  %v1160 = vpop.f32.mrf.mxu0
  %v1161 = vadd.f32 0.0, %v1160
  %v1162 = vpop.f32.mrf.mxu0
  %1163 = vdwg.mxu0
  %1164 = vrot.lane.b32.xlu0 %v244, 48
  %v1165 = vpop.permute.xlu0 %1164
  %v1168 = vsel %vm252, %v1087, 0
  %1170 = vmatprep.subr.mxu0 0.0
  %1171 = vmatpush1.msra.mxu0 0.0
  %1172 = vmatprep.subr.mxu0 0.0
  %1173 = vmatpush1.msra.mxu0 0.0
  %1174 = vmatprep.subr.mxu0 0.0
  %1175 = vmatpush1.msra.mxu0 0.0
  %1176 = vmatprep.subr.mxu0 0.0
  %1177 = vmatpush1.msra.mxu0 0.0
  %1178 = vmatprep.subr.mxu0 0.0
  %1179 = vmatpush1.msra.mxu0 0.0
  %1180 = vmatprep.subr.mxu0 0.0
  %1181 = vmatpush1.msra.mxu0 0.0
  %1182 = vmatprep.subr.mxu0 0.0
  %1183 = vmatpush1.msra.mxu0 0.0
  %1184 = vmatprep.subr.mxu0 0.0
  %1185 = vmatpush1.msra.mxu0 0.0
  %1186 = vmatprep.subr.mxu0 0.0
  %1187 = vmatpush1.msra.mxu0 0.0
  %1188 = vmatprep.subr.mxu0 0.0
  %1189 = vmatpush1.msra.mxu0 0.0
  %1190 = vmatprep.subr.mxu0 0.0
  %1191 = vmatpush1.msra.mxu0 0.0
  %1192 = vmatprep.subr.mxu0 0.0
  %1193 = vmatpush1.msra.mxu0 0.0
  %1194 = vmatprep.subr.mxu0 0.0
  %1195 = vmatpush1.msra.mxu0 0.0
  %1196 = vmatprep.subr.mxu0 0.0
  %1197 = vmatpush1.msra.mxu0 0.0
  %1198 = vmatprep.subr.mxu0 0.0
  %1199 = vmatpush1.msra.mxu0 0.0
  %1200 = vmatprep.subr.mxu0 0.0
  %1201 = vmatpush1.msra.mxu0 %v1165
  %1202 = vmatprep.subr.mxu0 0.0
  %1203 = vmatpush2.msra.mxu0 0.0
  %1204 = vmatprep.subr.mxu0 0.0
  %1205 = vmatpush2.msra.mxu0 0.0
  %1206 = vmatprep.subr.mxu0 0.0
  %1207 = vmatpush2.msra.mxu0 0.0
  %1208 = vmatprep.subr.mxu0 0.0
  %1209 = vmatpush2.msra.mxu0 0.0
  %1210 = vmatprep.subr.mxu0 0.0
  %1211 = vmatpush2.msra.mxu0 0.0
  %1212 = vmatprep.subr.mxu0 0.0
  %1213 = vmatpush2.msra.mxu0 0.0
  %1214 = vmatprep.subr.mxu0 0.0
  %1215 = vmatpush2.msra.mxu0 0.0
  %1216 = vmatprep.subr.mxu0 0.0
  %1217 = vmatpush2.msra.mxu0 0.0
  %1218 = vmatprep.subr.mxu0 0.0
  %1219 = vmatpush2.msra.mxu0 0.0
  %1220 = vmatprep.subr.mxu0 0.0
  %1221 = vmatpush2.msra.mxu0 0.0
  %1222 = vmatprep.subr.mxu0 0.0
  %1223 = vmatpush2.msra.mxu0 0.0
  %1224 = vmatprep.subr.mxu0 0.0
  %1225 = vmatpush2.msra.mxu0 0.0
  %1226 = vmatprep.subr.mxu0 0.0
  %1227 = vmatpush2.msra.mxu0 0.0
  %1228 = vmatprep.subr.mxu0 0.0
  %1229 = vmatpush2.msra.mxu0 0.0
  %1230 = vmatprep.subr.mxu0 0.0
  %1231 = vmatpush2.msra.mxu0 0.0
  %1232 = vmatprep.subr.mxu0 0.0
  %1233 = vmatpush2.msra.mxu0 0.0
  %1234 = vmatprep.mubr.f32.mxu0 0.0
  %1235 = vmatmul.mubr.f32.gmra.mxu0 %v1168
  %v1236 = vpop.f32.mrf.mxu0
  %v1237 = vadd.f32 0.0, %v1236
  %v1238 = vpop.f32.mrf.mxu0
  %1239 = vdwg.mxu0
  %1240 = vrot.lane.b32.xlu0 %v247, 104
  %v1241 = vpop.permute.xlu0 %1240
  %1242 = vrot.lane.b32.xlu0 %v241, 72
  %v1243 = vpop.permute.xlu0 %1242
  %v1244 = vsel %vm252, %v1241, 0
  %v1246 = vsel %vm252, %v1243, 0
  %1248 = vmatprep.subr.mxu0 0.0
  %1249 = vmatpush1.xpose.msra.mxu0 0.0
  %1250 = vmatprep.subr.mxu0 0.0
  %1251 = vmatpush1.xpose.msra.mxu0 0.0
  %1252 = vmatprep.subr.mxu0 0.0
  %1253 = vmatpush1.xpose.msra.mxu0 0.0
  %1254 = vmatprep.subr.mxu0 0.0
  %1255 = vmatpush1.xpose.msra.mxu0 0.0
  %1256 = vmatprep.subr.mxu0 0.0
  %1257 = vmatpush1.xpose.msra.mxu0 0.0
  %1258 = vmatprep.subr.mxu0 0.0
  %1259 = vmatpush1.xpose.msra.mxu0 0.0
  %1260 = vmatprep.subr.mxu0 0.0
  %1261 = vmatpush1.xpose.msra.mxu0 0.0
  %1262 = vmatprep.subr.mxu0 0.0
  %1263 = vmatpush1.xpose.msra.mxu0 0.0
  %1264 = vmatprep.subr.mxu0 0.0
  %1265 = vmatpush1.xpose.msra.mxu0 0.0
  %1266 = vmatprep.subr.mxu0 0.0
  %1267 = vmatpush1.xpose.msra.mxu0 0.0
  %1268 = vmatprep.subr.mxu0 0.0
  %1269 = vmatpush1.xpose.msra.mxu0 0.0
  %1270 = vmatprep.subr.mxu0 0.0
  %1271 = vmatpush1.xpose.msra.mxu0 0.0
  %1272 = vmatprep.subr.mxu0 0.0
  %1273 = vmatpush1.xpose.msra.mxu0 0.0
  %1274 = vmatprep.subr.mxu0 0.0
  %1275 = vmatpush1.xpose.msra.mxu0 0.0
  %1276 = vmatprep.subr.mxu0 0.0
  %1277 = vmatpush1.xpose.msra.mxu0 0.0
  %1278 = vmatprep.subr.mxu0 0.0
  %1279 = vmatpush1.xpose.msra.mxu0 %v1246
  %1280 = vmatprep.subr.mxu0 0.0
  %1281 = vmatpush2.xpose.msra.mxu0 0.0
  %1282 = vmatprep.subr.mxu0 0.0
  %1283 = vmatpush2.xpose.msra.mxu0 0.0
  %1284 = vmatprep.subr.mxu0 0.0
  %1285 = vmatpush2.xpose.msra.mxu0 0.0
  %1286 = vmatprep.subr.mxu0 0.0
  %1287 = vmatpush2.xpose.msra.mxu0 0.0
  %1288 = vmatprep.subr.mxu0 0.0
  %1289 = vmatpush2.xpose.msra.mxu0 0.0
  %1290 = vmatprep.subr.mxu0 0.0
  %1291 = vmatpush2.xpose.msra.mxu0 0.0
  %1292 = vmatprep.subr.mxu0 0.0
  %1293 = vmatpush2.xpose.msra.mxu0 0.0
  %1294 = vmatprep.subr.mxu0 0.0
  %1295 = vmatpush2.xpose.msra.mxu0 0.0
  %1296 = vmatprep.subr.mxu0 0.0
  %1297 = vmatpush2.xpose.msra.mxu0 0.0
  %1298 = vmatprep.subr.mxu0 0.0
  %1299 = vmatpush2.xpose.msra.mxu0 0.0
  %1300 = vmatprep.subr.mxu0 0.0
  %1301 = vmatpush2.xpose.msra.mxu0 0.0
  %1302 = vmatprep.subr.mxu0 0.0
  %1303 = vmatpush2.xpose.msra.mxu0 0.0
  %1304 = vmatprep.subr.mxu0 0.0
  %1305 = vmatpush2.xpose.msra.mxu0 0.0
  %1306 = vmatprep.subr.mxu0 0.0
  %1307 = vmatpush2.xpose.msra.mxu0 0.0
  %1308 = vmatprep.subr.mxu0 0.0
  %1309 = vmatpush2.xpose.msra.mxu0 0.0
  %1310 = vmatprep.subr.mxu0 0.0
  %1311 = vmatpush2.xpose.msra.mxu0 0.0
  %1312 = vmatprep.mubr.f32.mxu0 0.0
  %1313 = vmatmul.mubr.f32.gmra.mxu0 %v1244
  %v1314 = vpop.f32.mrf.mxu0
  %v1315 = vadd.f32 0.0, %v1314
  %v1316 = vpop.f32.mrf.mxu0
  %1317 = vdwg.mxu0
  %1318 = vrot.lane.b32.xlu0 %v248, 104
  %v1319 = vpop.permute.xlu0 %1318
  %1320 = vrot.lane.b32.xlu0 %v244, 72
  %v1321 = vpop.permute.xlu0 %1320
  %v1322 = vsel %vm252, %v1319, 0
  %v1324 = vsel %vm252, %v1321, 0
  %1326 = vmatprep.subr.mxu0 0.0
  %1327 = vmatpush1.xpose.msra.mxu0 0.0
  %1328 = vmatprep.subr.mxu0 0.0
  %1329 = vmatpush1.xpose.msra.mxu0 0.0
  %1330 = vmatprep.subr.mxu0 0.0
  %1331 = vmatpush1.xpose.msra.mxu0 0.0
  %1332 = vmatprep.subr.mxu0 0.0
  %1333 = vmatpush1.xpose.msra.mxu0 0.0
  %1334 = vmatprep.subr.mxu0 0.0
  %1335 = vmatpush1.xpose.msra.mxu0 0.0
  %1336 = vmatprep.subr.mxu0 0.0
  %1337 = vmatpush1.xpose.msra.mxu0 0.0
  %1338 = vmatprep.subr.mxu0 0.0
  %1339 = vmatpush1.xpose.msra.mxu0 0.0
  %1340 = vmatprep.subr.mxu0 0.0
  %1341 = vmatpush1.xpose.msra.mxu0 0.0
  %1342 = vmatprep.subr.mxu0 0.0
  %1343 = vmatpush1.xpose.msra.mxu0 0.0
  %1344 = vmatprep.subr.mxu0 0.0
  %1345 = vmatpush1.xpose.msra.mxu0 0.0
  %1346 = vmatprep.subr.mxu0 0.0
  %1347 = vmatpush1.xpose.msra.mxu0 0.0
  %1348 = vmatprep.subr.mxu0 0.0
  %1349 = vmatpush1.xpose.msra.mxu0 0.0
  %1350 = vmatprep.subr.mxu0 0.0
  %1351 = vmatpush1.xpose.msra.mxu0 0.0
  %1352 = vmatprep.subr.mxu0 0.0
  %1353 = vmatpush1.xpose.msra.mxu0 0.0
  %1354 = vmatprep.subr.mxu0 0.0
  %1355 = vmatpush1.xpose.msra.mxu0 0.0
  %1356 = vmatprep.subr.mxu0 0.0
  %1357 = vmatpush1.xpose.msra.mxu0 %v1324
  %1358 = vmatprep.subr.mxu0 0.0
  %1359 = vmatpush2.xpose.msra.mxu0 0.0
  %1360 = vmatprep.subr.mxu0 0.0
  %1361 = vmatpush2.xpose.msra.mxu0 0.0
  %1362 = vmatprep.subr.mxu0 0.0
  %1363 = vmatpush2.xpose.msra.mxu0 0.0
  %1364 = vmatprep.subr.mxu0 0.0
  %1365 = vmatpush2.xpose.msra.mxu0 0.0
  %1366 = vmatprep.subr.mxu0 0.0
  %1367 = vmatpush2.xpose.msra.mxu0 0.0
  %1368 = vmatprep.subr.mxu0 0.0
  %1369 = vmatpush2.xpose.msra.mxu0 0.0
  %1370 = vmatprep.subr.mxu0 0.0
  %1371 = vmatpush2.xpose.msra.mxu0 0.0
  %1372 = vmatprep.subr.mxu0 0.0
  %1373 = vmatpush2.xpose.msra.mxu0 0.0
  %1374 = vmatprep.subr.mxu0 0.0
  %1375 = vmatpush2.xpose.msra.mxu0 0.0
  %1376 = vmatprep.subr.mxu0 0.0
  %1377 = vmatpush2.xpose.msra.mxu0 0.0
  %1378 = vmatprep.subr.mxu0 0.0
  %1379 = vmatpush2.xpose.msra.mxu0 0.0
  %1380 = vmatprep.subr.mxu0 0.0
  %1381 = vmatpush2.xpose.msra.mxu0 0.0
  %1382 = vmatprep.subr.mxu0 0.0
  %1383 = vmatpush2.xpose.msra.mxu0 0.0
  %1384 = vmatprep.subr.mxu0 0.0
  %1385 = vmatpush2.xpose.msra.mxu0 0.0
  %1386 = vmatprep.subr.mxu0 0.0
  %1387 = vmatpush2.xpose.msra.mxu0 0.0
  %1388 = vmatprep.subr.mxu0 0.0
  %1389 = vmatpush2.xpose.msra.mxu0 0.0
  %1390 = vmatprep.mubr.f32.mxu0 0.0
  %1391 = vmatmul.mubr.f32.gmra.mxu0 %v1322
  %v1392 = vpop.f32.mrf.mxu0
  %v1393 = vadd.f32 0.0, %v1392
  %v1394 = vpop.f32.mrf.mxu0
  %1395 = vdwg.mxu0
  %v1396 = vsel %vm252, %v1315, -inf
  %1397 = vmax.xlane.f32.xlu0 %v1396
  %v1398 = vpop.xlane.xlu0 %1397
  %v1399 = vsel %vm252, %v1393, -inf
  %1400 = vmax.xlane.f32.xlu0 %v1399
  %v1401 = vpop.xlane.xlu0 %1400
  %v1402 = vsub.f32 %v1315, %v1398
  %v1403 = vsub.f32 %v1393, %v1401
  %v1404 = vmul.f32 %v1402, 1.442695
  %v1405 = vpow.pop %v1404
  %v1406 = vmul.f32 %v1403, 1.442695
  %v1407 = vpow.pop %v1406
  %v1408 = vsel %vm252, %v1405, 0.0
  %1409 = vadd.xlane.f32.xlu0 %v1408
  %v1410 = vpop.xlane.xlu0 %1409
  %v1411 = vsel %vm252, %v1407, 0.0
  %1412 = vadd.xlane.f32.xlu0 %v1411
  %v1413 = vpop.xlane.xlu0 %1412
  %v1414 = vrcp.pop %v1410
  %v1415 = vmul.f32 %v1405, %v1414
  %v1416 = vrcp.pop %v1413
  %v1417 = vmul.f32 %v1407, %v1416
  %1418 = vrot.lane.b32.xlu0 %v241, 40
  %v1419 = vpop.permute.xlu0 %1418
  %v1422 = vsel %vm252, %v1415, 0
  %1424 = vmatprep.subr.mxu0 0.0
  %1425 = vmatpush1.msra.mxu0 0.0
  %1426 = vmatprep.subr.mxu0 0.0
  %1427 = vmatpush1.msra.mxu0 0.0
  %1428 = vmatprep.subr.mxu0 0.0
  %1429 = vmatpush1.msra.mxu0 0.0
  %1430 = vmatprep.subr.mxu0 0.0
  %1431 = vmatpush1.msra.mxu0 0.0
  %1432 = vmatprep.subr.mxu0 0.0
  %1433 = vmatpush1.msra.mxu0 0.0
  %1434 = vmatprep.subr.mxu0 0.0
  %1435 = vmatpush1.msra.mxu0 0.0
  %1436 = vmatprep.subr.mxu0 0.0
  %1437 = vmatpush1.msra.mxu0 0.0
  %1438 = vmatprep.subr.mxu0 0.0
  %1439 = vmatpush1.msra.mxu0 0.0
  %1440 = vmatprep.subr.mxu0 0.0
  %1441 = vmatpush1.msra.mxu0 0.0
  %1442 = vmatprep.subr.mxu0 0.0
  %1443 = vmatpush1.msra.mxu0 0.0
  %1444 = vmatprep.subr.mxu0 0.0
  %1445 = vmatpush1.msra.mxu0 0.0
  %1446 = vmatprep.subr.mxu0 0.0
  %1447 = vmatpush1.msra.mxu0 0.0
  %1448 = vmatprep.subr.mxu0 0.0
  %1449 = vmatpush1.msra.mxu0 0.0
  %1450 = vmatprep.subr.mxu0 0.0
  %1451 = vmatpush1.msra.mxu0 0.0
  %1452 = vmatprep.subr.mxu0 0.0
  %1453 = vmatpush1.msra.mxu0 0.0
  %1454 = vmatprep.subr.mxu0 0.0
  %1455 = vmatpush1.msra.mxu0 %v1419
  %1456 = vmatprep.subr.mxu0 0.0
  %1457 = vmatpush2.msra.mxu0 0.0
  %1458 = vmatprep.subr.mxu0 0.0
  %1459 = vmatpush2.msra.mxu0 0.0
  %1460 = vmatprep.subr.mxu0 0.0
  %1461 = vmatpush2.msra.mxu0 0.0
  %1462 = vmatprep.subr.mxu0 0.0
  %1463 = vmatpush2.msra.mxu0 0.0
  %1464 = vmatprep.subr.mxu0 0.0
  %1465 = vmatpush2.msra.mxu0 0.0
  %1466 = vmatprep.subr.mxu0 0.0
  %1467 = vmatpush2.msra.mxu0 0.0
  %1468 = vmatprep.subr.mxu0 0.0
  %1469 = vmatpush2.msra.mxu0 0.0
  %1470 = vmatprep.subr.mxu0 0.0
  %1471 = vmatpush2.msra.mxu0 0.0
  %1472 = vmatprep.subr.mxu0 0.0
  %1473 = vmatpush2.msra.mxu0 0.0
  %1474 = vmatprep.subr.mxu0 0.0
  %1475 = vmatpush2.msra.mxu0 0.0
  %1476 = vmatprep.subr.mxu0 0.0
  %1477 = vmatpush2.msra.mxu0 0.0
  %1478 = vmatprep.subr.mxu0 0.0
  %1479 = vmatpush2.msra.mxu0 0.0
  %1480 = vmatprep.subr.mxu0 0.0
  %1481 = vmatpush2.msra.mxu0 0.0
  %1482 = vmatprep.subr.mxu0 0.0
  %1483 = vmatpush2.msra.mxu0 0.0
  %1484 = vmatprep.subr.mxu0 0.0
  %1485 = vmatpush2.msra.mxu0 0.0
  %1486 = vmatprep.subr.mxu0 0.0
  %1487 = vmatpush2.msra.mxu0 0.0
  %1488 = vmatprep.mubr.f32.mxu0 0.0
  %1489 = vmatmul.mubr.f32.gmra.mxu0 %v1422
  %v1490 = vpop.f32.mrf.mxu0
  %v1491 = vadd.f32 0.0, %v1490
  %v1492 = vpop.f32.mrf.mxu0
  %1493 = vdwg.mxu0
  %1494 = vrot.lane.b32.xlu0 %v244, 40
  %v1495 = vpop.permute.xlu0 %1494
  %v1498 = vsel %vm252, %v1417, 0
  %1500 = vmatprep.subr.mxu0 0.0
  %1501 = vmatpush1.msra.mxu0 0.0
  %1502 = vmatprep.subr.mxu0 0.0
  %1503 = vmatpush1.msra.mxu0 0.0
  %1504 = vmatprep.subr.mxu0 0.0
  %1505 = vmatpush1.msra.mxu0 0.0
  %1506 = vmatprep.subr.mxu0 0.0
  %1507 = vmatpush1.msra.mxu0 0.0
  %1508 = vmatprep.subr.mxu0 0.0
  %1509 = vmatpush1.msra.mxu0 0.0
  %1510 = vmatprep.subr.mxu0 0.0
  %1511 = vmatpush1.msra.mxu0 0.0
  %1512 = vmatprep.subr.mxu0 0.0
  %1513 = vmatpush1.msra.mxu0 0.0
  %1514 = vmatprep.subr.mxu0 0.0
  %1515 = vmatpush1.msra.mxu0 0.0
  %1516 = vmatprep.subr.mxu0 0.0
  %1517 = vmatpush1.msra.mxu0 0.0
  %1518 = vmatprep.subr.mxu0 0.0
  %1519 = vmatpush1.msra.mxu0 0.0
  %1520 = vmatprep.subr.mxu0 0.0
  %1521 = vmatpush1.msra.mxu0 0.0
  %1522 = vmatprep.subr.mxu0 0.0
  %1523 = vmatpush1.msra.mxu0 0.0
  %1524 = vmatprep.subr.mxu0 0.0
  %1525 = vmatpush1.msra.mxu0 0.0
  %1526 = vmatprep.subr.mxu0 0.0
  %1527 = vmatpush1.msra.mxu0 0.0
  %1528 = vmatprep.subr.mxu0 0.0
  %1529 = vmatpush1.msra.mxu0 0.0
  %1530 = vmatprep.subr.mxu0 0.0
  %1531 = vmatpush1.msra.mxu0 %v1495
  %1532 = vmatprep.subr.mxu0 0.0
  %1533 = vmatpush2.msra.mxu0 0.0
  %1534 = vmatprep.subr.mxu0 0.0
  %1535 = vmatpush2.msra.mxu0 0.0
  %1536 = vmatprep.subr.mxu0 0.0
  %1537 = vmatpush2.msra.mxu0 0.0
  %1538 = vmatprep.subr.mxu0 0.0
  %1539 = vmatpush2.msra.mxu0 0.0
  %1540 = vmatprep.subr.mxu0 0.0
  %1541 = vmatpush2.msra.mxu0 0.0
  %1542 = vmatprep.subr.mxu0 0.0
  %1543 = vmatpush2.msra.mxu0 0.0
  %1544 = vmatprep.subr.mxu0 0.0
  %1545 = vmatpush2.msra.mxu0 0.0
  %1546 = vmatprep.subr.mxu0 0.0
  %1547 = vmatpush2.msra.mxu0 0.0
  %1548 = vmatprep.subr.mxu0 0.0
  %1549 = vmatpush2.msra.mxu0 0.0
  %1550 = vmatprep.subr.mxu0 0.0
  %1551 = vmatpush2.msra.mxu0 0.0
  %1552 = vmatprep.subr.mxu0 0.0
  %1553 = vmatpush2.msra.mxu0 0.0
  %1554 = vmatprep.subr.mxu0 0.0
  %1555 = vmatpush2.msra.mxu0 0.0
  %1556 = vmatprep.subr.mxu0 0.0
  %1557 = vmatpush2.msra.mxu0 0.0
  %1558 = vmatprep.subr.mxu0 0.0
  %1559 = vmatpush2.msra.mxu0 0.0
  %1560 = vmatprep.subr.mxu0 0.0
  %1561 = vmatpush2.msra.mxu0 0.0
  %1562 = vmatprep.subr.mxu0 0.0
  %1563 = vmatpush2.msra.mxu0 0.0
  %1564 = vmatprep.mubr.f32.mxu0 0.0
  %1565 = vmatmul.mubr.f32.gmra.mxu0 %v1498
  %v1566 = vpop.f32.mrf.mxu0
  %v1567 = vadd.f32 0.0, %v1566
  %v1568 = vpop.f32.mrf.mxu0
  %1569 = vdwg.mxu0
  %1572 = vrot.lane.b32.xlu0 %v831, 8
  %v1573 = vpop.permute.xlu0 %1572
  %1574 = vrot.lane.b32.xlu0 %v907, 8
  %v1575 = vpop.permute.xlu0 %1574
  %1580 = vrot.lane.b32.xlu0 %v1161, 16
  %v1581 = vpop.permute.xlu0 %1580
  %1582 = vrot.lane.b32.xlu0 %v1237, 16
  %v1583 = vpop.permute.xlu0 %1582
  %1588 = vrot.lane.b32.xlu0 %v1491, 24
  %v1589 = vpop.permute.xlu0 %1588
  %1590 = vrot.lane.b32.xlu0 %v1567, 24
  %v1591 = vpop.permute.xlu0 %1590
  %v1594 = vsel %vm252, %v501, %v1573
  %v1595 = vsel %vm252, %v577, %v1575
  %vm1596 = vcmask 130048
  %v1597 = vsel %vm1596, %v1594, %v1581
  %v1598 = vsel %vm1596, %v1595, %v1583
  %vm1599 = vcmask 195584
  %v1600 = vsel %vm1599, %v1597, %v1589
  %v1601 = vsel %vm1599, %v1598, %v1591
  %v1602 = vld [vmem:[%s5] sm:$0xf]
  %v1603 = vld [vmem:[%s5 + $0x4] sm:$0xf]
  %v1604 = vld [vmem:[%s5 + $0x8] sm:$0xf]
  %v1605 = vld [vmem:[%s5 + $0xc] sm:$0xf]
  %v1606 = vld [vmem:[%s6] sm:$0x1]
  %v1607 = vpack.c.bf16 %v1601, %v1600
  %v1609 = vlaneseq
  %v1610 = vshrl.u32 %v1609, 7
  %v1611 = vsub.s32 0, %v1610
  %v1612 = vrot.slane %v1606, %v1611
  %v1618 = vunpack.c.l.b16 %v1602
  %v1619 = vunpack.c.l.b16 %v1603
  %v1620 = vunpack.c.l.b16 %v1604
  %v1621 = vunpack.c.l.b16 %v1605
  %v1622 = vpack.c.b16 %v1619, %v1618
  %v1623 = vpack.c.b16 %v1621, %v1620
  %v1627 = vsel %vm202, %v1607, 0
  %1629 = vmatprep.subr.bf16.mxu0 0
  %1630 = vmatpush1.bf16.msra.mxu0 0
  %1631 = vmatprep.subr.bf16.mxu0 0
  %1632 = vmatpush1.bf16.msra.mxu0 0
  %1633 = vmatprep.subr.bf16.mxu0 0
  %1634 = vmatpush1.bf16.msra.mxu0 0
  %1635 = vmatprep.subr.bf16.mxu0 0
  %1636 = vmatpush1.bf16.msra.mxu0 0
  %1637 = vmatprep.subr.bf16.mxu0 0
  %1638 = vmatpush1.bf16.msra.mxu0 0
  %1639 = vmatprep.subr.bf16.mxu0 0
  %1640 = vmatpush1.bf16.msra.mxu0 0
  %1641 = vmatprep.subr.bf16.mxu0 0
  %1642 = vmatpush1.bf16.msra.mxu0 %v1623
  %1643 = vmatprep.subr.bf16.mxu0 0
  %1644 = vmatpush1.bf16.msra.mxu0 %v1622
  %1645 = vmatprep.subr.bf16.mxu0 0
  %1646 = vmatpush2.bf16.msra.mxu0 0
  %1647 = vmatprep.subr.bf16.mxu0 0
  %1648 = vmatpush2.bf16.msra.mxu0 0
  %1649 = vmatprep.subr.bf16.mxu0 0
  %1650 = vmatpush2.bf16.msra.mxu0 0
  %1651 = vmatprep.subr.bf16.mxu0 0
  %1652 = vmatpush2.bf16.msra.mxu0 0
  %1653 = vmatprep.subr.bf16.mxu0 0
  %1654 = vmatpush2.bf16.msra.mxu0 0
  %1655 = vmatprep.subr.bf16.mxu0 0
  %1656 = vmatpush2.bf16.msra.mxu0 0
  %1657 = vmatprep.subr.bf16.mxu0 0
  %1658 = vmatpush2.bf16.msra.mxu0 0
  %1659 = vmatprep.subr.bf16.mxu0 0
  %1660 = vmatpush2.bf16.msra.mxu0 0
  %1661 = vmatprep.mubr.bf16.mxu0 0
  %1662 = vmatmul.mubr.bf16.gmra.mxu0 %v1627
  %v1663 = vpop.f32.mrf.mxu0
  %v1664 = vadd.f32 %v1612, %v1663
  %v1665 = vpop.f32.mrf.mxu0
  %v1666 = vpop.f32.mrf.mxu0
  %v1667 = vadd.f32 %v1612, %v1666
  %v1668 = vpop.f32.mrf.mxu0
  %1669 = vdwg.mxu0
  %v1670 = vadd.f32 %v172, %v1664
  %v1671 = vadd.f32 %v175, %v1667
  %v1672 = vld [vmem:[%s11] sm:$0x1]
  %v1673 = vld [vmem:[%s12] sm:$0x1]
  %v1674 = vsel %vm202, %v1670, 0.0
  %1675 = vadd.xlane.f32.xlu0 %v1674
  %v1676 = vpop.xlane.xlu0 %1675
  %v1677 = vsel %vm202, %v1671, 0.0
  %1678 = vadd.xlane.f32.xlu0 %v1677
  %v1679 = vpop.xlane.xlu0 %1678
  %v1680 = vrcp.pop 32.0
  %v1681 = vmul.f32 %v1676, %v1680
  %v1682 = vmul.f32 %v1679, %v1680
  %v1683 = vsub.f32 %v1670, %v1681
  %v1684 = vsub.f32 %v1671, %v1682
  %v1685 = vmul.f32 %v1683, %v1683
  %v1686 = vmul.f32 %v1684, %v1684
  %v1687 = vsel %vm202, %v1685, 0.0
  %1688 = vadd.xlane.f32.xlu0 %v1687
  %v1689 = vpop.xlane.xlu0 %1688
  %v1690 = vsel %vm202, %v1686, 0.0
  %1691 = vadd.xlane.f32.xlu0 %v1690
  %v1692 = vpop.xlane.xlu0 %1691
  %v1693 = vmul.f32 %v1689, %v1680
  %v1694 = vmul.f32 %v1692, %v1680
  %v1695 = vadd.f32 %v1693, 1e-05
  %v1696 = vadd.f32 %v1694, 1e-05
  %v1697 = vrsqrt.pop %v1695
  %v1698 = vrsqrt.pop %v1696
  %v1699 = vmul.f32 %v1683, %v1697
  %v1700 = vmul.f32 %v1684, %v1698
  %v1702 = vlaneseq
  %v1703 = vshrl.u32 %v1702, 7
  %v1704 = vsub.s32 0, %v1703
  %v1705 = vrot.slane %v1672, %v1704
  %v1707 = vmul.f32 %v1699, %v1705
  %v1708 = vmul.f32 %v1700, %v1705
  %v1710 = vlaneseq
  %v1711 = vshrl.u32 %v1710, 7
  %v1712 = vsub.s32 0, %v1711
  %v1713 = vrot.slane %v1673, %v1712
  %v1715 = vadd.f32 %v1707, %v1713
  %v1716 = vadd.f32 %v1708, %v1713
  %v1717 = vld [vmem:[%s7] sm:$0xff]
  %v1718 = vld [vmem:[%s7 + $0x8] sm:$0xff]
  %v1719 = vld [vmem:[%s7 + $0x10] sm:$0xff]
  %v1720 = vld [vmem:[%s7 + $0x18] sm:$0xff]
  %v1721 = vld [vmem:[%s7 + $0x20] sm:$0xff]
  %v1722 = vld [vmem:[%s7 + $0x28] sm:$0xff]
  %v1723 = vld [vmem:[%s7 + $0x30] sm:$0xff]
  %v1724 = vld [vmem:[%s7 + $0x38] sm:$0xff]
  %v1725 = vld [vmem:[%s7 + $0x40] sm:$0xff]
  %v1726 = vld [vmem:[%s7 + $0x48] sm:$0xff]
  %v1727 = vld [vmem:[%s7 + $0x50] sm:$0xff]
  %v1728 = vld [vmem:[%s7 + $0x58] sm:$0xff]
  %v1729 = vld [vmem:[%s7 + $0x60] sm:$0xff]
  %v1730 = vld [vmem:[%s7 + $0x68] sm:$0xff]
  %v1731 = vld [vmem:[%s7 + $0x70] sm:$0xff]
  %v1732 = vld [vmem:[%s7 + $0x78] sm:$0xff]
  %v1733 = vld [vmem:[%s7 + $0x80] sm:$0xff]
  %v1734 = vld [vmem:[%s7 + $0x88] sm:$0xff]
  %v1735 = vld [vmem:[%s7 + $0x90] sm:$0xff]
  %v1736 = vld [vmem:[%s7 + $0x98] sm:$0xff]
  %v1737 = vld [vmem:[%s7 + $0xa0] sm:$0xff]
  %v1738 = vld [vmem:[%s7 + $0xa8] sm:$0xff]
  %v1739 = vld [vmem:[%s7 + $0xb0] sm:$0xff]
  %v1740 = vld [vmem:[%s7 + $0xb8] sm:$0xff]
  %v1741 = vld [vmem:[%s7 + $0xc0] sm:$0xff]
  %v1742 = vld [vmem:[%s7 + $0xc8] sm:$0xff]
  %v1743 = vld [vmem:[%s7 + $0xd0] sm:$0xff]
  %v1744 = vld [vmem:[%s7 + $0xd8] sm:$0xff]
  %v1745 = vld [vmem:[%s7 + $0xe0] sm:$0xff]
  %v1746 = vld [vmem:[%s7 + $0xe8] sm:$0xff]
  %v1747 = vld [vmem:[%s7 + $0xf0] sm:$0xff]
  %v1748 = vld [vmem:[%s7 + $0xf8] sm:$0xff]
  %v1749 = vld [vmem:[%s8] sm:$0xff]
  %v1750 = vld [vmem:[%s8 + $0x8] sm:$0xff]
  %v1751 = vpack.c.bf16 %v1716, %v1715
  %v1754 = vlaneseq
  %v1755 = vshrl.u32 %v1754, 7
  %v1756 = vsub.s32 0, %v1755
  %v1757 = vrot.slane %v1749, %v1756
  %v1758 = vlaneseq
  %v1759 = vshrl.u32 %v1758, 7
  %v1760 = vsub.s32 1, %v1759
  %v1761 = vrot.slane %v1749, %v1760
  %v1762 = vlaneseq
  %v1763 = vshrl.u32 %v1762, 7
  %v1764 = vsub.s32 2, %v1763
  %v1765 = vrot.slane %v1749, %v1764
  %v1766 = vlaneseq
  %v1767 = vshrl.u32 %v1766, 7
  %v1768 = vsub.s32 3, %v1767
  %v1769 = vrot.slane %v1749, %v1768
  %v1770 = vlaneseq
  %v1771 = vshrl.u32 %v1770, 7
  %v1772 = vsub.s32 4, %v1771
  %v1773 = vrot.slane %v1749, %v1772
  %v1774 = vlaneseq
  %v1775 = vshrl.u32 %v1774, 7
  %v1776 = vsub.s32 5, %v1775
  %v1777 = vrot.slane %v1749, %v1776
  %v1778 = vlaneseq
  %v1779 = vshrl.u32 %v1778, 7
  %v1780 = vsub.s32 6, %v1779
  %v1781 = vrot.slane %v1749, %v1780
  %v1782 = vlaneseq
  %v1783 = vshrl.u32 %v1782, 7
  %v1784 = vsub.s32 7, %v1783
  %v1785 = vrot.slane %v1749, %v1784
  %v1786 = vlaneseq
  %v1787 = vshrl.u32 %v1786, 7
  %v1788 = vsub.s32 0, %v1787
  %v1789 = vrot.slane %v1750, %v1788
  %v1790 = vlaneseq
  %v1791 = vshrl.u32 %v1790, 7
  %v1792 = vsub.s32 1, %v1791
  %v1793 = vrot.slane %v1750, %v1792
  %v1794 = vlaneseq
  %v1795 = vshrl.u32 %v1794, 7
  %v1796 = vsub.s32 2, %v1795
  %v1797 = vrot.slane %v1750, %v1796
  %v1798 = vlaneseq
  %v1799 = vshrl.u32 %v1798, 7
  %v1800 = vsub.s32 3, %v1799
  %v1801 = vrot.slane %v1750, %v1800
  %v1802 = vlaneseq
  %v1803 = vshrl.u32 %v1802, 7
  %v1804 = vsub.s32 4, %v1803
  %v1805 = vrot.slane %v1750, %v1804
  %v1806 = vlaneseq
  %v1807 = vshrl.u32 %v1806, 7
  %v1808 = vsub.s32 5, %v1807
  %v1809 = vrot.slane %v1750, %v1808
  %v1810 = vlaneseq
  %v1811 = vshrl.u32 %v1810, 7
  %v1812 = vsub.s32 6, %v1811
  %v1813 = vrot.slane %v1750, %v1812
  %v1814 = vlaneseq
  %v1815 = vshrl.u32 %v1814, 7
  %v1816 = vsub.s32 7, %v1815
  %v1817 = vrot.slane %v1750, %v1816
  %v1866 = vunpack.c.l.b16 %v1717
  %v1867 = vunpack.c.h.b16 %v1717
  %v1868 = vunpack.c.l.b16 %v1718
  %v1869 = vunpack.c.h.b16 %v1718
  %v1870 = vunpack.c.l.b16 %v1719
  %v1871 = vunpack.c.h.b16 %v1719
  %v1872 = vunpack.c.l.b16 %v1720
  %v1873 = vunpack.c.h.b16 %v1720
  %v1874 = vunpack.c.l.b16 %v1721
  %v1875 = vunpack.c.h.b16 %v1721
  %v1876 = vunpack.c.l.b16 %v1722
  %v1877 = vunpack.c.h.b16 %v1722
  %v1878 = vunpack.c.l.b16 %v1723
  %v1879 = vunpack.c.h.b16 %v1723
  %v1880 = vunpack.c.l.b16 %v1724
  %v1881 = vunpack.c.h.b16 %v1724
  %v1882 = vunpack.c.l.b16 %v1725
  %v1883 = vunpack.c.h.b16 %v1725
  %v1884 = vunpack.c.l.b16 %v1726
  %v1885 = vunpack.c.h.b16 %v1726
  %v1886 = vunpack.c.l.b16 %v1727
  %v1887 = vunpack.c.h.b16 %v1727
  %v1888 = vunpack.c.l.b16 %v1728
  %v1889 = vunpack.c.h.b16 %v1728
  %v1890 = vunpack.c.l.b16 %v1729
  %v1891 = vunpack.c.h.b16 %v1729
  %v1892 = vunpack.c.l.b16 %v1730
  %v1893 = vunpack.c.h.b16 %v1730
  %v1894 = vunpack.c.l.b16 %v1731
  %v1895 = vunpack.c.h.b16 %v1731
  %v1896 = vunpack.c.l.b16 %v1732
  %v1897 = vunpack.c.h.b16 %v1732
  %v1898 = vunpack.c.l.b16 %v1733
  %v1899 = vunpack.c.h.b16 %v1733
  %v1900 = vunpack.c.l.b16 %v1734
  %v1901 = vunpack.c.h.b16 %v1734
  %v1902 = vunpack.c.l.b16 %v1735
  %v1903 = vunpack.c.h.b16 %v1735
  %v1904 = vunpack.c.l.b16 %v1736
  %v1905 = vunpack.c.h.b16 %v1736
  %v1906 = vunpack.c.l.b16 %v1737
  %v1907 = vunpack.c.h.b16 %v1737
  %v1908 = vunpack.c.l.b16 %v1738
  %v1909 = vunpack.c.h.b16 %v1738
  %v1910 = vunpack.c.l.b16 %v1739
  %v1911 = vunpack.c.h.b16 %v1739
  %v1912 = vunpack.c.l.b16 %v1740
  %v1913 = vunpack.c.h.b16 %v1740
  %v1914 = vunpack.c.l.b16 %v1741
  %v1915 = vunpack.c.h.b16 %v1741
  %v1916 = vunpack.c.l.b16 %v1742
  %v1917 = vunpack.c.h.b16 %v1742
  %v1918 = vunpack.c.l.b16 %v1743
  %v1919 = vunpack.c.h.b16 %v1743
  %v1920 = vunpack.c.l.b16 %v1744
  %v1921 = vunpack.c.h.b16 %v1744
  %v1922 = vunpack.c.l.b16 %v1745
  %v1923 = vunpack.c.h.b16 %v1745
  %v1924 = vunpack.c.l.b16 %v1746
  %v1925 = vunpack.c.h.b16 %v1746
  %v1926 = vunpack.c.l.b16 %v1747
  %v1927 = vunpack.c.h.b16 %v1747
  %v1928 = vunpack.c.l.b16 %v1748
  %v1929 = vunpack.c.h.b16 %v1748
  %v1930 = vpack.c.b16 %v1882, %v1866
  %v1931 = vpack.c.b16 %v1883, %v1867
  %v1932 = vpack.c.b16 %v1884, %v1868
  %v1933 = vpack.c.b16 %v1885, %v1869
  %v1934 = vpack.c.b16 %v1886, %v1870
  %v1935 = vpack.c.b16 %v1887, %v1871
  %v1936 = vpack.c.b16 %v1888, %v1872
  %v1937 = vpack.c.b16 %v1889, %v1873
  %v1938 = vpack.c.b16 %v1890, %v1874
  %v1939 = vpack.c.b16 %v1891, %v1875
  %v1940 = vpack.c.b16 %v1892, %v1876
  %v1941 = vpack.c.b16 %v1893, %v1877
  %v1942 = vpack.c.b16 %v1894, %v1878
  %v1943 = vpack.c.b16 %v1895, %v1879
  %v1944 = vpack.c.b16 %v1896, %v1880
  %v1945 = vpack.c.b16 %v1897, %v1881
  %v1946 = vpack.c.b16 %v1914, %v1898
  %v1947 = vpack.c.b16 %v1915, %v1899
  %v1948 = vpack.c.b16 %v1916, %v1900
  %v1949 = vpack.c.b16 %v1917, %v1901
  %v1950 = vpack.c.b16 %v1918, %v1902
  %v1951 = vpack.c.b16 %v1919, %v1903
  %v1952 = vpack.c.b16 %v1920, %v1904
  %v1953 = vpack.c.b16 %v1921, %v1905
  %v1954 = vpack.c.b16 %v1922, %v1906
  %v1955 = vpack.c.b16 %v1923, %v1907
  %v1956 = vpack.c.b16 %v1924, %v1908
  %v1957 = vpack.c.b16 %v1925, %v1909
  %v1958 = vpack.c.b16 %v1926, %v1910
  %v1959 = vpack.c.b16 %v1927, %v1911
  %v1960 = vpack.c.b16 %v1928, %v1912
  %v1961 = vpack.c.b16 %v1929, %v1913
  %v1995 = vsel %vm202, %v1751, 0
  %1997 = vmatprep.subr.bf16.mxu0 0
  %1998 = vmatpush1.bf16.msra.mxu0 0
  %1999 = vmatprep.subr.bf16.mxu0 0
  %2000 = vmatpush1.bf16.msra.mxu0 0
  %2001 = vmatprep.subr.bf16.mxu0 0
  %2002 = vmatpush1.bf16.msra.mxu0 0
  %2003 = vmatprep.subr.bf16.mxu0 0
  %2004 = vmatpush1.bf16.msra.mxu0 0
  %2005 = vmatprep.subr.bf16.mxu0 0
  %2006 = vmatpush1.bf16.msra.mxu0 0
  %2007 = vmatprep.subr.bf16.mxu0 0
  %2008 = vmatpush1.bf16.msra.mxu0 0
  %2009 = vmatprep.subr.bf16.mxu0 %v1947
  %2010 = vmatpush1.bf16.msra.mxu0 %v1946
  %2011 = vmatprep.subr.bf16.mxu0 %v1931
  %2012 = vmatpush1.bf16.msra.mxu0 %v1930
  %2013 = vmatprep.subr.bf16.mxu0 0
  %2014 = vmatpush2.bf16.msra.mxu0 0
  %2015 = vmatprep.subr.bf16.mxu0 0
  %2016 = vmatpush2.bf16.msra.mxu0 0
  %2017 = vmatprep.subr.bf16.mxu0 0
  %2018 = vmatpush2.bf16.msra.mxu0 0
  %2019 = vmatprep.subr.bf16.mxu0 0
  %2020 = vmatpush2.bf16.msra.mxu0 0
  %2021 = vmatprep.subr.bf16.mxu0 0
  %2022 = vmatpush2.bf16.msra.mxu0 0
  %2023 = vmatprep.subr.bf16.mxu0 0
  %2024 = vmatpush2.bf16.msra.mxu0 0
  %2025 = vmatprep.subr.bf16.mxu0 0
  %2026 = vmatpush2.bf16.msra.mxu0 0
  %2027 = vmatprep.subr.bf16.mxu0 0
  %2028 = vmatpush2.bf16.msra.mxu0 0
  %2029 = vmatprep.mubr.bf16.mxu0 0
  %2030 = vmatmul.mubr.bf16.gmra.mxu0 %v1995
  %v2031 = vpop.f32.mrf.mxu0
  %v2032 = vadd.f32 %v1757, %v2031
  %v2033 = vpop.f32.mrf.mxu0
  %v2034 = vadd.f32 %v1761, %v2033
  %v2035 = vpop.f32.mrf.mxu0
  %v2036 = vadd.f32 %v1757, %v2035
  %v2037 = vpop.f32.mrf.mxu0
  %v2038 = vadd.f32 %v1761, %v2037
  %2039 = vdwg.mxu0
  %2040 = vmatprep.subr.bf16.mxu0 0
  %2041 = vmatpush1.bf16.msra.mxu0 0
  %2042 = vmatprep.subr.bf16.mxu0 0
  %2043 = vmatpush1.bf16.msra.mxu0 0
  %2044 = vmatprep.subr.bf16.mxu0 0
  %2045 = vmatpush1.bf16.msra.mxu0 0
  %2046 = vmatprep.subr.bf16.mxu0 0
  %2047 = vmatpush1.bf16.msra.mxu0 0
  %2048 = vmatprep.subr.bf16.mxu0 0
  %2049 = vmatpush1.bf16.msra.mxu0 0
  %2050 = vmatprep.subr.bf16.mxu0 0
  %2051 = vmatpush1.bf16.msra.mxu0 0
  %2052 = vmatprep.subr.bf16.mxu0 %v1949
  %2053 = vmatpush1.bf16.msra.mxu0 %v1948
  %2054 = vmatprep.subr.bf16.mxu0 %v1933
  %2055 = vmatpush1.bf16.msra.mxu0 %v1932
  %2056 = vmatprep.subr.bf16.mxu0 0
  %2057 = vmatpush2.bf16.msra.mxu0 0
  %2058 = vmatprep.subr.bf16.mxu0 0
  %2059 = vmatpush2.bf16.msra.mxu0 0
  %2060 = vmatprep.subr.bf16.mxu0 0
  %2061 = vmatpush2.bf16.msra.mxu0 0
  %2062 = vmatprep.subr.bf16.mxu0 0
  %2063 = vmatpush2.bf16.msra.mxu0 0
  %2064 = vmatprep.subr.bf16.mxu0 0
  %2065 = vmatpush2.bf16.msra.mxu0 0
  %2066 = vmatprep.subr.bf16.mxu0 0
  %2067 = vmatpush2.bf16.msra.mxu0 0
  %2068 = vmatprep.subr.bf16.mxu0 0
  %2069 = vmatpush2.bf16.msra.mxu0 0
  %2070 = vmatprep.subr.bf16.mxu0 0
  %2071 = vmatpush2.bf16.msra.mxu0 0
  %2072 = vmatprep.mubr.bf16.mxu0 0
  %2073 = vmatmul.mubr.bf16.gmra.mxu0 %v1995
  %v2074 = vpop.f32.mrf.mxu0
  %v2075 = vadd.f32 %v1765, %v2074
  %v2076 = vpop.f32.mrf.mxu0
  %v2077 = vadd.f32 %v1769, %v2076
  %v2078 = vpop.f32.mrf.mxu0
  %v2079 = vadd.f32 %v1765, %v2078
  %v2080 = vpop.f32.mrf.mxu0
  %v2081 = vadd.f32 %v1769, %v2080
  %2082 = vdwg.mxu0
  %2083 = vmatprep.subr.bf16.mxu0 0
  %2084 = vmatpush1.bf16.msra.mxu0 0
  %2085 = vmatprep.subr.bf16.mxu0 0
  %2086 = vmatpush1.bf16.msra.mxu0 0
  %2087 = vmatprep.subr.bf16.mxu0 0
  %2088 = vmatpush1.bf16.msra.mxu0 0
  %2089 = vmatprep.subr.bf16.mxu0 0
  %2090 = vmatpush1.bf16.msra.mxu0 0
  %2091 = vmatprep.subr.bf16.mxu0 0
  %2092 = vmatpush1.bf16.msra.mxu0 0
  %2093 = vmatprep.subr.bf16.mxu0 0
  %2094 = vmatpush1.bf16.msra.mxu0 0
  %2095 = vmatprep.subr.bf16.mxu0 %v1951
  %2096 = vmatpush1.bf16.msra.mxu0 %v1950
  %2097 = vmatprep.subr.bf16.mxu0 %v1935
  %2098 = vmatpush1.bf16.msra.mxu0 %v1934
  %2099 = vmatprep.subr.bf16.mxu0 0
  %2100 = vmatpush2.bf16.msra.mxu0 0
  %2101 = vmatprep.subr.bf16.mxu0 0
  %2102 = vmatpush2.bf16.msra.mxu0 0
  %2103 = vmatprep.subr.bf16.mxu0 0
  %2104 = vmatpush2.bf16.msra.mxu0 0
  %2105 = vmatprep.subr.bf16.mxu0 0
  %2106 = vmatpush2.bf16.msra.mxu0 0
  %2107 = vmatprep.subr.bf16.mxu0 0
  %2108 = vmatpush2.bf16.msra.mxu0 0
  %2109 = vmatprep.subr.bf16.mxu0 0
  %2110 = vmatpush2.bf16.msra.mxu0 0
  %2111 = vmatprep.subr.bf16.mxu0 0
  %2112 = vmatpush2.bf16.msra.mxu0 0
  %2113 = vmatprep.subr.bf16.mxu0 0
  %2114 = vmatpush2.bf16.msra.mxu0 0
  %2115 = vmatprep.mubr.bf16.mxu0 0
  %2116 = vmatmul.mubr.bf16.gmra.mxu0 %v1995
  %v2117 = vpop.f32.mrf.mxu0
  %v2118 = vadd.f32 %v1773, %v2117
  %v2119 = vpop.f32.mrf.mxu0
  %v2120 = vadd.f32 %v1777, %v2119
  %v2121 = vpop.f32.mrf.mxu0
  %v2122 = vadd.f32 %v1773, %v2121
  %v2123 = vpop.f32.mrf.mxu0
  %v2124 = vadd.f32 %v1777, %v2123
  %2125 = vdwg.mxu0
  %2126 = vmatprep.subr.bf16.mxu0 0
  %2127 = vmatpush1.bf16.msra.mxu0 0
  %2128 = vmatprep.subr.bf16.mxu0 0
  %2129 = vmatpush1.bf16.msra.mxu0 0
  %2130 = vmatprep.subr.bf16.mxu0 0
  %2131 = vmatpush1.bf16.msra.mxu0 0
  %2132 = vmatprep.subr.bf16.mxu0 0
  %2133 = vmatpush1.bf16.msra.mxu0 0
  %2134 = vmatprep.subr.bf16.mxu0 0
  %2135 = vmatpush1.bf16.msra.mxu0 0
  %2136 = vmatprep.subr.bf16.mxu0 0
  %2137 = vmatpush1.bf16.msra.mxu0 0
  %2138 = vmatprep.subr.bf16.mxu0 %v1953
  %2139 = vmatpush1.bf16.msra.mxu0 %v1952
  %2140 = vmatprep.subr.bf16.mxu0 %v1937
  %2141 = vmatpush1.bf16.msra.mxu0 %v1936
  %2142 = vmatprep.subr.bf16.mxu0 0
  %2143 = vmatpush2.bf16.msra.mxu0 0
  %2144 = vmatprep.subr.bf16.mxu0 0
  %2145 = vmatpush2.bf16.msra.mxu0 0
  %2146 = vmatprep.subr.bf16.mxu0 0
  %2147 = vmatpush2.bf16.msra.mxu0 0
  %2148 = vmatprep.subr.bf16.mxu0 0
  %2149 = vmatpush2.bf16.msra.mxu0 0
  %2150 = vmatprep.subr.bf16.mxu0 0
  %2151 = vmatpush2.bf16.msra.mxu0 0
  %2152 = vmatprep.subr.bf16.mxu0 0
  %2153 = vmatpush2.bf16.msra.mxu0 0
  %2154 = vmatprep.subr.bf16.mxu0 0
  %2155 = vmatpush2.bf16.msra.mxu0 0
  %2156 = vmatprep.subr.bf16.mxu0 0
  %2157 = vmatpush2.bf16.msra.mxu0 0
  %2158 = vmatprep.mubr.bf16.mxu0 0
  %2159 = vmatmul.mubr.bf16.gmra.mxu0 %v1995
  %v2160 = vpop.f32.mrf.mxu0
  %v2161 = vadd.f32 %v1781, %v2160
  %v2162 = vpop.f32.mrf.mxu0
  %v2163 = vadd.f32 %v1785, %v2162
  %v2164 = vpop.f32.mrf.mxu0
  %v2165 = vadd.f32 %v1781, %v2164
  %v2166 = vpop.f32.mrf.mxu0
  %v2167 = vadd.f32 %v1785, %v2166
  %2168 = vdwg.mxu0
  %2169 = vmatprep.subr.bf16.mxu0 0
  %2170 = vmatpush1.bf16.msra.mxu0 0
  %2171 = vmatprep.subr.bf16.mxu0 0
  %2172 = vmatpush1.bf16.msra.mxu0 0
  %2173 = vmatprep.subr.bf16.mxu0 0
  %2174 = vmatpush1.bf16.msra.mxu0 0
  %2175 = vmatprep.subr.bf16.mxu0 0
  %2176 = vmatpush1.bf16.msra.mxu0 0
  %2177 = vmatprep.subr.bf16.mxu0 0
  %2178 = vmatpush1.bf16.msra.mxu0 0
  %2179 = vmatprep.subr.bf16.mxu0 0
  %2180 = vmatpush1.bf16.msra.mxu0 0
  %2181 = vmatprep.subr.bf16.mxu0 %v1955
  %2182 = vmatpush1.bf16.msra.mxu0 %v1954
  %2183 = vmatprep.subr.bf16.mxu0 %v1939
  %2184 = vmatpush1.bf16.msra.mxu0 %v1938
  %2185 = vmatprep.subr.bf16.mxu0 0
  %2186 = vmatpush2.bf16.msra.mxu0 0
  %2187 = vmatprep.subr.bf16.mxu0 0
  %2188 = vmatpush2.bf16.msra.mxu0 0
  %2189 = vmatprep.subr.bf16.mxu0 0
  %2190 = vmatpush2.bf16.msra.mxu0 0
  %2191 = vmatprep.subr.bf16.mxu0 0
  %2192 = vmatpush2.bf16.msra.mxu0 0
  %2193 = vmatprep.subr.bf16.mxu0 0
  %2194 = vmatpush2.bf16.msra.mxu0 0
  %2195 = vmatprep.subr.bf16.mxu0 0
  %2196 = vmatpush2.bf16.msra.mxu0 0
  %2197 = vmatprep.subr.bf16.mxu0 0
  %2198 = vmatpush2.bf16.msra.mxu0 0
  %2199 = vmatprep.subr.bf16.mxu0 0
  %2200 = vmatpush2.bf16.msra.mxu0 0
  %2201 = vmatprep.mubr.bf16.mxu0 0
  %2202 = vmatmul.mubr.bf16.gmra.mxu0 %v1995
  %v2203 = vpop.f32.mrf.mxu0
  %v2204 = vadd.f32 %v1789, %v2203
  %v2205 = vpop.f32.mrf.mxu0
  %v2206 = vadd.f32 %v1793, %v2205
  %v2207 = vpop.f32.mrf.mxu0
  %v2208 = vadd.f32 %v1789, %v2207
  %v2209 = vpop.f32.mrf.mxu0
  %v2210 = vadd.f32 %v1793, %v2209
  %2211 = vdwg.mxu0
  %2212 = vmatprep.subr.bf16.mxu0 0
  %2213 = vmatpush1.bf16.msra.mxu0 0
  %2214 = vmatprep.subr.bf16.mxu0 0
  %2215 = vmatpush1.bf16.msra.mxu0 0
  %2216 = vmatprep.subr.bf16.mxu0 0
  %2217 = vmatpush1.bf16.msra.mxu0 0
  %2218 = vmatprep.subr.bf16.mxu0 0
  %2219 = vmatpush1.bf16.msra.mxu0 0
  %2220 = vmatprep.subr.bf16.mxu0 0
  %2221 = vmatpush1.bf16.msra.mxu0 0
  %2222 = vmatprep.subr.bf16.mxu0 0
  %2223 = vmatpush1.bf16.msra.mxu0 0
  %2224 = vmatprep.subr.bf16.mxu0 %v1957
  %2225 = vmatpush1.bf16.msra.mxu0 %v1956
  %2226 = vmatprep.subr.bf16.mxu0 %v1941
  %2227 = vmatpush1.bf16.msra.mxu0 %v1940
  %2228 = vmatprep.subr.bf16.mxu0 0
  %2229 = vmatpush2.bf16.msra.mxu0 0
  %2230 = vmatprep.subr.bf16.mxu0 0
  %2231 = vmatpush2.bf16.msra.mxu0 0
  %2232 = vmatprep.subr.bf16.mxu0 0
  %2233 = vmatpush2.bf16.msra.mxu0 0
  %2234 = vmatprep.subr.bf16.mxu0 0
  %2235 = vmatpush2.bf16.msra.mxu0 0
  %2236 = vmatprep.subr.bf16.mxu0 0
  %2237 = vmatpush2.bf16.msra.mxu0 0
  %2238 = vmatprep.subr.bf16.mxu0 0
  %2239 = vmatpush2.bf16.msra.mxu0 0
  %2240 = vmatprep.subr.bf16.mxu0 0
  %2241 = vmatpush2.bf16.msra.mxu0 0
  %2242 = vmatprep.subr.bf16.mxu0 0
  %2243 = vmatpush2.bf16.msra.mxu0 0
  %2244 = vmatprep.mubr.bf16.mxu0 0
  %2245 = vmatmul.mubr.bf16.gmra.mxu0 %v1995
  %v2246 = vpop.f32.mrf.mxu0
  %v2247 = vadd.f32 %v1797, %v2246
  %v2248 = vpop.f32.mrf.mxu0
  %v2249 = vadd.f32 %v1801, %v2248
  %v2250 = vpop.f32.mrf.mxu0
  %v2251 = vadd.f32 %v1797, %v2250
  %v2252 = vpop.f32.mrf.mxu0
  %v2253 = vadd.f32 %v1801, %v2252
  %2254 = vdwg.mxu0
  %2255 = vmatprep.subr.bf16.mxu0 0
  %2256 = vmatpush1.bf16.msra.mxu0 0
  %2257 = vmatprep.subr.bf16.mxu0 0
  %2258 = vmatpush1.bf16.msra.mxu0 0
  %2259 = vmatprep.subr.bf16.mxu0 0
  %2260 = vmatpush1.bf16.msra.mxu0 0
  %2261 = vmatprep.subr.bf16.mxu0 0
  %2262 = vmatpush1.bf16.msra.mxu0 0
  %2263 = vmatprep.subr.bf16.mxu0 0
  %2264 = vmatpush1.bf16.msra.mxu0 0
  %2265 = vmatprep.subr.bf16.mxu0 0
  %2266 = vmatpush1.bf16.msra.mxu0 0
  %2267 = vmatprep.subr.bf16.mxu0 %v1959
  %2268 = vmatpush1.bf16.msra.mxu0 %v1958
  %2269 = vmatprep.subr.bf16.mxu0 %v1943
  %2270 = vmatpush1.bf16.msra.mxu0 %v1942
  %2271 = vmatprep.subr.bf16.mxu0 0
  %2272 = vmatpush2.bf16.msra.mxu0 0
  %2273 = vmatprep.subr.bf16.mxu0 0
  %2274 = vmatpush2.bf16.msra.mxu0 0
  %2275 = vmatprep.subr.bf16.mxu0 0
  %2276 = vmatpush2.bf16.msra.mxu0 0
  %2277 = vmatprep.subr.bf16.mxu0 0
  %2278 = vmatpush2.bf16.msra.mxu0 0
  %2279 = vmatprep.subr.bf16.mxu0 0
  %2280 = vmatpush2.bf16.msra.mxu0 0
  %2281 = vmatprep.subr.bf16.mxu0 0
  %2282 = vmatpush2.bf16.msra.mxu0 0
  %2283 = vmatprep.subr.bf16.mxu0 0
  %2284 = vmatpush2.bf16.msra.mxu0 0
  %2285 = vmatprep.subr.bf16.mxu0 0
  %2286 = vmatpush2.bf16.msra.mxu0 0
  %2287 = vmatprep.mubr.bf16.mxu0 0
  %2288 = vmatmul.mubr.bf16.gmra.mxu0 %v1995
  %v2289 = vpop.f32.mrf.mxu0
  %v2290 = vadd.f32 %v1805, %v2289
  %v2291 = vpop.f32.mrf.mxu0
  %v2292 = vadd.f32 %v1809, %v2291
  %v2293 = vpop.f32.mrf.mxu0
  %v2294 = vadd.f32 %v1805, %v2293
  %v2295 = vpop.f32.mrf.mxu0
  %v2296 = vadd.f32 %v1809, %v2295
  %2297 = vdwg.mxu0
  %2298 = vmatprep.subr.bf16.mxu0 0
  %2299 = vmatpush1.bf16.msra.mxu0 0
  %2300 = vmatprep.subr.bf16.mxu0 0
  %2301 = vmatpush1.bf16.msra.mxu0 0
  %2302 = vmatprep.subr.bf16.mxu0 0
  %2303 = vmatpush1.bf16.msra.mxu0 0
  %2304 = vmatprep.subr.bf16.mxu0 0
  %2305 = vmatpush1.bf16.msra.mxu0 0
  %2306 = vmatprep.subr.bf16.mxu0 0
  %2307 = vmatpush1.bf16.msra.mxu0 0
  %2308 = vmatprep.subr.bf16.mxu0 0
  %2309 = vmatpush1.bf16.msra.mxu0 0
  %2310 = vmatprep.subr.bf16.mxu0 %v1961
  %2311 = vmatpush1.bf16.msra.mxu0 %v1960
  %2312 = vmatprep.subr.bf16.mxu0 %v1945
  %2313 = vmatpush1.bf16.msra.mxu0 %v1944
  %2314 = vmatprep.subr.bf16.mxu0 0
  %2315 = vmatpush2.bf16.msra.mxu0 0
  %2316 = vmatprep.subr.bf16.mxu0 0
  %2317 = vmatpush2.bf16.msra.mxu0 0
  %2318 = vmatprep.subr.bf16.mxu0 0
  %2319 = vmatpush2.bf16.msra.mxu0 0
  %2320 = vmatprep.subr.bf16.mxu0 0
  %2321 = vmatpush2.bf16.msra.mxu0 0
  %2322 = vmatprep.subr.bf16.mxu0 0
  %2323 = vmatpush2.bf16.msra.mxu0 0
  %2324 = vmatprep.subr.bf16.mxu0 0
  %2325 = vmatpush2.bf16.msra.mxu0 0
  %2326 = vmatprep.subr.bf16.mxu0 0
  %2327 = vmatpush2.bf16.msra.mxu0 0
  %2328 = vmatprep.subr.bf16.mxu0 0
  %2329 = vmatpush2.bf16.msra.mxu0 0
  %2330 = vmatprep.mubr.bf16.mxu0 0
  %2331 = vmatmul.mubr.bf16.gmra.mxu0 %v1995
  %v2332 = vpop.f32.mrf.mxu0
  %v2333 = vadd.f32 %v1813, %v2332
  %v2334 = vpop.f32.mrf.mxu0
  %v2335 = vadd.f32 %v1817, %v2334
  %v2336 = vpop.f32.mrf.mxu0
  %v2337 = vadd.f32 %v1813, %v2336
  %v2338 = vpop.f32.mrf.mxu0
  %v2339 = vadd.f32 %v1817, %v2338
  %2340 = vdwg.mxu0
  %v2341 = vmax.f32 %v2032, 0.0
  %v2342 = vmax.f32 %v2034, 0.0
  %v2343 = vmax.f32 %v2075, 0.0
  %v2344 = vmax.f32 %v2077, 0.0
  %v2345 = vmax.f32 %v2118, 0.0
  %v2346 = vmax.f32 %v2120, 0.0
  %v2347 = vmax.f32 %v2161, 0.0
  %v2348 = vmax.f32 %v2163, 0.0
  %v2349 = vmax.f32 %v2204, 0.0
  %v2350 = vmax.f32 %v2206, 0.0
  %v2351 = vmax.f32 %v2247, 0.0
  %v2352 = vmax.f32 %v2249, 0.0
  %v2353 = vmax.f32 %v2290, 0.0
  %v2354 = vmax.f32 %v2292, 0.0
  %v2355 = vmax.f32 %v2333, 0.0
  %v2356 = vmax.f32 %v2335, 0.0
  %v2357 = vmax.f32 %v2036, 0.0
  %v2358 = vmax.f32 %v2038, 0.0
  %v2359 = vmax.f32 %v2079, 0.0
  %v2360 = vmax.f32 %v2081, 0.0
  %v2361 = vmax.f32 %v2122, 0.0
  %v2362 = vmax.f32 %v2124, 0.0
  %v2363 = vmax.f32 %v2165, 0.0
  %v2364 = vmax.f32 %v2167, 0.0
  %v2365 = vmax.f32 %v2208, 0.0
  %v2366 = vmax.f32 %v2210, 0.0
  %v2367 = vmax.f32 %v2251, 0.0
  %v2368 = vmax.f32 %v2253, 0.0
  %v2369 = vmax.f32 %v2294, 0.0
  %v2370 = vmax.f32 %v2296, 0.0
  %v2371 = vmax.f32 %v2337, 0.0
  %v2372 = vmax.f32 %v2339, 0.0
  %v2373 = vld [vmem:[%s9] sm:$0xf]
  %v2374 = vld [vmem:[%s9 + $0x4] sm:$0xf]
  %v2375 = vld [vmem:[%s9 + $0x8] sm:$0xf]
  %v2376 = vld [vmem:[%s9 + $0xc] sm:$0xf]
  %v2377 = vld [vmem:[%s9 + $0x10] sm:$0xf]
  %v2378 = vld [vmem:[%s9 + $0x14] sm:$0xf]
  %v2379 = vld [vmem:[%s9 + $0x18] sm:$0xf]
  %v2380 = vld [vmem:[%s9 + $0x1c] sm:$0xf]
  %v2381 = vld [vmem:[%s9 + $0x20] sm:$0xf]
  %v2382 = vld [vmem:[%s9 + $0x24] sm:$0xf]
  %v2383 = vld [vmem:[%s9 + $0x28] sm:$0xf]
  %v2384 = vld [vmem:[%s9 + $0x2c] sm:$0xf]
  %v2385 = vld [vmem:[%s9 + $0x30] sm:$0xf]
  %v2386 = vld [vmem:[%s9 + $0x34] sm:$0xf]
  %v2387 = vld [vmem:[%s9 + $0x38] sm:$0xf]
  %v2388 = vld [vmem:[%s9 + $0x3c] sm:$0xf]
  %v2389 = vld [vmem:[%s9 + $0x40] sm:$0xf]
  %v2390 = vld [vmem:[%s9 + $0x44] sm:$0xf]
  %v2391 = vld [vmem:[%s9 + $0x48] sm:$0xf]
  %v2392 = vld [vmem:[%s9 + $0x4c] sm:$0xf]
  %v2393 = vld [vmem:[%s9 + $0x50] sm:$0xf]
  %v2394 = vld [vmem:[%s9 + $0x54] sm:$0xf]
  %v2395 = vld [vmem:[%s9 + $0x58] sm:$0xf]
  %v2396 = vld [vmem:[%s9 + $0x5c] sm:$0xf]
  %v2397 = vld [vmem:[%s9 + $0x60] sm:$0xf]
  %v2398 = vld [vmem:[%s9 + $0x64] sm:$0xf]
  %v2399 = vld [vmem:[%s9 + $0x68] sm:$0xf]
  %v2400 = vld [vmem:[%s9 + $0x6c] sm:$0xf]
  %v2401 = vld [vmem:[%s9 + $0x70] sm:$0xf]
  %v2402 = vld [vmem:[%s9 + $0x74] sm:$0xf]
  %v2403 = vld [vmem:[%s9 + $0x78] sm:$0xf]
  %v2404 = vld [vmem:[%s9 + $0x7c] sm:$0xf]
  %v2405 = vld [vmem:[%s9 + $0x80] sm:$0xf]
  %v2406 = vld [vmem:[%s9 + $0x84] sm:$0xf]
  %v2407 = vld [vmem:[%s9 + $0x88] sm:$0xf]
  %v2408 = vld [vmem:[%s9 + $0x8c] sm:$0xf]
  %v2409 = vld [vmem:[%s9 + $0x90] sm:$0xf]
  %v2410 = vld [vmem:[%s9 + $0x94] sm:$0xf]
  %v2411 = vld [vmem:[%s9 + $0x98] sm:$0xf]
  %v2412 = vld [vmem:[%s9 + $0x9c] sm:$0xf]
  %v2413 = vld [vmem:[%s9 + $0xa0] sm:$0xf]
  %v2414 = vld [vmem:[%s9 + $0xa4] sm:$0xf]
  %v2415 = vld [vmem:[%s9 + $0xa8] sm:$0xf]
  %v2416 = vld [vmem:[%s9 + $0xac] sm:$0xf]
  %v2417 = vld [vmem:[%s9 + $0xb0] sm:$0xf]
  %v2418 = vld [vmem:[%s9 + $0xb4] sm:$0xf]
  %v2419 = vld [vmem:[%s9 + $0xb8] sm:$0xf]
  %v2420 = vld [vmem:[%s9 + $0xbc] sm:$0xf]
  %v2421 = vld [vmem:[%s9 + $0xc0] sm:$0xf]
  %v2422 = vld [vmem:[%s9 + $0xc4] sm:$0xf]
  %v2423 = vld [vmem:[%s9 + $0xc8] sm:$0xf]
  %v2424 = vld [vmem:[%s9 + $0xcc] sm:$0xf]
  %v2425 = vld [vmem:[%s9 + $0xd0] sm:$0xf]
  %v2426 = vld [vmem:[%s9 + $0xd4] sm:$0xf]
  %v2427 = vld [vmem:[%s9 + $0xd8] sm:$0xf]
  %v2428 = vld [vmem:[%s9 + $0xdc] sm:$0xf]
  %v2429 = vld [vmem:[%s9 + $0xe0] sm:$0xf]
  %v2430 = vld [vmem:[%s9 + $0xe4] sm:$0xf]
  %v2431 = vld [vmem:[%s9 + $0xe8] sm:$0xf]
  %v2432 = vld [vmem:[%s9 + $0xec] sm:$0xf]
  %v2433 = vld [vmem:[%s9 + $0xf0] sm:$0xf]
  %v2434 = vld [vmem:[%s9 + $0xf4] sm:$0xf]
  %v2435 = vld [vmem:[%s9 + $0xf8] sm:$0xf]
  %v2436 = vld [vmem:[%s9 + $0xfc] sm:$0xf]
  %v2437 = vld [vmem:[%s9 + $0x100] sm:$0xf]
  %v2438 = vld [vmem:[%s9 + $0x104] sm:$0xf]
  %v2439 = vld [vmem:[%s9 + $0x108] sm:$0xf]
  %v2440 = vld [vmem:[%s9 + $0x10c] sm:$0xf]
  %v2441 = vld [vmem:[%s9 + $0x110] sm:$0xf]
  %v2442 = vld [vmem:[%s9 + $0x114] sm:$0xf]
  %v2443 = vld [vmem:[%s9 + $0x118] sm:$0xf]
  %v2444 = vld [vmem:[%s9 + $0x11c] sm:$0xf]
  %v2445 = vld [vmem:[%s9 + $0x120] sm:$0xf]
  %v2446 = vld [vmem:[%s9 + $0x124] sm:$0xf]
  %v2447 = vld [vmem:[%s9 + $0x128] sm:$0xf]
  %v2448 = vld [vmem:[%s9 + $0x12c] sm:$0xf]
  %v2449 = vld [vmem:[%s9 + $0x130] sm:$0xf]
  %v2450 = vld [vmem:[%s9 + $0x134] sm:$0xf]
  %v2451 = vld [vmem:[%s9 + $0x138] sm:$0xf]
  %v2452 = vld [vmem:[%s9 + $0x13c] sm:$0xf]
  %v2453 = vld [vmem:[%s9 + $0x140] sm:$0xf]
  %v2454 = vld [vmem:[%s9 + $0x144] sm:$0xf]
  %v2455 = vld [vmem:[%s9 + $0x148] sm:$0xf]
  %v2456 = vld [vmem:[%s9 + $0x14c] sm:$0xf]
  %v2457 = vld [vmem:[%s9 + $0x150] sm:$0xf]
  %v2458 = vld [vmem:[%s9 + $0x154] sm:$0xf]
  %v2459 = vld [vmem:[%s9 + $0x158] sm:$0xf]
  %v2460 = vld [vmem:[%s9 + $0x15c] sm:$0xf]
  %v2461 = vld [vmem:[%s9 + $0x160] sm:$0xf]
  %v2462 = vld [vmem:[%s9 + $0x164] sm:$0xf]
  %v2463 = vld [vmem:[%s9 + $0x168] sm:$0xf]
  %v2464 = vld [vmem:[%s9 + $0x16c] sm:$0xf]
  %v2465 = vld [vmem:[%s9 + $0x170] sm:$0xf]
  %v2466 = vld [vmem:[%s9 + $0x174] sm:$0xf]
  %v2467 = vld [vmem:[%s9 + $0x178] sm:$0xf]
  %v2468 = vld [vmem:[%s9 + $0x17c] sm:$0xf]
  %v2469 = vld [vmem:[%s9 + $0x180] sm:$0xf]
  %v2470 = vld [vmem:[%s9 + $0x184] sm:$0xf]
  %v2471 = vld [vmem:[%s9 + $0x188] sm:$0xf]
  %v2472 = vld [vmem:[%s9 + $0x18c] sm:$0xf]
  %v2473 = vld [vmem:[%s9 + $0x190] sm:$0xf]
  %v2474 = vld [vmem:[%s9 + $0x194] sm:$0xf]
  %v2475 = vld [vmem:[%s9 + $0x198] sm:$0xf]
  %v2476 = vld [vmem:[%s9 + $0x19c] sm:$0xf]
  %v2477 = vld [vmem:[%s9 + $0x1a0] sm:$0xf]
  %v2478 = vld [vmem:[%s9 + $0x1a4] sm:$0xf]
  %v2479 = vld [vmem:[%s9 + $0x1a8] sm:$0xf]
  %v2480 = vld [vmem:[%s9 + $0x1ac] sm:$0xf]
  %v2481 = vld [vmem:[%s9 + $0x1b0] sm:$0xf]
  %v2482 = vld [vmem:[%s9 + $0x1b4] sm:$0xf]
  %v2483 = vld [vmem:[%s9 + $0x1b8] sm:$0xf]
  %v2484 = vld [vmem:[%s9 + $0x1bc] sm:$0xf]
  %v2485 = vld [vmem:[%s9 + $0x1c0] sm:$0xf]
  %v2486 = vld [vmem:[%s9 + $0x1c4] sm:$0xf]
  %v2487 = vld [vmem:[%s9 + $0x1c8] sm:$0xf]
  %v2488 = vld [vmem:[%s9 + $0x1cc] sm:$0xf]
  %v2489 = vld [vmem:[%s9 + $0x1d0] sm:$0xf]
  %v2490 = vld [vmem:[%s9 + $0x1d4] sm:$0xf]
  %v2491 = vld [vmem:[%s9 + $0x1d8] sm:$0xf]
  %v2492 = vld [vmem:[%s9 + $0x1dc] sm:$0xf]
  %v2493 = vld [vmem:[%s9 + $0x1e0] sm:$0xf]
  %v2494 = vld [vmem:[%s9 + $0x1e4] sm:$0xf]
  %v2495 = vld [vmem:[%s9 + $0x1e8] sm:$0xf]
  %v2496 = vld [vmem:[%s9 + $0x1ec] sm:$0xf]
  %v2497 = vld [vmem:[%s9 + $0x1f0] sm:$0xf]
  %v2498 = vld [vmem:[%s9 + $0x1f4] sm:$0xf]
  %v2499 = vld [vmem:[%s9 + $0x1f8] sm:$0xf]
  %v2500 = vld [vmem:[%s9 + $0x1fc] sm:$0xf]
  %v2501 = vld [vmem:[%s9 + $0x200] sm:$0xf]
  %v2502 = vld [vmem:[%s9 + $0x204] sm:$0xf]
  %v2503 = vld [vmem:[%s9 + $0x208] sm:$0xf]
  %v2504 = vld [vmem:[%s9 + $0x20c] sm:$0xf]
  %v2505 = vld [vmem:[%s9 + $0x210] sm:$0xf]
  %v2506 = vld [vmem:[%s9 + $0x214] sm:$0xf]
  %v2507 = vld [vmem:[%s9 + $0x218] sm:$0xf]
  %v2508 = vld [vmem:[%s9 + $0x21c] sm:$0xf]
  %v2509 = vld [vmem:[%s9 + $0x220] sm:$0xf]
  %v2510 = vld [vmem:[%s9 + $0x224] sm:$0xf]
  %v2511 = vld [vmem:[%s9 + $0x228] sm:$0xf]
  %v2512 = vld [vmem:[%s9 + $0x22c] sm:$0xf]
  %v2513 = vld [vmem:[%s9 + $0x230] sm:$0xf]
  %v2514 = vld [vmem:[%s9 + $0x234] sm:$0xf]
  %v2515 = vld [vmem:[%s9 + $0x238] sm:$0xf]
  %v2516 = vld [vmem:[%s9 + $0x23c] sm:$0xf]
  %v2517 = vld [vmem:[%s9 + $0x240] sm:$0xf]
  %v2518 = vld [vmem:[%s9 + $0x244] sm:$0xf]
  %v2519 = vld [vmem:[%s9 + $0x248] sm:$0xf]
  %v2520 = vld [vmem:[%s9 + $0x24c] sm:$0xf]
  %v2521 = vld [vmem:[%s9 + $0x250] sm:$0xf]
  %v2522 = vld [vmem:[%s9 + $0x254] sm:$0xf]
  %v2523 = vld [vmem:[%s9 + $0x258] sm:$0xf]
  %v2524 = vld [vmem:[%s9 + $0x25c] sm:$0xf]
  %v2525 = vld [vmem:[%s9 + $0x260] sm:$0xf]
  %v2526 = vld [vmem:[%s9 + $0x264] sm:$0xf]
  %v2527 = vld [vmem:[%s9 + $0x268] sm:$0xf]
  %v2528 = vld [vmem:[%s9 + $0x26c] sm:$0xf]
  %v2529 = vld [vmem:[%s9 + $0x270] sm:$0xf]
  %v2530 = vld [vmem:[%s9 + $0x274] sm:$0xf]
  %v2531 = vld [vmem:[%s9 + $0x278] sm:$0xf]
  %v2532 = vld [vmem:[%s9 + $0x27c] sm:$0xf]
  %v2533 = vld [vmem:[%s9 + $0x280] sm:$0xf]
  %v2534 = vld [vmem:[%s9 + $0x284] sm:$0xf]
  %v2535 = vld [vmem:[%s9 + $0x288] sm:$0xf]
  %v2536 = vld [vmem:[%s9 + $0x28c] sm:$0xf]
  %v2537 = vld [vmem:[%s9 + $0x290] sm:$0xf]
  %v2538 = vld [vmem:[%s9 + $0x294] sm:$0xf]
  %v2539 = vld [vmem:[%s9 + $0x298] sm:$0xf]
  %v2540 = vld [vmem:[%s9 + $0x29c] sm:$0xf]
  %v2541 = vld [vmem:[%s9 + $0x2a0] sm:$0xf]
  %v2542 = vld [vmem:[%s9 + $0x2a4] sm:$0xf]
  %v2543 = vld [vmem:[%s9 + $0x2a8] sm:$0xf]
  %v2544 = vld [vmem:[%s9 + $0x2ac] sm:$0xf]
  %v2545 = vld [vmem:[%s9 + $0x2b0] sm:$0xf]
  %v2546 = vld [vmem:[%s9 + $0x2b4] sm:$0xf]
  %v2547 = vld [vmem:[%s9 + $0x2b8] sm:$0xf]
  %v2548 = vld [vmem:[%s9 + $0x2bc] sm:$0xf]
  %v2549 = vld [vmem:[%s9 + $0x2c0] sm:$0xf]
  %v2550 = vld [vmem:[%s9 + $0x2c4] sm:$0xf]
  %v2551 = vld [vmem:[%s9 + $0x2c8] sm:$0xf]
  %v2552 = vld [vmem:[%s9 + $0x2cc] sm:$0xf]
  %v2553 = vld [vmem:[%s9 + $0x2d0] sm:$0xf]
  %v2554 = vld [vmem:[%s9 + $0x2d4] sm:$0xf]
  %v2555 = vld [vmem:[%s9 + $0x2d8] sm:$0xf]
  %v2556 = vld [vmem:[%s9 + $0x2dc] sm:$0xf]
  %v2557 = vld [vmem:[%s9 + $0x2e0] sm:$0xf]
  %v2558 = vld [vmem:[%s9 + $0x2e4] sm:$0xf]
  %v2559 = vld [vmem:[%s9 + $0x2e8] sm:$0xf]
  %v2560 = vld [vmem:[%s9 + $0x2ec] sm:$0xf]
  %v2561 = vld [vmem:[%s9 + $0x2f0] sm:$0xf]
  %v2562 = vld [vmem:[%s9 + $0x2f4] sm:$0xf]
  %v2563 = vld [vmem:[%s9 + $0x2f8] sm:$0xf]
  %v2564 = vld [vmem:[%s9 + $0x2fc] sm:$0xf]
  %v2565 = vld [vmem:[%s9 + $0x300] sm:$0xf]
  %v2566 = vld [vmem:[%s9 + $0x304] sm:$0xf]
  %v2567 = vld [vmem:[%s9 + $0x308] sm:$0xf]
  %v2568 = vld [vmem:[%s9 + $0x30c] sm:$0xf]
  %v2569 = vld [vmem:[%s9 + $0x310] sm:$0xf]
  %v2570 = vld [vmem:[%s9 + $0x314] sm:$0xf]
  %v2571 = vld [vmem:[%s9 + $0x318] sm:$0xf]
  %v2572 = vld [vmem:[%s9 + $0x31c] sm:$0xf]
  %v2573 = vld [vmem:[%s9 + $0x320] sm:$0xf]
  %v2574 = vld [vmem:[%s9 + $0x324] sm:$0xf]
  %v2575 = vld [vmem:[%s9 + $0x328] sm:$0xf]
  %v2576 = vld [vmem:[%s9 + $0x32c] sm:$0xf]
  %v2577 = vld [vmem:[%s9 + $0x330] sm:$0xf]
  %v2578 = vld [vmem:[%s9 + $0x334] sm:$0xf]
  %v2579 = vld [vmem:[%s9 + $0x338] sm:$0xf]
  %v2580 = vld [vmem:[%s9 + $0x33c] sm:$0xf]
  %v2581 = vld [vmem:[%s9 + $0x340] sm:$0xf]
  %v2582 = vld [vmem:[%s9 + $0x344] sm:$0xf]
  %v2583 = vld [vmem:[%s9 + $0x348] sm:$0xf]
  %v2584 = vld [vmem:[%s9 + $0x34c] sm:$0xf]
  %v2585 = vld [vmem:[%s9 + $0x350] sm:$0xf]
  %v2586 = vld [vmem:[%s9 + $0x354] sm:$0xf]
  %v2587 = vld [vmem:[%s9 + $0x358] sm:$0xf]
  %v2588 = vld [vmem:[%s9 + $0x35c] sm:$0xf]
  %v2589 = vld [vmem:[%s9 + $0x360] sm:$0xf]
  %v2590 = vld [vmem:[%s9 + $0x364] sm:$0xf]
  %v2591 = vld [vmem:[%s9 + $0x368] sm:$0xf]
  %v2592 = vld [vmem:[%s9 + $0x36c] sm:$0xf]
  %v2593 = vld [vmem:[%s9 + $0x370] sm:$0xf]
  %v2594 = vld [vmem:[%s9 + $0x374] sm:$0xf]
  %v2595 = vld [vmem:[%s9 + $0x378] sm:$0xf]
  %v2596 = vld [vmem:[%s9 + $0x37c] sm:$0xf]
  %v2597 = vld [vmem:[%s9 + $0x380] sm:$0xf]
  %v2598 = vld [vmem:[%s9 + $0x384] sm:$0xf]
  %v2599 = vld [vmem:[%s9 + $0x388] sm:$0xf]
  %v2600 = vld [vmem:[%s9 + $0x38c] sm:$0xf]
  %v2601 = vld [vmem:[%s9 + $0x390] sm:$0xf]
  %v2602 = vld [vmem:[%s9 + $0x394] sm:$0xf]
  %v2603 = vld [vmem:[%s9 + $0x398] sm:$0xf]
  %v2604 = vld [vmem:[%s9 + $0x39c] sm:$0xf]
  %v2605 = vld [vmem:[%s9 + $0x3a0] sm:$0xf]
  %v2606 = vld [vmem:[%s9 + $0x3a4] sm:$0xf]
  %v2607 = vld [vmem:[%s9 + $0x3a8] sm:$0xf]
  %v2608 = vld [vmem:[%s9 + $0x3ac] sm:$0xf]
  %v2609 = vld [vmem:[%s9 + $0x3b0] sm:$0xf]
  %v2610 = vld [vmem:[%s9 + $0x3b4] sm:$0xf]
  %v2611 = vld [vmem:[%s9 + $0x3b8] sm:$0xf]
  %v2612 = vld [vmem:[%s9 + $0x3bc] sm:$0xf]
  %v2613 = vld [vmem:[%s9 + $0x3c0] sm:$0xf]
  %v2614 = vld [vmem:[%s9 + $0x3c4] sm:$0xf]
  %v2615 = vld [vmem:[%s9 + $0x3c8] sm:$0xf]
  %v2616 = vld [vmem:[%s9 + $0x3cc] sm:$0xf]
  %v2617 = vld [vmem:[%s9 + $0x3d0] sm:$0xf]
  %v2618 = vld [vmem:[%s9 + $0x3d4] sm:$0xf]
  %v2619 = vld [vmem:[%s9 + $0x3d8] sm:$0xf]
  %v2620 = vld [vmem:[%s9 + $0x3dc] sm:$0xf]
  %v2621 = vld [vmem:[%s9 + $0x3e0] sm:$0xf]
  %v2622 = vld [vmem:[%s9 + $0x3e4] sm:$0xf]
  %v2623 = vld [vmem:[%s9 + $0x3e8] sm:$0xf]
  %v2624 = vld [vmem:[%s9 + $0x3ec] sm:$0xf]
  %v2625 = vld [vmem:[%s9 + $0x3f0] sm:$0xf]
  %v2626 = vld [vmem:[%s9 + $0x3f4] sm:$0xf]
  %v2627 = vld [vmem:[%s9 + $0x3f8] sm:$0xf]
  %v2628 = vld [vmem:[%s9 + $0x3fc] sm:$0xf]
  %v2629 = vld [vmem:[%s10] sm:$0x1]
  %v2630 = vpack.c.bf16 %v2357, %v2341
  %v2631 = vpack.c.bf16 %v2358, %v2342
  %v2632 = vpack.c.bf16 %v2359, %v2343
  %v2633 = vpack.c.bf16 %v2360, %v2344
  %v2634 = vpack.c.bf16 %v2361, %v2345
  %v2635 = vpack.c.bf16 %v2362, %v2346
  %v2636 = vpack.c.bf16 %v2363, %v2347
  %v2637 = vpack.c.bf16 %v2364, %v2348
  %v2638 = vpack.c.bf16 %v2365, %v2349
  %v2639 = vpack.c.bf16 %v2366, %v2350
  %v2640 = vpack.c.bf16 %v2367, %v2351
  %v2641 = vpack.c.bf16 %v2368, %v2352
  %v2642 = vpack.c.bf16 %v2369, %v2353
  %v2643 = vpack.c.bf16 %v2370, %v2354
  %v2644 = vpack.c.bf16 %v2371, %v2355
  %v2645 = vpack.c.bf16 %v2372, %v2356
  %v2647 = vlaneseq
  %v2648 = vshrl.u32 %v2647, 7
  %v2649 = vsub.s32 0, %v2648
  %v2650 = vrot.slane %v2629, %v2649
  %v2908 = vunpack.c.l.b16 %v2373
  %v2909 = vunpack.c.l.b16 %v2374
  %v2910 = vunpack.c.l.b16 %v2375
  %v2911 = vunpack.c.l.b16 %v2376
  %v2912 = vunpack.c.l.b16 %v2377
  %v2913 = vunpack.c.l.b16 %v2378
  %v2914 = vunpack.c.l.b16 %v2379
  %v2915 = vunpack.c.l.b16 %v2380
  %v2916 = vunpack.c.l.b16 %v2381
  %v2917 = vunpack.c.l.b16 %v2382
  %v2918 = vunpack.c.l.b16 %v2383
  %v2919 = vunpack.c.l.b16 %v2384
  %v2920 = vunpack.c.l.b16 %v2385
  %v2921 = vunpack.c.l.b16 %v2386
  %v2922 = vunpack.c.l.b16 %v2387
  %v2923 = vunpack.c.l.b16 %v2388
  %v2924 = vunpack.c.l.b16 %v2389
  %v2925 = vunpack.c.l.b16 %v2390
  %v2926 = vunpack.c.l.b16 %v2391
  %v2927 = vunpack.c.l.b16 %v2392
  %v2928 = vunpack.c.l.b16 %v2393
  %v2929 = vunpack.c.l.b16 %v2394
  %v2930 = vunpack.c.l.b16 %v2395
  %v2931 = vunpack.c.l.b16 %v2396
  %v2932 = vunpack.c.l.b16 %v2397
  %v2933 = vunpack.c.l.b16 %v2398
  %v2934 = vunpack.c.l.b16 %v2399
  %v2935 = vunpack.c.l.b16 %v2400
  %v2936 = vunpack.c.l.b16 %v2401
  %v2937 = vunpack.c.l.b16 %v2402
  %v2938 = vunpack.c.l.b16 %v2403
  %v2939 = vunpack.c.l.b16 %v2404
  %v2940 = vunpack.c.l.b16 %v2405
  %v2941 = vunpack.c.l.b16 %v2406
  %v2942 = vunpack.c.l.b16 %v2407
  %v2943 = vunpack.c.l.b16 %v2408
  %v2944 = vunpack.c.l.b16 %v2409
  %v2945 = vunpack.c.l.b16 %v2410
  %v2946 = vunpack.c.l.b16 %v2411
  %v2947 = vunpack.c.l.b16 %v2412
  %v2948 = vunpack.c.l.b16 %v2413
  %v2949 = vunpack.c.l.b16 %v2414
  %v2950 = vunpack.c.l.b16 %v2415
  %v2951 = vunpack.c.l.b16 %v2416
  %v2952 = vunpack.c.l.b16 %v2417
  %v2953 = vunpack.c.l.b16 %v2418
  %v2954 = vunpack.c.l.b16 %v2419
  %v2955 = vunpack.c.l.b16 %v2420
  %v2956 = vunpack.c.l.b16 %v2421
  %v2957 = vunpack.c.l.b16 %v2422
  %v2958 = vunpack.c.l.b16 %v2423
  %v2959 = vunpack.c.l.b16 %v2424
  %v2960 = vunpack.c.l.b16 %v2425
  %v2961 = vunpack.c.l.b16 %v2426
  %v2962 = vunpack.c.l.b16 %v2427
  %v2963 = vunpack.c.l.b16 %v2428
  %v2964 = vunpack.c.l.b16 %v2429
  %v2965 = vunpack.c.l.b16 %v2430
  %v2966 = vunpack.c.l.b16 %v2431
  %v2967 = vunpack.c.l.b16 %v2432
  %v2968 = vunpack.c.l.b16 %v2433
  %v2969 = vunpack.c.l.b16 %v2434
  %v2970 = vunpack.c.l.b16 %v2435
  %v2971 = vunpack.c.l.b16 %v2436
  %v2972 = vunpack.c.l.b16 %v2437
  %v2973 = vunpack.c.l.b16 %v2438
  %v2974 = vunpack.c.l.b16 %v2439
  %v2975 = vunpack.c.l.b16 %v2440
  %v2976 = vunpack.c.l.b16 %v2441
  %v2977 = vunpack.c.l.b16 %v2442
  %v2978 = vunpack.c.l.b16 %v2443
  %v2979 = vunpack.c.l.b16 %v2444
  %v2980 = vunpack.c.l.b16 %v2445
  %v2981 = vunpack.c.l.b16 %v2446
  %v2982 = vunpack.c.l.b16 %v2447
  %v2983 = vunpack.c.l.b16 %v2448
  %v2984 = vunpack.c.l.b16 %v2449
  %v2985 = vunpack.c.l.b16 %v2450
  %v2986 = vunpack.c.l.b16 %v2451
  %v2987 = vunpack.c.l.b16 %v2452
  %v2988 = vunpack.c.l.b16 %v2453
  %v2989 = vunpack.c.l.b16 %v2454
  %v2990 = vunpack.c.l.b16 %v2455
  %v2991 = vunpack.c.l.b16 %v2456
  %v2992 = vunpack.c.l.b16 %v2457
  %v2993 = vunpack.c.l.b16 %v2458
  %v2994 = vunpack.c.l.b16 %v2459
  %v2995 = vunpack.c.l.b16 %v2460
  %v2996 = vunpack.c.l.b16 %v2461
  %v2997 = vunpack.c.l.b16 %v2462
  %v2998 = vunpack.c.l.b16 %v2463
  %v2999 = vunpack.c.l.b16 %v2464
  %v3000 = vunpack.c.l.b16 %v2465
  %v3001 = vunpack.c.l.b16 %v2466
  %v3002 = vunpack.c.l.b16 %v2467
  %v3003 = vunpack.c.l.b16 %v2468
  %v3004 = vunpack.c.l.b16 %v2469
  %v3005 = vunpack.c.l.b16 %v2470
  %v3006 = vunpack.c.l.b16 %v2471
  %v3007 = vunpack.c.l.b16 %v2472
  %v3008 = vunpack.c.l.b16 %v2473
  %v3009 = vunpack.c.l.b16 %v2474
  %v3010 = vunpack.c.l.b16 %v2475
  %v3011 = vunpack.c.l.b16 %v2476
  %v3012 = vunpack.c.l.b16 %v2477
  %v3013 = vunpack.c.l.b16 %v2478
  %v3014 = vunpack.c.l.b16 %v2479
  %v3015 = vunpack.c.l.b16 %v2480
  %v3016 = vunpack.c.l.b16 %v2481
  %v3017 = vunpack.c.l.b16 %v2482
  %v3018 = vunpack.c.l.b16 %v2483
  %v3019 = vunpack.c.l.b16 %v2484
  %v3020 = vunpack.c.l.b16 %v2485
  %v3021 = vunpack.c.l.b16 %v2486
  %v3022 = vunpack.c.l.b16 %v2487
  %v3023 = vunpack.c.l.b16 %v2488
  %v3024 = vunpack.c.l.b16 %v2489
  %v3025 = vunpack.c.l.b16 %v2490
  %v3026 = vunpack.c.l.b16 %v2491
  %v3027 = vunpack.c.l.b16 %v2492
  %v3028 = vunpack.c.l.b16 %v2493
  %v3029 = vunpack.c.l.b16 %v2494
  %v3030 = vunpack.c.l.b16 %v2495
  %v3031 = vunpack.c.l.b16 %v2496
  %v3032 = vunpack.c.l.b16 %v2497
  %v3033 = vunpack.c.l.b16 %v2498
  %v3034 = vunpack.c.l.b16 %v2499
  %v3035 = vunpack.c.l.b16 %v2500
  %v3036 = vunpack.c.l.b16 %v2501
  %v3037 = vunpack.c.l.b16 %v2502
  %v3038 = vunpack.c.l.b16 %v2503
  %v3039 = vunpack.c.l.b16 %v2504
  %v3040 = vunpack.c.l.b16 %v2505
  %v3041 = vunpack.c.l.b16 %v2506
  %v3042 = vunpack.c.l.b16 %v2507
  %v3043 = vunpack.c.l.b16 %v2508
  %v3044 = vunpack.c.l.b16 %v2509
  %v3045 = vunpack.c.l.b16 %v2510
  %v3046 = vunpack.c.l.b16 %v2511
  %v3047 = vunpack.c.l.b16 %v2512
  %v3048 = vunpack.c.l.b16 %v2513
  %v3049 = vunpack.c.l.b16 %v2514
  %v3050 = vunpack.c.l.b16 %v2515
  %v3051 = vunpack.c.l.b16 %v2516
  %v3052 = vunpack.c.l.b16 %v2517
  %v3053 = vunpack.c.l.b16 %v2518
  %v3054 = vunpack.c.l.b16 %v2519
  %v3055 = vunpack.c.l.b16 %v2520
  %v3056 = vunpack.c.l.b16 %v2521
  %v3057 = vunpack.c.l.b16 %v2522
  %v3058 = vunpack.c.l.b16 %v2523
  %v3059 = vunpack.c.l.b16 %v2524
  %v3060 = vunpack.c.l.b16 %v2525
  %v3061 = vunpack.c.l.b16 %v2526
  %v3062 = vunpack.c.l.b16 %v2527
  %v3063 = vunpack.c.l.b16 %v2528
  %v3064 = vunpack.c.l.b16 %v2529
  %v3065 = vunpack.c.l.b16 %v2530
  %v3066 = vunpack.c.l.b16 %v2531
  %v3067 = vunpack.c.l.b16 %v2532
  %v3068 = vunpack.c.l.b16 %v2533
  %v3069 = vunpack.c.l.b16 %v2534
  %v3070 = vunpack.c.l.b16 %v2535
  %v3071 = vunpack.c.l.b16 %v2536
  %v3072 = vunpack.c.l.b16 %v2537
  %v3073 = vunpack.c.l.b16 %v2538
  %v3074 = vunpack.c.l.b16 %v2539
  %v3075 = vunpack.c.l.b16 %v2540
  %v3076 = vunpack.c.l.b16 %v2541
  %v3077 = vunpack.c.l.b16 %v2542
  %v3078 = vunpack.c.l.b16 %v2543
  %v3079 = vunpack.c.l.b16 %v2544
  %v3080 = vunpack.c.l.b16 %v2545
  %v3081 = vunpack.c.l.b16 %v2546
  %v3082 = vunpack.c.l.b16 %v2547
  %v3083 = vunpack.c.l.b16 %v2548
  %v3084 = vunpack.c.l.b16 %v2549
  %v3085 = vunpack.c.l.b16 %v2550
  %v3086 = vunpack.c.l.b16 %v2551
  %v3087 = vunpack.c.l.b16 %v2552
  %v3088 = vunpack.c.l.b16 %v2553
  %v3089 = vunpack.c.l.b16 %v2554
  %v3090 = vunpack.c.l.b16 %v2555
  %v3091 = vunpack.c.l.b16 %v2556
  %v3092 = vunpack.c.l.b16 %v2557
  %v3093 = vunpack.c.l.b16 %v2558
  %v3094 = vunpack.c.l.b16 %v2559
  %v3095 = vunpack.c.l.b16 %v2560
  %v3096 = vunpack.c.l.b16 %v2561
  %v3097 = vunpack.c.l.b16 %v2562
  %v3098 = vunpack.c.l.b16 %v2563
  %v3099 = vunpack.c.l.b16 %v2564
  %v3100 = vunpack.c.l.b16 %v2565
  %v3101 = vunpack.c.l.b16 %v2566
  %v3102 = vunpack.c.l.b16 %v2567
  %v3103 = vunpack.c.l.b16 %v2568
  %v3104 = vunpack.c.l.b16 %v2569
  %v3105 = vunpack.c.l.b16 %v2570
  %v3106 = vunpack.c.l.b16 %v2571
  %v3107 = vunpack.c.l.b16 %v2572
  %v3108 = vunpack.c.l.b16 %v2573
  %v3109 = vunpack.c.l.b16 %v2574
  %v3110 = vunpack.c.l.b16 %v2575
  %v3111 = vunpack.c.l.b16 %v2576
  %v3112 = vunpack.c.l.b16 %v2577
  %v3113 = vunpack.c.l.b16 %v2578
  %v3114 = vunpack.c.l.b16 %v2579
  %v3115 = vunpack.c.l.b16 %v2580
  %v3116 = vunpack.c.l.b16 %v2581
  %v3117 = vunpack.c.l.b16 %v2582
  %v3118 = vunpack.c.l.b16 %v2583
  %v3119 = vunpack.c.l.b16 %v2584
  %v3120 = vunpack.c.l.b16 %v2585
  %v3121 = vunpack.c.l.b16 %v2586
  %v3122 = vunpack.c.l.b16 %v2587
  %v3123 = vunpack.c.l.b16 %v2588
  %v3124 = vunpack.c.l.b16 %v2589
  %v3125 = vunpack.c.l.b16 %v2590
  %v3126 = vunpack.c.l.b16 %v2591
  %v3127 = vunpack.c.l.b16 %v2592
  %v3128 = vunpack.c.l.b16 %v2593
  %v3129 = vunpack.c.l.b16 %v2594
  %v3130 = vunpack.c.l.b16 %v2595
  %v3131 = vunpack.c.l.b16 %v2596
  %v3132 = vunpack.c.l.b16 %v2597
  %v3133 = vunpack.c.l.b16 %v2598
  %v3134 = vunpack.c.l.b16 %v2599
  %v3135 = vunpack.c.l.b16 %v2600
  %v3136 = vunpack.c.l.b16 %v2601
  %v3137 = vunpack.c.l.b16 %v2602
  %v3138 = vunpack.c.l.b16 %v2603
  %v3139 = vunpack.c.l.b16 %v2604
  %v3140 = vunpack.c.l.b16 %v2605
  %v3141 = vunpack.c.l.b16 %v2606
  %v3142 = vunpack.c.l.b16 %v2607
  %v3143 = vunpack.c.l.b16 %v2608
  %v3144 = vunpack.c.l.b16 %v2609
  %v3145 = vunpack.c.l.b16 %v2610
  %v3146 = vunpack.c.l.b16 %v2611
  %v3147 = vunpack.c.l.b16 %v2612
  %v3148 = vunpack.c.l.b16 %v2613
  %v3149 = vunpack.c.l.b16 %v2614
  %v3150 = vunpack.c.l.b16 %v2615
  %v3151 = vunpack.c.l.b16 %v2616
  %v3152 = vunpack.c.l.b16 %v2617
  %v3153 = vunpack.c.l.b16 %v2618
  %v3154 = vunpack.c.l.b16 %v2619
  %v3155 = vunpack.c.l.b16 %v2620
  %v3156 = vunpack.c.l.b16 %v2621
  %v3157 = vunpack.c.l.b16 %v2622
  %v3158 = vunpack.c.l.b16 %v2623
  %v3159 = vunpack.c.l.b16 %v2624
  %v3160 = vunpack.c.l.b16 %v2625
  %v3161 = vunpack.c.l.b16 %v2626
  %v3162 = vunpack.c.l.b16 %v2627
  %v3163 = vunpack.c.l.b16 %v2628
  %v3164 = vpack.c.b16 %v2909, %v2908
  %v3165 = vpack.c.b16 %v2911, %v2910
  %v3166 = vpack.c.b16 %v2913, %v2912
  %v3167 = vpack.c.b16 %v2915, %v2914
  %v3168 = vpack.c.b16 %v2917, %v2916
  %v3169 = vpack.c.b16 %v2919, %v2918
  %v3170 = vpack.c.b16 %v2921, %v2920
  %v3171 = vpack.c.b16 %v2923, %v2922
  %v3172 = vpack.c.b16 %v2925, %v2924
  %v3173 = vpack.c.b16 %v2927, %v2926
  %v3174 = vpack.c.b16 %v2929, %v2928
  %v3175 = vpack.c.b16 %v2931, %v2930
  %v3176 = vpack.c.b16 %v2933, %v2932
  %v3177 = vpack.c.b16 %v2935, %v2934
  %v3178 = vpack.c.b16 %v2937, %v2936
  %v3179 = vpack.c.b16 %v2939, %v2938
  %v3180 = vpack.c.b16 %v2941, %v2940
  %v3181 = vpack.c.b16 %v2943, %v2942
  %v3182 = vpack.c.b16 %v2945, %v2944
  %v3183 = vpack.c.b16 %v2947, %v2946
  %v3184 = vpack.c.b16 %v2949, %v2948
  %v3185 = vpack.c.b16 %v2951, %v2950
  %v3186 = vpack.c.b16 %v2953, %v2952
  %v3187 = vpack.c.b16 %v2955, %v2954
  %v3188 = vpack.c.b16 %v2957, %v2956
  %v3189 = vpack.c.b16 %v2959, %v2958
  %v3190 = vpack.c.b16 %v2961, %v2960
  %v3191 = vpack.c.b16 %v2963, %v2962
  %v3192 = vpack.c.b16 %v2965, %v2964
  %v3193 = vpack.c.b16 %v2967, %v2966
  %v3194 = vpack.c.b16 %v2969, %v2968
  %v3195 = vpack.c.b16 %v2971, %v2970
  %v3196 = vpack.c.b16 %v2973, %v2972
  %v3197 = vpack.c.b16 %v2975, %v2974
  %v3198 = vpack.c.b16 %v2977, %v2976
  %v3199 = vpack.c.b16 %v2979, %v2978
  %v3200 = vpack.c.b16 %v2981, %v2980
  %v3201 = vpack.c.b16 %v2983, %v2982
  %v3202 = vpack.c.b16 %v2985, %v2984
  %v3203 = vpack.c.b16 %v2987, %v2986
  %v3204 = vpack.c.b16 %v2989, %v2988
  %v3205 = vpack.c.b16 %v2991, %v2990
  %v3206 = vpack.c.b16 %v2993, %v2992
  %v3207 = vpack.c.b16 %v2995, %v2994
  %v3208 = vpack.c.b16 %v2997, %v2996
  %v3209 = vpack.c.b16 %v2999, %v2998
  %v3210 = vpack.c.b16 %v3001, %v3000
  %v3211 = vpack.c.b16 %v3003, %v3002
  %v3212 = vpack.c.b16 %v3005, %v3004
  %v3213 = vpack.c.b16 %v3007, %v3006
  %v3214 = vpack.c.b16 %v3009, %v3008
  %v3215 = vpack.c.b16 %v3011, %v3010
  %v3216 = vpack.c.b16 %v3013, %v3012
  %v3217 = vpack.c.b16 %v3015, %v3014
  %v3218 = vpack.c.b16 %v3017, %v3016
  %v3219 = vpack.c.b16 %v3019, %v3018
  %v3220 = vpack.c.b16 %v3021, %v3020
  %v3221 = vpack.c.b16 %v3023, %v3022
  %v3222 = vpack.c.b16 %v3025, %v3024
  %v3223 = vpack.c.b16 %v3027, %v3026
  %v3224 = vpack.c.b16 %v3029, %v3028
  %v3225 = vpack.c.b16 %v3031, %v3030
  %v3226 = vpack.c.b16 %v3033, %v3032
  %v3227 = vpack.c.b16 %v3035, %v3034
  %v3228 = vpack.c.b16 %v3037, %v3036
  %v3229 = vpack.c.b16 %v3039, %v3038
  %v3230 = vpack.c.b16 %v3041, %v3040
  %v3231 = vpack.c.b16 %v3043, %v3042
  %v3232 = vpack.c.b16 %v3045, %v3044
  %v3233 = vpack.c.b16 %v3047, %v3046
  %v3234 = vpack.c.b16 %v3049, %v3048
  %v3235 = vpack.c.b16 %v3051, %v3050
  %v3236 = vpack.c.b16 %v3053, %v3052
  %v3237 = vpack.c.b16 %v3055, %v3054
  %v3238 = vpack.c.b16 %v3057, %v3056
  %v3239 = vpack.c.b16 %v3059, %v3058
  %v3240 = vpack.c.b16 %v3061, %v3060
  %v3241 = vpack.c.b16 %v3063, %v3062
  %v3242 = vpack.c.b16 %v3065, %v3064
  %v3243 = vpack.c.b16 %v3067, %v3066
  %v3244 = vpack.c.b16 %v3069, %v3068
  %v3245 = vpack.c.b16 %v3071, %v3070
  %v3246 = vpack.c.b16 %v3073, %v3072
  %v3247 = vpack.c.b16 %v3075, %v3074
  %v3248 = vpack.c.b16 %v3077, %v3076
  %v3249 = vpack.c.b16 %v3079, %v3078
  %v3250 = vpack.c.b16 %v3081, %v3080
  %v3251 = vpack.c.b16 %v3083, %v3082
  %v3252 = vpack.c.b16 %v3085, %v3084
  %v3253 = vpack.c.b16 %v3087, %v3086
  %v3254 = vpack.c.b16 %v3089, %v3088
  %v3255 = vpack.c.b16 %v3091, %v3090
  %v3256 = vpack.c.b16 %v3093, %v3092
  %v3257 = vpack.c.b16 %v3095, %v3094
  %v3258 = vpack.c.b16 %v3097, %v3096
  %v3259 = vpack.c.b16 %v3099, %v3098
  %v3260 = vpack.c.b16 %v3101, %v3100
  %v3261 = vpack.c.b16 %v3103, %v3102
  %v3262 = vpack.c.b16 %v3105, %v3104
  %v3263 = vpack.c.b16 %v3107, %v3106
  %v3264 = vpack.c.b16 %v3109, %v3108
  %v3265 = vpack.c.b16 %v3111, %v3110
  %v3266 = vpack.c.b16 %v3113, %v3112
  %v3267 = vpack.c.b16 %v3115, %v3114
  %v3268 = vpack.c.b16 %v3117, %v3116
  %v3269 = vpack.c.b16 %v3119, %v3118
  %v3270 = vpack.c.b16 %v3121, %v3120
  %v3271 = vpack.c.b16 %v3123, %v3122
  %v3272 = vpack.c.b16 %v3125, %v3124
  %v3273 = vpack.c.b16 %v3127, %v3126
  %v3274 = vpack.c.b16 %v3129, %v3128
  %v3275 = vpack.c.b16 %v3131, %v3130
  %v3276 = vpack.c.b16 %v3133, %v3132
  %v3277 = vpack.c.b16 %v3135, %v3134
  %v3278 = vpack.c.b16 %v3137, %v3136
  %v3279 = vpack.c.b16 %v3139, %v3138
  %v3280 = vpack.c.b16 %v3141, %v3140
  %v3281 = vpack.c.b16 %v3143, %v3142
  %v3282 = vpack.c.b16 %v3145, %v3144
  %v3283 = vpack.c.b16 %v3147, %v3146
  %v3284 = vpack.c.b16 %v3149, %v3148
  %v3285 = vpack.c.b16 %v3151, %v3150
  %v3286 = vpack.c.b16 %v3153, %v3152
  %v3287 = vpack.c.b16 %v3155, %v3154
  %v3288 = vpack.c.b16 %v3157, %v3156
  %v3289 = vpack.c.b16 %v3159, %v3158
  %v3290 = vpack.c.b16 %v3161, %v3160
  %v3291 = vpack.c.b16 %v3163, %v3162
  %3420 = vmatprep.subr.bf16.mxu0 0
  %3421 = vmatpush1.bf16.msra.mxu0 %v3171
  %3422 = vmatprep.subr.bf16.mxu0 0
  %3423 = vmatpush1.bf16.msra.mxu0 %v3170
  %3424 = vmatprep.subr.bf16.mxu0 0
  %3425 = vmatpush1.bf16.msra.mxu0 %v3169
  %3426 = vmatprep.subr.bf16.mxu0 0
  %3427 = vmatpush1.bf16.msra.mxu0 %v3168
  %3428 = vmatprep.subr.bf16.mxu0 0
  %3429 = vmatpush1.bf16.msra.mxu0 %v3167
  %3430 = vmatprep.subr.bf16.mxu0 0
  %3431 = vmatpush1.bf16.msra.mxu0 %v3166
  %3432 = vmatprep.subr.bf16.mxu0 0
  %3433 = vmatpush1.bf16.msra.mxu0 %v3165
  %3434 = vmatprep.subr.bf16.mxu0 0
  %3435 = vmatpush1.bf16.msra.mxu0 %v3164
  %3436 = vmatprep.subr.bf16.mxu0 0
  %3437 = vmatpush2.bf16.msra.mxu0 %v3179
  %3438 = vmatprep.subr.bf16.mxu0 0
  %3439 = vmatpush2.bf16.msra.mxu0 %v3178
  %3440 = vmatprep.subr.bf16.mxu0 0
  %3441 = vmatpush2.bf16.msra.mxu0 %v3177
  %3442 = vmatprep.subr.bf16.mxu0 0
  %3443 = vmatpush2.bf16.msra.mxu0 %v3176
  %3444 = vmatprep.subr.bf16.mxu0 0
  %3445 = vmatpush2.bf16.msra.mxu0 %v3175
  %3446 = vmatprep.subr.bf16.mxu0 0
  %3447 = vmatpush2.bf16.msra.mxu0 %v3174
  %3448 = vmatprep.subr.bf16.mxu0 0
  %3449 = vmatpush2.bf16.msra.mxu0 %v3173
  %3450 = vmatprep.subr.bf16.mxu0 0
  %3451 = vmatpush2.bf16.msra.mxu0 %v3172
  %3452 = vmatprep.mubr.bf16.mxu0 %v2631
  %3453 = vmatmul.mubr.bf16.gmra.mxu0 %v2630
  %v3454 = vpop.f32.mrf.mxu0
  %v3455 = vadd.f32 %v2650, %v3454
  %v3456 = vpop.f32.mrf.mxu0
  %v3457 = vpop.f32.mrf.mxu0
  %v3458 = vadd.f32 %v2650, %v3457
  %v3459 = vpop.f32.mrf.mxu0
  %3460 = vdwg.mxu0
  %3461 = vmatprep.subr.bf16.mxu0 0
  %3462 = vmatpush1.bf16.msra.mxu0 %v3187
  %3463 = vmatprep.subr.bf16.mxu0 0
  %3464 = vmatpush1.bf16.msra.mxu0 %v3186
  %3465 = vmatprep.subr.bf16.mxu0 0
  %3466 = vmatpush1.bf16.msra.mxu0 %v3185
  %3467 = vmatprep.subr.bf16.mxu0 0
  %3468 = vmatpush1.bf16.msra.mxu0 %v3184
  %3469 = vmatprep.subr.bf16.mxu0 0
  %3470 = vmatpush1.bf16.msra.mxu0 %v3183
  %3471 = vmatprep.subr.bf16.mxu0 0
  %3472 = vmatpush1.bf16.msra.mxu0 %v3182
  %3473 = vmatprep.subr.bf16.mxu0 0
  %3474 = vmatpush1.bf16.msra.mxu0 %v3181
  %3475 = vmatprep.subr.bf16.mxu0 0
  %3476 = vmatpush1.bf16.msra.mxu0 %v3180
  %3477 = vmatprep.subr.bf16.mxu0 0
  %3478 = vmatpush2.bf16.msra.mxu0 %v3195
  %3479 = vmatprep.subr.bf16.mxu0 0
  %3480 = vmatpush2.bf16.msra.mxu0 %v3194
  %3481 = vmatprep.subr.bf16.mxu0 0
  %3482 = vmatpush2.bf16.msra.mxu0 %v3193
  %3483 = vmatprep.subr.bf16.mxu0 0
  %3484 = vmatpush2.bf16.msra.mxu0 %v3192
  %3485 = vmatprep.subr.bf16.mxu0 0
  %3486 = vmatpush2.bf16.msra.mxu0 %v3191
  %3487 = vmatprep.subr.bf16.mxu0 0
  %3488 = vmatpush2.bf16.msra.mxu0 %v3190
  %3489 = vmatprep.subr.bf16.mxu0 0
  %3490 = vmatpush2.bf16.msra.mxu0 %v3189
  %3491 = vmatprep.subr.bf16.mxu0 0
  %3492 = vmatpush2.bf16.msra.mxu0 %v3188
  %3493 = vmatprep.mubr.bf16.mxu0 %v2633
  %3494 = vmatmul.mubr.bf16.gmra.mxu0 %v2632
  %v3495 = vpop.f32.mrf.mxu0
  %v3496 = vadd.f32 %v3455, %v3495
  %v3497 = vpop.f32.mrf.mxu0
  %v3498 = vpop.f32.mrf.mxu0
  %v3499 = vadd.f32 %v3458, %v3498
  %v3500 = vpop.f32.mrf.mxu0
  %3501 = vdwg.mxu0
  %3502 = vmatprep.subr.bf16.mxu0 0
  %3503 = vmatpush1.bf16.msra.mxu0 %v3203
  %3504 = vmatprep.subr.bf16.mxu0 0
  %3505 = vmatpush1.bf16.msra.mxu0 %v3202
  %3506 = vmatprep.subr.bf16.mxu0 0
  %3507 = vmatpush1.bf16.msra.mxu0 %v3201
  %3508 = vmatprep.subr.bf16.mxu0 0
  %3509 = vmatpush1.bf16.msra.mxu0 %v3200
  %3510 = vmatprep.subr.bf16.mxu0 0
  %3511 = vmatpush1.bf16.msra.mxu0 %v3199
  %3512 = vmatprep.subr.bf16.mxu0 0
  %3513 = vmatpush1.bf16.msra.mxu0 %v3198
  %3514 = vmatprep.subr.bf16.mxu0 0
  %3515 = vmatpush1.bf16.msra.mxu0 %v3197
  %3516 = vmatprep.subr.bf16.mxu0 0
  %3517 = vmatpush1.bf16.msra.mxu0 %v3196
  %3518 = vmatprep.subr.bf16.mxu0 0
  %3519 = vmatpush2.bf16.msra.mxu0 %v3211
  %3520 = vmatprep.subr.bf16.mxu0 0
  %3521 = vmatpush2.bf16.msra.mxu0 %v3210
  %3522 = vmatprep.subr.bf16.mxu0 0
  %3523 = vmatpush2.bf16.msra.mxu0 %v3209
  %3524 = vmatprep.subr.bf16.mxu0 0
  %3525 = vmatpush2.bf16.msra.mxu0 %v3208
  %3526 = vmatprep.subr.bf16.mxu0 0
  %3527 = vmatpush2.bf16.msra.mxu0 %v3207
  %3528 = vmatprep.subr.bf16.mxu0 0
  %3529 = vmatpush2.bf16.msra.mxu0 %v3206
  %3530 = vmatprep.subr.bf16.mxu0 0
  %3531 = vmatpush2.bf16.msra.mxu0 %v3205
  %3532 = vmatprep.subr.bf16.mxu0 0
  %3533 = vmatpush2.bf16.msra.mxu0 %v3204
  %3534 = vmatprep.mubr.bf16.mxu0 %v2635
  %3535 = vmatmul.mubr.bf16.gmra.mxu0 %v2634
  %v3536 = vpop.f32.mrf.mxu0
  %v3537 = vadd.f32 %v3496, %v3536
  %v3538 = vpop.f32.mrf.mxu0
  %v3539 = vpop.f32.mrf.mxu0
  %v3540 = vadd.f32 %v3499, %v3539
  %v3541 = vpop.f32.mrf.mxu0
  %3542 = vdwg.mxu0
  %3543 = vmatprep.subr.bf16.mxu0 0
  %3544 = vmatpush1.bf16.msra.mxu0 %v3219
  %3545 = vmatprep.subr.bf16.mxu0 0
  %3546 = vmatpush1.bf16.msra.mxu0 %v3218
  %3547 = vmatprep.subr.bf16.mxu0 0
  %3548 = vmatpush1.bf16.msra.mxu0 %v3217
  %3549 = vmatprep.subr.bf16.mxu0 0
  %3550 = vmatpush1.bf16.msra.mxu0 %v3216
  %3551 = vmatprep.subr.bf16.mxu0 0
  %3552 = vmatpush1.bf16.msra.mxu0 %v3215
  %3553 = vmatprep.subr.bf16.mxu0 0
  %3554 = vmatpush1.bf16.msra.mxu0 %v3214
  %3555 = vmatprep.subr.bf16.mxu0 0
  %3556 = vmatpush1.bf16.msra.mxu0 %v3213
  %3557 = vmatprep.subr.bf16.mxu0 0
  %3558 = vmatpush1.bf16.msra.mxu0 %v3212
  %3559 = vmatprep.subr.bf16.mxu0 0
  %3560 = vmatpush2.bf16.msra.mxu0 %v3227
  %3561 = vmatprep.subr.bf16.mxu0 0
  %3562 = vmatpush2.bf16.msra.mxu0 %v3226
  %3563 = vmatprep.subr.bf16.mxu0 0
  %3564 = vmatpush2.bf16.msra.mxu0 %v3225
  %3565 = vmatprep.subr.bf16.mxu0 0
  %3566 = vmatpush2.bf16.msra.mxu0 %v3224
  %3567 = vmatprep.subr.bf16.mxu0 0
  %3568 = vmatpush2.bf16.msra.mxu0 %v3223
  %3569 = vmatprep.subr.bf16.mxu0 0
  %3570 = vmatpush2.bf16.msra.mxu0 %v3222
  %3571 = vmatprep.subr.bf16.mxu0 0
  %3572 = vmatpush2.bf16.msra.mxu0 %v3221
  %3573 = vmatprep.subr.bf16.mxu0 0
  %3574 = vmatpush2.bf16.msra.mxu0 %v3220
  %3575 = vmatprep.mubr.bf16.mxu0 %v2637
  %3576 = vmatmul.mubr.bf16.gmra.mxu0 %v2636
  %v3577 = vpop.f32.mrf.mxu0
  %v3578 = vadd.f32 %v3537, %v3577
  %v3579 = vpop.f32.mrf.mxu0
  %v3580 = vpop.f32.mrf.mxu0
  %v3581 = vadd.f32 %v3540, %v3580
  %v3582 = vpop.f32.mrf.mxu0
  %3583 = vdwg.mxu0
  %3584 = vmatprep.subr.bf16.mxu0 0
  %3585 = vmatpush1.bf16.msra.mxu0 %v3235
  %3586 = vmatprep.subr.bf16.mxu0 0
  %3587 = vmatpush1.bf16.msra.mxu0 %v3234
  %3588 = vmatprep.subr.bf16.mxu0 0
  %3589 = vmatpush1.bf16.msra.mxu0 %v3233
  %3590 = vmatprep.subr.bf16.mxu0 0
  %3591 = vmatpush1.bf16.msra.mxu0 %v3232
  %3592 = vmatprep.subr.bf16.mxu0 0
  %3593 = vmatpush1.bf16.msra.mxu0 %v3231
  %3594 = vmatprep.subr.bf16.mxu0 0
  %3595 = vmatpush1.bf16.msra.mxu0 %v3230
  %3596 = vmatprep.subr.bf16.mxu0 0
  %3597 = vmatpush1.bf16.msra.mxu0 %v3229
  %3598 = vmatprep.subr.bf16.mxu0 0
  %3599 = vmatpush1.bf16.msra.mxu0 %v3228
  %3600 = vmatprep.subr.bf16.mxu0 0
  %3601 = vmatpush2.bf16.msra.mxu0 %v3243
  %3602 = vmatprep.subr.bf16.mxu0 0
  %3603 = vmatpush2.bf16.msra.mxu0 %v3242
  %3604 = vmatprep.subr.bf16.mxu0 0
  %3605 = vmatpush2.bf16.msra.mxu0 %v3241
  %3606 = vmatprep.subr.bf16.mxu0 0
  %3607 = vmatpush2.bf16.msra.mxu0 %v3240
  %3608 = vmatprep.subr.bf16.mxu0 0
  %3609 = vmatpush2.bf16.msra.mxu0 %v3239
  %3610 = vmatprep.subr.bf16.mxu0 0
  %3611 = vmatpush2.bf16.msra.mxu0 %v3238
  %3612 = vmatprep.subr.bf16.mxu0 0
  %3613 = vmatpush2.bf16.msra.mxu0 %v3237
  %3614 = vmatprep.subr.bf16.mxu0 0
  %3615 = vmatpush2.bf16.msra.mxu0 %v3236
  %3616 = vmatprep.mubr.bf16.mxu0 %v2639
  %3617 = vmatmul.mubr.bf16.gmra.mxu0 %v2638
  %v3618 = vpop.f32.mrf.mxu0
  %v3619 = vadd.f32 %v3578, %v3618
  %v3620 = vpop.f32.mrf.mxu0
  %v3621 = vpop.f32.mrf.mxu0
  %v3622 = vadd.f32 %v3581, %v3621
  %v3623 = vpop.f32.mrf.mxu0
  %3624 = vdwg.mxu0
  %3625 = vmatprep.subr.bf16.mxu0 0
  %3626 = vmatpush1.bf16.msra.mxu0 %v3251
  %3627 = vmatprep.subr.bf16.mxu0 0
  %3628 = vmatpush1.bf16.msra.mxu0 %v3250
  %3629 = vmatprep.subr.bf16.mxu0 0
  %3630 = vmatpush1.bf16.msra.mxu0 %v3249
  %3631 = vmatprep.subr.bf16.mxu0 0
  %3632 = vmatpush1.bf16.msra.mxu0 %v3248
  %3633 = vmatprep.subr.bf16.mxu0 0
  %3634 = vmatpush1.bf16.msra.mxu0 %v3247
  %3635 = vmatprep.subr.bf16.mxu0 0
  %3636 = vmatpush1.bf16.msra.mxu0 %v3246
  %3637 = vmatprep.subr.bf16.mxu0 0
  %3638 = vmatpush1.bf16.msra.mxu0 %v3245
  %3639 = vmatprep.subr.bf16.mxu0 0
  %3640 = vmatpush1.bf16.msra.mxu0 %v3244
  %3641 = vmatprep.subr.bf16.mxu0 0
  %3642 = vmatpush2.bf16.msra.mxu0 %v3259
  %3643 = vmatprep.subr.bf16.mxu0 0
  %3644 = vmatpush2.bf16.msra.mxu0 %v3258
  %3645 = vmatprep.subr.bf16.mxu0 0
  %3646 = vmatpush2.bf16.msra.mxu0 %v3257
  %3647 = vmatprep.subr.bf16.mxu0 0
  %3648 = vmatpush2.bf16.msra.mxu0 %v3256
  %3649 = vmatprep.subr.bf16.mxu0 0
  %3650 = vmatpush2.bf16.msra.mxu0 %v3255
  %3651 = vmatprep.subr.bf16.mxu0 0
  %3652 = vmatpush2.bf16.msra.mxu0 %v3254
  %3653 = vmatprep.subr.bf16.mxu0 0
  %3654 = vmatpush2.bf16.msra.mxu0 %v3253
  %3655 = vmatprep.subr.bf16.mxu0 0
  %3656 = vmatpush2.bf16.msra.mxu0 %v3252
  %3657 = vmatprep.mubr.bf16.mxu0 %v2641
  %3658 = vmatmul.mubr.bf16.gmra.mxu0 %v2640
  %v3659 = vpop.f32.mrf.mxu0
  %v3660 = vadd.f32 %v3619, %v3659
  %v3661 = vpop.f32.mrf.mxu0
  %v3662 = vpop.f32.mrf.mxu0
  %v3663 = vadd.f32 %v3622, %v3662
  %v3664 = vpop.f32.mrf.mxu0
  %3665 = vdwg.mxu0
  %3666 = vmatprep.subr.bf16.mxu0 0
  %3667 = vmatpush1.bf16.msra.mxu0 %v3267
  %3668 = vmatprep.subr.bf16.mxu0 0
  %3669 = vmatpush1.bf16.msra.mxu0 %v3266
  %3670 = vmatprep.subr.bf16.mxu0 0
  %3671 = vmatpush1.bf16.msra.mxu0 %v3265
  %3672 = vmatprep.subr.bf16.mxu0 0
  %3673 = vmatpush1.bf16.msra.mxu0 %v3264
  %3674 = vmatprep.subr.bf16.mxu0 0
  %3675 = vmatpush1.bf16.msra.mxu0 %v3263
  %3676 = vmatprep.subr.bf16.mxu0 0
  %3677 = vmatpush1.bf16.msra.mxu0 %v3262
  %3678 = vmatprep.subr.bf16.mxu0 0
  %3679 = vmatpush1.bf16.msra.mxu0 %v3261
  %3680 = vmatprep.subr.bf16.mxu0 0
  %3681 = vmatpush1.bf16.msra.mxu0 %v3260
  %3682 = vmatprep.subr.bf16.mxu0 0
  %3683 = vmatpush2.bf16.msra.mxu0 %v3275
  %3684 = vmatprep.subr.bf16.mxu0 0
  %3685 = vmatpush2.bf16.msra.mxu0 %v3274
  %3686 = vmatprep.subr.bf16.mxu0 0
  %3687 = vmatpush2.bf16.msra.mxu0 %v3273
  %3688 = vmatprep.subr.bf16.mxu0 0
  %3689 = vmatpush2.bf16.msra.mxu0 %v3272
  %3690 = vmatprep.subr.bf16.mxu0 0
  %3691 = vmatpush2.bf16.msra.mxu0 %v3271
  %3692 = vmatprep.subr.bf16.mxu0 0
  %3693 = vmatpush2.bf16.msra.mxu0 %v3270
  %3694 = vmatprep.subr.bf16.mxu0 0
  %3695 = vmatpush2.bf16.msra.mxu0 %v3269
  %3696 = vmatprep.subr.bf16.mxu0 0
  %3697 = vmatpush2.bf16.msra.mxu0 %v3268
  %3698 = vmatprep.mubr.bf16.mxu0 %v2643
  %3699 = vmatmul.mubr.bf16.gmra.mxu0 %v2642
  %v3700 = vpop.f32.mrf.mxu0
  %v3701 = vadd.f32 %v3660, %v3700
  %v3702 = vpop.f32.mrf.mxu0
  %v3703 = vpop.f32.mrf.mxu0
  %v3704 = vadd.f32 %v3663, %v3703
  %v3705 = vpop.f32.mrf.mxu0
  %3706 = vdwg.mxu0
  %3707 = vmatprep.subr.bf16.mxu0 0
  %3708 = vmatpush1.bf16.msra.mxu0 %v3283
  %3709 = vmatprep.subr.bf16.mxu0 0
  %3710 = vmatpush1.bf16.msra.mxu0 %v3282
  %3711 = vmatprep.subr.bf16.mxu0 0
  %3712 = vmatpush1.bf16.msra.mxu0 %v3281
  %3713 = vmatprep.subr.bf16.mxu0 0
  %3714 = vmatpush1.bf16.msra.mxu0 %v3280
  %3715 = vmatprep.subr.bf16.mxu0 0
  %3716 = vmatpush1.bf16.msra.mxu0 %v3279
  %3717 = vmatprep.subr.bf16.mxu0 0
  %3718 = vmatpush1.bf16.msra.mxu0 %v3278
  %3719 = vmatprep.subr.bf16.mxu0 0
  %3720 = vmatpush1.bf16.msra.mxu0 %v3277
  %3721 = vmatprep.subr.bf16.mxu0 0
  %3722 = vmatpush1.bf16.msra.mxu0 %v3276
  %3723 = vmatprep.subr.bf16.mxu0 0
  %3724 = vmatpush2.bf16.msra.mxu0 %v3291
  %3725 = vmatprep.subr.bf16.mxu0 0
  %3726 = vmatpush2.bf16.msra.mxu0 %v3290
  %3727 = vmatprep.subr.bf16.mxu0 0
  %3728 = vmatpush2.bf16.msra.mxu0 %v3289
  %3729 = vmatprep.subr.bf16.mxu0 0
  %3730 = vmatpush2.bf16.msra.mxu0 %v3288
  %3731 = vmatprep.subr.bf16.mxu0 0
  %3732 = vmatpush2.bf16.msra.mxu0 %v3287
  %3733 = vmatprep.subr.bf16.mxu0 0
  %3734 = vmatpush2.bf16.msra.mxu0 %v3286
  %3735 = vmatprep.subr.bf16.mxu0 0
  %3736 = vmatpush2.bf16.msra.mxu0 %v3285
  %3737 = vmatprep.subr.bf16.mxu0 0
  %3738 = vmatpush2.bf16.msra.mxu0 %v3284
  %3739 = vmatprep.mubr.bf16.mxu0 %v2645
  %3740 = vmatmul.mubr.bf16.gmra.mxu0 %v2644
  %v3741 = vpop.f32.mrf.mxu0
  %v3742 = vadd.f32 %v3701, %v3741
  %v3743 = vpop.f32.mrf.mxu0
  %v3744 = vpop.f32.mrf.mxu0
  %v3745 = vadd.f32 %v3704, %v3744
  %v3746 = vpop.f32.mrf.mxu0
  %3747 = vdwg.mxu0
  %v3748 = vadd.f32 %v1715, %v3742
  %v3749 = vadd.f32 %v1716, %v3745
  %v3750 = vld [vmem:[%s13] sm:$0x1]
  %v3751 = vld [vmem:[%s14] sm:$0x1]
  %v3752 = vsel %vm202, %v3748, 0.0
  %3753 = vadd.xlane.f32.xlu0 %v3752
  %v3754 = vpop.xlane.xlu0 %3753
  %v3755 = vsel %vm202, %v3749, 0.0
  %3756 = vadd.xlane.f32.xlu0 %v3755
  %v3757 = vpop.xlane.xlu0 %3756
  %v3758 = vmul.f32 %v3754, %v1680
  %v3759 = vmul.f32 %v3757, %v1680
  %v3760 = vsub.f32 %v3748, %v3758
  %v3761 = vsub.f32 %v3749, %v3759
  %v3762 = vmul.f32 %v3760, %v3760
  %v3763 = vmul.f32 %v3761, %v3761
  %v3764 = vsel %vm202, %v3762, 0.0
  %3765 = vadd.xlane.f32.xlu0 %v3764
  %v3766 = vpop.xlane.xlu0 %3765
  %v3767 = vsel %vm202, %v3763, 0.0
  %3768 = vadd.xlane.f32.xlu0 %v3767
  %v3769 = vpop.xlane.xlu0 %3768
  %v3770 = vmul.f32 %v3766, %v1680
  %v3771 = vmul.f32 %v3769, %v1680
  %v3772 = vadd.f32 %v3770, 1e-05
  %v3773 = vadd.f32 %v3771, 1e-05
  %v3774 = vrsqrt.pop %v3772
  %v3775 = vrsqrt.pop %v3773
  %v3776 = vmul.f32 %v3760, %v3774
  %v3777 = vmul.f32 %v3761, %v3775
  %v3779 = vlaneseq
  %v3780 = vshrl.u32 %v3779, 7
  %v3781 = vsub.s32 0, %v3780
  %v3782 = vrot.slane %v3750, %v3781
  %v3784 = vmul.f32 %v3776, %v3782
  %v3785 = vmul.f32 %v3777, %v3782
  %v3787 = vlaneseq
  %v3788 = vshrl.u32 %v3787, 7
  %v3789 = vsub.s32 0, %v3788
  %v3790 = vrot.slane %v3751, %v3789
  %v3792 = vadd.f32 %v3784, %v3790
  %v3793 = vadd.f32 %v3785, %v3790
  %s3794 = scalar_lea.vmem %s3, 16
  %v3795 = vld [vmem:[%s3794] sm:$0xf]
  %v3796 = vld [vmem:[%s3794 + $0x4] sm:$0xf]
  %v3797 = vld [vmem:[%s3794 + $0x8] sm:$0xf]
  %v3798 = vld [vmem:[%s3794 + $0xc] sm:$0xf]
  %s3799 = scalar_lea.vmem %s4, 1
  %v3800 = vld [vmem:[%s3799] sm:$0x1]
  %v3801 = vpack.c.bf16 %v3793, %v3792
  %v3803 = vlaneseq
  %v3804 = vshrl.u32 %v3803, 7
  %v3805 = vsub.s32 0, %v3804
  %v3806 = vrot.slane %v3800, %v3805
  %v3812 = vunpack.c.l.b16 %v3795
  %v3813 = vunpack.c.l.b16 %v3796
  %v3814 = vunpack.c.l.b16 %v3797
  %v3815 = vunpack.c.l.b16 %v3798
  %v3816 = vpack.c.b16 %v3813, %v3812
  %v3817 = vpack.c.b16 %v3815, %v3814
  %v3821 = vsel %vm202, %v3801, 0
  %3823 = vmatprep.subr.bf16.mxu0 0
  %3824 = vmatpush1.bf16.msra.mxu0 0
  %3825 = vmatprep.subr.bf16.mxu0 0
  %3826 = vmatpush1.bf16.msra.mxu0 0
  %3827 = vmatprep.subr.bf16.mxu0 0
  %3828 = vmatpush1.bf16.msra.mxu0 0
  %3829 = vmatprep.subr.bf16.mxu0 0
  %3830 = vmatpush1.bf16.msra.mxu0 0
  %3831 = vmatprep.subr.bf16.mxu0 0
  %3832 = vmatpush1.bf16.msra.mxu0 0
  %3833 = vmatprep.subr.bf16.mxu0 0
  %3834 = vmatpush1.bf16.msra.mxu0 0
  %3835 = vmatprep.subr.bf16.mxu0 0
  %3836 = vmatpush1.bf16.msra.mxu0 %v3817
  %3837 = vmatprep.subr.bf16.mxu0 0
  %3838 = vmatpush1.bf16.msra.mxu0 %v3816
  %3839 = vmatprep.subr.bf16.mxu0 0
  %3840 = vmatpush2.bf16.msra.mxu0 0
  %3841 = vmatprep.subr.bf16.mxu0 0
  %3842 = vmatpush2.bf16.msra.mxu0 0
  %3843 = vmatprep.subr.bf16.mxu0 0
  %3844 = vmatpush2.bf16.msra.mxu0 0
  %3845 = vmatprep.subr.bf16.mxu0 0
  %3846 = vmatpush2.bf16.msra.mxu0 0
  %3847 = vmatprep.subr.bf16.mxu0 0
  %3848 = vmatpush2.bf16.msra.mxu0 0
  %3849 = vmatprep.subr.bf16.mxu0 0
  %3850 = vmatpush2.bf16.msra.mxu0 0
  %3851 = vmatprep.subr.bf16.mxu0 0
  %3852 = vmatpush2.bf16.msra.mxu0 0
  %3853 = vmatprep.subr.bf16.mxu0 0
  %3854 = vmatpush2.bf16.msra.mxu0 0
  %3855 = vmatprep.mubr.bf16.mxu0 0
  %3856 = vmatmul.mubr.bf16.gmra.mxu0 %v3821
  %v3857 = vpop.f32.mrf.mxu0
  %v3858 = vadd.f32 %v3806, %v3857
  %v3859 = vpop.f32.mrf.mxu0
  %v3860 = vpop.f32.mrf.mxu0
  %v3861 = vadd.f32 %v3806, %v3860
  %v3862 = vpop.f32.mrf.mxu0
  %3863 = vdwg.mxu0
  %v3864 = vmul.f32 %v3858, 0.35355338
  %v3865 = vmul.f32 %v3861, 0.35355338
  %3867 = vrot.lane.b32.xlu0 %v3858, 96
  %v3868 = vpop.permute.xlu0 %3867
  %v3870 = vsel %vm252, %v3864, 0
  %v3872 = vsel %vm252, %v3868, 0
  %3874 = vmatprep.subr.mxu0 0.0
  %3875 = vmatpush1.xpose.msra.mxu0 0.0
  %3876 = vmatprep.subr.mxu0 0.0
  %3877 = vmatpush1.xpose.msra.mxu0 0.0
  %3878 = vmatprep.subr.mxu0 0.0
  %3879 = vmatpush1.xpose.msra.mxu0 0.0
  %3880 = vmatprep.subr.mxu0 0.0
  %3881 = vmatpush1.xpose.msra.mxu0 0.0
  %3882 = vmatprep.subr.mxu0 0.0
  %3883 = vmatpush1.xpose.msra.mxu0 0.0
  %3884 = vmatprep.subr.mxu0 0.0
  %3885 = vmatpush1.xpose.msra.mxu0 0.0
  %3886 = vmatprep.subr.mxu0 0.0
  %3887 = vmatpush1.xpose.msra.mxu0 0.0
  %3888 = vmatprep.subr.mxu0 0.0
  %3889 = vmatpush1.xpose.msra.mxu0 0.0
  %3890 = vmatprep.subr.mxu0 0.0
  %3891 = vmatpush1.xpose.msra.mxu0 0.0
  %3892 = vmatprep.subr.mxu0 0.0
  %3893 = vmatpush1.xpose.msra.mxu0 0.0
  %3894 = vmatprep.subr.mxu0 0.0
  %3895 = vmatpush1.xpose.msra.mxu0 0.0
  %3896 = vmatprep.subr.mxu0 0.0
  %3897 = vmatpush1.xpose.msra.mxu0 0.0
  %3898 = vmatprep.subr.mxu0 0.0
  %3899 = vmatpush1.xpose.msra.mxu0 0.0
  %3900 = vmatprep.subr.mxu0 0.0
  %3901 = vmatpush1.xpose.msra.mxu0 0.0
  %3902 = vmatprep.subr.mxu0 0.0
  %3903 = vmatpush1.xpose.msra.mxu0 0.0
  %3904 = vmatprep.subr.mxu0 0.0
  %3905 = vmatpush1.xpose.msra.mxu0 %v3872
  %3906 = vmatprep.subr.mxu0 0.0
  %3907 = vmatpush2.xpose.msra.mxu0 0.0
  %3908 = vmatprep.subr.mxu0 0.0
  %3909 = vmatpush2.xpose.msra.mxu0 0.0
  %3910 = vmatprep.subr.mxu0 0.0
  %3911 = vmatpush2.xpose.msra.mxu0 0.0
  %3912 = vmatprep.subr.mxu0 0.0
  %3913 = vmatpush2.xpose.msra.mxu0 0.0
  %3914 = vmatprep.subr.mxu0 0.0
  %3915 = vmatpush2.xpose.msra.mxu0 0.0
  %3916 = vmatprep.subr.mxu0 0.0
  %3917 = vmatpush2.xpose.msra.mxu0 0.0
  %3918 = vmatprep.subr.mxu0 0.0
  %3919 = vmatpush2.xpose.msra.mxu0 0.0
  %3920 = vmatprep.subr.mxu0 0.0
  %3921 = vmatpush2.xpose.msra.mxu0 0.0
  %3922 = vmatprep.subr.mxu0 0.0
  %3923 = vmatpush2.xpose.msra.mxu0 0.0
  %3924 = vmatprep.subr.mxu0 0.0
  %3925 = vmatpush2.xpose.msra.mxu0 0.0
  %3926 = vmatprep.subr.mxu0 0.0
  %3927 = vmatpush2.xpose.msra.mxu0 0.0
  %3928 = vmatprep.subr.mxu0 0.0
  %3929 = vmatpush2.xpose.msra.mxu0 0.0
  %3930 = vmatprep.subr.mxu0 0.0
  %3931 = vmatpush2.xpose.msra.mxu0 0.0
  %3932 = vmatprep.subr.mxu0 0.0
  %3933 = vmatpush2.xpose.msra.mxu0 0.0
  %3934 = vmatprep.subr.mxu0 0.0
  %3935 = vmatpush2.xpose.msra.mxu0 0.0
  %3936 = vmatprep.subr.mxu0 0.0
  %3937 = vmatpush2.xpose.msra.mxu0 0.0
  %3938 = vmatprep.mubr.f32.mxu0 0.0
  %3939 = vmatmul.mubr.f32.gmra.mxu0 %v3870
  %v3940 = vpop.f32.mrf.mxu0
  %v3941 = vadd.f32 0.0, %v3940
  %v3942 = vpop.f32.mrf.mxu0
  %3943 = vdwg.mxu0
  %3945 = vrot.lane.b32.xlu0 %v3861, 96
  %v3946 = vpop.permute.xlu0 %3945
  %v3948 = vsel %vm252, %v3865, 0
  %v3950 = vsel %vm252, %v3946, 0
  %3952 = vmatprep.subr.mxu0 0.0
  %3953 = vmatpush1.xpose.msra.mxu0 0.0
  %3954 = vmatprep.subr.mxu0 0.0
  %3955 = vmatpush1.xpose.msra.mxu0 0.0
  %3956 = vmatprep.subr.mxu0 0.0
  %3957 = vmatpush1.xpose.msra.mxu0 0.0
  %3958 = vmatprep.subr.mxu0 0.0
  %3959 = vmatpush1.xpose.msra.mxu0 0.0
  %3960 = vmatprep.subr.mxu0 0.0
  %3961 = vmatpush1.xpose.msra.mxu0 0.0
  %3962 = vmatprep.subr.mxu0 0.0
  %3963 = vmatpush1.xpose.msra.mxu0 0.0
  %3964 = vmatprep.subr.mxu0 0.0
  %3965 = vmatpush1.xpose.msra.mxu0 0.0
  %3966 = vmatprep.subr.mxu0 0.0
  %3967 = vmatpush1.xpose.msra.mxu0 0.0
  %3968 = vmatprep.subr.mxu0 0.0
  %3969 = vmatpush1.xpose.msra.mxu0 0.0
  %3970 = vmatprep.subr.mxu0 0.0
  %3971 = vmatpush1.xpose.msra.mxu0 0.0
  %3972 = vmatprep.subr.mxu0 0.0
  %3973 = vmatpush1.xpose.msra.mxu0 0.0
  %3974 = vmatprep.subr.mxu0 0.0
  %3975 = vmatpush1.xpose.msra.mxu0 0.0
  %3976 = vmatprep.subr.mxu0 0.0
  %3977 = vmatpush1.xpose.msra.mxu0 0.0
  %3978 = vmatprep.subr.mxu0 0.0
  %3979 = vmatpush1.xpose.msra.mxu0 0.0
  %3980 = vmatprep.subr.mxu0 0.0
  %3981 = vmatpush1.xpose.msra.mxu0 0.0
  %3982 = vmatprep.subr.mxu0 0.0
  %3983 = vmatpush1.xpose.msra.mxu0 %v3950
  %3984 = vmatprep.subr.mxu0 0.0
  %3985 = vmatpush2.xpose.msra.mxu0 0.0
  %3986 = vmatprep.subr.mxu0 0.0
  %3987 = vmatpush2.xpose.msra.mxu0 0.0
  %3988 = vmatprep.subr.mxu0 0.0
  %3989 = vmatpush2.xpose.msra.mxu0 0.0
  %3990 = vmatprep.subr.mxu0 0.0
  %3991 = vmatpush2.xpose.msra.mxu0 0.0
  %3992 = vmatprep.subr.mxu0 0.0
  %3993 = vmatpush2.xpose.msra.mxu0 0.0
  %3994 = vmatprep.subr.mxu0 0.0
  %3995 = vmatpush2.xpose.msra.mxu0 0.0
  %3996 = vmatprep.subr.mxu0 0.0
  %3997 = vmatpush2.xpose.msra.mxu0 0.0
  %3998 = vmatprep.subr.mxu0 0.0
  %3999 = vmatpush2.xpose.msra.mxu0 0.0
  %4000 = vmatprep.subr.mxu0 0.0
  %4001 = vmatpush2.xpose.msra.mxu0 0.0
  %4002 = vmatprep.subr.mxu0 0.0
  %4003 = vmatpush2.xpose.msra.mxu0 0.0
  %4004 = vmatprep.subr.mxu0 0.0
  %4005 = vmatpush2.xpose.msra.mxu0 0.0
  %4006 = vmatprep.subr.mxu0 0.0
  %4007 = vmatpush2.xpose.msra.mxu0 0.0
  %4008 = vmatprep.subr.mxu0 0.0
  %4009 = vmatpush2.xpose.msra.mxu0 0.0
  %4010 = vmatprep.subr.mxu0 0.0
  %4011 = vmatpush2.xpose.msra.mxu0 0.0
  %4012 = vmatprep.subr.mxu0 0.0
  %4013 = vmatpush2.xpose.msra.mxu0 0.0
  %4014 = vmatprep.subr.mxu0 0.0
  %4015 = vmatpush2.xpose.msra.mxu0 0.0
  %4016 = vmatprep.mubr.f32.mxu0 0.0
  %4017 = vmatmul.mubr.f32.gmra.mxu0 %v3948
  %v4018 = vpop.f32.mrf.mxu0
  %v4019 = vadd.f32 0.0, %v4018
  %v4020 = vpop.f32.mrf.mxu0
  %4021 = vdwg.mxu0
  %v4022 = vsel %vm252, %v3941, -inf
  %4023 = vmax.xlane.f32.xlu0 %v4022
  %v4024 = vpop.xlane.xlu0 %4023
  %v4025 = vsel %vm252, %v4019, -inf
  %4026 = vmax.xlane.f32.xlu0 %v4025
  %v4027 = vpop.xlane.xlu0 %4026
  %v4028 = vsub.f32 %v3941, %v4024
  %v4029 = vsub.f32 %v4019, %v4027
  %v4030 = vmul.f32 %v4028, 1.442695
  %v4031 = vpow.pop %v4030
  %v4032 = vmul.f32 %v4029, 1.442695
  %v4033 = vpow.pop %v4032
  %v4034 = vsel %vm252, %v4031, 0.0
  %4035 = vadd.xlane.f32.xlu0 %v4034
  %v4036 = vpop.xlane.xlu0 %4035
  %v4037 = vsel %vm252, %v4033, 0.0
  %4038 = vadd.xlane.f32.xlu0 %v4037
  %v4039 = vpop.xlane.xlu0 %4038
  %v4040 = vrcp.pop %v4036
  %v4041 = vmul.f32 %v4031, %v4040
  %v4042 = vrcp.pop %v4039
  %v4043 = vmul.f32 %v4033, %v4042
  %4044 = vrot.lane.b32.xlu0 %v3858, 64
  %v4045 = vpop.permute.xlu0 %4044
  %v4048 = vsel %vm252, %v4041, 0
  %4050 = vmatprep.subr.mxu0 0.0
  %4051 = vmatpush1.msra.mxu0 0.0
  %4052 = vmatprep.subr.mxu0 0.0
  %4053 = vmatpush1.msra.mxu0 0.0
  %4054 = vmatprep.subr.mxu0 0.0
  %4055 = vmatpush1.msra.mxu0 0.0
  %4056 = vmatprep.subr.mxu0 0.0
  %4057 = vmatpush1.msra.mxu0 0.0
  %4058 = vmatprep.subr.mxu0 0.0
  %4059 = vmatpush1.msra.mxu0 0.0
  %4060 = vmatprep.subr.mxu0 0.0
  %4061 = vmatpush1.msra.mxu0 0.0
  %4062 = vmatprep.subr.mxu0 0.0
  %4063 = vmatpush1.msra.mxu0 0.0
  %4064 = vmatprep.subr.mxu0 0.0
  %4065 = vmatpush1.msra.mxu0 0.0
  %4066 = vmatprep.subr.mxu0 0.0
  %4067 = vmatpush1.msra.mxu0 0.0
  %4068 = vmatprep.subr.mxu0 0.0
  %4069 = vmatpush1.msra.mxu0 0.0
  %4070 = vmatprep.subr.mxu0 0.0
  %4071 = vmatpush1.msra.mxu0 0.0
  %4072 = vmatprep.subr.mxu0 0.0
  %4073 = vmatpush1.msra.mxu0 0.0
  %4074 = vmatprep.subr.mxu0 0.0
  %4075 = vmatpush1.msra.mxu0 0.0
  %4076 = vmatprep.subr.mxu0 0.0
  %4077 = vmatpush1.msra.mxu0 0.0
  %4078 = vmatprep.subr.mxu0 0.0
  %4079 = vmatpush1.msra.mxu0 0.0
  %4080 = vmatprep.subr.mxu0 0.0
  %4081 = vmatpush1.msra.mxu0 %v4045
  %4082 = vmatprep.subr.mxu0 0.0
  %4083 = vmatpush2.msra.mxu0 0.0
  %4084 = vmatprep.subr.mxu0 0.0
  %4085 = vmatpush2.msra.mxu0 0.0
  %4086 = vmatprep.subr.mxu0 0.0
  %4087 = vmatpush2.msra.mxu0 0.0
  %4088 = vmatprep.subr.mxu0 0.0
  %4089 = vmatpush2.msra.mxu0 0.0
  %4090 = vmatprep.subr.mxu0 0.0
  %4091 = vmatpush2.msra.mxu0 0.0
  %4092 = vmatprep.subr.mxu0 0.0
  %4093 = vmatpush2.msra.mxu0 0.0
  %4094 = vmatprep.subr.mxu0 0.0
  %4095 = vmatpush2.msra.mxu0 0.0
  %4096 = vmatprep.subr.mxu0 0.0
  %4097 = vmatpush2.msra.mxu0 0.0
  %4098 = vmatprep.subr.mxu0 0.0
  %4099 = vmatpush2.msra.mxu0 0.0
  %4100 = vmatprep.subr.mxu0 0.0
  %4101 = vmatpush2.msra.mxu0 0.0
  %4102 = vmatprep.subr.mxu0 0.0
  %4103 = vmatpush2.msra.mxu0 0.0
  %4104 = vmatprep.subr.mxu0 0.0
  %4105 = vmatpush2.msra.mxu0 0.0
  %4106 = vmatprep.subr.mxu0 0.0
  %4107 = vmatpush2.msra.mxu0 0.0
  %4108 = vmatprep.subr.mxu0 0.0
  %4109 = vmatpush2.msra.mxu0 0.0
  %4110 = vmatprep.subr.mxu0 0.0
  %4111 = vmatpush2.msra.mxu0 0.0
  %4112 = vmatprep.subr.mxu0 0.0
  %4113 = vmatpush2.msra.mxu0 0.0
  %4114 = vmatprep.mubr.f32.mxu0 0.0
  %4115 = vmatmul.mubr.f32.gmra.mxu0 %v4048
  %v4116 = vpop.f32.mrf.mxu0
  %v4117 = vadd.f32 0.0, %v4116
  %v4118 = vpop.f32.mrf.mxu0
  %4119 = vdwg.mxu0
  %4120 = vrot.lane.b32.xlu0 %v3861, 64
  %v4121 = vpop.permute.xlu0 %4120
  %v4124 = vsel %vm252, %v4043, 0
  %4126 = vmatprep.subr.mxu0 0.0
  %4127 = vmatpush1.msra.mxu0 0.0
  %4128 = vmatprep.subr.mxu0 0.0
  %4129 = vmatpush1.msra.mxu0 0.0
  %4130 = vmatprep.subr.mxu0 0.0
  %4131 = vmatpush1.msra.mxu0 0.0
  %4132 = vmatprep.subr.mxu0 0.0
  %4133 = vmatpush1.msra.mxu0 0.0
  %4134 = vmatprep.subr.mxu0 0.0
  %4135 = vmatpush1.msra.mxu0 0.0
  %4136 = vmatprep.subr.mxu0 0.0
  %4137 = vmatpush1.msra.mxu0 0.0
  %4138 = vmatprep.subr.mxu0 0.0
  %4139 = vmatpush1.msra.mxu0 0.0
  %4140 = vmatprep.subr.mxu0 0.0
  %4141 = vmatpush1.msra.mxu0 0.0
  %4142 = vmatprep.subr.mxu0 0.0
  %4143 = vmatpush1.msra.mxu0 0.0
  %4144 = vmatprep.subr.mxu0 0.0
  %4145 = vmatpush1.msra.mxu0 0.0
  %4146 = vmatprep.subr.mxu0 0.0
  %4147 = vmatpush1.msra.mxu0 0.0
  %4148 = vmatprep.subr.mxu0 0.0
  %4149 = vmatpush1.msra.mxu0 0.0
  %4150 = vmatprep.subr.mxu0 0.0
  %4151 = vmatpush1.msra.mxu0 0.0
  %4152 = vmatprep.subr.mxu0 0.0
  %4153 = vmatpush1.msra.mxu0 0.0
  %4154 = vmatprep.subr.mxu0 0.0
  %4155 = vmatpush1.msra.mxu0 0.0
  %4156 = vmatprep.subr.mxu0 0.0
  %4157 = vmatpush1.msra.mxu0 %v4121
  %4158 = vmatprep.subr.mxu0 0.0
  %4159 = vmatpush2.msra.mxu0 0.0
  %4160 = vmatprep.subr.mxu0 0.0
  %4161 = vmatpush2.msra.mxu0 0.0
  %4162 = vmatprep.subr.mxu0 0.0
  %4163 = vmatpush2.msra.mxu0 0.0
  %4164 = vmatprep.subr.mxu0 0.0
  %4165 = vmatpush2.msra.mxu0 0.0
  %4166 = vmatprep.subr.mxu0 0.0
  %4167 = vmatpush2.msra.mxu0 0.0
  %4168 = vmatprep.subr.mxu0 0.0
  %4169 = vmatpush2.msra.mxu0 0.0
  %4170 = vmatprep.subr.mxu0 0.0
  %4171 = vmatpush2.msra.mxu0 0.0
  %4172 = vmatprep.subr.mxu0 0.0
  %4173 = vmatpush2.msra.mxu0 0.0
  %4174 = vmatprep.subr.mxu0 0.0
  %4175 = vmatpush2.msra.mxu0 0.0
  %4176 = vmatprep.subr.mxu0 0.0
  %4177 = vmatpush2.msra.mxu0 0.0
  %4178 = vmatprep.subr.mxu0 0.0
  %4179 = vmatpush2.msra.mxu0 0.0
  %4180 = vmatprep.subr.mxu0 0.0
  %4181 = vmatpush2.msra.mxu0 0.0
  %4182 = vmatprep.subr.mxu0 0.0
  %4183 = vmatpush2.msra.mxu0 0.0
  %4184 = vmatprep.subr.mxu0 0.0
  %4185 = vmatpush2.msra.mxu0 0.0
  %4186 = vmatprep.subr.mxu0 0.0
  %4187 = vmatpush2.msra.mxu0 0.0
  %4188 = vmatprep.subr.mxu0 0.0
  %4189 = vmatpush2.msra.mxu0 0.0
  %4190 = vmatprep.mubr.f32.mxu0 0.0
  %4191 = vmatmul.mubr.f32.gmra.mxu0 %v4124
  %v4192 = vpop.f32.mrf.mxu0
  %v4193 = vadd.f32 0.0, %v4192
  %v4194 = vpop.f32.mrf.mxu0
  %4195 = vdwg.mxu0
  %4196 = vrot.lane.b32.xlu0 %v3864, 120
  %v4197 = vpop.permute.xlu0 %4196
  %4198 = vrot.lane.b32.xlu0 %v3858, 88
  %v4199 = vpop.permute.xlu0 %4198
  %v4200 = vsel %vm252, %v4197, 0
  %v4202 = vsel %vm252, %v4199, 0
  %4204 = vmatprep.subr.mxu0 0.0
  %4205 = vmatpush1.xpose.msra.mxu0 0.0
  %4206 = vmatprep.subr.mxu0 0.0
  %4207 = vmatpush1.xpose.msra.mxu0 0.0
  %4208 = vmatprep.subr.mxu0 0.0
  %4209 = vmatpush1.xpose.msra.mxu0 0.0
  %4210 = vmatprep.subr.mxu0 0.0
  %4211 = vmatpush1.xpose.msra.mxu0 0.0
  %4212 = vmatprep.subr.mxu0 0.0
  %4213 = vmatpush1.xpose.msra.mxu0 0.0
  %4214 = vmatprep.subr.mxu0 0.0
  %4215 = vmatpush1.xpose.msra.mxu0 0.0
  %4216 = vmatprep.subr.mxu0 0.0
  %4217 = vmatpush1.xpose.msra.mxu0 0.0
  %4218 = vmatprep.subr.mxu0 0.0
  %4219 = vmatpush1.xpose.msra.mxu0 0.0
  %4220 = vmatprep.subr.mxu0 0.0
  %4221 = vmatpush1.xpose.msra.mxu0 0.0
  %4222 = vmatprep.subr.mxu0 0.0
  %4223 = vmatpush1.xpose.msra.mxu0 0.0
  %4224 = vmatprep.subr.mxu0 0.0
  %4225 = vmatpush1.xpose.msra.mxu0 0.0
  %4226 = vmatprep.subr.mxu0 0.0
  %4227 = vmatpush1.xpose.msra.mxu0 0.0
  %4228 = vmatprep.subr.mxu0 0.0
  %4229 = vmatpush1.xpose.msra.mxu0 0.0
  %4230 = vmatprep.subr.mxu0 0.0
  %4231 = vmatpush1.xpose.msra.mxu0 0.0
  %4232 = vmatprep.subr.mxu0 0.0
  %4233 = vmatpush1.xpose.msra.mxu0 0.0
  %4234 = vmatprep.subr.mxu0 0.0
  %4235 = vmatpush1.xpose.msra.mxu0 %v4202
  %4236 = vmatprep.subr.mxu0 0.0
  %4237 = vmatpush2.xpose.msra.mxu0 0.0
  %4238 = vmatprep.subr.mxu0 0.0
  %4239 = vmatpush2.xpose.msra.mxu0 0.0
  %4240 = vmatprep.subr.mxu0 0.0
  %4241 = vmatpush2.xpose.msra.mxu0 0.0
  %4242 = vmatprep.subr.mxu0 0.0
  %4243 = vmatpush2.xpose.msra.mxu0 0.0
  %4244 = vmatprep.subr.mxu0 0.0
  %4245 = vmatpush2.xpose.msra.mxu0 0.0
  %4246 = vmatprep.subr.mxu0 0.0
  %4247 = vmatpush2.xpose.msra.mxu0 0.0
  %4248 = vmatprep.subr.mxu0 0.0
  %4249 = vmatpush2.xpose.msra.mxu0 0.0
  %4250 = vmatprep.subr.mxu0 0.0
  %4251 = vmatpush2.xpose.msra.mxu0 0.0
  %4252 = vmatprep.subr.mxu0 0.0
  %4253 = vmatpush2.xpose.msra.mxu0 0.0
  %4254 = vmatprep.subr.mxu0 0.0
  %4255 = vmatpush2.xpose.msra.mxu0 0.0
  %4256 = vmatprep.subr.mxu0 0.0
  %4257 = vmatpush2.xpose.msra.mxu0 0.0
  %4258 = vmatprep.subr.mxu0 0.0
  %4259 = vmatpush2.xpose.msra.mxu0 0.0
  %4260 = vmatprep.subr.mxu0 0.0
  %4261 = vmatpush2.xpose.msra.mxu0 0.0
  %4262 = vmatprep.subr.mxu0 0.0
  %4263 = vmatpush2.xpose.msra.mxu0 0.0
  %4264 = vmatprep.subr.mxu0 0.0
  %4265 = vmatpush2.xpose.msra.mxu0 0.0
  %4266 = vmatprep.subr.mxu0 0.0
  %4267 = vmatpush2.xpose.msra.mxu0 0.0
  %4268 = vmatprep.mubr.f32.mxu0 0.0
  %4269 = vmatmul.mubr.f32.gmra.mxu0 %v4200
  %v4270 = vpop.f32.mrf.mxu0
  %v4271 = vadd.f32 0.0, %v4270
  %v4272 = vpop.f32.mrf.mxu0
  %4273 = vdwg.mxu0
  %4274 = vrot.lane.b32.xlu0 %v3865, 120
  %v4275 = vpop.permute.xlu0 %4274
  %4276 = vrot.lane.b32.xlu0 %v3861, 88
  %v4277 = vpop.permute.xlu0 %4276
  %v4278 = vsel %vm252, %v4275, 0
  %v4280 = vsel %vm252, %v4277, 0
  %4282 = vmatprep.subr.mxu0 0.0
  %4283 = vmatpush1.xpose.msra.mxu0 0.0
  %4284 = vmatprep.subr.mxu0 0.0
  %4285 = vmatpush1.xpose.msra.mxu0 0.0
  %4286 = vmatprep.subr.mxu0 0.0
  %4287 = vmatpush1.xpose.msra.mxu0 0.0
  %4288 = vmatprep.subr.mxu0 0.0
  %4289 = vmatpush1.xpose.msra.mxu0 0.0
  %4290 = vmatprep.subr.mxu0 0.0
  %4291 = vmatpush1.xpose.msra.mxu0 0.0
  %4292 = vmatprep.subr.mxu0 0.0
  %4293 = vmatpush1.xpose.msra.mxu0 0.0
  %4294 = vmatprep.subr.mxu0 0.0
  %4295 = vmatpush1.xpose.msra.mxu0 0.0
  %4296 = vmatprep.subr.mxu0 0.0
  %4297 = vmatpush1.xpose.msra.mxu0 0.0
  %4298 = vmatprep.subr.mxu0 0.0
  %4299 = vmatpush1.xpose.msra.mxu0 0.0
  %4300 = vmatprep.subr.mxu0 0.0
  %4301 = vmatpush1.xpose.msra.mxu0 0.0
  %4302 = vmatprep.subr.mxu0 0.0
  %4303 = vmatpush1.xpose.msra.mxu0 0.0
  %4304 = vmatprep.subr.mxu0 0.0
  %4305 = vmatpush1.xpose.msra.mxu0 0.0
  %4306 = vmatprep.subr.mxu0 0.0
  %4307 = vmatpush1.xpose.msra.mxu0 0.0
  %4308 = vmatprep.subr.mxu0 0.0
  %4309 = vmatpush1.xpose.msra.mxu0 0.0
  %4310 = vmatprep.subr.mxu0 0.0
  %4311 = vmatpush1.xpose.msra.mxu0 0.0
  %4312 = vmatprep.subr.mxu0 0.0
  %4313 = vmatpush1.xpose.msra.mxu0 %v4280
  %4314 = vmatprep.subr.mxu0 0.0
  %4315 = vmatpush2.xpose.msra.mxu0 0.0
  %4316 = vmatprep.subr.mxu0 0.0
  %4317 = vmatpush2.xpose.msra.mxu0 0.0
  %4318 = vmatprep.subr.mxu0 0.0
  %4319 = vmatpush2.xpose.msra.mxu0 0.0
  %4320 = vmatprep.subr.mxu0 0.0
  %4321 = vmatpush2.xpose.msra.mxu0 0.0
  %4322 = vmatprep.subr.mxu0 0.0
  %4323 = vmatpush2.xpose.msra.mxu0 0.0
  %4324 = vmatprep.subr.mxu0 0.0
  %4325 = vmatpush2.xpose.msra.mxu0 0.0
  %4326 = vmatprep.subr.mxu0 0.0
  %4327 = vmatpush2.xpose.msra.mxu0 0.0
  %4328 = vmatprep.subr.mxu0 0.0
  %4329 = vmatpush2.xpose.msra.mxu0 0.0
  %4330 = vmatprep.subr.mxu0 0.0
  %4331 = vmatpush2.xpose.msra.mxu0 0.0
  %4332 = vmatprep.subr.mxu0 0.0
  %4333 = vmatpush2.xpose.msra.mxu0 0.0
  %4334 = vmatprep.subr.mxu0 0.0
  %4335 = vmatpush2.xpose.msra.mxu0 0.0
  %4336 = vmatprep.subr.mxu0 0.0
  %4337 = vmatpush2.xpose.msra.mxu0 0.0
  %4338 = vmatprep.subr.mxu0 0.0
  %4339 = vmatpush2.xpose.msra.mxu0 0.0
  %4340 = vmatprep.subr.mxu0 0.0
  %4341 = vmatpush2.xpose.msra.mxu0 0.0
  %4342 = vmatprep.subr.mxu0 0.0
  %4343 = vmatpush2.xpose.msra.mxu0 0.0
  %4344 = vmatprep.subr.mxu0 0.0
  %4345 = vmatpush2.xpose.msra.mxu0 0.0
  %4346 = vmatprep.mubr.f32.mxu0 0.0
  %4347 = vmatmul.mubr.f32.gmra.mxu0 %v4278
  %v4348 = vpop.f32.mrf.mxu0
  %v4349 = vadd.f32 0.0, %v4348
  %v4350 = vpop.f32.mrf.mxu0
  %4351 = vdwg.mxu0
  %v4352 = vsel %vm252, %v4271, -inf
  %4353 = vmax.xlane.f32.xlu0 %v4352
  %v4354 = vpop.xlane.xlu0 %4353
  %v4355 = vsel %vm252, %v4349, -inf
  %4356 = vmax.xlane.f32.xlu0 %v4355
  %v4357 = vpop.xlane.xlu0 %4356
  %v4358 = vsub.f32 %v4271, %v4354
  %v4359 = vsub.f32 %v4349, %v4357
  %v4360 = vmul.f32 %v4358, 1.442695
  %v4361 = vpow.pop %v4360
  %v4362 = vmul.f32 %v4359, 1.442695
  %v4363 = vpow.pop %v4362
  %v4364 = vsel %vm252, %v4361, 0.0
  %4365 = vadd.xlane.f32.xlu0 %v4364
  %v4366 = vpop.xlane.xlu0 %4365
  %v4367 = vsel %vm252, %v4363, 0.0
  %4368 = vadd.xlane.f32.xlu0 %v4367
  %v4369 = vpop.xlane.xlu0 %4368
  %v4370 = vrcp.pop %v4366
  %v4371 = vmul.f32 %v4361, %v4370
  %v4372 = vrcp.pop %v4369
  %v4373 = vmul.f32 %v4363, %v4372
  %4374 = vrot.lane.b32.xlu0 %v3858, 56
  %v4375 = vpop.permute.xlu0 %4374
  %v4378 = vsel %vm252, %v4371, 0
  %4380 = vmatprep.subr.mxu0 0.0
  %4381 = vmatpush1.msra.mxu0 0.0
  %4382 = vmatprep.subr.mxu0 0.0
  %4383 = vmatpush1.msra.mxu0 0.0
  %4384 = vmatprep.subr.mxu0 0.0
  %4385 = vmatpush1.msra.mxu0 0.0
  %4386 = vmatprep.subr.mxu0 0.0
  %4387 = vmatpush1.msra.mxu0 0.0
  %4388 = vmatprep.subr.mxu0 0.0
  %4389 = vmatpush1.msra.mxu0 0.0
  %4390 = vmatprep.subr.mxu0 0.0
  %4391 = vmatpush1.msra.mxu0 0.0
  %4392 = vmatprep.subr.mxu0 0.0
  %4393 = vmatpush1.msra.mxu0 0.0
  %4394 = vmatprep.subr.mxu0 0.0
  %4395 = vmatpush1.msra.mxu0 0.0
  %4396 = vmatprep.subr.mxu0 0.0
  %4397 = vmatpush1.msra.mxu0 0.0
  %4398 = vmatprep.subr.mxu0 0.0
  %4399 = vmatpush1.msra.mxu0 0.0
  %4400 = vmatprep.subr.mxu0 0.0
  %4401 = vmatpush1.msra.mxu0 0.0
  %4402 = vmatprep.subr.mxu0 0.0
  %4403 = vmatpush1.msra.mxu0 0.0
  %4404 = vmatprep.subr.mxu0 0.0
  %4405 = vmatpush1.msra.mxu0 0.0
  %4406 = vmatprep.subr.mxu0 0.0
  %4407 = vmatpush1.msra.mxu0 0.0
  %4408 = vmatprep.subr.mxu0 0.0
  %4409 = vmatpush1.msra.mxu0 0.0
  %4410 = vmatprep.subr.mxu0 0.0
  %4411 = vmatpush1.msra.mxu0 %v4375
  %4412 = vmatprep.subr.mxu0 0.0
  %4413 = vmatpush2.msra.mxu0 0.0
  %4414 = vmatprep.subr.mxu0 0.0
  %4415 = vmatpush2.msra.mxu0 0.0
  %4416 = vmatprep.subr.mxu0 0.0
  %4417 = vmatpush2.msra.mxu0 0.0
  %4418 = vmatprep.subr.mxu0 0.0
  %4419 = vmatpush2.msra.mxu0 0.0
  %4420 = vmatprep.subr.mxu0 0.0
  %4421 = vmatpush2.msra.mxu0 0.0
  %4422 = vmatprep.subr.mxu0 0.0
  %4423 = vmatpush2.msra.mxu0 0.0
  %4424 = vmatprep.subr.mxu0 0.0
  %4425 = vmatpush2.msra.mxu0 0.0
  %4426 = vmatprep.subr.mxu0 0.0
  %4427 = vmatpush2.msra.mxu0 0.0
  %4428 = vmatprep.subr.mxu0 0.0
  %4429 = vmatpush2.msra.mxu0 0.0
  %4430 = vmatprep.subr.mxu0 0.0
  %4431 = vmatpush2.msra.mxu0 0.0
  %4432 = vmatprep.subr.mxu0 0.0
  %4433 = vmatpush2.msra.mxu0 0.0
  %4434 = vmatprep.subr.mxu0 0.0
  %4435 = vmatpush2.msra.mxu0 0.0
  %4436 = vmatprep.subr.mxu0 0.0
  %4437 = vmatpush2.msra.mxu0 0.0
  %4438 = vmatprep.subr.mxu0 0.0
  %4439 = vmatpush2.msra.mxu0 0.0
  %4440 = vmatprep.subr.mxu0 0.0
  %4441 = vmatpush2.msra.mxu0 0.0
  %4442 = vmatprep.subr.mxu0 0.0
  %4443 = vmatpush2.msra.mxu0 0.0
  %4444 = vmatprep.mubr.f32.mxu0 0.0
  %4445 = vmatmul.mubr.f32.gmra.mxu0 %v4378
  %v4446 = vpop.f32.mrf.mxu0
  %v4447 = vadd.f32 0.0, %v4446
  %v4448 = vpop.f32.mrf.mxu0
  %4449 = vdwg.mxu0
  %4450 = vrot.lane.b32.xlu0 %v3861, 56
  %v4451 = vpop.permute.xlu0 %4450
  %v4454 = vsel %vm252, %v4373, 0
  %4456 = vmatprep.subr.mxu0 0.0
  %4457 = vmatpush1.msra.mxu0 0.0
  %4458 = vmatprep.subr.mxu0 0.0
  %4459 = vmatpush1.msra.mxu0 0.0
  %4460 = vmatprep.subr.mxu0 0.0
  %4461 = vmatpush1.msra.mxu0 0.0
  %4462 = vmatprep.subr.mxu0 0.0
  %4463 = vmatpush1.msra.mxu0 0.0
  %4464 = vmatprep.subr.mxu0 0.0
  %4465 = vmatpush1.msra.mxu0 0.0
  %4466 = vmatprep.subr.mxu0 0.0
  %4467 = vmatpush1.msra.mxu0 0.0
  %4468 = vmatprep.subr.mxu0 0.0
  %4469 = vmatpush1.msra.mxu0 0.0
  %4470 = vmatprep.subr.mxu0 0.0
  %4471 = vmatpush1.msra.mxu0 0.0
  %4472 = vmatprep.subr.mxu0 0.0
  %4473 = vmatpush1.msra.mxu0 0.0
  %4474 = vmatprep.subr.mxu0 0.0
  %4475 = vmatpush1.msra.mxu0 0.0
  %4476 = vmatprep.subr.mxu0 0.0
  %4477 = vmatpush1.msra.mxu0 0.0
  %4478 = vmatprep.subr.mxu0 0.0
  %4479 = vmatpush1.msra.mxu0 0.0
  %4480 = vmatprep.subr.mxu0 0.0
  %4481 = vmatpush1.msra.mxu0 0.0
  %4482 = vmatprep.subr.mxu0 0.0
  %4483 = vmatpush1.msra.mxu0 0.0
  %4484 = vmatprep.subr.mxu0 0.0
  %4485 = vmatpush1.msra.mxu0 0.0
  %4486 = vmatprep.subr.mxu0 0.0
  %4487 = vmatpush1.msra.mxu0 %v4451
  %4488 = vmatprep.subr.mxu0 0.0
  %4489 = vmatpush2.msra.mxu0 0.0
  %4490 = vmatprep.subr.mxu0 0.0
  %4491 = vmatpush2.msra.mxu0 0.0
  %4492 = vmatprep.subr.mxu0 0.0
  %4493 = vmatpush2.msra.mxu0 0.0
  %4494 = vmatprep.subr.mxu0 0.0
  %4495 = vmatpush2.msra.mxu0 0.0
  %4496 = vmatprep.subr.mxu0 0.0
  %4497 = vmatpush2.msra.mxu0 0.0
  %4498 = vmatprep.subr.mxu0 0.0
  %4499 = vmatpush2.msra.mxu0 0.0
  %4500 = vmatprep.subr.mxu0 0.0
  %4501 = vmatpush2.msra.mxu0 0.0
  %4502 = vmatprep.subr.mxu0 0.0
  %4503 = vmatpush2.msra.mxu0 0.0
  %4504 = vmatprep.subr.mxu0 0.0
  %4505 = vmatpush2.msra.mxu0 0.0
  %4506 = vmatprep.subr.mxu0 0.0
  %4507 = vmatpush2.msra.mxu0 0.0
  %4508 = vmatprep.subr.mxu0 0.0
  %4509 = vmatpush2.msra.mxu0 0.0
  %4510 = vmatprep.subr.mxu0 0.0
  %4511 = vmatpush2.msra.mxu0 0.0
  %4512 = vmatprep.subr.mxu0 0.0
  %4513 = vmatpush2.msra.mxu0 0.0
  %4514 = vmatprep.subr.mxu0 0.0
  %4515 = vmatpush2.msra.mxu0 0.0
  %4516 = vmatprep.subr.mxu0 0.0
  %4517 = vmatpush2.msra.mxu0 0.0
  %4518 = vmatprep.subr.mxu0 0.0
  %4519 = vmatpush2.msra.mxu0 0.0
  %4520 = vmatprep.mubr.f32.mxu0 0.0
  %4521 = vmatmul.mubr.f32.gmra.mxu0 %v4454
  %v4522 = vpop.f32.mrf.mxu0
  %v4523 = vadd.f32 0.0, %v4522
  %v4524 = vpop.f32.mrf.mxu0
  %4525 = vdwg.mxu0
  %4526 = vrot.lane.b32.xlu0 %v3864, 112
  %v4527 = vpop.permute.xlu0 %4526
  %4528 = vrot.lane.b32.xlu0 %v3858, 80
  %v4529 = vpop.permute.xlu0 %4528
  %v4530 = vsel %vm252, %v4527, 0
  %v4532 = vsel %vm252, %v4529, 0
  %4534 = vmatprep.subr.mxu0 0.0
  %4535 = vmatpush1.xpose.msra.mxu0 0.0
  %4536 = vmatprep.subr.mxu0 0.0
  %4537 = vmatpush1.xpose.msra.mxu0 0.0
  %4538 = vmatprep.subr.mxu0 0.0
  %4539 = vmatpush1.xpose.msra.mxu0 0.0
  %4540 = vmatprep.subr.mxu0 0.0
  %4541 = vmatpush1.xpose.msra.mxu0 0.0
  %4542 = vmatprep.subr.mxu0 0.0
  %4543 = vmatpush1.xpose.msra.mxu0 0.0
  %4544 = vmatprep.subr.mxu0 0.0
  %4545 = vmatpush1.xpose.msra.mxu0 0.0
  %4546 = vmatprep.subr.mxu0 0.0
  %4547 = vmatpush1.xpose.msra.mxu0 0.0
  %4548 = vmatprep.subr.mxu0 0.0
  %4549 = vmatpush1.xpose.msra.mxu0 0.0
  %4550 = vmatprep.subr.mxu0 0.0
  %4551 = vmatpush1.xpose.msra.mxu0 0.0
  %4552 = vmatprep.subr.mxu0 0.0
  %4553 = vmatpush1.xpose.msra.mxu0 0.0
  %4554 = vmatprep.subr.mxu0 0.0
  %4555 = vmatpush1.xpose.msra.mxu0 0.0
  %4556 = vmatprep.subr.mxu0 0.0
  %4557 = vmatpush1.xpose.msra.mxu0 0.0
  %4558 = vmatprep.subr.mxu0 0.0
  %4559 = vmatpush1.xpose.msra.mxu0 0.0
  %4560 = vmatprep.subr.mxu0 0.0
  %4561 = vmatpush1.xpose.msra.mxu0 0.0
  %4562 = vmatprep.subr.mxu0 0.0
  %4563 = vmatpush1.xpose.msra.mxu0 0.0
  %4564 = vmatprep.subr.mxu0 0.0
  %4565 = vmatpush1.xpose.msra.mxu0 %v4532
  %4566 = vmatprep.subr.mxu0 0.0
  %4567 = vmatpush2.xpose.msra.mxu0 0.0
  %4568 = vmatprep.subr.mxu0 0.0
  %4569 = vmatpush2.xpose.msra.mxu0 0.0
  %4570 = vmatprep.subr.mxu0 0.0
  %4571 = vmatpush2.xpose.msra.mxu0 0.0
  %4572 = vmatprep.subr.mxu0 0.0
  %4573 = vmatpush2.xpose.msra.mxu0 0.0
  %4574 = vmatprep.subr.mxu0 0.0
  %4575 = vmatpush2.xpose.msra.mxu0 0.0
  %4576 = vmatprep.subr.mxu0 0.0
  %4577 = vmatpush2.xpose.msra.mxu0 0.0
  %4578 = vmatprep.subr.mxu0 0.0
  %4579 = vmatpush2.xpose.msra.mxu0 0.0
  %4580 = vmatprep.subr.mxu0 0.0
  %4581 = vmatpush2.xpose.msra.mxu0 0.0
  %4582 = vmatprep.subr.mxu0 0.0
  %4583 = vmatpush2.xpose.msra.mxu0 0.0
  %4584 = vmatprep.subr.mxu0 0.0
  %4585 = vmatpush2.xpose.msra.mxu0 0.0
  %4586 = vmatprep.subr.mxu0 0.0
  %4587 = vmatpush2.xpose.msra.mxu0 0.0
  %4588 = vmatprep.subr.mxu0 0.0
  %4589 = vmatpush2.xpose.msra.mxu0 0.0
  %4590 = vmatprep.subr.mxu0 0.0
  %4591 = vmatpush2.xpose.msra.mxu0 0.0
  %4592 = vmatprep.subr.mxu0 0.0
  %4593 = vmatpush2.xpose.msra.mxu0 0.0
  %4594 = vmatprep.subr.mxu0 0.0
  %4595 = vmatpush2.xpose.msra.mxu0 0.0
  %4596 = vmatprep.subr.mxu0 0.0
  %4597 = vmatpush2.xpose.msra.mxu0 0.0
  %4598 = vmatprep.mubr.f32.mxu0 0.0
  %4599 = vmatmul.mubr.f32.gmra.mxu0 %v4530
  %v4600 = vpop.f32.mrf.mxu0
  %v4601 = vadd.f32 0.0, %v4600
  %v4602 = vpop.f32.mrf.mxu0
  %4603 = vdwg.mxu0
  %4604 = vrot.lane.b32.xlu0 %v3865, 112
  %v4605 = vpop.permute.xlu0 %4604
  %4606 = vrot.lane.b32.xlu0 %v3861, 80
  %v4607 = vpop.permute.xlu0 %4606
  %v4608 = vsel %vm252, %v4605, 0
  %v4610 = vsel %vm252, %v4607, 0
  %4612 = vmatprep.subr.mxu0 0.0
  %4613 = vmatpush1.xpose.msra.mxu0 0.0
  %4614 = vmatprep.subr.mxu0 0.0
  %4615 = vmatpush1.xpose.msra.mxu0 0.0
  %4616 = vmatprep.subr.mxu0 0.0
  %4617 = vmatpush1.xpose.msra.mxu0 0.0
  %4618 = vmatprep.subr.mxu0 0.0
  %4619 = vmatpush1.xpose.msra.mxu0 0.0
  %4620 = vmatprep.subr.mxu0 0.0
  %4621 = vmatpush1.xpose.msra.mxu0 0.0
  %4622 = vmatprep.subr.mxu0 0.0
  %4623 = vmatpush1.xpose.msra.mxu0 0.0
  %4624 = vmatprep.subr.mxu0 0.0
  %4625 = vmatpush1.xpose.msra.mxu0 0.0
  %4626 = vmatprep.subr.mxu0 0.0
  %4627 = vmatpush1.xpose.msra.mxu0 0.0
  %4628 = vmatprep.subr.mxu0 0.0
  %4629 = vmatpush1.xpose.msra.mxu0 0.0
  %4630 = vmatprep.subr.mxu0 0.0
  %4631 = vmatpush1.xpose.msra.mxu0 0.0
  %4632 = vmatprep.subr.mxu0 0.0
  %4633 = vmatpush1.xpose.msra.mxu0 0.0
  %4634 = vmatprep.subr.mxu0 0.0
  %4635 = vmatpush1.xpose.msra.mxu0 0.0
  %4636 = vmatprep.subr.mxu0 0.0
  %4637 = vmatpush1.xpose.msra.mxu0 0.0
  %4638 = vmatprep.subr.mxu0 0.0
  %4639 = vmatpush1.xpose.msra.mxu0 0.0
  %4640 = vmatprep.subr.mxu0 0.0
  %4641 = vmatpush1.xpose.msra.mxu0 0.0
  %4642 = vmatprep.subr.mxu0 0.0
  %4643 = vmatpush1.xpose.msra.mxu0 %v4610
  %4644 = vmatprep.subr.mxu0 0.0
  %4645 = vmatpush2.xpose.msra.mxu0 0.0
  %4646 = vmatprep.subr.mxu0 0.0
  %4647 = vmatpush2.xpose.msra.mxu0 0.0
  %4648 = vmatprep.subr.mxu0 0.0
  %4649 = vmatpush2.xpose.msra.mxu0 0.0
  %4650 = vmatprep.subr.mxu0 0.0
  %4651 = vmatpush2.xpose.msra.mxu0 0.0
  %4652 = vmatprep.subr.mxu0 0.0
  %4653 = vmatpush2.xpose.msra.mxu0 0.0
  %4654 = vmatprep.subr.mxu0 0.0
  %4655 = vmatpush2.xpose.msra.mxu0 0.0
  %4656 = vmatprep.subr.mxu0 0.0
  %4657 = vmatpush2.xpose.msra.mxu0 0.0
  %4658 = vmatprep.subr.mxu0 0.0
  %4659 = vmatpush2.xpose.msra.mxu0 0.0
  %4660 = vmatprep.subr.mxu0 0.0
  %4661 = vmatpush2.xpose.msra.mxu0 0.0
  %4662 = vmatprep.subr.mxu0 0.0
  %4663 = vmatpush2.xpose.msra.mxu0 0.0
  %4664 = vmatprep.subr.mxu0 0.0
  %4665 = vmatpush2.xpose.msra.mxu0 0.0
  %4666 = vmatprep.subr.mxu0 0.0
  %4667 = vmatpush2.xpose.msra.mxu0 0.0
  %4668 = vmatprep.subr.mxu0 0.0
  %4669 = vmatpush2.xpose.msra.mxu0 0.0
  %4670 = vmatprep.subr.mxu0 0.0
  %4671 = vmatpush2.xpose.msra.mxu0 0.0
  %4672 = vmatprep.subr.mxu0 0.0
  %4673 = vmatpush2.xpose.msra.mxu0 0.0
  %4674 = vmatprep.subr.mxu0 0.0
  %4675 = vmatpush2.xpose.msra.mxu0 0.0
  %4676 = vmatprep.mubr.f32.mxu0 0.0
  %4677 = vmatmul.mubr.f32.gmra.mxu0 %v4608
  %v4678 = vpop.f32.mrf.mxu0
  %v4679 = vadd.f32 0.0, %v4678
  %v4680 = vpop.f32.mrf.mxu0
  %4681 = vdwg.mxu0
  %v4682 = vsel %vm252, %v4601, -inf
  %4683 = vmax.xlane.f32.xlu0 %v4682
  %v4684 = vpop.xlane.xlu0 %4683
  %v4685 = vsel %vm252, %v4679, -inf
  %4686 = vmax.xlane.f32.xlu0 %v4685
  %v4687 = vpop.xlane.xlu0 %4686
  %v4688 = vsub.f32 %v4601, %v4684
  %v4689 = vsub.f32 %v4679, %v4687
  %v4690 = vmul.f32 %v4688, 1.442695
  %v4691 = vpow.pop %v4690
  %v4692 = vmul.f32 %v4689, 1.442695
  %v4693 = vpow.pop %v4692
  %v4694 = vsel %vm252, %v4691, 0.0
  %4695 = vadd.xlane.f32.xlu0 %v4694
  %v4696 = vpop.xlane.xlu0 %4695
  %v4697 = vsel %vm252, %v4693, 0.0
  %4698 = vadd.xlane.f32.xlu0 %v4697
  %v4699 = vpop.xlane.xlu0 %4698
  %v4700 = vrcp.pop %v4696
  %v4701 = vmul.f32 %v4691, %v4700
  %v4702 = vrcp.pop %v4699
  %v4703 = vmul.f32 %v4693, %v4702
  %4704 = vrot.lane.b32.xlu0 %v3858, 48
  %v4705 = vpop.permute.xlu0 %4704
  %v4708 = vsel %vm252, %v4701, 0
  %4710 = vmatprep.subr.mxu0 0.0
  %4711 = vmatpush1.msra.mxu0 0.0
  %4712 = vmatprep.subr.mxu0 0.0
  %4713 = vmatpush1.msra.mxu0 0.0
  %4714 = vmatprep.subr.mxu0 0.0
  %4715 = vmatpush1.msra.mxu0 0.0
  %4716 = vmatprep.subr.mxu0 0.0
  %4717 = vmatpush1.msra.mxu0 0.0
  %4718 = vmatprep.subr.mxu0 0.0
  %4719 = vmatpush1.msra.mxu0 0.0
  %4720 = vmatprep.subr.mxu0 0.0
  %4721 = vmatpush1.msra.mxu0 0.0
  %4722 = vmatprep.subr.mxu0 0.0
  %4723 = vmatpush1.msra.mxu0 0.0
  %4724 = vmatprep.subr.mxu0 0.0
  %4725 = vmatpush1.msra.mxu0 0.0
  %4726 = vmatprep.subr.mxu0 0.0
  %4727 = vmatpush1.msra.mxu0 0.0
  %4728 = vmatprep.subr.mxu0 0.0
  %4729 = vmatpush1.msra.mxu0 0.0
  %4730 = vmatprep.subr.mxu0 0.0
  %4731 = vmatpush1.msra.mxu0 0.0
  %4732 = vmatprep.subr.mxu0 0.0
  %4733 = vmatpush1.msra.mxu0 0.0
  %4734 = vmatprep.subr.mxu0 0.0
  %4735 = vmatpush1.msra.mxu0 0.0
  %4736 = vmatprep.subr.mxu0 0.0
  %4737 = vmatpush1.msra.mxu0 0.0
  %4738 = vmatprep.subr.mxu0 0.0
  %4739 = vmatpush1.msra.mxu0 0.0
  %4740 = vmatprep.subr.mxu0 0.0
  %4741 = vmatpush1.msra.mxu0 %v4705
  %4742 = vmatprep.subr.mxu0 0.0
  %4743 = vmatpush2.msra.mxu0 0.0
  %4744 = vmatprep.subr.mxu0 0.0
  %4745 = vmatpush2.msra.mxu0 0.0
  %4746 = vmatprep.subr.mxu0 0.0
  %4747 = vmatpush2.msra.mxu0 0.0
  %4748 = vmatprep.subr.mxu0 0.0
  %4749 = vmatpush2.msra.mxu0 0.0
  %4750 = vmatprep.subr.mxu0 0.0
  %4751 = vmatpush2.msra.mxu0 0.0
  %4752 = vmatprep.subr.mxu0 0.0
  %4753 = vmatpush2.msra.mxu0 0.0
  %4754 = vmatprep.subr.mxu0 0.0
  %4755 = vmatpush2.msra.mxu0 0.0
  %4756 = vmatprep.subr.mxu0 0.0
  %4757 = vmatpush2.msra.mxu0 0.0
  %4758 = vmatprep.subr.mxu0 0.0
  %4759 = vmatpush2.msra.mxu0 0.0
  %4760 = vmatprep.subr.mxu0 0.0
  %4761 = vmatpush2.msra.mxu0 0.0
  %4762 = vmatprep.subr.mxu0 0.0
  %4763 = vmatpush2.msra.mxu0 0.0
  %4764 = vmatprep.subr.mxu0 0.0
  %4765 = vmatpush2.msra.mxu0 0.0
  %4766 = vmatprep.subr.mxu0 0.0
  %4767 = vmatpush2.msra.mxu0 0.0
  %4768 = vmatprep.subr.mxu0 0.0
  %4769 = vmatpush2.msra.mxu0 0.0
  %4770 = vmatprep.subr.mxu0 0.0
  %4771 = vmatpush2.msra.mxu0 0.0
  %4772 = vmatprep.subr.mxu0 0.0
  %4773 = vmatpush2.msra.mxu0 0.0
  %4774 = vmatprep.mubr.f32.mxu0 0.0
  %4775 = vmatmul.mubr.f32.gmra.mxu0 %v4708
  %v4776 = vpop.f32.mrf.mxu0
  %v4777 = vadd.f32 0.0, %v4776
  %v4778 = vpop.f32.mrf.mxu0
  %4779 = vdwg.mxu0
  %4780 = vrot.lane.b32.xlu0 %v3861, 48
  %v4781 = vpop.permute.xlu0 %4780
  %v4784 = vsel %vm252, %v4703, 0
  %4786 = vmatprep.subr.mxu0 0.0
  %4787 = vmatpush1.msra.mxu0 0.0
  %4788 = vmatprep.subr.mxu0 0.0
  %4789 = vmatpush1.msra.mxu0 0.0
  %4790 = vmatprep.subr.mxu0 0.0
  %4791 = vmatpush1.msra.mxu0 0.0
  %4792 = vmatprep.subr.mxu0 0.0
  %4793 = vmatpush1.msra.mxu0 0.0
  %4794 = vmatprep.subr.mxu0 0.0
  %4795 = vmatpush1.msra.mxu0 0.0
  %4796 = vmatprep.subr.mxu0 0.0
  %4797 = vmatpush1.msra.mxu0 0.0
  %4798 = vmatprep.subr.mxu0 0.0
  %4799 = vmatpush1.msra.mxu0 0.0
  %4800 = vmatprep.subr.mxu0 0.0
  %4801 = vmatpush1.msra.mxu0 0.0
  %4802 = vmatprep.subr.mxu0 0.0
  %4803 = vmatpush1.msra.mxu0 0.0
  %4804 = vmatprep.subr.mxu0 0.0
  %4805 = vmatpush1.msra.mxu0 0.0
  %4806 = vmatprep.subr.mxu0 0.0
  %4807 = vmatpush1.msra.mxu0 0.0
  %4808 = vmatprep.subr.mxu0 0.0
  %4809 = vmatpush1.msra.mxu0 0.0
  %4810 = vmatprep.subr.mxu0 0.0
  %4811 = vmatpush1.msra.mxu0 0.0
  %4812 = vmatprep.subr.mxu0 0.0
  %4813 = vmatpush1.msra.mxu0 0.0
  %4814 = vmatprep.subr.mxu0 0.0
  %4815 = vmatpush1.msra.mxu0 0.0
  %4816 = vmatprep.subr.mxu0 0.0
  %4817 = vmatpush1.msra.mxu0 %v4781
  %4818 = vmatprep.subr.mxu0 0.0
  %4819 = vmatpush2.msra.mxu0 0.0
  %4820 = vmatprep.subr.mxu0 0.0
  %4821 = vmatpush2.msra.mxu0 0.0
  %4822 = vmatprep.subr.mxu0 0.0
  %4823 = vmatpush2.msra.mxu0 0.0
  %4824 = vmatprep.subr.mxu0 0.0
  %4825 = vmatpush2.msra.mxu0 0.0
  %4826 = vmatprep.subr.mxu0 0.0
  %4827 = vmatpush2.msra.mxu0 0.0
  %4828 = vmatprep.subr.mxu0 0.0
  %4829 = vmatpush2.msra.mxu0 0.0
  %4830 = vmatprep.subr.mxu0 0.0
  %4831 = vmatpush2.msra.mxu0 0.0
  %4832 = vmatprep.subr.mxu0 0.0
  %4833 = vmatpush2.msra.mxu0 0.0
  %4834 = vmatprep.subr.mxu0 0.0
  %4835 = vmatpush2.msra.mxu0 0.0
  %4836 = vmatprep.subr.mxu0 0.0
  %4837 = vmatpush2.msra.mxu0 0.0
  %4838 = vmatprep.subr.mxu0 0.0
  %4839 = vmatpush2.msra.mxu0 0.0
  %4840 = vmatprep.subr.mxu0 0.0
  %4841 = vmatpush2.msra.mxu0 0.0
  %4842 = vmatprep.subr.mxu0 0.0
  %4843 = vmatpush2.msra.mxu0 0.0
  %4844 = vmatprep.subr.mxu0 0.0
  %4845 = vmatpush2.msra.mxu0 0.0
  %4846 = vmatprep.subr.mxu0 0.0
  %4847 = vmatpush2.msra.mxu0 0.0
  %4848 = vmatprep.subr.mxu0 0.0
  %4849 = vmatpush2.msra.mxu0 0.0
  %4850 = vmatprep.mubr.f32.mxu0 0.0
  %4851 = vmatmul.mubr.f32.gmra.mxu0 %v4784
  %v4852 = vpop.f32.mrf.mxu0
  %v4853 = vadd.f32 0.0, %v4852
  %v4854 = vpop.f32.mrf.mxu0
  %4855 = vdwg.mxu0
  %4856 = vrot.lane.b32.xlu0 %v3864, 104
  %v4857 = vpop.permute.xlu0 %4856
  %4858 = vrot.lane.b32.xlu0 %v3858, 72
  %v4859 = vpop.permute.xlu0 %4858
  %v4860 = vsel %vm252, %v4857, 0
  %v4862 = vsel %vm252, %v4859, 0
  %4864 = vmatprep.subr.mxu0 0.0
  %4865 = vmatpush1.xpose.msra.mxu0 0.0
  %4866 = vmatprep.subr.mxu0 0.0
  %4867 = vmatpush1.xpose.msra.mxu0 0.0
  %4868 = vmatprep.subr.mxu0 0.0
  %4869 = vmatpush1.xpose.msra.mxu0 0.0
  %4870 = vmatprep.subr.mxu0 0.0
  %4871 = vmatpush1.xpose.msra.mxu0 0.0
  %4872 = vmatprep.subr.mxu0 0.0
  %4873 = vmatpush1.xpose.msra.mxu0 0.0
  %4874 = vmatprep.subr.mxu0 0.0
  %4875 = vmatpush1.xpose.msra.mxu0 0.0
  %4876 = vmatprep.subr.mxu0 0.0
  %4877 = vmatpush1.xpose.msra.mxu0 0.0
  %4878 = vmatprep.subr.mxu0 0.0
  %4879 = vmatpush1.xpose.msra.mxu0 0.0
  %4880 = vmatprep.subr.mxu0 0.0
  %4881 = vmatpush1.xpose.msra.mxu0 0.0
  %4882 = vmatprep.subr.mxu0 0.0
  %4883 = vmatpush1.xpose.msra.mxu0 0.0
  %4884 = vmatprep.subr.mxu0 0.0
  %4885 = vmatpush1.xpose.msra.mxu0 0.0
  %4886 = vmatprep.subr.mxu0 0.0
  %4887 = vmatpush1.xpose.msra.mxu0 0.0
  %4888 = vmatprep.subr.mxu0 0.0
  %4889 = vmatpush1.xpose.msra.mxu0 0.0
  %4890 = vmatprep.subr.mxu0 0.0
  %4891 = vmatpush1.xpose.msra.mxu0 0.0
  %4892 = vmatprep.subr.mxu0 0.0
  %4893 = vmatpush1.xpose.msra.mxu0 0.0
  %4894 = vmatprep.subr.mxu0 0.0
  %4895 = vmatpush1.xpose.msra.mxu0 %v4862
  %4896 = vmatprep.subr.mxu0 0.0
  %4897 = vmatpush2.xpose.msra.mxu0 0.0
  %4898 = vmatprep.subr.mxu0 0.0
  %4899 = vmatpush2.xpose.msra.mxu0 0.0
  %4900 = vmatprep.subr.mxu0 0.0
  %4901 = vmatpush2.xpose.msra.mxu0 0.0
  %4902 = vmatprep.subr.mxu0 0.0
  %4903 = vmatpush2.xpose.msra.mxu0 0.0
  %4904 = vmatprep.subr.mxu0 0.0
  %4905 = vmatpush2.xpose.msra.mxu0 0.0
  %4906 = vmatprep.subr.mxu0 0.0
  %4907 = vmatpush2.xpose.msra.mxu0 0.0
  %4908 = vmatprep.subr.mxu0 0.0
  %4909 = vmatpush2.xpose.msra.mxu0 0.0
  %4910 = vmatprep.subr.mxu0 0.0
  %4911 = vmatpush2.xpose.msra.mxu0 0.0
  %4912 = vmatprep.subr.mxu0 0.0
  %4913 = vmatpush2.xpose.msra.mxu0 0.0
  %4914 = vmatprep.subr.mxu0 0.0
  %4915 = vmatpush2.xpose.msra.mxu0 0.0
  %4916 = vmatprep.subr.mxu0 0.0
  %4917 = vmatpush2.xpose.msra.mxu0 0.0
  %4918 = vmatprep.subr.mxu0 0.0
  %4919 = vmatpush2.xpose.msra.mxu0 0.0
  %4920 = vmatprep.subr.mxu0 0.0
  %4921 = vmatpush2.xpose.msra.mxu0 0.0
  %4922 = vmatprep.subr.mxu0 0.0
  %4923 = vmatpush2.xpose.msra.mxu0 0.0
  %4924 = vmatprep.subr.mxu0 0.0
  %4925 = vmatpush2.xpose.msra.mxu0 0.0
  %4926 = vmatprep.subr.mxu0 0.0
  %4927 = vmatpush2.xpose.msra.mxu0 0.0
  %4928 = vmatprep.mubr.f32.mxu0 0.0
  %4929 = vmatmul.mubr.f32.gmra.mxu0 %v4860
  %v4930 = vpop.f32.mrf.mxu0
  %v4931 = vadd.f32 0.0, %v4930
  %v4932 = vpop.f32.mrf.mxu0
  %4933 = vdwg.mxu0
  %4934 = vrot.lane.b32.xlu0 %v3865, 104
  %v4935 = vpop.permute.xlu0 %4934
  %4936 = vrot.lane.b32.xlu0 %v3861, 72
  %v4937 = vpop.permute.xlu0 %4936
  %v4938 = vsel %vm252, %v4935, 0
  %v4940 = vsel %vm252, %v4937, 0
  %4942 = vmatprep.subr.mxu0 0.0
  %4943 = vmatpush1.xpose.msra.mxu0 0.0
  %4944 = vmatprep.subr.mxu0 0.0
  %4945 = vmatpush1.xpose.msra.mxu0 0.0
  %4946 = vmatprep.subr.mxu0 0.0
  %4947 = vmatpush1.xpose.msra.mxu0 0.0
  %4948 = vmatprep.subr.mxu0 0.0
  %4949 = vmatpush1.xpose.msra.mxu0 0.0
  %4950 = vmatprep.subr.mxu0 0.0
  %4951 = vmatpush1.xpose.msra.mxu0 0.0
  %4952 = vmatprep.subr.mxu0 0.0
  %4953 = vmatpush1.xpose.msra.mxu0 0.0
  %4954 = vmatprep.subr.mxu0 0.0
  %4955 = vmatpush1.xpose.msra.mxu0 0.0
  %4956 = vmatprep.subr.mxu0 0.0
  %4957 = vmatpush1.xpose.msra.mxu0 0.0
  %4958 = vmatprep.subr.mxu0 0.0
  %4959 = vmatpush1.xpose.msra.mxu0 0.0
  %4960 = vmatprep.subr.mxu0 0.0
  %4961 = vmatpush1.xpose.msra.mxu0 0.0
  %4962 = vmatprep.subr.mxu0 0.0
  %4963 = vmatpush1.xpose.msra.mxu0 0.0
  %4964 = vmatprep.subr.mxu0 0.0
  %4965 = vmatpush1.xpose.msra.mxu0 0.0
  %4966 = vmatprep.subr.mxu0 0.0
  %4967 = vmatpush1.xpose.msra.mxu0 0.0
  %4968 = vmatprep.subr.mxu0 0.0
  %4969 = vmatpush1.xpose.msra.mxu0 0.0
  %4970 = vmatprep.subr.mxu0 0.0
  %4971 = vmatpush1.xpose.msra.mxu0 0.0
  %4972 = vmatprep.subr.mxu0 0.0
  %4973 = vmatpush1.xpose.msra.mxu0 %v4940
  %4974 = vmatprep.subr.mxu0 0.0
  %4975 = vmatpush2.xpose.msra.mxu0 0.0
  %4976 = vmatprep.subr.mxu0 0.0
  %4977 = vmatpush2.xpose.msra.mxu0 0.0
  %4978 = vmatprep.subr.mxu0 0.0
  %4979 = vmatpush2.xpose.msra.mxu0 0.0
  %4980 = vmatprep.subr.mxu0 0.0
  %4981 = vmatpush2.xpose.msra.mxu0 0.0
  %4982 = vmatprep.subr.mxu0 0.0
  %4983 = vmatpush2.xpose.msra.mxu0 0.0
  %4984 = vmatprep.subr.mxu0 0.0
  %4985 = vmatpush2.xpose.msra.mxu0 0.0
  %4986 = vmatprep.subr.mxu0 0.0
  %4987 = vmatpush2.xpose.msra.mxu0 0.0
  %4988 = vmatprep.subr.mxu0 0.0
  %4989 = vmatpush2.xpose.msra.mxu0 0.0
  %4990 = vmatprep.subr.mxu0 0.0
  %4991 = vmatpush2.xpose.msra.mxu0 0.0
  %4992 = vmatprep.subr.mxu0 0.0
  %4993 = vmatpush2.xpose.msra.mxu0 0.0
  %4994 = vmatprep.subr.mxu0 0.0
  %4995 = vmatpush2.xpose.msra.mxu0 0.0
  %4996 = vmatprep.subr.mxu0 0.0
  %4997 = vmatpush2.xpose.msra.mxu0 0.0
  %4998 = vmatprep.subr.mxu0 0.0
  %4999 = vmatpush2.xpose.msra.mxu0 0.0
  %5000 = vmatprep.subr.mxu0 0.0
  %5001 = vmatpush2.xpose.msra.mxu0 0.0
  %5002 = vmatprep.subr.mxu0 0.0
  %5003 = vmatpush2.xpose.msra.mxu0 0.0
  %5004 = vmatprep.subr.mxu0 0.0
  %5005 = vmatpush2.xpose.msra.mxu0 0.0
  %5006 = vmatprep.mubr.f32.mxu0 0.0
  %5007 = vmatmul.mubr.f32.gmra.mxu0 %v4938
  %v5008 = vpop.f32.mrf.mxu0
  %v5009 = vadd.f32 0.0, %v5008
  %v5010 = vpop.f32.mrf.mxu0
  %5011 = vdwg.mxu0
  %v5012 = vsel %vm252, %v4931, -inf
  %5013 = vmax.xlane.f32.xlu0 %v5012
  %v5014 = vpop.xlane.xlu0 %5013
  %v5015 = vsel %vm252, %v5009, -inf
  %5016 = vmax.xlane.f32.xlu0 %v5015
  %v5017 = vpop.xlane.xlu0 %5016
  %v5018 = vsub.f32 %v4931, %v5014
  %v5019 = vsub.f32 %v5009, %v5017
  %v5020 = vmul.f32 %v5018, 1.442695
  %v5021 = vpow.pop %v5020
  %v5022 = vmul.f32 %v5019, 1.442695
  %v5023 = vpow.pop %v5022
  %v5024 = vsel %vm252, %v5021, 0.0
  %5025 = vadd.xlane.f32.xlu0 %v5024
  %v5026 = vpop.xlane.xlu0 %5025
  %v5027 = vsel %vm252, %v5023, 0.0
  %5028 = vadd.xlane.f32.xlu0 %v5027
  %v5029 = vpop.xlane.xlu0 %5028
  %v5030 = vrcp.pop %v5026
  %v5031 = vmul.f32 %v5021, %v5030
  %v5032 = vrcp.pop %v5029
  %v5033 = vmul.f32 %v5023, %v5032
  %5034 = vrot.lane.b32.xlu0 %v3858, 40
  %v5035 = vpop.permute.xlu0 %5034
  %v5038 = vsel %vm252, %v5031, 0
  %5040 = vmatprep.subr.mxu0 0.0
  %5041 = vmatpush1.msra.mxu0 0.0
  %5042 = vmatprep.subr.mxu0 0.0
  %5043 = vmatpush1.msra.mxu0 0.0
  %5044 = vmatprep.subr.mxu0 0.0
  %5045 = vmatpush1.msra.mxu0 0.0
  %5046 = vmatprep.subr.mxu0 0.0
  %5047 = vmatpush1.msra.mxu0 0.0
  %5048 = vmatprep.subr.mxu0 0.0
  %5049 = vmatpush1.msra.mxu0 0.0
  %5050 = vmatprep.subr.mxu0 0.0
  %5051 = vmatpush1.msra.mxu0 0.0
  %5052 = vmatprep.subr.mxu0 0.0
  %5053 = vmatpush1.msra.mxu0 0.0
  %5054 = vmatprep.subr.mxu0 0.0
  %5055 = vmatpush1.msra.mxu0 0.0
  %5056 = vmatprep.subr.mxu0 0.0
  %5057 = vmatpush1.msra.mxu0 0.0
  %5058 = vmatprep.subr.mxu0 0.0
  %5059 = vmatpush1.msra.mxu0 0.0
  %5060 = vmatprep.subr.mxu0 0.0
  %5061 = vmatpush1.msra.mxu0 0.0
  %5062 = vmatprep.subr.mxu0 0.0
  %5063 = vmatpush1.msra.mxu0 0.0
  %5064 = vmatprep.subr.mxu0 0.0
  %5065 = vmatpush1.msra.mxu0 0.0
  %5066 = vmatprep.subr.mxu0 0.0
  %5067 = vmatpush1.msra.mxu0 0.0
  %5068 = vmatprep.subr.mxu0 0.0
  %5069 = vmatpush1.msra.mxu0 0.0
  %5070 = vmatprep.subr.mxu0 0.0
  %5071 = vmatpush1.msra.mxu0 %v5035
  %5072 = vmatprep.subr.mxu0 0.0
  %5073 = vmatpush2.msra.mxu0 0.0
  %5074 = vmatprep.subr.mxu0 0.0
  %5075 = vmatpush2.msra.mxu0 0.0
  %5076 = vmatprep.subr.mxu0 0.0
  %5077 = vmatpush2.msra.mxu0 0.0
  %5078 = vmatprep.subr.mxu0 0.0
  %5079 = vmatpush2.msra.mxu0 0.0
  %5080 = vmatprep.subr.mxu0 0.0
  %5081 = vmatpush2.msra.mxu0 0.0
  %5082 = vmatprep.subr.mxu0 0.0
  %5083 = vmatpush2.msra.mxu0 0.0
  %5084 = vmatprep.subr.mxu0 0.0
  %5085 = vmatpush2.msra.mxu0 0.0
  %5086 = vmatprep.subr.mxu0 0.0
  %5087 = vmatpush2.msra.mxu0 0.0
  %5088 = vmatprep.subr.mxu0 0.0
  %5089 = vmatpush2.msra.mxu0 0.0
  %5090 = vmatprep.subr.mxu0 0.0
  %5091 = vmatpush2.msra.mxu0 0.0
  %5092 = vmatprep.subr.mxu0 0.0
  %5093 = vmatpush2.msra.mxu0 0.0
  %5094 = vmatprep.subr.mxu0 0.0
  %5095 = vmatpush2.msra.mxu0 0.0
  %5096 = vmatprep.subr.mxu0 0.0
  %5097 = vmatpush2.msra.mxu0 0.0
  %5098 = vmatprep.subr.mxu0 0.0
  %5099 = vmatpush2.msra.mxu0 0.0
  %5100 = vmatprep.subr.mxu0 0.0
  %5101 = vmatpush2.msra.mxu0 0.0
  %5102 = vmatprep.subr.mxu0 0.0
  %5103 = vmatpush2.msra.mxu0 0.0
  %5104 = vmatprep.mubr.f32.mxu0 0.0
  %5105 = vmatmul.mubr.f32.gmra.mxu0 %v5038
  %v5106 = vpop.f32.mrf.mxu0
  %v5107 = vadd.f32 0.0, %v5106
  %v5108 = vpop.f32.mrf.mxu0
  %5109 = vdwg.mxu0
  %5110 = vrot.lane.b32.xlu0 %v3861, 40
  %v5111 = vpop.permute.xlu0 %5110
  %v5114 = vsel %vm252, %v5033, 0
  %5116 = vmatprep.subr.mxu0 0.0
  %5117 = vmatpush1.msra.mxu0 0.0
  %5118 = vmatprep.subr.mxu0 0.0
  %5119 = vmatpush1.msra.mxu0 0.0
  %5120 = vmatprep.subr.mxu0 0.0
  %5121 = vmatpush1.msra.mxu0 0.0
  %5122 = vmatprep.subr.mxu0 0.0
  %5123 = vmatpush1.msra.mxu0 0.0
  %5124 = vmatprep.subr.mxu0 0.0
  %5125 = vmatpush1.msra.mxu0 0.0
  %5126 = vmatprep.subr.mxu0 0.0
  %5127 = vmatpush1.msra.mxu0 0.0
  %5128 = vmatprep.subr.mxu0 0.0
  %5129 = vmatpush1.msra.mxu0 0.0
  %5130 = vmatprep.subr.mxu0 0.0
  %5131 = vmatpush1.msra.mxu0 0.0
  %5132 = vmatprep.subr.mxu0 0.0
  %5133 = vmatpush1.msra.mxu0 0.0
  %5134 = vmatprep.subr.mxu0 0.0
  %5135 = vmatpush1.msra.mxu0 0.0
  %5136 = vmatprep.subr.mxu0 0.0
  %5137 = vmatpush1.msra.mxu0 0.0
  %5138 = vmatprep.subr.mxu0 0.0
  %5139 = vmatpush1.msra.mxu0 0.0
  %5140 = vmatprep.subr.mxu0 0.0
  %5141 = vmatpush1.msra.mxu0 0.0
  %5142 = vmatprep.subr.mxu0 0.0
  %5143 = vmatpush1.msra.mxu0 0.0
  %5144 = vmatprep.subr.mxu0 0.0
  %5145 = vmatpush1.msra.mxu0 0.0
  %5146 = vmatprep.subr.mxu0 0.0
  %5147 = vmatpush1.msra.mxu0 %v5111
  %5148 = vmatprep.subr.mxu0 0.0
  %5149 = vmatpush2.msra.mxu0 0.0
  %5150 = vmatprep.subr.mxu0 0.0
  %5151 = vmatpush2.msra.mxu0 0.0
  %5152 = vmatprep.subr.mxu0 0.0
  %5153 = vmatpush2.msra.mxu0 0.0
  %5154 = vmatprep.subr.mxu0 0.0
  %5155 = vmatpush2.msra.mxu0 0.0
  %5156 = vmatprep.subr.mxu0 0.0
  %5157 = vmatpush2.msra.mxu0 0.0
  %5158 = vmatprep.subr.mxu0 0.0
  %5159 = vmatpush2.msra.mxu0 0.0
  %5160 = vmatprep.subr.mxu0 0.0
  %5161 = vmatpush2.msra.mxu0 0.0
  %5162 = vmatprep.subr.mxu0 0.0
  %5163 = vmatpush2.msra.mxu0 0.0
  %5164 = vmatprep.subr.mxu0 0.0
  %5165 = vmatpush2.msra.mxu0 0.0
  %5166 = vmatprep.subr.mxu0 0.0
  %5167 = vmatpush2.msra.mxu0 0.0
  %5168 = vmatprep.subr.mxu0 0.0
  %5169 = vmatpush2.msra.mxu0 0.0
  %5170 = vmatprep.subr.mxu0 0.0
  %5171 = vmatpush2.msra.mxu0 0.0
  %5172 = vmatprep.subr.mxu0 0.0
  %5173 = vmatpush2.msra.mxu0 0.0
  %5174 = vmatprep.subr.mxu0 0.0
  %5175 = vmatpush2.msra.mxu0 0.0
  %5176 = vmatprep.subr.mxu0 0.0
  %5177 = vmatpush2.msra.mxu0 0.0
  %5178 = vmatprep.subr.mxu0 0.0
  %5179 = vmatpush2.msra.mxu0 0.0
  %5180 = vmatprep.mubr.f32.mxu0 0.0
  %5181 = vmatmul.mubr.f32.gmra.mxu0 %v5114
  %v5182 = vpop.f32.mrf.mxu0
  %v5183 = vadd.f32 0.0, %v5182
  %v5184 = vpop.f32.mrf.mxu0
  %5185 = vdwg.mxu0
  %5188 = vrot.lane.b32.xlu0 %v4447, 8
  %v5189 = vpop.permute.xlu0 %5188
  %5190 = vrot.lane.b32.xlu0 %v4523, 8
  %v5191 = vpop.permute.xlu0 %5190
  %5196 = vrot.lane.b32.xlu0 %v4777, 16
  %v5197 = vpop.permute.xlu0 %5196
  %5198 = vrot.lane.b32.xlu0 %v4853, 16
  %v5199 = vpop.permute.xlu0 %5198
  %5204 = vrot.lane.b32.xlu0 %v5107, 24
  %v5205 = vpop.permute.xlu0 %5204
  %5206 = vrot.lane.b32.xlu0 %v5183, 24
  %v5207 = vpop.permute.xlu0 %5206
  %v5210 = vsel %vm252, %v4117, %v5189
  %v5211 = vsel %vm252, %v4193, %v5191
  %v5212 = vsel %vm1596, %v5210, %v5197
  %v5213 = vsel %vm1596, %v5211, %v5199
  %v5214 = vsel %vm1599, %v5212, %v5205
  %v5215 = vsel %vm1599, %v5213, %v5207
  %s5216 = scalar_lea.vmem %s5, 16
  %v5217 = vld [vmem:[%s5216] sm:$0xf]
  %v5218 = vld [vmem:[%s5216 + $0x4] sm:$0xf]
  %v5219 = vld [vmem:[%s5216 + $0x8] sm:$0xf]
  %v5220 = vld [vmem:[%s5216 + $0xc] sm:$0xf]
  %s5221 = scalar_lea.vmem %s6, 1
  %v5222 = vld [vmem:[%s5221] sm:$0x1]
  %v5223 = vpack.c.bf16 %v5215, %v5214
  %v5225 = vlaneseq
  %v5226 = vshrl.u32 %v5225, 7
  %v5227 = vsub.s32 0, %v5226
  %v5228 = vrot.slane %v5222, %v5227
  %v5234 = vunpack.c.l.b16 %v5217
  %v5235 = vunpack.c.l.b16 %v5218
  %v5236 = vunpack.c.l.b16 %v5219
  %v5237 = vunpack.c.l.b16 %v5220
  %v5238 = vpack.c.b16 %v5235, %v5234
  %v5239 = vpack.c.b16 %v5237, %v5236
  %v5243 = vsel %vm202, %v5223, 0
  %5245 = vmatprep.subr.bf16.mxu0 0
  %5246 = vmatpush1.bf16.msra.mxu0 0
  %5247 = vmatprep.subr.bf16.mxu0 0
  %5248 = vmatpush1.bf16.msra.mxu0 0
  %5249 = vmatprep.subr.bf16.mxu0 0
  %5250 = vmatpush1.bf16.msra.mxu0 0
  %5251 = vmatprep.subr.bf16.mxu0 0
  %5252 = vmatpush1.bf16.msra.mxu0 0
  %5253 = vmatprep.subr.bf16.mxu0 0
  %5254 = vmatpush1.bf16.msra.mxu0 0
  %5255 = vmatprep.subr.bf16.mxu0 0
  %5256 = vmatpush1.bf16.msra.mxu0 0
  %5257 = vmatprep.subr.bf16.mxu0 0
  %5258 = vmatpush1.bf16.msra.mxu0 %v5239
  %5259 = vmatprep.subr.bf16.mxu0 0
  %5260 = vmatpush1.bf16.msra.mxu0 %v5238
  %5261 = vmatprep.subr.bf16.mxu0 0
  %5262 = vmatpush2.bf16.msra.mxu0 0
  %5263 = vmatprep.subr.bf16.mxu0 0
  %5264 = vmatpush2.bf16.msra.mxu0 0
  %5265 = vmatprep.subr.bf16.mxu0 0
  %5266 = vmatpush2.bf16.msra.mxu0 0
  %5267 = vmatprep.subr.bf16.mxu0 0
  %5268 = vmatpush2.bf16.msra.mxu0 0
  %5269 = vmatprep.subr.bf16.mxu0 0
  %5270 = vmatpush2.bf16.msra.mxu0 0
  %5271 = vmatprep.subr.bf16.mxu0 0
  %5272 = vmatpush2.bf16.msra.mxu0 0
  %5273 = vmatprep.subr.bf16.mxu0 0
  %5274 = vmatpush2.bf16.msra.mxu0 0
  %5275 = vmatprep.subr.bf16.mxu0 0
  %5276 = vmatpush2.bf16.msra.mxu0 0
  %5277 = vmatprep.mubr.bf16.mxu0 0
  %5278 = vmatmul.mubr.bf16.gmra.mxu0 %v5243
  %v5279 = vpop.f32.mrf.mxu0
  %v5280 = vadd.f32 %v5228, %v5279
  %v5281 = vpop.f32.mrf.mxu0
  %v5282 = vpop.f32.mrf.mxu0
  %v5283 = vadd.f32 %v5228, %v5282
  %v5284 = vpop.f32.mrf.mxu0
  %5285 = vdwg.mxu0
  %v5286 = vadd.f32 %v3792, %v5280
  %v5287 = vadd.f32 %v3793, %v5283
  %s5288 = scalar_lea.vmem %s11, 1
  %v5289 = vld [vmem:[%s5288] sm:$0x1]
  %s5290 = scalar_lea.vmem %s12, 1
  %v5291 = vld [vmem:[%s5290] sm:$0x1]
  %v5292 = vsel %vm202, %v5286, 0.0
  %5293 = vadd.xlane.f32.xlu0 %v5292
  %v5294 = vpop.xlane.xlu0 %5293
  %v5295 = vsel %vm202, %v5287, 0.0
  %5296 = vadd.xlane.f32.xlu0 %v5295
  %v5297 = vpop.xlane.xlu0 %5296
  %v5298 = vmul.f32 %v5294, %v1680
  %v5299 = vmul.f32 %v5297, %v1680
  %v5300 = vsub.f32 %v5286, %v5298
  %v5301 = vsub.f32 %v5287, %v5299
  %v5302 = vmul.f32 %v5300, %v5300
  %v5303 = vmul.f32 %v5301, %v5301
  %v5304 = vsel %vm202, %v5302, 0.0
  %5305 = vadd.xlane.f32.xlu0 %v5304
  %v5306 = vpop.xlane.xlu0 %5305
  %v5307 = vsel %vm202, %v5303, 0.0
  %5308 = vadd.xlane.f32.xlu0 %v5307
  %v5309 = vpop.xlane.xlu0 %5308
  %v5310 = vmul.f32 %v5306, %v1680
  %v5311 = vmul.f32 %v5309, %v1680
  %v5312 = vadd.f32 %v5310, 1e-05
  %v5313 = vadd.f32 %v5311, 1e-05
  %v5314 = vrsqrt.pop %v5312
  %v5315 = vrsqrt.pop %v5313
  %v5316 = vmul.f32 %v5300, %v5314
  %v5317 = vmul.f32 %v5301, %v5315
  %v5319 = vlaneseq
  %v5320 = vshrl.u32 %v5319, 7
  %v5321 = vsub.s32 0, %v5320
  %v5322 = vrot.slane %v5289, %v5321
  %v5324 = vmul.f32 %v5316, %v5322
  %v5325 = vmul.f32 %v5317, %v5322
  %v5327 = vlaneseq
  %v5328 = vshrl.u32 %v5327, 7
  %v5329 = vsub.s32 0, %v5328
  %v5330 = vrot.slane %v5291, %v5329
  %v5332 = vadd.f32 %v5324, %v5330
  %v5333 = vadd.f32 %v5325, %v5330
  %s5334 = scalar_lea.vmem %s7, 256
  %v5335 = vld [vmem:[%s5334] sm:$0xff]
  %v5336 = vld [vmem:[%s5334 + $0x8] sm:$0xff]
  %v5337 = vld [vmem:[%s5334 + $0x10] sm:$0xff]
  %v5338 = vld [vmem:[%s5334 + $0x18] sm:$0xff]
  %v5339 = vld [vmem:[%s5334 + $0x20] sm:$0xff]
  %v5340 = vld [vmem:[%s5334 + $0x28] sm:$0xff]
  %v5341 = vld [vmem:[%s5334 + $0x30] sm:$0xff]
  %v5342 = vld [vmem:[%s5334 + $0x38] sm:$0xff]
  %v5343 = vld [vmem:[%s5334 + $0x40] sm:$0xff]
  %v5344 = vld [vmem:[%s5334 + $0x48] sm:$0xff]
  %v5345 = vld [vmem:[%s5334 + $0x50] sm:$0xff]
  %v5346 = vld [vmem:[%s5334 + $0x58] sm:$0xff]
  %v5347 = vld [vmem:[%s5334 + $0x60] sm:$0xff]
  %v5348 = vld [vmem:[%s5334 + $0x68] sm:$0xff]
  %v5349 = vld [vmem:[%s5334 + $0x70] sm:$0xff]
  %v5350 = vld [vmem:[%s5334 + $0x78] sm:$0xff]
  %v5351 = vld [vmem:[%s5334 + $0x80] sm:$0xff]
  %v5352 = vld [vmem:[%s5334 + $0x88] sm:$0xff]
  %v5353 = vld [vmem:[%s5334 + $0x90] sm:$0xff]
  %v5354 = vld [vmem:[%s5334 + $0x98] sm:$0xff]
  %v5355 = vld [vmem:[%s5334 + $0xa0] sm:$0xff]
  %v5356 = vld [vmem:[%s5334 + $0xa8] sm:$0xff]
  %v5357 = vld [vmem:[%s5334 + $0xb0] sm:$0xff]
  %v5358 = vld [vmem:[%s5334 + $0xb8] sm:$0xff]
  %v5359 = vld [vmem:[%s5334 + $0xc0] sm:$0xff]
  %v5360 = vld [vmem:[%s5334 + $0xc8] sm:$0xff]
  %v5361 = vld [vmem:[%s5334 + $0xd0] sm:$0xff]
  %v5362 = vld [vmem:[%s5334 + $0xd8] sm:$0xff]
  %v5363 = vld [vmem:[%s5334 + $0xe0] sm:$0xff]
  %v5364 = vld [vmem:[%s5334 + $0xe8] sm:$0xff]
  %v5365 = vld [vmem:[%s5334 + $0xf0] sm:$0xff]
  %v5366 = vld [vmem:[%s5334 + $0xf8] sm:$0xff]
  %s5367 = scalar_lea.vmem %s8, 16
  %v5368 = vld [vmem:[%s5367] sm:$0xff]
  %v5369 = vld [vmem:[%s5367 + $0x8] sm:$0xff]
  %v5370 = vpack.c.bf16 %v5333, %v5332
  %v5373 = vlaneseq
  %v5374 = vshrl.u32 %v5373, 7
  %v5375 = vsub.s32 0, %v5374
  %v5376 = vrot.slane %v5368, %v5375
  %v5377 = vlaneseq
  %v5378 = vshrl.u32 %v5377, 7
  %v5379 = vsub.s32 1, %v5378
  %v5380 = vrot.slane %v5368, %v5379
  %v5381 = vlaneseq
  %v5382 = vshrl.u32 %v5381, 7
  %v5383 = vsub.s32 2, %v5382
  %v5384 = vrot.slane %v5368, %v5383
  %v5385 = vlaneseq
  %v5386 = vshrl.u32 %v5385, 7
  %v5387 = vsub.s32 3, %v5386
  %v5388 = vrot.slane %v5368, %v5387
  %v5389 = vlaneseq
  %v5390 = vshrl.u32 %v5389, 7
  %v5391 = vsub.s32 4, %v5390
  %v5392 = vrot.slane %v5368, %v5391
  %v5393 = vlaneseq
  %v5394 = vshrl.u32 %v5393, 7
  %v5395 = vsub.s32 5, %v5394
  %v5396 = vrot.slane %v5368, %v5395
  %v5397 = vlaneseq
  %v5398 = vshrl.u32 %v5397, 7
  %v5399 = vsub.s32 6, %v5398
  %v5400 = vrot.slane %v5368, %v5399
  %v5401 = vlaneseq
  %v5402 = vshrl.u32 %v5401, 7
  %v5403 = vsub.s32 7, %v5402
  %v5404 = vrot.slane %v5368, %v5403
  %v5405 = vlaneseq
  %v5406 = vshrl.u32 %v5405, 7
  %v5407 = vsub.s32 0, %v5406
  %v5408 = vrot.slane %v5369, %v5407
  %v5409 = vlaneseq
  %v5410 = vshrl.u32 %v5409, 7
  %v5411 = vsub.s32 1, %v5410
  %v5412 = vrot.slane %v5369, %v5411
  %v5413 = vlaneseq
  %v5414 = vshrl.u32 %v5413, 7
  %v5415 = vsub.s32 2, %v5414
  %v5416 = vrot.slane %v5369, %v5415
  %v5417 = vlaneseq
  %v5418 = vshrl.u32 %v5417, 7
  %v5419 = vsub.s32 3, %v5418
  %v5420 = vrot.slane %v5369, %v5419
  %v5421 = vlaneseq
  %v5422 = vshrl.u32 %v5421, 7
  %v5423 = vsub.s32 4, %v5422
  %v5424 = vrot.slane %v5369, %v5423
  %v5425 = vlaneseq
  %v5426 = vshrl.u32 %v5425, 7
  %v5427 = vsub.s32 5, %v5426
  %v5428 = vrot.slane %v5369, %v5427
  %v5429 = vlaneseq
  %v5430 = vshrl.u32 %v5429, 7
  %v5431 = vsub.s32 6, %v5430
  %v5432 = vrot.slane %v5369, %v5431
  %v5433 = vlaneseq
  %v5434 = vshrl.u32 %v5433, 7
  %v5435 = vsub.s32 7, %v5434
  %v5436 = vrot.slane %v5369, %v5435
  %v5485 = vunpack.c.l.b16 %v5335
  %v5486 = vunpack.c.h.b16 %v5335
  %v5487 = vunpack.c.l.b16 %v5336
  %v5488 = vunpack.c.h.b16 %v5336
  %v5489 = vunpack.c.l.b16 %v5337
  %v5490 = vunpack.c.h.b16 %v5337
  %v5491 = vunpack.c.l.b16 %v5338
  %v5492 = vunpack.c.h.b16 %v5338
  %v5493 = vunpack.c.l.b16 %v5339
  %v5494 = vunpack.c.h.b16 %v5339
  %v5495 = vunpack.c.l.b16 %v5340
  %v5496 = vunpack.c.h.b16 %v5340
  %v5497 = vunpack.c.l.b16 %v5341
  %v5498 = vunpack.c.h.b16 %v5341
  %v5499 = vunpack.c.l.b16 %v5342
  %v5500 = vunpack.c.h.b16 %v5342
  %v5501 = vunpack.c.l.b16 %v5343
  %v5502 = vunpack.c.h.b16 %v5343
  %v5503 = vunpack.c.l.b16 %v5344
  %v5504 = vunpack.c.h.b16 %v5344
  %v5505 = vunpack.c.l.b16 %v5345
  %v5506 = vunpack.c.h.b16 %v5345
  %v5507 = vunpack.c.l.b16 %v5346
  %v5508 = vunpack.c.h.b16 %v5346
  %v5509 = vunpack.c.l.b16 %v5347
  %v5510 = vunpack.c.h.b16 %v5347
  %v5511 = vunpack.c.l.b16 %v5348
  %v5512 = vunpack.c.h.b16 %v5348
  %v5513 = vunpack.c.l.b16 %v5349
  %v5514 = vunpack.c.h.b16 %v5349
  %v5515 = vunpack.c.l.b16 %v5350
  %v5516 = vunpack.c.h.b16 %v5350
  %v5517 = vunpack.c.l.b16 %v5351
  %v5518 = vunpack.c.h.b16 %v5351
  %v5519 = vunpack.c.l.b16 %v5352
  %v5520 = vunpack.c.h.b16 %v5352
  %v5521 = vunpack.c.l.b16 %v5353
  %v5522 = vunpack.c.h.b16 %v5353
  %v5523 = vunpack.c.l.b16 %v5354
  %v5524 = vunpack.c.h.b16 %v5354
  %v5525 = vunpack.c.l.b16 %v5355
  %v5526 = vunpack.c.h.b16 %v5355
  %v5527 = vunpack.c.l.b16 %v5356
  %v5528 = vunpack.c.h.b16 %v5356
  %v5529 = vunpack.c.l.b16 %v5357
  %v5530 = vunpack.c.h.b16 %v5357
  %v5531 = vunpack.c.l.b16 %v5358
  %v5532 = vunpack.c.h.b16 %v5358
  %v5533 = vunpack.c.l.b16 %v5359
  %v5534 = vunpack.c.h.b16 %v5359
  %v5535 = vunpack.c.l.b16 %v5360
  %v5536 = vunpack.c.h.b16 %v5360
  %v5537 = vunpack.c.l.b16 %v5361
  %v5538 = vunpack.c.h.b16 %v5361
  %v5539 = vunpack.c.l.b16 %v5362
  %v5540 = vunpack.c.h.b16 %v5362
  %v5541 = vunpack.c.l.b16 %v5363
  %v5542 = vunpack.c.h.b16 %v5363
  %v5543 = vunpack.c.l.b16 %v5364
  %v5544 = vunpack.c.h.b16 %v5364
  %v5545 = vunpack.c.l.b16 %v5365
  %v5546 = vunpack.c.h.b16 %v5365
  %v5547 = vunpack.c.l.b16 %v5366
  %v5548 = vunpack.c.h.b16 %v5366
  %v5549 = vpack.c.b16 %v5501, %v5485
  %v5550 = vpack.c.b16 %v5502, %v5486
  %v5551 = vpack.c.b16 %v5503, %v5487
  %v5552 = vpack.c.b16 %v5504, %v5488
  %v5553 = vpack.c.b16 %v5505, %v5489
  %v5554 = vpack.c.b16 %v5506, %v5490
  %v5555 = vpack.c.b16 %v5507, %v5491
  %v5556 = vpack.c.b16 %v5508, %v5492
  %v5557 = vpack.c.b16 %v5509, %v5493
  %v5558 = vpack.c.b16 %v5510, %v5494
  %v5559 = vpack.c.b16 %v5511, %v5495
  %v5560 = vpack.c.b16 %v5512, %v5496
  %v5561 = vpack.c.b16 %v5513, %v5497
  %v5562 = vpack.c.b16 %v5514, %v5498
  %v5563 = vpack.c.b16 %v5515, %v5499
  %v5564 = vpack.c.b16 %v5516, %v5500
  %v5565 = vpack.c.b16 %v5533, %v5517
  %v5566 = vpack.c.b16 %v5534, %v5518
  %v5567 = vpack.c.b16 %v5535, %v5519
  %v5568 = vpack.c.b16 %v5536, %v5520
  %v5569 = vpack.c.b16 %v5537, %v5521
  %v5570 = vpack.c.b16 %v5538, %v5522
  %v5571 = vpack.c.b16 %v5539, %v5523
  %v5572 = vpack.c.b16 %v5540, %v5524
  %v5573 = vpack.c.b16 %v5541, %v5525
  %v5574 = vpack.c.b16 %v5542, %v5526
  %v5575 = vpack.c.b16 %v5543, %v5527
  %v5576 = vpack.c.b16 %v5544, %v5528
  %v5577 = vpack.c.b16 %v5545, %v5529
  %v5578 = vpack.c.b16 %v5546, %v5530
  %v5579 = vpack.c.b16 %v5547, %v5531
  %v5580 = vpack.c.b16 %v5548, %v5532
  %v5614 = vsel %vm202, %v5370, 0
  %5616 = vmatprep.subr.bf16.mxu0 0
  %5617 = vmatpush1.bf16.msra.mxu0 0
  %5618 = vmatprep.subr.bf16.mxu0 0
  %5619 = vmatpush1.bf16.msra.mxu0 0
  %5620 = vmatprep.subr.bf16.mxu0 0
  %5621 = vmatpush1.bf16.msra.mxu0 0
  %5622 = vmatprep.subr.bf16.mxu0 0
  %5623 = vmatpush1.bf16.msra.mxu0 0
  %5624 = vmatprep.subr.bf16.mxu0 0
  %5625 = vmatpush1.bf16.msra.mxu0 0
  %5626 = vmatprep.subr.bf16.mxu0 0
  %5627 = vmatpush1.bf16.msra.mxu0 0
  %5628 = vmatprep.subr.bf16.mxu0 %v5566
  %5629 = vmatpush1.bf16.msra.mxu0 %v5565
  %5630 = vmatprep.subr.bf16.mxu0 %v5550
  %5631 = vmatpush1.bf16.msra.mxu0 %v5549
  %5632 = vmatprep.subr.bf16.mxu0 0
  %5633 = vmatpush2.bf16.msra.mxu0 0
  %5634 = vmatprep.subr.bf16.mxu0 0
  %5635 = vmatpush2.bf16.msra.mxu0 0
  %5636 = vmatprep.subr.bf16.mxu0 0
  %5637 = vmatpush2.bf16.msra.mxu0 0
  %5638 = vmatprep.subr.bf16.mxu0 0
  %5639 = vmatpush2.bf16.msra.mxu0 0
  %5640 = vmatprep.subr.bf16.mxu0 0
  %5641 = vmatpush2.bf16.msra.mxu0 0
  %5642 = vmatprep.subr.bf16.mxu0 0
  %5643 = vmatpush2.bf16.msra.mxu0 0
  %5644 = vmatprep.subr.bf16.mxu0 0
  %5645 = vmatpush2.bf16.msra.mxu0 0
  %5646 = vmatprep.subr.bf16.mxu0 0
  %5647 = vmatpush2.bf16.msra.mxu0 0
  %5648 = vmatprep.mubr.bf16.mxu0 0
  %5649 = vmatmul.mubr.bf16.gmra.mxu0 %v5614
  %v5650 = vpop.f32.mrf.mxu0
  %v5651 = vadd.f32 %v5376, %v5650
  %v5652 = vpop.f32.mrf.mxu0
  %v5653 = vadd.f32 %v5380, %v5652
  %v5654 = vpop.f32.mrf.mxu0
  %v5655 = vadd.f32 %v5376, %v5654
  %v5656 = vpop.f32.mrf.mxu0
  %v5657 = vadd.f32 %v5380, %v5656
  %5658 = vdwg.mxu0
  %5659 = vmatprep.subr.bf16.mxu0 0
  %5660 = vmatpush1.bf16.msra.mxu0 0
  %5661 = vmatprep.subr.bf16.mxu0 0
  %5662 = vmatpush1.bf16.msra.mxu0 0
  %5663 = vmatprep.subr.bf16.mxu0 0
  %5664 = vmatpush1.bf16.msra.mxu0 0
  %5665 = vmatprep.subr.bf16.mxu0 0
  %5666 = vmatpush1.bf16.msra.mxu0 0
  %5667 = vmatprep.subr.bf16.mxu0 0
  %5668 = vmatpush1.bf16.msra.mxu0 0
  %5669 = vmatprep.subr.bf16.mxu0 0
  %5670 = vmatpush1.bf16.msra.mxu0 0
  %5671 = vmatprep.subr.bf16.mxu0 %v5568
  %5672 = vmatpush1.bf16.msra.mxu0 %v5567
  %5673 = vmatprep.subr.bf16.mxu0 %v5552
  %5674 = vmatpush1.bf16.msra.mxu0 %v5551
  %5675 = vmatprep.subr.bf16.mxu0 0
  %5676 = vmatpush2.bf16.msra.mxu0 0
  %5677 = vmatprep.subr.bf16.mxu0 0
  %5678 = vmatpush2.bf16.msra.mxu0 0
  %5679 = vmatprep.subr.bf16.mxu0 0
  %5680 = vmatpush2.bf16.msra.mxu0 0
  %5681 = vmatprep.subr.bf16.mxu0 0
  %5682 = vmatpush2.bf16.msra.mxu0 0
  %5683 = vmatprep.subr.bf16.mxu0 0
  %5684 = vmatpush2.bf16.msra.mxu0 0
  %5685 = vmatprep.subr.bf16.mxu0 0
  %5686 = vmatpush2.bf16.msra.mxu0 0
  %5687 = vmatprep.subr.bf16.mxu0 0
  %5688 = vmatpush2.bf16.msra.mxu0 0
  %5689 = vmatprep.subr.bf16.mxu0 0
  %5690 = vmatpush2.bf16.msra.mxu0 0
  %5691 = vmatprep.mubr.bf16.mxu0 0
  %5692 = vmatmul.mubr.bf16.gmra.mxu0 %v5614
  %v5693 = vpop.f32.mrf.mxu0
  %v5694 = vadd.f32 %v5384, %v5693
  %v5695 = vpop.f32.mrf.mxu0
  %v5696 = vadd.f32 %v5388, %v5695
  %v5697 = vpop.f32.mrf.mxu0
  %v5698 = vadd.f32 %v5384, %v5697
  %v5699 = vpop.f32.mrf.mxu0
  %v5700 = vadd.f32 %v5388, %v5699
  %5701 = vdwg.mxu0
  %5702 = vmatprep.subr.bf16.mxu0 0
  %5703 = vmatpush1.bf16.msra.mxu0 0
  %5704 = vmatprep.subr.bf16.mxu0 0
  %5705 = vmatpush1.bf16.msra.mxu0 0
  %5706 = vmatprep.subr.bf16.mxu0 0
  %5707 = vmatpush1.bf16.msra.mxu0 0
  %5708 = vmatprep.subr.bf16.mxu0 0
  %5709 = vmatpush1.bf16.msra.mxu0 0
  %5710 = vmatprep.subr.bf16.mxu0 0
  %5711 = vmatpush1.bf16.msra.mxu0 0
  %5712 = vmatprep.subr.bf16.mxu0 0
  %5713 = vmatpush1.bf16.msra.mxu0 0
  %5714 = vmatprep.subr.bf16.mxu0 %v5570
  %5715 = vmatpush1.bf16.msra.mxu0 %v5569
  %5716 = vmatprep.subr.bf16.mxu0 %v5554
  %5717 = vmatpush1.bf16.msra.mxu0 %v5553
  %5718 = vmatprep.subr.bf16.mxu0 0
  %5719 = vmatpush2.bf16.msra.mxu0 0
  %5720 = vmatprep.subr.bf16.mxu0 0
  %5721 = vmatpush2.bf16.msra.mxu0 0
  %5722 = vmatprep.subr.bf16.mxu0 0
  %5723 = vmatpush2.bf16.msra.mxu0 0
  %5724 = vmatprep.subr.bf16.mxu0 0
  %5725 = vmatpush2.bf16.msra.mxu0 0
  %5726 = vmatprep.subr.bf16.mxu0 0
  %5727 = vmatpush2.bf16.msra.mxu0 0
  %5728 = vmatprep.subr.bf16.mxu0 0
  %5729 = vmatpush2.bf16.msra.mxu0 0
  %5730 = vmatprep.subr.bf16.mxu0 0
  %5731 = vmatpush2.bf16.msra.mxu0 0
  %5732 = vmatprep.subr.bf16.mxu0 0
  %5733 = vmatpush2.bf16.msra.mxu0 0
  %5734 = vmatprep.mubr.bf16.mxu0 0
  %5735 = vmatmul.mubr.bf16.gmra.mxu0 %v5614
  %v5736 = vpop.f32.mrf.mxu0
  %v5737 = vadd.f32 %v5392, %v5736
  %v5738 = vpop.f32.mrf.mxu0
  %v5739 = vadd.f32 %v5396, %v5738
  %v5740 = vpop.f32.mrf.mxu0
  %v5741 = vadd.f32 %v5392, %v5740
  %v5742 = vpop.f32.mrf.mxu0
  %v5743 = vadd.f32 %v5396, %v5742
  %5744 = vdwg.mxu0
  %5745 = vmatprep.subr.bf16.mxu0 0
  %5746 = vmatpush1.bf16.msra.mxu0 0
  %5747 = vmatprep.subr.bf16.mxu0 0
  %5748 = vmatpush1.bf16.msra.mxu0 0
  %5749 = vmatprep.subr.bf16.mxu0 0
  %5750 = vmatpush1.bf16.msra.mxu0 0
  %5751 = vmatprep.subr.bf16.mxu0 0
  %5752 = vmatpush1.bf16.msra.mxu0 0
  %5753 = vmatprep.subr.bf16.mxu0 0
  %5754 = vmatpush1.bf16.msra.mxu0 0
  %5755 = vmatprep.subr.bf16.mxu0 0
  %5756 = vmatpush1.bf16.msra.mxu0 0
  %5757 = vmatprep.subr.bf16.mxu0 %v5572
  %5758 = vmatpush1.bf16.msra.mxu0 %v5571
  %5759 = vmatprep.subr.bf16.mxu0 %v5556
  %5760 = vmatpush1.bf16.msra.mxu0 %v5555
  %5761 = vmatprep.subr.bf16.mxu0 0
  %5762 = vmatpush2.bf16.msra.mxu0 0
  %5763 = vmatprep.subr.bf16.mxu0 0
  %5764 = vmatpush2.bf16.msra.mxu0 0
  %5765 = vmatprep.subr.bf16.mxu0 0
  %5766 = vmatpush2.bf16.msra.mxu0 0
  %5767 = vmatprep.subr.bf16.mxu0 0
  %5768 = vmatpush2.bf16.msra.mxu0 0
  %5769 = vmatprep.subr.bf16.mxu0 0
  %5770 = vmatpush2.bf16.msra.mxu0 0
  %5771 = vmatprep.subr.bf16.mxu0 0
  %5772 = vmatpush2.bf16.msra.mxu0 0
  %5773 = vmatprep.subr.bf16.mxu0 0
  %5774 = vmatpush2.bf16.msra.mxu0 0
  %5775 = vmatprep.subr.bf16.mxu0 0
  %5776 = vmatpush2.bf16.msra.mxu0 0
  %5777 = vmatprep.mubr.bf16.mxu0 0
  %5778 = vmatmul.mubr.bf16.gmra.mxu0 %v5614
  %v5779 = vpop.f32.mrf.mxu0
  %v5780 = vadd.f32 %v5400, %v5779
  %v5781 = vpop.f32.mrf.mxu0
  %v5782 = vadd.f32 %v5404, %v5781
  %v5783 = vpop.f32.mrf.mxu0
  %v5784 = vadd.f32 %v5400, %v5783
  %v5785 = vpop.f32.mrf.mxu0
  %v5786 = vadd.f32 %v5404, %v5785
  %5787 = vdwg.mxu0
  %5788 = vmatprep.subr.bf16.mxu0 0
  %5789 = vmatpush1.bf16.msra.mxu0 0
  %5790 = vmatprep.subr.bf16.mxu0 0
  %5791 = vmatpush1.bf16.msra.mxu0 0
  %5792 = vmatprep.subr.bf16.mxu0 0
  %5793 = vmatpush1.bf16.msra.mxu0 0
  %5794 = vmatprep.subr.bf16.mxu0 0
  %5795 = vmatpush1.bf16.msra.mxu0 0
  %5796 = vmatprep.subr.bf16.mxu0 0
  %5797 = vmatpush1.bf16.msra.mxu0 0
  %5798 = vmatprep.subr.bf16.mxu0 0
  %5799 = vmatpush1.bf16.msra.mxu0 0
  %5800 = vmatprep.subr.bf16.mxu0 %v5574
  %5801 = vmatpush1.bf16.msra.mxu0 %v5573
  %5802 = vmatprep.subr.bf16.mxu0 %v5558
  %5803 = vmatpush1.bf16.msra.mxu0 %v5557
  %5804 = vmatprep.subr.bf16.mxu0 0
  %5805 = vmatpush2.bf16.msra.mxu0 0
  %5806 = vmatprep.subr.bf16.mxu0 0
  %5807 = vmatpush2.bf16.msra.mxu0 0
  %5808 = vmatprep.subr.bf16.mxu0 0
  %5809 = vmatpush2.bf16.msra.mxu0 0
  %5810 = vmatprep.subr.bf16.mxu0 0
  %5811 = vmatpush2.bf16.msra.mxu0 0
  %5812 = vmatprep.subr.bf16.mxu0 0
  %5813 = vmatpush2.bf16.msra.mxu0 0
  %5814 = vmatprep.subr.bf16.mxu0 0
  %5815 = vmatpush2.bf16.msra.mxu0 0
  %5816 = vmatprep.subr.bf16.mxu0 0
  %5817 = vmatpush2.bf16.msra.mxu0 0
  %5818 = vmatprep.subr.bf16.mxu0 0
  %5819 = vmatpush2.bf16.msra.mxu0 0
  %5820 = vmatprep.mubr.bf16.mxu0 0
  %5821 = vmatmul.mubr.bf16.gmra.mxu0 %v5614
  %v5822 = vpop.f32.mrf.mxu0
  %v5823 = vadd.f32 %v5408, %v5822
  %v5824 = vpop.f32.mrf.mxu0
  %v5825 = vadd.f32 %v5412, %v5824
  %v5826 = vpop.f32.mrf.mxu0
  %v5827 = vadd.f32 %v5408, %v5826
  %v5828 = vpop.f32.mrf.mxu0
  %v5829 = vadd.f32 %v5412, %v5828
  %5830 = vdwg.mxu0
  %5831 = vmatprep.subr.bf16.mxu0 0
  %5832 = vmatpush1.bf16.msra.mxu0 0
  %5833 = vmatprep.subr.bf16.mxu0 0
  %5834 = vmatpush1.bf16.msra.mxu0 0
  %5835 = vmatprep.subr.bf16.mxu0 0
  %5836 = vmatpush1.bf16.msra.mxu0 0
  %5837 = vmatprep.subr.bf16.mxu0 0
  %5838 = vmatpush1.bf16.msra.mxu0 0
  %5839 = vmatprep.subr.bf16.mxu0 0
  %5840 = vmatpush1.bf16.msra.mxu0 0
  %5841 = vmatprep.subr.bf16.mxu0 0
  %5842 = vmatpush1.bf16.msra.mxu0 0
  %5843 = vmatprep.subr.bf16.mxu0 %v5576
  %5844 = vmatpush1.bf16.msra.mxu0 %v5575
  %5845 = vmatprep.subr.bf16.mxu0 %v5560
  %5846 = vmatpush1.bf16.msra.mxu0 %v5559
  %5847 = vmatprep.subr.bf16.mxu0 0
  %5848 = vmatpush2.bf16.msra.mxu0 0
  %5849 = vmatprep.subr.bf16.mxu0 0
  %5850 = vmatpush2.bf16.msra.mxu0 0
  %5851 = vmatprep.subr.bf16.mxu0 0
  %5852 = vmatpush2.bf16.msra.mxu0 0
  %5853 = vmatprep.subr.bf16.mxu0 0
  %5854 = vmatpush2.bf16.msra.mxu0 0
  %5855 = vmatprep.subr.bf16.mxu0 0
  %5856 = vmatpush2.bf16.msra.mxu0 0
  %5857 = vmatprep.subr.bf16.mxu0 0
  %5858 = vmatpush2.bf16.msra.mxu0 0
  %5859 = vmatprep.subr.bf16.mxu0 0
  %5860 = vmatpush2.bf16.msra.mxu0 0
  %5861 = vmatprep.subr.bf16.mxu0 0
  %5862 = vmatpush2.bf16.msra.mxu0 0
  %5863 = vmatprep.mubr.bf16.mxu0 0
  %5864 = vmatmul.mubr.bf16.gmra.mxu0 %v5614
  %v5865 = vpop.f32.mrf.mxu0
  %v5866 = vadd.f32 %v5416, %v5865
  %v5867 = vpop.f32.mrf.mxu0
  %v5868 = vadd.f32 %v5420, %v5867
  %v5869 = vpop.f32.mrf.mxu0
  %v5870 = vadd.f32 %v5416, %v5869
  %v5871 = vpop.f32.mrf.mxu0
  %v5872 = vadd.f32 %v5420, %v5871
  %5873 = vdwg.mxu0
  %5874 = vmatprep.subr.bf16.mxu0 0
  %5875 = vmatpush1.bf16.msra.mxu0 0
  %5876 = vmatprep.subr.bf16.mxu0 0
  %5877 = vmatpush1.bf16.msra.mxu0 0
  %5878 = vmatprep.subr.bf16.mxu0 0
  %5879 = vmatpush1.bf16.msra.mxu0 0
  %5880 = vmatprep.subr.bf16.mxu0 0
  %5881 = vmatpush1.bf16.msra.mxu0 0
  %5882 = vmatprep.subr.bf16.mxu0 0
  %5883 = vmatpush1.bf16.msra.mxu0 0
  %5884 = vmatprep.subr.bf16.mxu0 0
  %5885 = vmatpush1.bf16.msra.mxu0 0
  %5886 = vmatprep.subr.bf16.mxu0 %v5578
  %5887 = vmatpush1.bf16.msra.mxu0 %v5577
  %5888 = vmatprep.subr.bf16.mxu0 %v5562
  %5889 = vmatpush1.bf16.msra.mxu0 %v5561
  %5890 = vmatprep.subr.bf16.mxu0 0
  %5891 = vmatpush2.bf16.msra.mxu0 0
  %5892 = vmatprep.subr.bf16.mxu0 0
  %5893 = vmatpush2.bf16.msra.mxu0 0
  %5894 = vmatprep.subr.bf16.mxu0 0
  %5895 = vmatpush2.bf16.msra.mxu0 0
  %5896 = vmatprep.subr.bf16.mxu0 0
  %5897 = vmatpush2.bf16.msra.mxu0 0
  %5898 = vmatprep.subr.bf16.mxu0 0
  %5899 = vmatpush2.bf16.msra.mxu0 0
  %5900 = vmatprep.subr.bf16.mxu0 0
  %5901 = vmatpush2.bf16.msra.mxu0 0
  %5902 = vmatprep.subr.bf16.mxu0 0
  %5903 = vmatpush2.bf16.msra.mxu0 0
  %5904 = vmatprep.subr.bf16.mxu0 0
  %5905 = vmatpush2.bf16.msra.mxu0 0
  %5906 = vmatprep.mubr.bf16.mxu0 0
  %5907 = vmatmul.mubr.bf16.gmra.mxu0 %v5614
  %v5908 = vpop.f32.mrf.mxu0
  %v5909 = vadd.f32 %v5424, %v5908
  %v5910 = vpop.f32.mrf.mxu0
  %v5911 = vadd.f32 %v5428, %v5910
  %v5912 = vpop.f32.mrf.mxu0
  %v5913 = vadd.f32 %v5424, %v5912
  %v5914 = vpop.f32.mrf.mxu0
  %v5915 = vadd.f32 %v5428, %v5914
  %5916 = vdwg.mxu0
  %5917 = vmatprep.subr.bf16.mxu0 0
  %5918 = vmatpush1.bf16.msra.mxu0 0
  %5919 = vmatprep.subr.bf16.mxu0 0
  %5920 = vmatpush1.bf16.msra.mxu0 0
  %5921 = vmatprep.subr.bf16.mxu0 0
  %5922 = vmatpush1.bf16.msra.mxu0 0
  %5923 = vmatprep.subr.bf16.mxu0 0
  %5924 = vmatpush1.bf16.msra.mxu0 0
  %5925 = vmatprep.subr.bf16.mxu0 0
  %5926 = vmatpush1.bf16.msra.mxu0 0
  %5927 = vmatprep.subr.bf16.mxu0 0
  %5928 = vmatpush1.bf16.msra.mxu0 0
  %5929 = vmatprep.subr.bf16.mxu0 %v5580
  %5930 = vmatpush1.bf16.msra.mxu0 %v5579
  %5931 = vmatprep.subr.bf16.mxu0 %v5564
  %5932 = vmatpush1.bf16.msra.mxu0 %v5563
  %5933 = vmatprep.subr.bf16.mxu0 0
  %5934 = vmatpush2.bf16.msra.mxu0 0
  %5935 = vmatprep.subr.bf16.mxu0 0
  %5936 = vmatpush2.bf16.msra.mxu0 0
  %5937 = vmatprep.subr.bf16.mxu0 0
  %5938 = vmatpush2.bf16.msra.mxu0 0
  %5939 = vmatprep.subr.bf16.mxu0 0
  %5940 = vmatpush2.bf16.msra.mxu0 0
  %5941 = vmatprep.subr.bf16.mxu0 0
  %5942 = vmatpush2.bf16.msra.mxu0 0
  %5943 = vmatprep.subr.bf16.mxu0 0
  %5944 = vmatpush2.bf16.msra.mxu0 0
  %5945 = vmatprep.subr.bf16.mxu0 0
  %5946 = vmatpush2.bf16.msra.mxu0 0
  %5947 = vmatprep.subr.bf16.mxu0 0
  %5948 = vmatpush2.bf16.msra.mxu0 0
  %5949 = vmatprep.mubr.bf16.mxu0 0
  %5950 = vmatmul.mubr.bf16.gmra.mxu0 %v5614
  %v5951 = vpop.f32.mrf.mxu0
  %v5952 = vadd.f32 %v5432, %v5951
  %v5953 = vpop.f32.mrf.mxu0
  %v5954 = vadd.f32 %v5436, %v5953
  %v5955 = vpop.f32.mrf.mxu0
  %v5956 = vadd.f32 %v5432, %v5955
  %v5957 = vpop.f32.mrf.mxu0
  %v5958 = vadd.f32 %v5436, %v5957
  %5959 = vdwg.mxu0
  %v5960 = vmax.f32 %v5651, 0.0
  %v5961 = vmax.f32 %v5653, 0.0
  %v5962 = vmax.f32 %v5694, 0.0
  %v5963 = vmax.f32 %v5696, 0.0
  %v5964 = vmax.f32 %v5737, 0.0
  %v5965 = vmax.f32 %v5739, 0.0
  %v5966 = vmax.f32 %v5780, 0.0
  %v5967 = vmax.f32 %v5782, 0.0
  %v5968 = vmax.f32 %v5823, 0.0
  %v5969 = vmax.f32 %v5825, 0.0
  %v5970 = vmax.f32 %v5866, 0.0
  %v5971 = vmax.f32 %v5868, 0.0
  %v5972 = vmax.f32 %v5909, 0.0
  %v5973 = vmax.f32 %v5911, 0.0
  %v5974 = vmax.f32 %v5952, 0.0
  %v5975 = vmax.f32 %v5954, 0.0
  %v5976 = vmax.f32 %v5655, 0.0
  %v5977 = vmax.f32 %v5657, 0.0
  %v5978 = vmax.f32 %v5698, 0.0
  %v5979 = vmax.f32 %v5700, 0.0
  %v5980 = vmax.f32 %v5741, 0.0
  %v5981 = vmax.f32 %v5743, 0.0
  %v5982 = vmax.f32 %v5784, 0.0
  %v5983 = vmax.f32 %v5786, 0.0
  %v5984 = vmax.f32 %v5827, 0.0
  %v5985 = vmax.f32 %v5829, 0.0
  %v5986 = vmax.f32 %v5870, 0.0
  %v5987 = vmax.f32 %v5872, 0.0
  %v5988 = vmax.f32 %v5913, 0.0
  %v5989 = vmax.f32 %v5915, 0.0
  %v5990 = vmax.f32 %v5956, 0.0
  %v5991 = vmax.f32 %v5958, 0.0
  %s5992 = scalar_lea.vmem %s9, 1024
  %v5993 = vld [vmem:[%s5992] sm:$0xf]
  %v5994 = vld [vmem:[%s5992 + $0x4] sm:$0xf]
  %v5995 = vld [vmem:[%s5992 + $0x8] sm:$0xf]
  %v5996 = vld [vmem:[%s5992 + $0xc] sm:$0xf]
  %v5997 = vld [vmem:[%s5992 + $0x10] sm:$0xf]
  %v5998 = vld [vmem:[%s5992 + $0x14] sm:$0xf]
  %v5999 = vld [vmem:[%s5992 + $0x18] sm:$0xf]
  %v6000 = vld [vmem:[%s5992 + $0x1c] sm:$0xf]
  %v6001 = vld [vmem:[%s5992 + $0x20] sm:$0xf]
  %v6002 = vld [vmem:[%s5992 + $0x24] sm:$0xf]
  %v6003 = vld [vmem:[%s5992 + $0x28] sm:$0xf]
  %v6004 = vld [vmem:[%s5992 + $0x2c] sm:$0xf]
  %v6005 = vld [vmem:[%s5992 + $0x30] sm:$0xf]
  %v6006 = vld [vmem:[%s5992 + $0x34] sm:$0xf]
  %v6007 = vld [vmem:[%s5992 + $0x38] sm:$0xf]
  %v6008 = vld [vmem:[%s5992 + $0x3c] sm:$0xf]
  %v6009 = vld [vmem:[%s5992 + $0x40] sm:$0xf]
  %v6010 = vld [vmem:[%s5992 + $0x44] sm:$0xf]
  %v6011 = vld [vmem:[%s5992 + $0x48] sm:$0xf]
  %v6012 = vld [vmem:[%s5992 + $0x4c] sm:$0xf]
  %v6013 = vld [vmem:[%s5992 + $0x50] sm:$0xf]
  %v6014 = vld [vmem:[%s5992 + $0x54] sm:$0xf]
  %v6015 = vld [vmem:[%s5992 + $0x58] sm:$0xf]
  %v6016 = vld [vmem:[%s5992 + $0x5c] sm:$0xf]
  %v6017 = vld [vmem:[%s5992 + $0x60] sm:$0xf]
  %v6018 = vld [vmem:[%s5992 + $0x64] sm:$0xf]
  %v6019 = vld [vmem:[%s5992 + $0x68] sm:$0xf]
  %v6020 = vld [vmem:[%s5992 + $0x6c] sm:$0xf]
  %v6021 = vld [vmem:[%s5992 + $0x70] sm:$0xf]
  %v6022 = vld [vmem:[%s5992 + $0x74] sm:$0xf]
  %v6023 = vld [vmem:[%s5992 + $0x78] sm:$0xf]
  %v6024 = vld [vmem:[%s5992 + $0x7c] sm:$0xf]
  %v6025 = vld [vmem:[%s5992 + $0x80] sm:$0xf]
  %v6026 = vld [vmem:[%s5992 + $0x84] sm:$0xf]
  %v6027 = vld [vmem:[%s5992 + $0x88] sm:$0xf]
  %v6028 = vld [vmem:[%s5992 + $0x8c] sm:$0xf]
  %v6029 = vld [vmem:[%s5992 + $0x90] sm:$0xf]
  %v6030 = vld [vmem:[%s5992 + $0x94] sm:$0xf]
  %v6031 = vld [vmem:[%s5992 + $0x98] sm:$0xf]
  %v6032 = vld [vmem:[%s5992 + $0x9c] sm:$0xf]
  %v6033 = vld [vmem:[%s5992 + $0xa0] sm:$0xf]
  %v6034 = vld [vmem:[%s5992 + $0xa4] sm:$0xf]
  %v6035 = vld [vmem:[%s5992 + $0xa8] sm:$0xf]
  %v6036 = vld [vmem:[%s5992 + $0xac] sm:$0xf]
  %v6037 = vld [vmem:[%s5992 + $0xb0] sm:$0xf]
  %v6038 = vld [vmem:[%s5992 + $0xb4] sm:$0xf]
  %v6039 = vld [vmem:[%s5992 + $0xb8] sm:$0xf]
  %v6040 = vld [vmem:[%s5992 + $0xbc] sm:$0xf]
  %v6041 = vld [vmem:[%s5992 + $0xc0] sm:$0xf]
  %v6042 = vld [vmem:[%s5992 + $0xc4] sm:$0xf]
  %v6043 = vld [vmem:[%s5992 + $0xc8] sm:$0xf]
  %v6044 = vld [vmem:[%s5992 + $0xcc] sm:$0xf]
  %v6045 = vld [vmem:[%s5992 + $0xd0] sm:$0xf]
  %v6046 = vld [vmem:[%s5992 + $0xd4] sm:$0xf]
  %v6047 = vld [vmem:[%s5992 + $0xd8] sm:$0xf]
  %v6048 = vld [vmem:[%s5992 + $0xdc] sm:$0xf]
  %v6049 = vld [vmem:[%s5992 + $0xe0] sm:$0xf]
  %v6050 = vld [vmem:[%s5992 + $0xe4] sm:$0xf]
  %v6051 = vld [vmem:[%s5992 + $0xe8] sm:$0xf]
  %v6052 = vld [vmem:[%s5992 + $0xec] sm:$0xf]
  %v6053 = vld [vmem:[%s5992 + $0xf0] sm:$0xf]
  %v6054 = vld [vmem:[%s5992 + $0xf4] sm:$0xf]
  %v6055 = vld [vmem:[%s5992 + $0xf8] sm:$0xf]
  %v6056 = vld [vmem:[%s5992 + $0xfc] sm:$0xf]
  %v6057 = vld [vmem:[%s5992 + $0x100] sm:$0xf]
  %v6058 = vld [vmem:[%s5992 + $0x104] sm:$0xf]
  %v6059 = vld [vmem:[%s5992 + $0x108] sm:$0xf]
  %v6060 = vld [vmem:[%s5992 + $0x10c] sm:$0xf]
  %v6061 = vld [vmem:[%s5992 + $0x110] sm:$0xf]
  %v6062 = vld [vmem:[%s5992 + $0x114] sm:$0xf]
  %v6063 = vld [vmem:[%s5992 + $0x118] sm:$0xf]
  %v6064 = vld [vmem:[%s5992 + $0x11c] sm:$0xf]
  %v6065 = vld [vmem:[%s5992 + $0x120] sm:$0xf]
  %v6066 = vld [vmem:[%s5992 + $0x124] sm:$0xf]
  %v6067 = vld [vmem:[%s5992 + $0x128] sm:$0xf]
  %v6068 = vld [vmem:[%s5992 + $0x12c] sm:$0xf]
  %v6069 = vld [vmem:[%s5992 + $0x130] sm:$0xf]
  %v6070 = vld [vmem:[%s5992 + $0x134] sm:$0xf]
  %v6071 = vld [vmem:[%s5992 + $0x138] sm:$0xf]
  %v6072 = vld [vmem:[%s5992 + $0x13c] sm:$0xf]
  %v6073 = vld [vmem:[%s5992 + $0x140] sm:$0xf]
  %v6074 = vld [vmem:[%s5992 + $0x144] sm:$0xf]
  %v6075 = vld [vmem:[%s5992 + $0x148] sm:$0xf]
  %v6076 = vld [vmem:[%s5992 + $0x14c] sm:$0xf]
  %v6077 = vld [vmem:[%s5992 + $0x150] sm:$0xf]
  %v6078 = vld [vmem:[%s5992 + $0x154] sm:$0xf]
  %v6079 = vld [vmem:[%s5992 + $0x158] sm:$0xf]
  %v6080 = vld [vmem:[%s5992 + $0x15c] sm:$0xf]
  %v6081 = vld [vmem:[%s5992 + $0x160] sm:$0xf]
  %v6082 = vld [vmem:[%s5992 + $0x164] sm:$0xf]
  %v6083 = vld [vmem:[%s5992 + $0x168] sm:$0xf]
  %v6084 = vld [vmem:[%s5992 + $0x16c] sm:$0xf]
  %v6085 = vld [vmem:[%s5992 + $0x170] sm:$0xf]
  %v6086 = vld [vmem:[%s5992 + $0x174] sm:$0xf]
  %v6087 = vld [vmem:[%s5992 + $0x178] sm:$0xf]
  %v6088 = vld [vmem:[%s5992 + $0x17c] sm:$0xf]
  %v6089 = vld [vmem:[%s5992 + $0x180] sm:$0xf]
  %v6090 = vld [vmem:[%s5992 + $0x184] sm:$0xf]
  %v6091 = vld [vmem:[%s5992 + $0x188] sm:$0xf]
  %v6092 = vld [vmem:[%s5992 + $0x18c] sm:$0xf]
  %v6093 = vld [vmem:[%s5992 + $0x190] sm:$0xf]
  %v6094 = vld [vmem:[%s5992 + $0x194] sm:$0xf]
  %v6095 = vld [vmem:[%s5992 + $0x198] sm:$0xf]
  %v6096 = vld [vmem:[%s5992 + $0x19c] sm:$0xf]
  %v6097 = vld [vmem:[%s5992 + $0x1a0] sm:$0xf]
  %v6098 = vld [vmem:[%s5992 + $0x1a4] sm:$0xf]
  %v6099 = vld [vmem:[%s5992 + $0x1a8] sm:$0xf]
  %v6100 = vld [vmem:[%s5992 + $0x1ac] sm:$0xf]
  %v6101 = vld [vmem:[%s5992 + $0x1b0] sm:$0xf]
  %v6102 = vld [vmem:[%s5992 + $0x1b4] sm:$0xf]
  %v6103 = vld [vmem:[%s5992 + $0x1b8] sm:$0xf]
  %v6104 = vld [vmem:[%s5992 + $0x1bc] sm:$0xf]
  %v6105 = vld [vmem:[%s5992 + $0x1c0] sm:$0xf]
  %v6106 = vld [vmem:[%s5992 + $0x1c4] sm:$0xf]
  %v6107 = vld [vmem:[%s5992 + $0x1c8] sm:$0xf]
  %v6108 = vld [vmem:[%s5992 + $0x1cc] sm:$0xf]
  %v6109 = vld [vmem:[%s5992 + $0x1d0] sm:$0xf]
  %v6110 = vld [vmem:[%s5992 + $0x1d4] sm:$0xf]
  %v6111 = vld [vmem:[%s5992 + $0x1d8] sm:$0xf]
  %v6112 = vld [vmem:[%s5992 + $0x1dc] sm:$0xf]
  %v6113 = vld [vmem:[%s5992 + $0x1e0] sm:$0xf]
  %v6114 = vld [vmem:[%s5992 + $0x1e4] sm:$0xf]
  %v6115 = vld [vmem:[%s5992 + $0x1e8] sm:$0xf]
  %v6116 = vld [vmem:[%s5992 + $0x1ec] sm:$0xf]
  %v6117 = vld [vmem:[%s5992 + $0x1f0] sm:$0xf]
  %v6118 = vld [vmem:[%s5992 + $0x1f4] sm:$0xf]
  %v6119 = vld [vmem:[%s5992 + $0x1f8] sm:$0xf]
  %v6120 = vld [vmem:[%s5992 + $0x1fc] sm:$0xf]
  %v6121 = vld [vmem:[%s5992 + $0x200] sm:$0xf]
  %v6122 = vld [vmem:[%s5992 + $0x204] sm:$0xf]
  %v6123 = vld [vmem:[%s5992 + $0x208] sm:$0xf]
  %v6124 = vld [vmem:[%s5992 + $0x20c] sm:$0xf]
  %v6125 = vld [vmem:[%s5992 + $0x210] sm:$0xf]
  %v6126 = vld [vmem:[%s5992 + $0x214] sm:$0xf]
  %v6127 = vld [vmem:[%s5992 + $0x218] sm:$0xf]
  %v6128 = vld [vmem:[%s5992 + $0x21c] sm:$0xf]
  %v6129 = vld [vmem:[%s5992 + $0x220] sm:$0xf]
  %v6130 = vld [vmem:[%s5992 + $0x224] sm:$0xf]
  %v6131 = vld [vmem:[%s5992 + $0x228] sm:$0xf]
  %v6132 = vld [vmem:[%s5992 + $0x22c] sm:$0xf]
  %v6133 = vld [vmem:[%s5992 + $0x230] sm:$0xf]
  %v6134 = vld [vmem:[%s5992 + $0x234] sm:$0xf]
  %v6135 = vld [vmem:[%s5992 + $0x238] sm:$0xf]
  %v6136 = vld [vmem:[%s5992 + $0x23c] sm:$0xf]
  %v6137 = vld [vmem:[%s5992 + $0x240] sm:$0xf]
  %v6138 = vld [vmem:[%s5992 + $0x244] sm:$0xf]
  %v6139 = vld [vmem:[%s5992 + $0x248] sm:$0xf]
  %v6140 = vld [vmem:[%s5992 + $0x24c] sm:$0xf]
  %v6141 = vld [vmem:[%s5992 + $0x250] sm:$0xf]
  %v6142 = vld [vmem:[%s5992 + $0x254] sm:$0xf]
  %v6143 = vld [vmem:[%s5992 + $0x258] sm:$0xf]
  %v6144 = vld [vmem:[%s5992 + $0x25c] sm:$0xf]
  %v6145 = vld [vmem:[%s5992 + $0x260] sm:$0xf]
  %v6146 = vld [vmem:[%s5992 + $0x264] sm:$0xf]
  %v6147 = vld [vmem:[%s5992 + $0x268] sm:$0xf]
  %v6148 = vld [vmem:[%s5992 + $0x26c] sm:$0xf]
  %v6149 = vld [vmem:[%s5992 + $0x270] sm:$0xf]
  %v6150 = vld [vmem:[%s5992 + $0x274] sm:$0xf]
  %v6151 = vld [vmem:[%s5992 + $0x278] sm:$0xf]
  %v6152 = vld [vmem:[%s5992 + $0x27c] sm:$0xf]
  %v6153 = vld [vmem:[%s5992 + $0x280] sm:$0xf]
  %v6154 = vld [vmem:[%s5992 + $0x284] sm:$0xf]
  %v6155 = vld [vmem:[%s5992 + $0x288] sm:$0xf]
  %v6156 = vld [vmem:[%s5992 + $0x28c] sm:$0xf]
  %v6157 = vld [vmem:[%s5992 + $0x290] sm:$0xf]
  %v6158 = vld [vmem:[%s5992 + $0x294] sm:$0xf]
  %v6159 = vld [vmem:[%s5992 + $0x298] sm:$0xf]
  %v6160 = vld [vmem:[%s5992 + $0x29c] sm:$0xf]
  %v6161 = vld [vmem:[%s5992 + $0x2a0] sm:$0xf]
  %v6162 = vld [vmem:[%s5992 + $0x2a4] sm:$0xf]
  %v6163 = vld [vmem:[%s5992 + $0x2a8] sm:$0xf]
  %v6164 = vld [vmem:[%s5992 + $0x2ac] sm:$0xf]
  %v6165 = vld [vmem:[%s5992 + $0x2b0] sm:$0xf]
  %v6166 = vld [vmem:[%s5992 + $0x2b4] sm:$0xf]
  %v6167 = vld [vmem:[%s5992 + $0x2b8] sm:$0xf]
  %v6168 = vld [vmem:[%s5992 + $0x2bc] sm:$0xf]
  %v6169 = vld [vmem:[%s5992 + $0x2c0] sm:$0xf]
  %v6170 = vld [vmem:[%s5992 + $0x2c4] sm:$0xf]
  %v6171 = vld [vmem:[%s5992 + $0x2c8] sm:$0xf]
  %v6172 = vld [vmem:[%s5992 + $0x2cc] sm:$0xf]
  %v6173 = vld [vmem:[%s5992 + $0x2d0] sm:$0xf]
  %v6174 = vld [vmem:[%s5992 + $0x2d4] sm:$0xf]
  %v6175 = vld [vmem:[%s5992 + $0x2d8] sm:$0xf]
  %v6176 = vld [vmem:[%s5992 + $0x2dc] sm:$0xf]
  %v6177 = vld [vmem:[%s5992 + $0x2e0] sm:$0xf]
  %v6178 = vld [vmem:[%s5992 + $0x2e4] sm:$0xf]
  %v6179 = vld [vmem:[%s5992 + $0x2e8] sm:$0xf]
  %v6180 = vld [vmem:[%s5992 + $0x2ec] sm:$0xf]
  %v6181 = vld [vmem:[%s5992 + $0x2f0] sm:$0xf]
  %v6182 = vld [vmem:[%s5992 + $0x2f4] sm:$0xf]
  %v6183 = vld [vmem:[%s5992 + $0x2f8] sm:$0xf]
  %v6184 = vld [vmem:[%s5992 + $0x2fc] sm:$0xf]
  %v6185 = vld [vmem:[%s5992 + $0x300] sm:$0xf]
  %v6186 = vld [vmem:[%s5992 + $0x304] sm:$0xf]
  %v6187 = vld [vmem:[%s5992 + $0x308] sm:$0xf]
  %v6188 = vld [vmem:[%s5992 + $0x30c] sm:$0xf]
  %v6189 = vld [vmem:[%s5992 + $0x310] sm:$0xf]
  %v6190 = vld [vmem:[%s5992 + $0x314] sm:$0xf]
  %v6191 = vld [vmem:[%s5992 + $0x318] sm:$0xf]
  %v6192 = vld [vmem:[%s5992 + $0x31c] sm:$0xf]
  %v6193 = vld [vmem:[%s5992 + $0x320] sm:$0xf]
  %v6194 = vld [vmem:[%s5992 + $0x324] sm:$0xf]
  %v6195 = vld [vmem:[%s5992 + $0x328] sm:$0xf]
  %v6196 = vld [vmem:[%s5992 + $0x32c] sm:$0xf]
  %v6197 = vld [vmem:[%s5992 + $0x330] sm:$0xf]
  %v6198 = vld [vmem:[%s5992 + $0x334] sm:$0xf]
  %v6199 = vld [vmem:[%s5992 + $0x338] sm:$0xf]
  %v6200 = vld [vmem:[%s5992 + $0x33c] sm:$0xf]
  %v6201 = vld [vmem:[%s5992 + $0x340] sm:$0xf]
  %v6202 = vld [vmem:[%s5992 + $0x344] sm:$0xf]
  %v6203 = vld [vmem:[%s5992 + $0x348] sm:$0xf]
  %v6204 = vld [vmem:[%s5992 + $0x34c] sm:$0xf]
  %v6205 = vld [vmem:[%s5992 + $0x350] sm:$0xf]
  %v6206 = vld [vmem:[%s5992 + $0x354] sm:$0xf]
  %v6207 = vld [vmem:[%s5992 + $0x358] sm:$0xf]
  %v6208 = vld [vmem:[%s5992 + $0x35c] sm:$0xf]
  %v6209 = vld [vmem:[%s5992 + $0x360] sm:$0xf]
  %v6210 = vld [vmem:[%s5992 + $0x364] sm:$0xf]
  %v6211 = vld [vmem:[%s5992 + $0x368] sm:$0xf]
  %v6212 = vld [vmem:[%s5992 + $0x36c] sm:$0xf]
  %v6213 = vld [vmem:[%s5992 + $0x370] sm:$0xf]
  %v6214 = vld [vmem:[%s5992 + $0x374] sm:$0xf]
  %v6215 = vld [vmem:[%s5992 + $0x378] sm:$0xf]
  %v6216 = vld [vmem:[%s5992 + $0x37c] sm:$0xf]
  %v6217 = vld [vmem:[%s5992 + $0x380] sm:$0xf]
  %v6218 = vld [vmem:[%s5992 + $0x384] sm:$0xf]
  %v6219 = vld [vmem:[%s5992 + $0x388] sm:$0xf]
  %v6220 = vld [vmem:[%s5992 + $0x38c] sm:$0xf]
  %v6221 = vld [vmem:[%s5992 + $0x390] sm:$0xf]
  %v6222 = vld [vmem:[%s5992 + $0x394] sm:$0xf]
  %v6223 = vld [vmem:[%s5992 + $0x398] sm:$0xf]
  %v6224 = vld [vmem:[%s5992 + $0x39c] sm:$0xf]
  %v6225 = vld [vmem:[%s5992 + $0x3a0] sm:$0xf]
  %v6226 = vld [vmem:[%s5992 + $0x3a4] sm:$0xf]
  %v6227 = vld [vmem:[%s5992 + $0x3a8] sm:$0xf]
  %v6228 = vld [vmem:[%s5992 + $0x3ac] sm:$0xf]
  %v6229 = vld [vmem:[%s5992 + $0x3b0] sm:$0xf]
  %v6230 = vld [vmem:[%s5992 + $0x3b4] sm:$0xf]
  %v6231 = vld [vmem:[%s5992 + $0x3b8] sm:$0xf]
  %v6232 = vld [vmem:[%s5992 + $0x3bc] sm:$0xf]
  %v6233 = vld [vmem:[%s5992 + $0x3c0] sm:$0xf]
  %v6234 = vld [vmem:[%s5992 + $0x3c4] sm:$0xf]
  %v6235 = vld [vmem:[%s5992 + $0x3c8] sm:$0xf]
  %v6236 = vld [vmem:[%s5992 + $0x3cc] sm:$0xf]
  %v6237 = vld [vmem:[%s5992 + $0x3d0] sm:$0xf]
  %v6238 = vld [vmem:[%s5992 + $0x3d4] sm:$0xf]
  %v6239 = vld [vmem:[%s5992 + $0x3d8] sm:$0xf]
  %v6240 = vld [vmem:[%s5992 + $0x3dc] sm:$0xf]
  %v6241 = vld [vmem:[%s5992 + $0x3e0] sm:$0xf]
  %v6242 = vld [vmem:[%s5992 + $0x3e4] sm:$0xf]
  %v6243 = vld [vmem:[%s5992 + $0x3e8] sm:$0xf]
  %v6244 = vld [vmem:[%s5992 + $0x3ec] sm:$0xf]
  %v6245 = vld [vmem:[%s5992 + $0x3f0] sm:$0xf]
  %v6246 = vld [vmem:[%s5992 + $0x3f4] sm:$0xf]
  %v6247 = vld [vmem:[%s5992 + $0x3f8] sm:$0xf]
  %v6248 = vld [vmem:[%s5992 + $0x3fc] sm:$0xf]
  %s6249 = scalar_lea.vmem %s10, 1
  %v6250 = vld [vmem:[%s6249] sm:$0x1]
  %v6251 = vpack.c.bf16 %v5976, %v5960
  %v6252 = vpack.c.bf16 %v5977, %v5961
  %v6253 = vpack.c.bf16 %v5978, %v5962
  %v6254 = vpack.c.bf16 %v5979, %v5963
  %v6255 = vpack.c.bf16 %v5980, %v5964
  %v6256 = vpack.c.bf16 %v5981, %v5965
  %v6257 = vpack.c.bf16 %v5982, %v5966
  %v6258 = vpack.c.bf16 %v5983, %v5967
  %v6259 = vpack.c.bf16 %v5984, %v5968
  %v6260 = vpack.c.bf16 %v5985, %v5969
  %v6261 = vpack.c.bf16 %v5986, %v5970
  %v6262 = vpack.c.bf16 %v5987, %v5971
  %v6263 = vpack.c.bf16 %v5988, %v5972
  %v6264 = vpack.c.bf16 %v5989, %v5973
  %v6265 = vpack.c.bf16 %v5990, %v5974
  %v6266 = vpack.c.bf16 %v5991, %v5975
  %v6268 = vlaneseq
  %v6269 = vshrl.u32 %v6268, 7
  %v6270 = vsub.s32 0, %v6269
  %v6271 = vrot.slane %v6250, %v6270
  %v6529 = vunpack.c.l.b16 %v5993
  %v6530 = vunpack.c.l.b16 %v5994
  %v6531 = vunpack.c.l.b16 %v5995
  %v6532 = vunpack.c.l.b16 %v5996
  %v6533 = vunpack.c.l.b16 %v5997
  %v6534 = vunpack.c.l.b16 %v5998
  %v6535 = vunpack.c.l.b16 %v5999
  %v6536 = vunpack.c.l.b16 %v6000
  %v6537 = vunpack.c.l.b16 %v6001
  %v6538 = vunpack.c.l.b16 %v6002
  %v6539 = vunpack.c.l.b16 %v6003
  %v6540 = vunpack.c.l.b16 %v6004
  %v6541 = vunpack.c.l.b16 %v6005
  %v6542 = vunpack.c.l.b16 %v6006
  %v6543 = vunpack.c.l.b16 %v6007
  %v6544 = vunpack.c.l.b16 %v6008
  %v6545 = vunpack.c.l.b16 %v6009
  %v6546 = vunpack.c.l.b16 %v6010
  %v6547 = vunpack.c.l.b16 %v6011
  %v6548 = vunpack.c.l.b16 %v6012
  %v6549 = vunpack.c.l.b16 %v6013
  %v6550 = vunpack.c.l.b16 %v6014
  %v6551 = vunpack.c.l.b16 %v6015
  %v6552 = vunpack.c.l.b16 %v6016
  %v6553 = vunpack.c.l.b16 %v6017
  %v6554 = vunpack.c.l.b16 %v6018
  %v6555 = vunpack.c.l.b16 %v6019
  %v6556 = vunpack.c.l.b16 %v6020
  %v6557 = vunpack.c.l.b16 %v6021
  %v6558 = vunpack.c.l.b16 %v6022
  %v6559 = vunpack.c.l.b16 %v6023
  %v6560 = vunpack.c.l.b16 %v6024
  %v6561 = vunpack.c.l.b16 %v6025
  %v6562 = vunpack.c.l.b16 %v6026
  %v6563 = vunpack.c.l.b16 %v6027
  %v6564 = vunpack.c.l.b16 %v6028
  %v6565 = vunpack.c.l.b16 %v6029
  %v6566 = vunpack.c.l.b16 %v6030
  %v6567 = vunpack.c.l.b16 %v6031
  %v6568 = vunpack.c.l.b16 %v6032
  %v6569 = vunpack.c.l.b16 %v6033
  %v6570 = vunpack.c.l.b16 %v6034
  %v6571 = vunpack.c.l.b16 %v6035
  %v6572 = vunpack.c.l.b16 %v6036
  %v6573 = vunpack.c.l.b16 %v6037
  %v6574 = vunpack.c.l.b16 %v6038
  %v6575 = vunpack.c.l.b16 %v6039
  %v6576 = vunpack.c.l.b16 %v6040
  %v6577 = vunpack.c.l.b16 %v6041
  %v6578 = vunpack.c.l.b16 %v6042
  %v6579 = vunpack.c.l.b16 %v6043
  %v6580 = vunpack.c.l.b16 %v6044
  %v6581 = vunpack.c.l.b16 %v6045
  %v6582 = vunpack.c.l.b16 %v6046
  %v6583 = vunpack.c.l.b16 %v6047
  %v6584 = vunpack.c.l.b16 %v6048
  %v6585 = vunpack.c.l.b16 %v6049
  %v6586 = vunpack.c.l.b16 %v6050
  %v6587 = vunpack.c.l.b16 %v6051
  %v6588 = vunpack.c.l.b16 %v6052
  %v6589 = vunpack.c.l.b16 %v6053
  %v6590 = vunpack.c.l.b16 %v6054
  %v6591 = vunpack.c.l.b16 %v6055
  %v6592 = vunpack.c.l.b16 %v6056
  %v6593 = vunpack.c.l.b16 %v6057
  %v6594 = vunpack.c.l.b16 %v6058
  %v6595 = vunpack.c.l.b16 %v6059
  %v6596 = vunpack.c.l.b16 %v6060
  %v6597 = vunpack.c.l.b16 %v6061
  %v6598 = vunpack.c.l.b16 %v6062
  %v6599 = vunpack.c.l.b16 %v6063
  %v6600 = vunpack.c.l.b16 %v6064
  %v6601 = vunpack.c.l.b16 %v6065
  %v6602 = vunpack.c.l.b16 %v6066
  %v6603 = vunpack.c.l.b16 %v6067
  %v6604 = vunpack.c.l.b16 %v6068
  %v6605 = vunpack.c.l.b16 %v6069
  %v6606 = vunpack.c.l.b16 %v6070
  %v6607 = vunpack.c.l.b16 %v6071
  %v6608 = vunpack.c.l.b16 %v6072
  %v6609 = vunpack.c.l.b16 %v6073
  %v6610 = vunpack.c.l.b16 %v6074
  %v6611 = vunpack.c.l.b16 %v6075
  %v6612 = vunpack.c.l.b16 %v6076
  %v6613 = vunpack.c.l.b16 %v6077
  %v6614 = vunpack.c.l.b16 %v6078
  %v6615 = vunpack.c.l.b16 %v6079
  %v6616 = vunpack.c.l.b16 %v6080
  %v6617 = vunpack.c.l.b16 %v6081
  %v6618 = vunpack.c.l.b16 %v6082
  %v6619 = vunpack.c.l.b16 %v6083
  %v6620 = vunpack.c.l.b16 %v6084
  %v6621 = vunpack.c.l.b16 %v6085
  %v6622 = vunpack.c.l.b16 %v6086
  %v6623 = vunpack.c.l.b16 %v6087
  %v6624 = vunpack.c.l.b16 %v6088
  %v6625 = vunpack.c.l.b16 %v6089
  %v6626 = vunpack.c.l.b16 %v6090
  %v6627 = vunpack.c.l.b16 %v6091
  %v6628 = vunpack.c.l.b16 %v6092
  %v6629 = vunpack.c.l.b16 %v6093
  %v6630 = vunpack.c.l.b16 %v6094
  %v6631 = vunpack.c.l.b16 %v6095
  %v6632 = vunpack.c.l.b16 %v6096
  %v6633 = vunpack.c.l.b16 %v6097
  %v6634 = vunpack.c.l.b16 %v6098
  %v6635 = vunpack.c.l.b16 %v6099
  %v6636 = vunpack.c.l.b16 %v6100
  %v6637 = vunpack.c.l.b16 %v6101
  %v6638 = vunpack.c.l.b16 %v6102
  %v6639 = vunpack.c.l.b16 %v6103
  %v6640 = vunpack.c.l.b16 %v6104
  %v6641 = vunpack.c.l.b16 %v6105
  %v6642 = vunpack.c.l.b16 %v6106
  %v6643 = vunpack.c.l.b16 %v6107
  %v6644 = vunpack.c.l.b16 %v6108
  %v6645 = vunpack.c.l.b16 %v6109
  %v6646 = vunpack.c.l.b16 %v6110
  %v6647 = vunpack.c.l.b16 %v6111
  %v6648 = vunpack.c.l.b16 %v6112
  %v6649 = vunpack.c.l.b16 %v6113
  %v6650 = vunpack.c.l.b16 %v6114
  %v6651 = vunpack.c.l.b16 %v6115
  %v6652 = vunpack.c.l.b16 %v6116
  %v6653 = vunpack.c.l.b16 %v6117
  %v6654 = vunpack.c.l.b16 %v6118
  %v6655 = vunpack.c.l.b16 %v6119
  %v6656 = vunpack.c.l.b16 %v6120
  %v6657 = vunpack.c.l.b16 %v6121
  %v6658 = vunpack.c.l.b16 %v6122
  %v6659 = vunpack.c.l.b16 %v6123
  %v6660 = vunpack.c.l.b16 %v6124
  %v6661 = vunpack.c.l.b16 %v6125
  %v6662 = vunpack.c.l.b16 %v6126
  %v6663 = vunpack.c.l.b16 %v6127
  %v6664 = vunpack.c.l.b16 %v6128
  %v6665 = vunpack.c.l.b16 %v6129
  %v6666 = vunpack.c.l.b16 %v6130
  %v6667 = vunpack.c.l.b16 %v6131
  %v6668 = vunpack.c.l.b16 %v6132
  %v6669 = vunpack.c.l.b16 %v6133
  %v6670 = vunpack.c.l.b16 %v6134
  %v6671 = vunpack.c.l.b16 %v6135
  %v6672 = vunpack.c.l.b16 %v6136
  %v6673 = vunpack.c.l.b16 %v6137
  %v6674 = vunpack.c.l.b16 %v6138
  %v6675 = vunpack.c.l.b16 %v6139
  %v6676 = vunpack.c.l.b16 %v6140
  %v6677 = vunpack.c.l.b16 %v6141
  %v6678 = vunpack.c.l.b16 %v6142
  %v6679 = vunpack.c.l.b16 %v6143
  %v6680 = vunpack.c.l.b16 %v6144
  %v6681 = vunpack.c.l.b16 %v6145
  %v6682 = vunpack.c.l.b16 %v6146
  %v6683 = vunpack.c.l.b16 %v6147
  %v6684 = vunpack.c.l.b16 %v6148
  %v6685 = vunpack.c.l.b16 %v6149
  %v6686 = vunpack.c.l.b16 %v6150
  %v6687 = vunpack.c.l.b16 %v6151
  %v6688 = vunpack.c.l.b16 %v6152
  %v6689 = vunpack.c.l.b16 %v6153
  %v6690 = vunpack.c.l.b16 %v6154
  %v6691 = vunpack.c.l.b16 %v6155
  %v6692 = vunpack.c.l.b16 %v6156
  %v6693 = vunpack.c.l.b16 %v6157
  %v6694 = vunpack.c.l.b16 %v6158
  %v6695 = vunpack.c.l.b16 %v6159
  %v6696 = vunpack.c.l.b16 %v6160
  %v6697 = vunpack.c.l.b16 %v6161
  %v6698 = vunpack.c.l.b16 %v6162
  %v6699 = vunpack.c.l.b16 %v6163
  %v6700 = vunpack.c.l.b16 %v6164
  %v6701 = vunpack.c.l.b16 %v6165
  %v6702 = vunpack.c.l.b16 %v6166
  %v6703 = vunpack.c.l.b16 %v6167
  %v6704 = vunpack.c.l.b16 %v6168
  %v6705 = vunpack.c.l.b16 %v6169
  %v6706 = vunpack.c.l.b16 %v6170
  %v6707 = vunpack.c.l.b16 %v6171
  %v6708 = vunpack.c.l.b16 %v6172
  %v6709 = vunpack.c.l.b16 %v6173
  %v6710 = vunpack.c.l.b16 %v6174
  %v6711 = vunpack.c.l.b16 %v6175
  %v6712 = vunpack.c.l.b16 %v6176
  %v6713 = vunpack.c.l.b16 %v6177
  %v6714 = vunpack.c.l.b16 %v6178
  %v6715 = vunpack.c.l.b16 %v6179
  %v6716 = vunpack.c.l.b16 %v6180
  %v6717 = vunpack.c.l.b16 %v6181
  %v6718 = vunpack.c.l.b16 %v6182
  %v6719 = vunpack.c.l.b16 %v6183
  %v6720 = vunpack.c.l.b16 %v6184
  %v6721 = vunpack.c.l.b16 %v6185
  %v6722 = vunpack.c.l.b16 %v6186
  %v6723 = vunpack.c.l.b16 %v6187
  %v6724 = vunpack.c.l.b16 %v6188
  %v6725 = vunpack.c.l.b16 %v6189
  %v6726 = vunpack.c.l.b16 %v6190
  %v6727 = vunpack.c.l.b16 %v6191
  %v6728 = vunpack.c.l.b16 %v6192
  %v6729 = vunpack.c.l.b16 %v6193
  %v6730 = vunpack.c.l.b16 %v6194
  %v6731 = vunpack.c.l.b16 %v6195
  %v6732 = vunpack.c.l.b16 %v6196
  %v6733 = vunpack.c.l.b16 %v6197
  %v6734 = vunpack.c.l.b16 %v6198
  %v6735 = vunpack.c.l.b16 %v6199
  %v6736 = vunpack.c.l.b16 %v6200
  %v6737 = vunpack.c.l.b16 %v6201
  %v6738 = vunpack.c.l.b16 %v6202
  %v6739 = vunpack.c.l.b16 %v6203
  %v6740 = vunpack.c.l.b16 %v6204
  %v6741 = vunpack.c.l.b16 %v6205
  %v6742 = vunpack.c.l.b16 %v6206
  %v6743 = vunpack.c.l.b16 %v6207
  %v6744 = vunpack.c.l.b16 %v6208
  %v6745 = vunpack.c.l.b16 %v6209
  %v6746 = vunpack.c.l.b16 %v6210
  %v6747 = vunpack.c.l.b16 %v6211
  %v6748 = vunpack.c.l.b16 %v6212
  %v6749 = vunpack.c.l.b16 %v6213
  %v6750 = vunpack.c.l.b16 %v6214
  %v6751 = vunpack.c.l.b16 %v6215
  %v6752 = vunpack.c.l.b16 %v6216
  %v6753 = vunpack.c.l.b16 %v6217
  %v6754 = vunpack.c.l.b16 %v6218
  %v6755 = vunpack.c.l.b16 %v6219
  %v6756 = vunpack.c.l.b16 %v6220
  %v6757 = vunpack.c.l.b16 %v6221
  %v6758 = vunpack.c.l.b16 %v6222
  %v6759 = vunpack.c.l.b16 %v6223
  %v6760 = vunpack.c.l.b16 %v6224
  %v6761 = vunpack.c.l.b16 %v6225
  %v6762 = vunpack.c.l.b16 %v6226
  %v6763 = vunpack.c.l.b16 %v6227
  %v6764 = vunpack.c.l.b16 %v6228
  %v6765 = vunpack.c.l.b16 %v6229
  %v6766 = vunpack.c.l.b16 %v6230
  %v6767 = vunpack.c.l.b16 %v6231
  %v6768 = vunpack.c.l.b16 %v6232
  %v6769 = vunpack.c.l.b16 %v6233
  %v6770 = vunpack.c.l.b16 %v6234
  %v6771 = vunpack.c.l.b16 %v6235
  %v6772 = vunpack.c.l.b16 %v6236
  %v6773 = vunpack.c.l.b16 %v6237
  %v6774 = vunpack.c.l.b16 %v6238
  %v6775 = vunpack.c.l.b16 %v6239
  %v6776 = vunpack.c.l.b16 %v6240
  %v6777 = vunpack.c.l.b16 %v6241
  %v6778 = vunpack.c.l.b16 %v6242
  %v6779 = vunpack.c.l.b16 %v6243
  %v6780 = vunpack.c.l.b16 %v6244
  %v6781 = vunpack.c.l.b16 %v6245
  %v6782 = vunpack.c.l.b16 %v6246
  %v6783 = vunpack.c.l.b16 %v6247
  %v6784 = vunpack.c.l.b16 %v6248
  %v6785 = vpack.c.b16 %v6530, %v6529
  %v6786 = vpack.c.b16 %v6532, %v6531
  %v6787 = vpack.c.b16 %v6534, %v6533
  %v6788 = vpack.c.b16 %v6536, %v6535
  %v6789 = vpack.c.b16 %v6538, %v6537
  %v6790 = vpack.c.b16 %v6540, %v6539
  %v6791 = vpack.c.b16 %v6542, %v6541
  %v6792 = vpack.c.b16 %v6544, %v6543
  %v6793 = vpack.c.b16 %v6546, %v6545
  %v6794 = vpack.c.b16 %v6548, %v6547
  %v6795 = vpack.c.b16 %v6550, %v6549
  %v6796 = vpack.c.b16 %v6552, %v6551
  %v6797 = vpack.c.b16 %v6554, %v6553
  %v6798 = vpack.c.b16 %v6556, %v6555
  %v6799 = vpack.c.b16 %v6558, %v6557
  %v6800 = vpack.c.b16 %v6560, %v6559
  %v6801 = vpack.c.b16 %v6562, %v6561
  %v6802 = vpack.c.b16 %v6564, %v6563
  %v6803 = vpack.c.b16 %v6566, %v6565
  %v6804 = vpack.c.b16 %v6568, %v6567
  %v6805 = vpack.c.b16 %v6570, %v6569
  %v6806 = vpack.c.b16 %v6572, %v6571
  %v6807 = vpack.c.b16 %v6574, %v6573
  %v6808 = vpack.c.b16 %v6576, %v6575
  %v6809 = vpack.c.b16 %v6578, %v6577
  %v6810 = vpack.c.b16 %v6580, %v6579
  %v6811 = vpack.c.b16 %v6582, %v6581
  %v6812 = vpack.c.b16 %v6584, %v6583
  %v6813 = vpack.c.b16 %v6586, %v6585
  %v6814 = vpack.c.b16 %v6588, %v6587
  %v6815 = vpack.c.b16 %v6590, %v6589
  %v6816 = vpack.c.b16 %v6592, %v6591
  %v6817 = vpack.c.b16 %v6594, %v6593
  %v6818 = vpack.c.b16 %v6596, %v6595
  %v6819 = vpack.c.b16 %v6598, %v6597
  %v6820 = vpack.c.b16 %v6600, %v6599
  %v6821 = vpack.c.b16 %v6602, %v6601
  %v6822 = vpack.c.b16 %v6604, %v6603
  %v6823 = vpack.c.b16 %v6606, %v6605
  %v6824 = vpack.c.b16 %v6608, %v6607
  %v6825 = vpack.c.b16 %v6610, %v6609
  %v6826 = vpack.c.b16 %v6612, %v6611
  %v6827 = vpack.c.b16 %v6614, %v6613
  %v6828 = vpack.c.b16 %v6616, %v6615
  %v6829 = vpack.c.b16 %v6618, %v6617
  %v6830 = vpack.c.b16 %v6620, %v6619
  %v6831 = vpack.c.b16 %v6622, %v6621
  %v6832 = vpack.c.b16 %v6624, %v6623
  %v6833 = vpack.c.b16 %v6626, %v6625
  %v6834 = vpack.c.b16 %v6628, %v6627
  %v6835 = vpack.c.b16 %v6630, %v6629
  %v6836 = vpack.c.b16 %v6632, %v6631
  %v6837 = vpack.c.b16 %v6634, %v6633
  %v6838 = vpack.c.b16 %v6636, %v6635
  %v6839 = vpack.c.b16 %v6638, %v6637
  %v6840 = vpack.c.b16 %v6640, %v6639
  %v6841 = vpack.c.b16 %v6642, %v6641
  %v6842 = vpack.c.b16 %v6644, %v6643
  %v6843 = vpack.c.b16 %v6646, %v6645
  %v6844 = vpack.c.b16 %v6648, %v6647
  %v6845 = vpack.c.b16 %v6650, %v6649
  %v6846 = vpack.c.b16 %v6652, %v6651
  %v6847 = vpack.c.b16 %v6654, %v6653
  %v6848 = vpack.c.b16 %v6656, %v6655
  %v6849 = vpack.c.b16 %v6658, %v6657
  %v6850 = vpack.c.b16 %v6660, %v6659
  %v6851 = vpack.c.b16 %v6662, %v6661
  %v6852 = vpack.c.b16 %v6664, %v6663
  %v6853 = vpack.c.b16 %v6666, %v6665
  %v6854 = vpack.c.b16 %v6668, %v6667
  %v6855 = vpack.c.b16 %v6670, %v6669
  %v6856 = vpack.c.b16 %v6672, %v6671
  %v6857 = vpack.c.b16 %v6674, %v6673
  %v6858 = vpack.c.b16 %v6676, %v6675
  %v6859 = vpack.c.b16 %v6678, %v6677
  %v6860 = vpack.c.b16 %v6680, %v6679
  %v6861 = vpack.c.b16 %v6682, %v6681
  %v6862 = vpack.c.b16 %v6684, %v6683
  %v6863 = vpack.c.b16 %v6686, %v6685
  %v6864 = vpack.c.b16 %v6688, %v6687
  %v6865 = vpack.c.b16 %v6690, %v6689
  %v6866 = vpack.c.b16 %v6692, %v6691
  %v6867 = vpack.c.b16 %v6694, %v6693
  %v6868 = vpack.c.b16 %v6696, %v6695
  %v6869 = vpack.c.b16 %v6698, %v6697
  %v6870 = vpack.c.b16 %v6700, %v6699
  %v6871 = vpack.c.b16 %v6702, %v6701
  %v6872 = vpack.c.b16 %v6704, %v6703
  %v6873 = vpack.c.b16 %v6706, %v6705
  %v6874 = vpack.c.b16 %v6708, %v6707
  %v6875 = vpack.c.b16 %v6710, %v6709
  %v6876 = vpack.c.b16 %v6712, %v6711
  %v6877 = vpack.c.b16 %v6714, %v6713
  %v6878 = vpack.c.b16 %v6716, %v6715
  %v6879 = vpack.c.b16 %v6718, %v6717
  %v6880 = vpack.c.b16 %v6720, %v6719
  %v6881 = vpack.c.b16 %v6722, %v6721
  %v6882 = vpack.c.b16 %v6724, %v6723
  %v6883 = vpack.c.b16 %v6726, %v6725
  %v6884 = vpack.c.b16 %v6728, %v6727
  %v6885 = vpack.c.b16 %v6730, %v6729
  %v6886 = vpack.c.b16 %v6732, %v6731
  %v6887 = vpack.c.b16 %v6734, %v6733
  %v6888 = vpack.c.b16 %v6736, %v6735
  %v6889 = vpack.c.b16 %v6738, %v6737
  %v6890 = vpack.c.b16 %v6740, %v6739
  %v6891 = vpack.c.b16 %v6742, %v6741
  %v6892 = vpack.c.b16 %v6744, %v6743
  %v6893 = vpack.c.b16 %v6746, %v6745
  %v6894 = vpack.c.b16 %v6748, %v6747
  %v6895 = vpack.c.b16 %v6750, %v6749
  %v6896 = vpack.c.b16 %v6752, %v6751
  %v6897 = vpack.c.b16 %v6754, %v6753
  %v6898 = vpack.c.b16 %v6756, %v6755
  %v6899 = vpack.c.b16 %v6758, %v6757
  %v6900 = vpack.c.b16 %v6760, %v6759
  %v6901 = vpack.c.b16 %v6762, %v6761
  %v6902 = vpack.c.b16 %v6764, %v6763
  %v6903 = vpack.c.b16 %v6766, %v6765
  %v6904 = vpack.c.b16 %v6768, %v6767
  %v6905 = vpack.c.b16 %v6770, %v6769
  %v6906 = vpack.c.b16 %v6772, %v6771
  %v6907 = vpack.c.b16 %v6774, %v6773
  %v6908 = vpack.c.b16 %v6776, %v6775
  %v6909 = vpack.c.b16 %v6778, %v6777
  %v6910 = vpack.c.b16 %v6780, %v6779
  %v6911 = vpack.c.b16 %v6782, %v6781
  %v6912 = vpack.c.b16 %v6784, %v6783
  %7041 = vmatprep.subr.bf16.mxu0 0
  %7042 = vmatpush1.bf16.msra.mxu0 %v6792
  %7043 = vmatprep.subr.bf16.mxu0 0
  %7044 = vmatpush1.bf16.msra.mxu0 %v6791
  %7045 = vmatprep.subr.bf16.mxu0 0
  %7046 = vmatpush1.bf16.msra.mxu0 %v6790
  %7047 = vmatprep.subr.bf16.mxu0 0
  %7048 = vmatpush1.bf16.msra.mxu0 %v6789
  %7049 = vmatprep.subr.bf16.mxu0 0
  %7050 = vmatpush1.bf16.msra.mxu0 %v6788
  %7051 = vmatprep.subr.bf16.mxu0 0
  %7052 = vmatpush1.bf16.msra.mxu0 %v6787
  %7053 = vmatprep.subr.bf16.mxu0 0
  %7054 = vmatpush1.bf16.msra.mxu0 %v6786
  %7055 = vmatprep.subr.bf16.mxu0 0
  %7056 = vmatpush1.bf16.msra.mxu0 %v6785
  %7057 = vmatprep.subr.bf16.mxu0 0
  %7058 = vmatpush2.bf16.msra.mxu0 %v6800
  %7059 = vmatprep.subr.bf16.mxu0 0
  %7060 = vmatpush2.bf16.msra.mxu0 %v6799
  %7061 = vmatprep.subr.bf16.mxu0 0
  %7062 = vmatpush2.bf16.msra.mxu0 %v6798
  %7063 = vmatprep.subr.bf16.mxu0 0
  %7064 = vmatpush2.bf16.msra.mxu0 %v6797
  %7065 = vmatprep.subr.bf16.mxu0 0
  %7066 = vmatpush2.bf16.msra.mxu0 %v6796
  %7067 = vmatprep.subr.bf16.mxu0 0
  %7068 = vmatpush2.bf16.msra.mxu0 %v6795
  %7069 = vmatprep.subr.bf16.mxu0 0
  %7070 = vmatpush2.bf16.msra.mxu0 %v6794
  %7071 = vmatprep.subr.bf16.mxu0 0
  %7072 = vmatpush2.bf16.msra.mxu0 %v6793
  %7073 = vmatprep.mubr.bf16.mxu0 %v6252
  %7074 = vmatmul.mubr.bf16.gmra.mxu0 %v6251
  %v7075 = vpop.f32.mrf.mxu0
  %v7076 = vadd.f32 %v6271, %v7075
  %v7077 = vpop.f32.mrf.mxu0
  %v7078 = vpop.f32.mrf.mxu0
  %v7079 = vadd.f32 %v6271, %v7078
  %v7080 = vpop.f32.mrf.mxu0
  %7081 = vdwg.mxu0
  %7082 = vmatprep.subr.bf16.mxu0 0
  %7083 = vmatpush1.bf16.msra.mxu0 %v6808
  %7084 = vmatprep.subr.bf16.mxu0 0
  %7085 = vmatpush1.bf16.msra.mxu0 %v6807
  %7086 = vmatprep.subr.bf16.mxu0 0
  %7087 = vmatpush1.bf16.msra.mxu0 %v6806
  %7088 = vmatprep.subr.bf16.mxu0 0
  %7089 = vmatpush1.bf16.msra.mxu0 %v6805
  %7090 = vmatprep.subr.bf16.mxu0 0
  %7091 = vmatpush1.bf16.msra.mxu0 %v6804
  %7092 = vmatprep.subr.bf16.mxu0 0
  %7093 = vmatpush1.bf16.msra.mxu0 %v6803
  %7094 = vmatprep.subr.bf16.mxu0 0
  %7095 = vmatpush1.bf16.msra.mxu0 %v6802
  %7096 = vmatprep.subr.bf16.mxu0 0
  %7097 = vmatpush1.bf16.msra.mxu0 %v6801
  %7098 = vmatprep.subr.bf16.mxu0 0
  %7099 = vmatpush2.bf16.msra.mxu0 %v6816
  %7100 = vmatprep.subr.bf16.mxu0 0
  %7101 = vmatpush2.bf16.msra.mxu0 %v6815
  %7102 = vmatprep.subr.bf16.mxu0 0
  %7103 = vmatpush2.bf16.msra.mxu0 %v6814
  %7104 = vmatprep.subr.bf16.mxu0 0
  %7105 = vmatpush2.bf16.msra.mxu0 %v6813
  %7106 = vmatprep.subr.bf16.mxu0 0
  %7107 = vmatpush2.bf16.msra.mxu0 %v6812
  %7108 = vmatprep.subr.bf16.mxu0 0
  %7109 = vmatpush2.bf16.msra.mxu0 %v6811
  %7110 = vmatprep.subr.bf16.mxu0 0
  %7111 = vmatpush2.bf16.msra.mxu0 %v6810
  %7112 = vmatprep.subr.bf16.mxu0 0
  %7113 = vmatpush2.bf16.msra.mxu0 %v6809
  %7114 = vmatprep.mubr.bf16.mxu0 %v6254
  %7115 = vmatmul.mubr.bf16.gmra.mxu0 %v6253
  %v7116 = vpop.f32.mrf.mxu0
  %v7117 = vadd.f32 %v7076, %v7116
  %v7118 = vpop.f32.mrf.mxu0
  %v7119 = vpop.f32.mrf.mxu0
  %v7120 = vadd.f32 %v7079, %v7119
  %v7121 = vpop.f32.mrf.mxu0
  %7122 = vdwg.mxu0
  %7123 = vmatprep.subr.bf16.mxu0 0
  %7124 = vmatpush1.bf16.msra.mxu0 %v6824
  %7125 = vmatprep.subr.bf16.mxu0 0
  %7126 = vmatpush1.bf16.msra.mxu0 %v6823
  %7127 = vmatprep.subr.bf16.mxu0 0
  %7128 = vmatpush1.bf16.msra.mxu0 %v6822
  %7129 = vmatprep.subr.bf16.mxu0 0
  %7130 = vmatpush1.bf16.msra.mxu0 %v6821
  %7131 = vmatprep.subr.bf16.mxu0 0
  %7132 = vmatpush1.bf16.msra.mxu0 %v6820
  %7133 = vmatprep.subr.bf16.mxu0 0
  %7134 = vmatpush1.bf16.msra.mxu0 %v6819
  %7135 = vmatprep.subr.bf16.mxu0 0
  %7136 = vmatpush1.bf16.msra.mxu0 %v6818
  %7137 = vmatprep.subr.bf16.mxu0 0
  %7138 = vmatpush1.bf16.msra.mxu0 %v6817
  %7139 = vmatprep.subr.bf16.mxu0 0
  %7140 = vmatpush2.bf16.msra.mxu0 %v6832
  %7141 = vmatprep.subr.bf16.mxu0 0
  %7142 = vmatpush2.bf16.msra.mxu0 %v6831
  %7143 = vmatprep.subr.bf16.mxu0 0
  %7144 = vmatpush2.bf16.msra.mxu0 %v6830
  %7145 = vmatprep.subr.bf16.mxu0 0
  %7146 = vmatpush2.bf16.msra.mxu0 %v6829
  %7147 = vmatprep.subr.bf16.mxu0 0
  %7148 = vmatpush2.bf16.msra.mxu0 %v6828
  %7149 = vmatprep.subr.bf16.mxu0 0
  %7150 = vmatpush2.bf16.msra.mxu0 %v6827
  %7151 = vmatprep.subr.bf16.mxu0 0
  %7152 = vmatpush2.bf16.msra.mxu0 %v6826
  %7153 = vmatprep.subr.bf16.mxu0 0
  %7154 = vmatpush2.bf16.msra.mxu0 %v6825
  %7155 = vmatprep.mubr.bf16.mxu0 %v6256
  %7156 = vmatmul.mubr.bf16.gmra.mxu0 %v6255
  %v7157 = vpop.f32.mrf.mxu0
  %v7158 = vadd.f32 %v7117, %v7157
  %v7159 = vpop.f32.mrf.mxu0
  %v7160 = vpop.f32.mrf.mxu0
  %v7161 = vadd.f32 %v7120, %v7160
  %v7162 = vpop.f32.mrf.mxu0
  %7163 = vdwg.mxu0
  %7164 = vmatprep.subr.bf16.mxu0 0
  %7165 = vmatpush1.bf16.msra.mxu0 %v6840
  %7166 = vmatprep.subr.bf16.mxu0 0
  %7167 = vmatpush1.bf16.msra.mxu0 %v6839
  %7168 = vmatprep.subr.bf16.mxu0 0
  %7169 = vmatpush1.bf16.msra.mxu0 %v6838
  %7170 = vmatprep.subr.bf16.mxu0 0
  %7171 = vmatpush1.bf16.msra.mxu0 %v6837
  %7172 = vmatprep.subr.bf16.mxu0 0
  %7173 = vmatpush1.bf16.msra.mxu0 %v6836
  %7174 = vmatprep.subr.bf16.mxu0 0
  %7175 = vmatpush1.bf16.msra.mxu0 %v6835
  %7176 = vmatprep.subr.bf16.mxu0 0
  %7177 = vmatpush1.bf16.msra.mxu0 %v6834
  %7178 = vmatprep.subr.bf16.mxu0 0
  %7179 = vmatpush1.bf16.msra.mxu0 %v6833
  %7180 = vmatprep.subr.bf16.mxu0 0
  %7181 = vmatpush2.bf16.msra.mxu0 %v6848
  %7182 = vmatprep.subr.bf16.mxu0 0
  %7183 = vmatpush2.bf16.msra.mxu0 %v6847
  %7184 = vmatprep.subr.bf16.mxu0 0
  %7185 = vmatpush2.bf16.msra.mxu0 %v6846
  %7186 = vmatprep.subr.bf16.mxu0 0
  %7187 = vmatpush2.bf16.msra.mxu0 %v6845
  %7188 = vmatprep.subr.bf16.mxu0 0
  %7189 = vmatpush2.bf16.msra.mxu0 %v6844
  %7190 = vmatprep.subr.bf16.mxu0 0
  %7191 = vmatpush2.bf16.msra.mxu0 %v6843
  %7192 = vmatprep.subr.bf16.mxu0 0
  %7193 = vmatpush2.bf16.msra.mxu0 %v6842
  %7194 = vmatprep.subr.bf16.mxu0 0
  %7195 = vmatpush2.bf16.msra.mxu0 %v6841
  %7196 = vmatprep.mubr.bf16.mxu0 %v6258
  %7197 = vmatmul.mubr.bf16.gmra.mxu0 %v6257
  %v7198 = vpop.f32.mrf.mxu0
  %v7199 = vadd.f32 %v7158, %v7198
  %v7200 = vpop.f32.mrf.mxu0
  %v7201 = vpop.f32.mrf.mxu0
  %v7202 = vadd.f32 %v7161, %v7201
  %v7203 = vpop.f32.mrf.mxu0
  %7204 = vdwg.mxu0
  %7205 = vmatprep.subr.bf16.mxu0 0
  %7206 = vmatpush1.bf16.msra.mxu0 %v6856
  %7207 = vmatprep.subr.bf16.mxu0 0
  %7208 = vmatpush1.bf16.msra.mxu0 %v6855
  %7209 = vmatprep.subr.bf16.mxu0 0
  %7210 = vmatpush1.bf16.msra.mxu0 %v6854
  %7211 = vmatprep.subr.bf16.mxu0 0
  %7212 = vmatpush1.bf16.msra.mxu0 %v6853
  %7213 = vmatprep.subr.bf16.mxu0 0
  %7214 = vmatpush1.bf16.msra.mxu0 %v6852
  %7215 = vmatprep.subr.bf16.mxu0 0
  %7216 = vmatpush1.bf16.msra.mxu0 %v6851
  %7217 = vmatprep.subr.bf16.mxu0 0
  %7218 = vmatpush1.bf16.msra.mxu0 %v6850
  %7219 = vmatprep.subr.bf16.mxu0 0
  %7220 = vmatpush1.bf16.msra.mxu0 %v6849
  %7221 = vmatprep.subr.bf16.mxu0 0
  %7222 = vmatpush2.bf16.msra.mxu0 %v6864
  %7223 = vmatprep.subr.bf16.mxu0 0
  %7224 = vmatpush2.bf16.msra.mxu0 %v6863
  %7225 = vmatprep.subr.bf16.mxu0 0
  %7226 = vmatpush2.bf16.msra.mxu0 %v6862
  %7227 = vmatprep.subr.bf16.mxu0 0
  %7228 = vmatpush2.bf16.msra.mxu0 %v6861
  %7229 = vmatprep.subr.bf16.mxu0 0
  %7230 = vmatpush2.bf16.msra.mxu0 %v6860
  %7231 = vmatprep.subr.bf16.mxu0 0
  %7232 = vmatpush2.bf16.msra.mxu0 %v6859
  %7233 = vmatprep.subr.bf16.mxu0 0
  %7234 = vmatpush2.bf16.msra.mxu0 %v6858
  %7235 = vmatprep.subr.bf16.mxu0 0
  %7236 = vmatpush2.bf16.msra.mxu0 %v6857
  %7237 = vmatprep.mubr.bf16.mxu0 %v6260
  %7238 = vmatmul.mubr.bf16.gmra.mxu0 %v6259
  %v7239 = vpop.f32.mrf.mxu0
  %v7240 = vadd.f32 %v7199, %v7239
  %v7241 = vpop.f32.mrf.mxu0
  %v7242 = vpop.f32.mrf.mxu0
  %v7243 = vadd.f32 %v7202, %v7242
  %v7244 = vpop.f32.mrf.mxu0
  %7245 = vdwg.mxu0
  %7246 = vmatprep.subr.bf16.mxu0 0
  %7247 = vmatpush1.bf16.msra.mxu0 %v6872
  %7248 = vmatprep.subr.bf16.mxu0 0
  %7249 = vmatpush1.bf16.msra.mxu0 %v6871
  %7250 = vmatprep.subr.bf16.mxu0 0
  %7251 = vmatpush1.bf16.msra.mxu0 %v6870
  %7252 = vmatprep.subr.bf16.mxu0 0
  %7253 = vmatpush1.bf16.msra.mxu0 %v6869
  %7254 = vmatprep.subr.bf16.mxu0 0
  %7255 = vmatpush1.bf16.msra.mxu0 %v6868
  %7256 = vmatprep.subr.bf16.mxu0 0
  %7257 = vmatpush1.bf16.msra.mxu0 %v6867
  %7258 = vmatprep.subr.bf16.mxu0 0
  %7259 = vmatpush1.bf16.msra.mxu0 %v6866
  %7260 = vmatprep.subr.bf16.mxu0 0
  %7261 = vmatpush1.bf16.msra.mxu0 %v6865
  %7262 = vmatprep.subr.bf16.mxu0 0
  %7263 = vmatpush2.bf16.msra.mxu0 %v6880
  %7264 = vmatprep.subr.bf16.mxu0 0
  %7265 = vmatpush2.bf16.msra.mxu0 %v6879
  %7266 = vmatprep.subr.bf16.mxu0 0
  %7267 = vmatpush2.bf16.msra.mxu0 %v6878
  %7268 = vmatprep.subr.bf16.mxu0 0
  %7269 = vmatpush2.bf16.msra.mxu0 %v6877
  %7270 = vmatprep.subr.bf16.mxu0 0
  %7271 = vmatpush2.bf16.msra.mxu0 %v6876
  %7272 = vmatprep.subr.bf16.mxu0 0
  %7273 = vmatpush2.bf16.msra.mxu0 %v6875
  %7274 = vmatprep.subr.bf16.mxu0 0
  %7275 = vmatpush2.bf16.msra.mxu0 %v6874
  %7276 = vmatprep.subr.bf16.mxu0 0
  %7277 = vmatpush2.bf16.msra.mxu0 %v6873
  %7278 = vmatprep.mubr.bf16.mxu0 %v6262
  %7279 = vmatmul.mubr.bf16.gmra.mxu0 %v6261
  %v7280 = vpop.f32.mrf.mxu0
  %v7281 = vadd.f32 %v7240, %v7280
  %v7282 = vpop.f32.mrf.mxu0
  %v7283 = vpop.f32.mrf.mxu0
  %v7284 = vadd.f32 %v7243, %v7283
  %v7285 = vpop.f32.mrf.mxu0
  %7286 = vdwg.mxu0
  %7287 = vmatprep.subr.bf16.mxu0 0
  %7288 = vmatpush1.bf16.msra.mxu0 %v6888
  %7289 = vmatprep.subr.bf16.mxu0 0
  %7290 = vmatpush1.bf16.msra.mxu0 %v6887
  %7291 = vmatprep.subr.bf16.mxu0 0
  %7292 = vmatpush1.bf16.msra.mxu0 %v6886
  %7293 = vmatprep.subr.bf16.mxu0 0
  %7294 = vmatpush1.bf16.msra.mxu0 %v6885
  %7295 = vmatprep.subr.bf16.mxu0 0
  %7296 = vmatpush1.bf16.msra.mxu0 %v6884
  %7297 = vmatprep.subr.bf16.mxu0 0
  %7298 = vmatpush1.bf16.msra.mxu0 %v6883
  %7299 = vmatprep.subr.bf16.mxu0 0
  %7300 = vmatpush1.bf16.msra.mxu0 %v6882
  %7301 = vmatprep.subr.bf16.mxu0 0
  %7302 = vmatpush1.bf16.msra.mxu0 %v6881
  %7303 = vmatprep.subr.bf16.mxu0 0
  %7304 = vmatpush2.bf16.msra.mxu0 %v6896
  %7305 = vmatprep.subr.bf16.mxu0 0
  %7306 = vmatpush2.bf16.msra.mxu0 %v6895
  %7307 = vmatprep.subr.bf16.mxu0 0
  %7308 = vmatpush2.bf16.msra.mxu0 %v6894
  %7309 = vmatprep.subr.bf16.mxu0 0
  %7310 = vmatpush2.bf16.msra.mxu0 %v6893
  %7311 = vmatprep.subr.bf16.mxu0 0
  %7312 = vmatpush2.bf16.msra.mxu0 %v6892
  %7313 = vmatprep.subr.bf16.mxu0 0
  %7314 = vmatpush2.bf16.msra.mxu0 %v6891
  %7315 = vmatprep.subr.bf16.mxu0 0
  %7316 = vmatpush2.bf16.msra.mxu0 %v6890
  %7317 = vmatprep.subr.bf16.mxu0 0
  %7318 = vmatpush2.bf16.msra.mxu0 %v6889
  %7319 = vmatprep.mubr.bf16.mxu0 %v6264
  %7320 = vmatmul.mubr.bf16.gmra.mxu0 %v6263
  %v7321 = vpop.f32.mrf.mxu0
  %v7322 = vadd.f32 %v7281, %v7321
  %v7323 = vpop.f32.mrf.mxu0
  %v7324 = vpop.f32.mrf.mxu0
  %v7325 = vadd.f32 %v7284, %v7324
  %v7326 = vpop.f32.mrf.mxu0
  %7327 = vdwg.mxu0
  %7328 = vmatprep.subr.bf16.mxu0 0
  %7329 = vmatpush1.bf16.msra.mxu0 %v6904
  %7330 = vmatprep.subr.bf16.mxu0 0
  %7331 = vmatpush1.bf16.msra.mxu0 %v6903
  %7332 = vmatprep.subr.bf16.mxu0 0
  %7333 = vmatpush1.bf16.msra.mxu0 %v6902
  %7334 = vmatprep.subr.bf16.mxu0 0
  %7335 = vmatpush1.bf16.msra.mxu0 %v6901
  %7336 = vmatprep.subr.bf16.mxu0 0
  %7337 = vmatpush1.bf16.msra.mxu0 %v6900
  %7338 = vmatprep.subr.bf16.mxu0 0
  %7339 = vmatpush1.bf16.msra.mxu0 %v6899
  %7340 = vmatprep.subr.bf16.mxu0 0
  %7341 = vmatpush1.bf16.msra.mxu0 %v6898
  %7342 = vmatprep.subr.bf16.mxu0 0
  %7343 = vmatpush1.bf16.msra.mxu0 %v6897
  %7344 = vmatprep.subr.bf16.mxu0 0
  %7345 = vmatpush2.bf16.msra.mxu0 %v6912
  %7346 = vmatprep.subr.bf16.mxu0 0
  %7347 = vmatpush2.bf16.msra.mxu0 %v6911
  %7348 = vmatprep.subr.bf16.mxu0 0
  %7349 = vmatpush2.bf16.msra.mxu0 %v6910
  %7350 = vmatprep.subr.bf16.mxu0 0
  %7351 = vmatpush2.bf16.msra.mxu0 %v6909
  %7352 = vmatprep.subr.bf16.mxu0 0
  %7353 = vmatpush2.bf16.msra.mxu0 %v6908
  %7354 = vmatprep.subr.bf16.mxu0 0
  %7355 = vmatpush2.bf16.msra.mxu0 %v6907
  %7356 = vmatprep.subr.bf16.mxu0 0
  %7357 = vmatpush2.bf16.msra.mxu0 %v6906
  %7358 = vmatprep.subr.bf16.mxu0 0
  %7359 = vmatpush2.bf16.msra.mxu0 %v6905
  %7360 = vmatprep.mubr.bf16.mxu0 %v6266
  %7361 = vmatmul.mubr.bf16.gmra.mxu0 %v6265
  %v7362 = vpop.f32.mrf.mxu0
  %v7363 = vadd.f32 %v7322, %v7362
  %v7364 = vpop.f32.mrf.mxu0
  %v7365 = vpop.f32.mrf.mxu0
  %v7366 = vadd.f32 %v7325, %v7365
  %v7367 = vpop.f32.mrf.mxu0
  %7368 = vdwg.mxu0
  %v7369 = vadd.f32 %v5332, %v7363
  %v7370 = vadd.f32 %v5333, %v7366
  %s7371 = scalar_lea.vmem %s13, 1
  %v7372 = vld [vmem:[%s7371] sm:$0x1]
  %s7373 = scalar_lea.vmem %s14, 1
  %v7374 = vld [vmem:[%s7373] sm:$0x1]
  %v7375 = vsel %vm202, %v7369, 0.0
  %7376 = vadd.xlane.f32.xlu0 %v7375
  %v7377 = vpop.xlane.xlu0 %7376
  %v7378 = vsel %vm202, %v7370, 0.0
  %7379 = vadd.xlane.f32.xlu0 %v7378
  %v7380 = vpop.xlane.xlu0 %7379
  %v7381 = vmul.f32 %v7377, %v1680
  %v7382 = vmul.f32 %v7380, %v1680
  %v7383 = vsub.f32 %v7369, %v7381
  %v7384 = vsub.f32 %v7370, %v7382
  %v7385 = vmul.f32 %v7383, %v7383
  %v7386 = vmul.f32 %v7384, %v7384
  %v7387 = vsel %vm202, %v7385, 0.0
  %7388 = vadd.xlane.f32.xlu0 %v7387
  %v7389 = vpop.xlane.xlu0 %7388
  %v7390 = vsel %vm202, %v7386, 0.0
  %7391 = vadd.xlane.f32.xlu0 %v7390
  %v7392 = vpop.xlane.xlu0 %7391
  %v7393 = vmul.f32 %v7389, %v1680
  %v7394 = vmul.f32 %v7392, %v1680
  %v7395 = vadd.f32 %v7393, 1e-05
  %v7396 = vadd.f32 %v7394, 1e-05
  %v7397 = vrsqrt.pop %v7395
  %v7398 = vrsqrt.pop %v7396
  %v7399 = vmul.f32 %v7383, %v7397
  %v7400 = vmul.f32 %v7384, %v7398
  %v7402 = vlaneseq
  %v7403 = vshrl.u32 %v7402, 7
  %v7404 = vsub.s32 0, %v7403
  %v7405 = vrot.slane %v7372, %v7404
  %v7407 = vmul.f32 %v7399, %v7405
  %v7408 = vmul.f32 %v7400, %v7405
  %v7410 = vlaneseq
  %v7411 = vshrl.u32 %v7410, 7
  %v7412 = vsub.s32 0, %v7411
  %v7413 = vrot.slane %v7374, %v7412
  %v7415 = vadd.f32 %v7407, %v7413
  %v7416 = vadd.f32 %v7408, %v7413
  %v7417 = vld [vmem:[%s15] sm:$0xff]
  %v7418 = vld [vmem:[%s15 + $0x8] sm:$0xff]
  %v7419 = vld [vmem:[%s15 + $0x10] sm:$0xff]
  %v7420 = vld [vmem:[%s15 + $0x18] sm:$0xff]
  %v7421 = vld [vmem:[%s15 + $0x20] sm:$0xff]
  %v7422 = vld [vmem:[%s15 + $0x28] sm:$0xff]
  %v7423 = vld [vmem:[%s15 + $0x30] sm:$0xff]
  %v7424 = vld [vmem:[%s15 + $0x38] sm:$0xff]
  %v7425 = vld [vmem:[%s16] sm:$0xf]
  %v7426 = vpack.c.bf16 %v7415, %v7415
  %v7427 = vpack.c.bf16 %v7416, %v7416
  %v7429 = vlaneseq
  %v7430 = vshrl.u32 %v7429, 7
  %v7431 = vsub.s32 0, %v7430
  %v7432 = vrot.slane %v7425, %v7431
  %v7433 = vlaneseq
  %v7434 = vshrl.u32 %v7433, 7
  %v7435 = vsub.s32 1, %v7434
  %v7436 = vrot.slane %v7425, %v7435
  %v7437 = vlaneseq
  %v7438 = vshrl.u32 %v7437, 7
  %v7439 = vsub.s32 2, %v7438
  %v7440 = vrot.slane %v7425, %v7439
  %v7441 = vlaneseq
  %v7442 = vshrl.u32 %v7441, 7
  %v7443 = vsub.s32 3, %v7442
  %v7444 = vrot.slane %v7425, %v7443
  %v7451 = vunpack.c.l.b16 %v7426
  %v7452 = vunpack.c.l.b16 %v7427
  %v7453 = vrot.slane %v7451, 7
  %v7454 = vrot.slane %v7452, 6
  %vm7455 = vcmask 1041409
  %v7456 = vsel %vm7455, %v7454, %v7453
  %v7457 = vpack.c.b16 %v7456, %v7456
  %v7466 = vunpack.c.l.b16 %v7417
  %v7467 = vunpack.c.h.b16 %v7417
  %v7468 = vunpack.c.l.b16 %v7418
  %v7469 = vunpack.c.h.b16 %v7418
  %v7470 = vunpack.c.l.b16 %v7419
  %v7471 = vunpack.c.h.b16 %v7419
  %v7472 = vunpack.c.l.b16 %v7420
  %v7473 = vunpack.c.h.b16 %v7420
  %v7474 = vunpack.c.l.b16 %v7421
  %v7475 = vunpack.c.h.b16 %v7421
  %v7476 = vunpack.c.l.b16 %v7422
  %v7477 = vunpack.c.h.b16 %v7422
  %v7478 = vunpack.c.l.b16 %v7423
  %v7479 = vunpack.c.h.b16 %v7423
  %v7480 = vunpack.c.l.b16 %v7424
  %v7481 = vunpack.c.h.b16 %v7424
  %v7482 = vpack.c.b16 %v7470, %v7466
  %v7483 = vpack.c.b16 %v7471, %v7467
  %v7484 = vpack.c.b16 %v7472, %v7468
  %v7485 = vpack.c.b16 %v7473, %v7469
  %v7486 = vpack.c.b16 %v7478, %v7474
  %v7487 = vpack.c.b16 %v7479, %v7475
  %v7488 = vpack.c.b16 %v7480, %v7476
  %v7489 = vpack.c.b16 %v7481, %v7477
  %v7499 = vsel %vm202, %v7457, 0
  %7501 = vmatprep.subr.bf16.mxu0 0
  %7502 = vmatpush1.bf16.msra.mxu0 0
  %7503 = vmatprep.subr.bf16.mxu0 0
  %7504 = vmatpush1.bf16.msra.mxu0 0
  %7505 = vmatprep.subr.bf16.mxu0 0
  %7506 = vmatpush1.bf16.msra.mxu0 0
  %7507 = vmatprep.subr.bf16.mxu0 0
  %7508 = vmatpush1.bf16.msra.mxu0 0
  %7509 = vmatprep.subr.bf16.mxu0 0
  %7510 = vmatpush1.bf16.msra.mxu0 0
  %7511 = vmatprep.subr.bf16.mxu0 0
  %7512 = vmatpush1.bf16.msra.mxu0 0
  %7513 = vmatprep.subr.bf16.mxu0 %v7487
  %7514 = vmatpush1.bf16.msra.mxu0 %v7486
  %7515 = vmatprep.subr.bf16.mxu0 %v7483
  %7516 = vmatpush1.bf16.msra.mxu0 %v7482
  %7517 = vmatprep.subr.bf16.mxu0 0
  %7518 = vmatpush2.bf16.msra.mxu0 0
  %7519 = vmatprep.subr.bf16.mxu0 0
  %7520 = vmatpush2.bf16.msra.mxu0 0
  %7521 = vmatprep.subr.bf16.mxu0 0
  %7522 = vmatpush2.bf16.msra.mxu0 0
  %7523 = vmatprep.subr.bf16.mxu0 0
  %7524 = vmatpush2.bf16.msra.mxu0 0
  %7525 = vmatprep.subr.bf16.mxu0 0
  %7526 = vmatpush2.bf16.msra.mxu0 0
  %7527 = vmatprep.subr.bf16.mxu0 0
  %7528 = vmatpush2.bf16.msra.mxu0 0
  %7529 = vmatprep.subr.bf16.mxu0 0
  %7530 = vmatpush2.bf16.msra.mxu0 0
  %7531 = vmatprep.subr.bf16.mxu0 0
  %7532 = vmatpush2.bf16.msra.mxu0 0
  %7533 = vmatprep.mubr.bf16.mxu0 0
  %7534 = vmatmul.mubr.bf16.gmra.mxu0 %v7499
  %v7535 = vpop.f32.mrf.mxu0
  %v7536 = vadd.f32 %v7432, %v7535
  %v7537 = vpop.f32.mrf.mxu0
  %v7538 = vadd.f32 %v7436, %v7537
  %v7539 = vpop.f32.mrf.mxu0
  %v7540 = vpop.f32.mrf.mxu0
  %7541 = vdwg.mxu0
  %7542 = vmatprep.subr.bf16.mxu0 0
  %7543 = vmatpush1.bf16.msra.mxu0 0
  %7544 = vmatprep.subr.bf16.mxu0 0
  %7545 = vmatpush1.bf16.msra.mxu0 0
  %7546 = vmatprep.subr.bf16.mxu0 0
  %7547 = vmatpush1.bf16.msra.mxu0 0
  %7548 = vmatprep.subr.bf16.mxu0 0
  %7549 = vmatpush1.bf16.msra.mxu0 0
  %7550 = vmatprep.subr.bf16.mxu0 0
  %7551 = vmatpush1.bf16.msra.mxu0 0
  %7552 = vmatprep.subr.bf16.mxu0 0
  %7553 = vmatpush1.bf16.msra.mxu0 0
  %7554 = vmatprep.subr.bf16.mxu0 %v7489
  %7555 = vmatpush1.bf16.msra.mxu0 %v7488
  %7556 = vmatprep.subr.bf16.mxu0 %v7485
  %7557 = vmatpush1.bf16.msra.mxu0 %v7484
  %7558 = vmatprep.subr.bf16.mxu0 0
  %7559 = vmatpush2.bf16.msra.mxu0 0
  %7560 = vmatprep.subr.bf16.mxu0 0
  %7561 = vmatpush2.bf16.msra.mxu0 0
  %7562 = vmatprep.subr.bf16.mxu0 0
  %7563 = vmatpush2.bf16.msra.mxu0 0
  %7564 = vmatprep.subr.bf16.mxu0 0
  %7565 = vmatpush2.bf16.msra.mxu0 0
  %7566 = vmatprep.subr.bf16.mxu0 0
  %7567 = vmatpush2.bf16.msra.mxu0 0
  %7568 = vmatprep.subr.bf16.mxu0 0
  %7569 = vmatpush2.bf16.msra.mxu0 0
  %7570 = vmatprep.subr.bf16.mxu0 0
  %7571 = vmatpush2.bf16.msra.mxu0 0
  %7572 = vmatprep.subr.bf16.mxu0 0
  %7573 = vmatpush2.bf16.msra.mxu0 0
  %7574 = vmatprep.mubr.bf16.mxu0 0
  %7575 = vmatmul.mubr.bf16.gmra.mxu0 %v7499
  %v7576 = vpop.f32.mrf.mxu0
  %v7577 = vadd.f32 %v7440, %v7576
  %v7578 = vpop.f32.mrf.mxu0
  %v7579 = vadd.f32 %v7444, %v7578
  %v7580 = vpop.f32.mrf.mxu0
  %v7581 = vpop.f32.mrf.mxu0
  %7582 = vdwg.mxu0
  %v7583 = vmax.f32 %v7536, 0.0
  %v7584 = vmax.f32 %v7538, 0.0
  %v7585 = vmax.f32 %v7577, 0.0
  %v7586 = vmax.f32 %v7579, 0.0
  %v7587 = vld [vmem:[%s17] sm:$0xff]
  %v7588 = vld [vmem:[%s17 + $0x8] sm:$0xff]
  %v7589 = vld [vmem:[%s17 + $0x10] sm:$0xff]
  %v7590 = vld [vmem:[%s17 + $0x18] sm:$0xff]
  %v7591 = vld [vmem:[%s17 + $0x20] sm:$0xff]
  %v7592 = vld [vmem:[%s17 + $0x28] sm:$0xff]
  %v7593 = vld [vmem:[%s17 + $0x30] sm:$0xff]
  %v7594 = vld [vmem:[%s17 + $0x38] sm:$0xff]
  %v7595 = vld [vmem:[%s17 + $0x40] sm:$0xff]
  %v7596 = vld [vmem:[%s17 + $0x48] sm:$0xff]
  %v7597 = vld [vmem:[%s17 + $0x50] sm:$0xff]
  %v7598 = vld [vmem:[%s17 + $0x58] sm:$0xff]
  %v7599 = vld [vmem:[%s17 + $0x60] sm:$0xff]
  %v7600 = vld [vmem:[%s17 + $0x68] sm:$0xff]
  %v7601 = vld [vmem:[%s17 + $0x70] sm:$0xff]
  %v7602 = vld [vmem:[%s17 + $0x78] sm:$0xff]
  %v7603 = vld [vmem:[%s17 + $0x80] sm:$0xff]
  %v7604 = vld [vmem:[%s17 + $0x88] sm:$0xff]
  %v7605 = vld [vmem:[%s17 + $0x90] sm:$0xff]
  %v7606 = vld [vmem:[%s17 + $0x98] sm:$0xff]
  %v7607 = vld [vmem:[%s17 + $0xa0] sm:$0xff]
  %v7608 = vld [vmem:[%s17 + $0xa8] sm:$0xff]
  %v7609 = vld [vmem:[%s17 + $0xb0] sm:$0xff]
  %v7610 = vld [vmem:[%s17 + $0xb8] sm:$0xff]
  %v7611 = vld [vmem:[%s17 + $0xc0] sm:$0xff]
  %v7612 = vld [vmem:[%s17 + $0xc8] sm:$0xff]
  %v7613 = vld [vmem:[%s17 + $0xd0] sm:$0xff]
  %v7614 = vld [vmem:[%s17 + $0xd8] sm:$0xff]
  %v7615 = vld [vmem:[%s17 + $0xe0] sm:$0xff]
  %v7616 = vld [vmem:[%s17 + $0xe8] sm:$0xff]
  %v7617 = vld [vmem:[%s17 + $0xf0] sm:$0xff]
  %v7618 = vld [vmem:[%s17 + $0xf8] sm:$0xff]
  %v7619 = vld [vmem:[%s17 + $0x100] sm:$0xff]
  %v7620 = vld [vmem:[%s17 + $0x108] sm:$0xff]
  %v7621 = vld [vmem:[%s17 + $0x110] sm:$0xff]
  %v7622 = vld [vmem:[%s17 + $0x118] sm:$0xff]
  %v7623 = vld [vmem:[%s17 + $0x120] sm:$0xff]
  %v7624 = vld [vmem:[%s17 + $0x128] sm:$0xff]
  %v7625 = vld [vmem:[%s17 + $0x130] sm:$0xff]
  %v7626 = vld [vmem:[%s17 + $0x138] sm:$0xff]
  %v7627 = vld [vmem:[%s17 + $0x140] sm:$0xff]
  %v7628 = vld [vmem:[%s17 + $0x148] sm:$0xff]
  %v7629 = vld [vmem:[%s17 + $0x150] sm:$0xff]
  %v7630 = vld [vmem:[%s17 + $0x158] sm:$0xff]
  %v7631 = vld [vmem:[%s17 + $0x160] sm:$0xff]
  %v7632 = vld [vmem:[%s17 + $0x168] sm:$0xff]
  %v7633 = vld [vmem:[%s17 + $0x170] sm:$0xff]
  %v7634 = vld [vmem:[%s17 + $0x178] sm:$0xff]
  %v7635 = vld [vmem:[%s17 + $0x180] sm:$0xff]
  %v7636 = vld [vmem:[%s17 + $0x188] sm:$0xff]
  %v7637 = vld [vmem:[%s17 + $0x190] sm:$0xff]
  %v7638 = vld [vmem:[%s17 + $0x198] sm:$0xff]
  %v7639 = vld [vmem:[%s17 + $0x1a0] sm:$0xff]
  %v7640 = vld [vmem:[%s17 + $0x1a8] sm:$0xff]
  %v7641 = vld [vmem:[%s17 + $0x1b0] sm:$0xff]
  %v7642 = vld [vmem:[%s17 + $0x1b8] sm:$0xff]
  %v7643 = vld [vmem:[%s17 + $0x1c0] sm:$0xff]
  %v7644 = vld [vmem:[%s17 + $0x1c8] sm:$0xff]
  %v7645 = vld [vmem:[%s17 + $0x1d0] sm:$0xff]
  %v7646 = vld [vmem:[%s17 + $0x1d8] sm:$0xff]
  %v7647 = vld [vmem:[%s17 + $0x1e0] sm:$0xff]
  %v7648 = vld [vmem:[%s17 + $0x1e8] sm:$0xff]
  %v7649 = vld [vmem:[%s17 + $0x1f0] sm:$0xff]
  %v7650 = vld [vmem:[%s17 + $0x1f8] sm:$0xff]
  %v7651 = vld [vmem:[%s18] sm:$0x3]
  %v7652 = vpack.c.bf16 %v7583, %v7583
  %v7653 = vpack.c.bf16 %v7584, %v7584
  %v7654 = vpack.c.bf16 %v7585, %v7585
  %v7655 = vpack.c.bf16 %v7586, %v7586
  %v7657 = vlaneseq
  %v7658 = vshrl.u32 %v7657, 7
  %v7659 = vsub.s32 0, %v7658
  %v7660 = vrot.slane %v7651, %v7659
  %v7661 = vlaneseq
  %v7662 = vshrl.u32 %v7661, 7
  %v7663 = vsub.s32 1, %v7662
  %v7664 = vrot.slane %v7651, %v7663
  %v7731 = vunpack.c.l.b16 %v7587
  %v7732 = vunpack.c.h.b16 %v7587
  %v7733 = vunpack.c.l.b16 %v7588
  %v7734 = vunpack.c.h.b16 %v7588
  %v7735 = vunpack.c.l.b16 %v7589
  %v7736 = vunpack.c.h.b16 %v7589
  %v7737 = vunpack.c.l.b16 %v7590
  %v7738 = vunpack.c.h.b16 %v7590
  %v7739 = vunpack.c.l.b16 %v7591
  %v7740 = vunpack.c.h.b16 %v7591
  %v7741 = vunpack.c.l.b16 %v7592
  %v7742 = vunpack.c.h.b16 %v7592
  %v7743 = vunpack.c.l.b16 %v7593
  %v7744 = vunpack.c.h.b16 %v7593
  %v7745 = vunpack.c.l.b16 %v7594
  %v7746 = vunpack.c.h.b16 %v7594
  %v7747 = vunpack.c.l.b16 %v7595
  %v7748 = vunpack.c.h.b16 %v7595
  %v7749 = vunpack.c.l.b16 %v7596
  %v7750 = vunpack.c.h.b16 %v7596
  %v7751 = vunpack.c.l.b16 %v7597
  %v7752 = vunpack.c.h.b16 %v7597
  %v7753 = vunpack.c.l.b16 %v7598
  %v7754 = vunpack.c.h.b16 %v7598
  %v7755 = vunpack.c.l.b16 %v7599
  %v7756 = vunpack.c.h.b16 %v7599
  %v7757 = vunpack.c.l.b16 %v7600
  %v7758 = vunpack.c.h.b16 %v7600
  %v7759 = vunpack.c.l.b16 %v7601
  %v7760 = vunpack.c.h.b16 %v7601
  %v7761 = vunpack.c.l.b16 %v7602
  %v7762 = vunpack.c.h.b16 %v7602
  %v7763 = vunpack.c.l.b16 %v7603
  %v7764 = vunpack.c.h.b16 %v7603
  %v7765 = vunpack.c.l.b16 %v7604
  %v7766 = vunpack.c.h.b16 %v7604
  %v7767 = vunpack.c.l.b16 %v7605
  %v7768 = vunpack.c.h.b16 %v7605
  %v7769 = vunpack.c.l.b16 %v7606
  %v7770 = vunpack.c.h.b16 %v7606
  %v7771 = vunpack.c.l.b16 %v7607
  %v7772 = vunpack.c.h.b16 %v7607
  %v7773 = vunpack.c.l.b16 %v7608
  %v7774 = vunpack.c.h.b16 %v7608
  %v7775 = vunpack.c.l.b16 %v7609
  %v7776 = vunpack.c.h.b16 %v7609
  %v7777 = vunpack.c.l.b16 %v7610
  %v7778 = vunpack.c.h.b16 %v7610
  %v7779 = vunpack.c.l.b16 %v7611
  %v7780 = vunpack.c.h.b16 %v7611
  %v7781 = vunpack.c.l.b16 %v7612
  %v7782 = vunpack.c.h.b16 %v7612
  %v7783 = vunpack.c.l.b16 %v7613
  %v7784 = vunpack.c.h.b16 %v7613
  %v7785 = vunpack.c.l.b16 %v7614
  %v7786 = vunpack.c.h.b16 %v7614
  %v7787 = vunpack.c.l.b16 %v7615
  %v7788 = vunpack.c.h.b16 %v7615
  %v7789 = vunpack.c.l.b16 %v7616
  %v7790 = vunpack.c.h.b16 %v7616
  %v7791 = vunpack.c.l.b16 %v7617
  %v7792 = vunpack.c.h.b16 %v7617
  %v7793 = vunpack.c.l.b16 %v7618
  %v7794 = vunpack.c.h.b16 %v7618
  %v7795 = vunpack.c.l.b16 %v7619
  %v7796 = vunpack.c.h.b16 %v7619
  %v7797 = vunpack.c.l.b16 %v7620
  %v7798 = vunpack.c.h.b16 %v7620
  %v7799 = vunpack.c.l.b16 %v7621
  %v7800 = vunpack.c.h.b16 %v7621
  %v7801 = vunpack.c.l.b16 %v7622
  %v7802 = vunpack.c.h.b16 %v7622
  %v7803 = vunpack.c.l.b16 %v7623
  %v7804 = vunpack.c.h.b16 %v7623
  %v7805 = vunpack.c.l.b16 %v7624
  %v7806 = vunpack.c.h.b16 %v7624
  %v7807 = vunpack.c.l.b16 %v7625
  %v7808 = vunpack.c.h.b16 %v7625
  %v7809 = vunpack.c.l.b16 %v7626
  %v7810 = vunpack.c.h.b16 %v7626
  %v7811 = vunpack.c.l.b16 %v7627
  %v7812 = vunpack.c.h.b16 %v7627
  %v7813 = vunpack.c.l.b16 %v7628
  %v7814 = vunpack.c.h.b16 %v7628
  %v7815 = vunpack.c.l.b16 %v7629
  %v7816 = vunpack.c.h.b16 %v7629
  %v7817 = vunpack.c.l.b16 %v7630
  %v7818 = vunpack.c.h.b16 %v7630
  %v7819 = vunpack.c.l.b16 %v7631
  %v7820 = vunpack.c.h.b16 %v7631
  %v7821 = vunpack.c.l.b16 %v7632
  %v7822 = vunpack.c.h.b16 %v7632
  %v7823 = vunpack.c.l.b16 %v7633
  %v7824 = vunpack.c.h.b16 %v7633
  %v7825 = vunpack.c.l.b16 %v7634
  %v7826 = vunpack.c.h.b16 %v7634
  %v7827 = vunpack.c.l.b16 %v7635
  %v7828 = vunpack.c.h.b16 %v7635
  %v7829 = vunpack.c.l.b16 %v7636
  %v7830 = vunpack.c.h.b16 %v7636
  %v7831 = vunpack.c.l.b16 %v7637
  %v7832 = vunpack.c.h.b16 %v7637
  %v7833 = vunpack.c.l.b16 %v7638
  %v7834 = vunpack.c.h.b16 %v7638
  %v7835 = vunpack.c.l.b16 %v7639
  %v7836 = vunpack.c.h.b16 %v7639
  %v7837 = vunpack.c.l.b16 %v7640
  %v7838 = vunpack.c.h.b16 %v7640
  %v7839 = vunpack.c.l.b16 %v7641
  %v7840 = vunpack.c.h.b16 %v7641
  %v7841 = vunpack.c.l.b16 %v7642
  %v7842 = vunpack.c.h.b16 %v7642
  %v7843 = vunpack.c.l.b16 %v7643
  %v7844 = vunpack.c.h.b16 %v7643
  %v7845 = vunpack.c.l.b16 %v7644
  %v7846 = vunpack.c.h.b16 %v7644
  %v7847 = vunpack.c.l.b16 %v7645
  %v7848 = vunpack.c.h.b16 %v7645
  %v7849 = vunpack.c.l.b16 %v7646
  %v7850 = vunpack.c.h.b16 %v7646
  %v7851 = vunpack.c.l.b16 %v7647
  %v7852 = vunpack.c.h.b16 %v7647
  %v7853 = vunpack.c.l.b16 %v7648
  %v7854 = vunpack.c.h.b16 %v7648
  %v7855 = vunpack.c.l.b16 %v7649
  %v7856 = vunpack.c.h.b16 %v7649
  %v7857 = vunpack.c.l.b16 %v7650
  %v7858 = vunpack.c.h.b16 %v7650
  %v7859 = vpack.c.b16 %v7733, %v7731
  %v7860 = vpack.c.b16 %v7734, %v7732
  %v7861 = vpack.c.b16 %v7737, %v7735
  %v7862 = vpack.c.b16 %v7738, %v7736
  %v7863 = vpack.c.b16 %v7741, %v7739
  %v7864 = vpack.c.b16 %v7742, %v7740
  %v7865 = vpack.c.b16 %v7745, %v7743
  %v7866 = vpack.c.b16 %v7746, %v7744
  %v7867 = vpack.c.b16 %v7749, %v7747
  %v7868 = vpack.c.b16 %v7750, %v7748
  %v7869 = vpack.c.b16 %v7753, %v7751
  %v7870 = vpack.c.b16 %v7754, %v7752
  %v7871 = vpack.c.b16 %v7757, %v7755
  %v7872 = vpack.c.b16 %v7758, %v7756
  %v7873 = vpack.c.b16 %v7761, %v7759
  %v7874 = vpack.c.b16 %v7762, %v7760
  %v7875 = vpack.c.b16 %v7765, %v7763
  %v7876 = vpack.c.b16 %v7766, %v7764
  %v7877 = vpack.c.b16 %v7769, %v7767
  %v7878 = vpack.c.b16 %v7770, %v7768
  %v7879 = vpack.c.b16 %v7773, %v7771
  %v7880 = vpack.c.b16 %v7774, %v7772
  %v7881 = vpack.c.b16 %v7777, %v7775
  %v7882 = vpack.c.b16 %v7778, %v7776
  %v7883 = vpack.c.b16 %v7781, %v7779
  %v7884 = vpack.c.b16 %v7782, %v7780
  %v7885 = vpack.c.b16 %v7785, %v7783
  %v7886 = vpack.c.b16 %v7786, %v7784
  %v7887 = vpack.c.b16 %v7789, %v7787
  %v7888 = vpack.c.b16 %v7790, %v7788
  %v7889 = vpack.c.b16 %v7793, %v7791
  %v7890 = vpack.c.b16 %v7794, %v7792
  %v7891 = vpack.c.b16 %v7797, %v7795
  %v7892 = vpack.c.b16 %v7798, %v7796
  %v7893 = vpack.c.b16 %v7801, %v7799
  %v7894 = vpack.c.b16 %v7802, %v7800
  %v7895 = vpack.c.b16 %v7805, %v7803
  %v7896 = vpack.c.b16 %v7806, %v7804
  %v7897 = vpack.c.b16 %v7809, %v7807
  %v7898 = vpack.c.b16 %v7810, %v7808
  %v7899 = vpack.c.b16 %v7813, %v7811
  %v7900 = vpack.c.b16 %v7814, %v7812
  %v7901 = vpack.c.b16 %v7817, %v7815
  %v7902 = vpack.c.b16 %v7818, %v7816
  %v7903 = vpack.c.b16 %v7821, %v7819
  %v7904 = vpack.c.b16 %v7822, %v7820
  %v7905 = vpack.c.b16 %v7825, %v7823
  %v7906 = vpack.c.b16 %v7826, %v7824
  %v7907 = vpack.c.b16 %v7829, %v7827
  %v7908 = vpack.c.b16 %v7830, %v7828
  %v7909 = vpack.c.b16 %v7833, %v7831
  %v7910 = vpack.c.b16 %v7834, %v7832
  %v7911 = vpack.c.b16 %v7837, %v7835
  %v7912 = vpack.c.b16 %v7838, %v7836
  %v7913 = vpack.c.b16 %v7841, %v7839
  %v7914 = vpack.c.b16 %v7842, %v7840
  %v7915 = vpack.c.b16 %v7845, %v7843
  %v7916 = vpack.c.b16 %v7846, %v7844
  %v7917 = vpack.c.b16 %v7849, %v7847
  %v7918 = vpack.c.b16 %v7850, %v7848
  %v7919 = vpack.c.b16 %v7853, %v7851
  %v7920 = vpack.c.b16 %v7854, %v7852
  %v7921 = vpack.c.b16 %v7857, %v7855
  %v7922 = vpack.c.b16 %v7858, %v7856
  %7987 = vmatprep.subr.bf16.mxu0 %v7874
  %7988 = vmatpush1.bf16.msra.mxu0 %v7873
  %7989 = vmatprep.subr.bf16.mxu0 %v7872
  %7990 = vmatpush1.bf16.msra.mxu0 %v7871
  %7991 = vmatprep.subr.bf16.mxu0 %v7870
  %7992 = vmatpush1.bf16.msra.mxu0 %v7869
  %7993 = vmatprep.subr.bf16.mxu0 %v7868
  %7994 = vmatpush1.bf16.msra.mxu0 %v7867
  %7995 = vmatprep.subr.bf16.mxu0 %v7866
  %7996 = vmatpush1.bf16.msra.mxu0 %v7865
  %7997 = vmatprep.subr.bf16.mxu0 %v7864
  %7998 = vmatpush1.bf16.msra.mxu0 %v7863
  %7999 = vmatprep.subr.bf16.mxu0 %v7862
  %8000 = vmatpush1.bf16.msra.mxu0 %v7861
  %8001 = vmatprep.subr.bf16.mxu0 %v7860
  %8002 = vmatpush1.bf16.msra.mxu0 %v7859
  %8003 = vmatprep.subr.bf16.mxu0 %v7890
  %8004 = vmatpush2.bf16.msra.mxu0 %v7889
  %8005 = vmatprep.subr.bf16.mxu0 %v7888
  %8006 = vmatpush2.bf16.msra.mxu0 %v7887
  %8007 = vmatprep.subr.bf16.mxu0 %v7886
  %8008 = vmatpush2.bf16.msra.mxu0 %v7885
  %8009 = vmatprep.subr.bf16.mxu0 %v7884
  %8010 = vmatpush2.bf16.msra.mxu0 %v7883
  %8011 = vmatprep.subr.bf16.mxu0 %v7882
  %8012 = vmatpush2.bf16.msra.mxu0 %v7881
  %8013 = vmatprep.subr.bf16.mxu0 %v7880
  %8014 = vmatpush2.bf16.msra.mxu0 %v7879
  %8015 = vmatprep.subr.bf16.mxu0 %v7878
  %8016 = vmatpush2.bf16.msra.mxu0 %v7877
  %8017 = vmatprep.subr.bf16.mxu0 %v7876
  %8018 = vmatpush2.bf16.msra.mxu0 %v7875
  %8019 = vmatprep.mubr.bf16.mxu0 %v7653
  %8020 = vmatmul.mubr.bf16.gmra.mxu0 %v7652
  %v8021 = vpop.f32.mrf.mxu0
  %v8022 = vadd.f32 %v7660, %v8021
  %v8023 = vpop.f32.mrf.mxu0
  %v8024 = vadd.f32 %v7664, %v8023
  %v8025 = vpop.f32.mrf.mxu0
  %v8026 = vpop.f32.mrf.mxu0
  %8027 = vdwg.mxu0
  %8028 = vmatprep.subr.bf16.mxu0 %v7906
  %8029 = vmatpush1.bf16.msra.mxu0 %v7905
  %8030 = vmatprep.subr.bf16.mxu0 %v7904
  %8031 = vmatpush1.bf16.msra.mxu0 %v7903
  %8032 = vmatprep.subr.bf16.mxu0 %v7902
  %8033 = vmatpush1.bf16.msra.mxu0 %v7901
  %8034 = vmatprep.subr.bf16.mxu0 %v7900
  %8035 = vmatpush1.bf16.msra.mxu0 %v7899
  %8036 = vmatprep.subr.bf16.mxu0 %v7898
  %8037 = vmatpush1.bf16.msra.mxu0 %v7897
  %8038 = vmatprep.subr.bf16.mxu0 %v7896
  %8039 = vmatpush1.bf16.msra.mxu0 %v7895
  %8040 = vmatprep.subr.bf16.mxu0 %v7894
  %8041 = vmatpush1.bf16.msra.mxu0 %v7893
  %8042 = vmatprep.subr.bf16.mxu0 %v7892
  %8043 = vmatpush1.bf16.msra.mxu0 %v7891
  %8044 = vmatprep.subr.bf16.mxu0 %v7922
  %8045 = vmatpush2.bf16.msra.mxu0 %v7921
  %8046 = vmatprep.subr.bf16.mxu0 %v7920
  %8047 = vmatpush2.bf16.msra.mxu0 %v7919
  %8048 = vmatprep.subr.bf16.mxu0 %v7918
  %8049 = vmatpush2.bf16.msra.mxu0 %v7917
  %8050 = vmatprep.subr.bf16.mxu0 %v7916
  %8051 = vmatpush2.bf16.msra.mxu0 %v7915
  %8052 = vmatprep.subr.bf16.mxu0 %v7914
  %8053 = vmatpush2.bf16.msra.mxu0 %v7913
  %8054 = vmatprep.subr.bf16.mxu0 %v7912
  %8055 = vmatpush2.bf16.msra.mxu0 %v7911
  %8056 = vmatprep.subr.bf16.mxu0 %v7910
  %8057 = vmatpush2.bf16.msra.mxu0 %v7909
  %8058 = vmatprep.subr.bf16.mxu0 %v7908
  %8059 = vmatpush2.bf16.msra.mxu0 %v7907
  %8060 = vmatprep.mubr.bf16.mxu0 %v7655
  %8061 = vmatmul.mubr.bf16.gmra.mxu0 %v7654
  %v8062 = vpop.f32.mrf.mxu0
  %v8063 = vadd.f32 %v8022, %v8062
  %v8064 = vpop.f32.mrf.mxu0
  %v8065 = vadd.f32 %v8024, %v8064
  %v8066 = vpop.f32.mrf.mxu0
  %v8067 = vpop.f32.mrf.mxu0
  %8068 = vdwg.mxu0
  %v8071 = vcombine.low %v8063, %v8065
  %v8073 = vunpack.c.l.s4 1966171168
  %v8074 = vunpack.c.0.s8 %v8073
  %v8075 = vlaneseq
  %v8076 = vshrl.u32 %v8075, 7
  %v8077 = vsub.s32 %v8074, %v8076
  %v8078 = vrot.slane %v8071, %v8077
  %v8079 = vcombine.high %v8078, %v8078
  %v8081 = vunpack.c.l.s4 1966171168
  %v8082 = vunpack.c.0.s8 %v8081
  %v8083 = vlaneseq
  %v8084 = vshrl.u32 %v8083, 7
  %v8085 = vsub.s32 %v8082, %v8084
  %v8086 = vrot.slane %v8078, %v8085
  %v8088 = vunpack.c.l.s4 1966171168
  %v8089 = vunpack.c.0.s8 %v8088
  %v8090 = vlaneseq
  %v8091 = vshrl.u32 %v8090, 7
  %v8092 = vsub.s32 %v8089, %v8091
  %v8093 = vrot.slane %v8079, %v8092
  %v8096 = vlaneseq
  %vm8097 = vcmp.ge.s32.totalorder %v8096, 0
  %vm8098 = vcmp.lt.s32.totalorder %v8096, 256
  %vm8099 = vmand %vm8097, %vm8098
  %8100 = vst.msk [vmem:[%s19] sm:$0x3] %vm8099, %v8086
  %8101 = vst.msk [vmem:[%s19 + $0x2] sm:$0x3] %vm8099, %v8093
  // Predicated region
  $region78: #{avatar_poser_forward.1} parent=0 // pred_check
    _
  $region79: #{avatar_poser_forward.1} parent=0 // pred_check_branch
    %8103 = sbr.rel (0) target = $region81
  $region80: #{avatar_poser_forward.1} parent=0 // pred_region
    _
  $region81: #{avatar_poser_forward.1} parent=0 // pred_fallthru
    _
  // Predicated region
  $region82: #{avatar_poser_forward.1} parent=0 // pred_check
    _
  $region83: #{avatar_poser_forward.1} parent=0 // pred_check_branch
    %8105 = sbr.rel (0) target = $region85
  $region84: #{avatar_poser_forward.1} parent=0 // pred_region
    _
  $region85: #{avatar_poser_forward.1} parent=0 // pred_fallthru
    _

</llo_original>
